<compile_context>
chip_gen: v6e
topology: v6e:2x2x1
jax: 0.10.0
libtpu: 0.0.40
codegen_flags: <defaults>
</compile_context>

<pallas_src>
import functools

import jax
import jax.numpy as jnp
from jax.experimental import pallas as pl
from jax.experimental.pallas import tpu as pltpu


KPAD = 32        # im2col K (3*3*3 = 27) padded to a sublane-friendly 32
C_STEM = 24      # stem conv output channels
C_FEAT = 1280    # EfficientNetV2-M head-conv / classifier input width


# ----------------------------------------------------------------------------
# Per-generation tuning (perf-only; all paths are numerically valid everywhere)
# ----------------------------------------------------------------------------
def _device_kind():
    try:
        return jax.devices()[0].device_kind.lower()
    except Exception:
        return ""


_KIND = _device_kind()
_IS_V5E = ("v5 lite" in _KIND) or ("v5e" in _KIND) or ("v5litepod" in _KIND)
_IS_V7 = ("7x" in _KIND) or ("v7" in _KIND)
# bf16 EUP/VPU exist on v6e/v7x only; on v5e (or unknown) keep the gate in f32.
_BF16_GATE = (not _IS_V5E) and (("v6" in _KIND) or _IS_V7)
# v7x has 64 MiB physical VMEM (vs 128 MiB on v5e/v6e): cap the spatial tile
# lower and leave the default scoped-VMEM limit; raise it on the bigger chips.
_TILE_CAP = 1024 if _IS_V7 else 2048
_VMEM_LIMIT = None if _IS_V7 else (64 << 20)


def _full_spec(shape):
    """Whole-array BlockSpec for un-gridded calls."""
    return pl.BlockSpec(shape, lambda: (0,) * len(shape))


def _pick_tile(s, cap):
    """Largest power-of-two divisor of s that is <= cap (spatial M-tile)."""
    for t in (2048, 1024, 512, 256, 128, 64, 32, 16, 8):
        if t <= cap and s % t == 0:
            return t
    return s


def _silu(y, bf16_gate):
    """SiLU(y) = y*sigmoid(y) = 0.5*y*(1 + tanh(y/2)): one EUP push per element.

    With bf16_gate the tanh gate is computed in bf16 (2 elems / 32-bit sublane,
    ~2x EUP throughput on v6e/v7x); the value path stays f32.
    """
    if bf16_gate:
        g = jnp.tanh(y.astype(jnp.bfloat16) * 0.5)
        gate = 0.5 + 0.5 * g                      # stays bf16 (weak-typed consts)
    else:
        gate = 0.5 + 0.5 * jnp.tanh(y * 0.5)
    return y * gate                               # promotes back to f32


# ----------------------------------------------------------------------------
# Kernel 1: fused stem conv + 1x1 head conv + global average pool (accumulator)
# ----------------------------------------------------------------------------
def _stem_conv_gap_kernel(p_ref, ws_ref, bs_ref, wh_ref, bh_ref, o_ref,
                          acc_ref, *, inv_s, tile_s, bf16_gate):
    t = pl.program_id(2)

    @pl.when(t == 0)
    def _init():
        acc_ref[...] = jnp.zeros_like(acc_ref)

    patches = p_ref[0]                                   # (tile_s, KPAD) bf16
    # stem 3x3-s2 conv as matmul + SiLU; the lane-sparse 24-wide intermediate
    # never leaves vregs/VMEM (no masked vst.msk HBM stores).
    h = jnp.dot(patches, ws_ref[...],
                preferred_element_type=jnp.float32) + bs_ref[...]
    h = _silu(h, bf16_gate)
    # 1x1 head conv 24 -> 1280 + SiLU (this activation dominates EUP time).
    y = jnp.dot(h.astype(jnp.bfloat16), wh_ref[...],
                preferred_element_type=jnp.float32) + bh_ref[...]
    y = _silu(y, bf16_gate)                              # (tile_s, 1280) f32

    # Accumulate partial GAP sums into an (8, 1280) sublane-aligned accumulator:
    # the hot loop only does full-vreg VPU adds; the cross-sublane 8->1 reduce
    # happens once at finalize.
    if tile_s % 8 == 0:
        acc_ref[...] += jnp.sum(y.reshape(tile_s // 8, 8, C_FEAT), axis=0)
    else:  # fallback for odd spatial sizes (not hit when tiles are pow2)
        acc_ref[0:1, :] += jnp.sum(y, axis=0, keepdims=True)

    @pl.when(t == pl.num_programs(2) - 1)
    def _finalize():
        pooled = jnp.sum(acc_ref[...], axis=0, keepdims=True) * inv_s  # (1,1280)
        o_ref[...] = pooled.reshape(1, 1, 1, C_FEAT).astype(o_ref.dtype)


def fused_stem_conv_gap(patches, params):
    """patches: (B, S, KPAD) bf16 -> partial pooled feats (n_split, B, 1, 1280) f32.

    Each spatial split produces an independent partial mean (already scaled by
    1/S); summing over the split axis yields the full global-average-pooled
    feature vector. The split axis is marked "parallel" so v7x's two
    TensorCores both get work even at B == 1.
    """
    B, S, KP = patches.shape
    tile_s = _pick_tile(S, _TILE_CAP)
    n_t = S // tile_s
    n_split = 2 if (n_t >= 2 and n_t % 2 == 0) else 1
    tpb = n_t // n_split                                 # tiles per split
    inv_s = 1.0 / float(S)

    ws = params["stem_w"]                      # (KPAD, 24)  bf16
    bs = params["stem_b"].reshape(1, -1)       # (1, 24)     f32
    wh = params["hc_w"]                        # (24, 1280)  bf16
    bh = params["hc_b"].reshape(1, -1)         # (1, 1280)   f32

    kern = functools.partial(_stem_conv_gap_kernel, inv_s=inv_s,
                             tile_s=tile_s, bf16_gate=_BF16_GATE)

    cost = pl.CostEstimate(
        flops=2 * B * S * (KP * C_STEM + C_STEM * C_FEAT),
        transcendentals=B * S * (C_STEM + C_FEAT),           # 1 tanh / element
        bytes_accessed=(B * S * KP * 2                        # bf16 patches
                        + (KP * C_STEM + C_STEM * C_FEAT) * 2   # bf16 weights
                        + (C_STEM + C_FEAT) * 4                 # f32 biases
                        + n_split * B * C_FEAT * 4))            # f32 partials

    out = pl.pallas_call(
        kern,
        out_shape=jax.ShapeDtypeStruct((n_split, B, 1, C_FEAT), jnp.float32),
        grid_spec=pltpu.PrefetchScalarGridSpec(
            num_scalar_prefetch=0,
            grid=(n_split, B, tpb),
            in_specs=[
                pl.BlockSpec((1, tile_s, KP),
                             lambda p, b, t: (b, p * tpb + t, 0)),
                pl.BlockSpec(ws.shape, lambda p, b, t: (0, 0)),   # resident
                pl.BlockSpec(bs.shape, lambda p, b, t: (0, 0)),
                pl.BlockSpec(wh.shape, lambda p, b, t: (0, 0)),
                pl.BlockSpec(bh.shape, lambda p, b, t: (0, 0)),
            ],
            out_specs=pl.BlockSpec((1, 1, 1, C_FEAT),
                                   lambda p, b, t: (p, b, 0, 0)),
            scratch_shapes=[pltpu.VMEM((8, C_FEAT), jnp.float32)],
        ),
        compiler_params=pltpu.CompilerParams(
            dimension_semantics=("parallel", "parallel", "arbitrary"),
            vmem_limit_bytes=_VMEM_LIMIT),
        cost_estimate=cost,
    )(patches, ws, bs, wh, bh)
    return out                                            # (n_split, B, 1, 1280)


# ----------------------------------------------------------------------------
# Kernel 2: split-reduction + fused 4-layer classifier head (weight-DMA bound)
# ----------------------------------------------------------------------------
def _head_kernel(x_ref, w1, b1, w2, b2, w3, b3, w4, b4, o_ref):
    p_, b_, _, f_ = x_ref.shape
    # reduce the spatial-split partial GAP sums -> (B, 1280) pooled features
    feat = jnp.sum(x_ref[...], axis=0).reshape(b_, f_)
    h = feat.astype(jnp.bfloat16)
    # Linear(1280,512) -> Dropout(identity @ eval) -> ReLU
    h = jnp.dot(h, w1[...], preferred_element_type=jnp.float32) + b1[...]
    h = jnp.maximum(h, 0.0)
    # Linear(512,128) -> Dropout(identity @ eval)
    h = jnp.dot(h.astype(jnp.bfloat16), w2[...],
                preferred_element_type=jnp.float32) + b2[...]
    # Linear(128,64)
    h = jnp.dot(h.astype(jnp.bfloat16), w3[...],
                preferred_element_type=jnp.float32) + b3[...]
    # Linear(64,4)
    o_ref[...] = (jnp.dot(h.astype(jnp.bfloat16), w4[...],
                          preferred_element_type=jnp.float32)
                  + b4[...]).astype(o_ref.dtype)


def classifier_head(feat_parts, fc_params):
    """feat_parts: (n_split, B, 1, 1280) f32 -> logits (B, 4) f32."""
    # TODO(synk): M = batch is tiny (pads to 8 sublanes); the head is purely
    #             weight-DMA bound — batch multiple requests to fill sublanes.
    B = feat_parts.shape[1]
    (w1, b1), (w2, b2), (w3, b3), (w4, b4) = fc_params
    args = [feat_parts,
            w1, b1.reshape(1, -1),
            w2, b2.reshape(1, -1),
            w3, b3.reshape(1, -1),
            w4, b4.reshape(1, -1)]
    return pl.pallas_call(
        _head_kernel,
        out_shape=jax.ShapeDtypeStruct((B, 4), jnp.float32),
        in_specs=[_full_spec(a.shape) for a in args],
        out_specs=_full_spec((B, 4)),
    )(*args)


# ----------------------------------------------------------------------------
# Glue (plain JAX): im2col for the 3x3 stride-2 stem conv, K padded to 32
# ----------------------------------------------------------------------------
def im2col_3x3_s2(x_nhwc):
    B, H, W, C = x_nhwc.shape
    k, stride, pad = 3, 2, 1
    xp = jnp.pad(x_nhwc, ((0, 0), (pad, pad), (pad, pad), (0, 0)))
    Ho = (H + 2 * pad - k) // stride + 1
    Wo = (W + 2 * pad - k) // stride + 1
    patches = []
    for di in range(k):
        for dj in range(k):
            patches.append(
                xp[:, di:di + Ho * stride:stride, dj:dj + Wo * stride:stride, :])
    p = jnp.stack(patches, axis=-2)                      # (B, Ho, Wo, 9, C)
    p = p.reshape(B, Ho * Wo, k * k * C)                 # (B, S, 27)
    p = jnp.pad(p, ((0, 0), (0, 0), (0, KPAD - k * k * C)))   # pad K to 32
    return p, Ho, Wo


# ----------------------------------------------------------------------------
# Parameters (deterministic init) and forward pass
# ----------------------------------------------------------------------------
def init_params(key):
    ks = jax.random.split(key, 12)
    w = lambda k, shape, s: jax.random.normal(k, shape, jnp.float32) * s
    stem_w = w(ks[0], (27, C_STEM), 0.10)
    stem_w = jnp.pad(stem_w, ((0, KPAD - 27), (0, 0)))   # zero-pad to (32, 24)
    params = {
        # stem conv: 3x3 s2, 3 -> 24 channels (BN folded into bias), SiLU
        "stem_w": stem_w.astype(jnp.bfloat16),
        "stem_b": w(ks[1], (C_STEM,), 0.01),
        # 1x1 head conv: 24 -> 1280 channels, SiLU
        "hc_w": w(ks[2], (C_STEM, C_FEAT), 0.05).astype(jnp.bfloat16),
        "hc_b": w(ks[3], (C_FEAT,), 0.01),
        # custom classifier head (bf16 weights, f32 biases)
        "fc": [
            (w(ks[4], (1280, 512), 0.03).astype(jnp.bfloat16),
             w(ks[5], (512,), 0.01)),
            (w(ks[6], (512, 128), 0.05).astype(jnp.bfloat16),
             w(ks[7], (128,), 0.01)),
            (w(ks[8], (128, 64), 0.08).astype(jnp.bfloat16),
             w(ks[9], (64,), 0.01)),
            (w(ks[10], (64, 4), 0.12).astype(jnp.bfloat16),
             w(ks[11], (4,), 0.01)),
        ],
    }
    return params


def mynet_forward(img_nchw, params):
    # NCHW (PyTorch) -> NHWC for TPU lane-dense layouts
    x = jnp.transpose(img_nchw, (0, 2, 3, 1)).astype(jnp.float32)

    # Stem patches (im2col, K padded to 32), cast to bf16 to halve HBM traffic
    patches, Ho, Wo = im2col_3x3_s2(x)                   # (B, S, 32)
    patches = patches.astype(jnp.bfloat16)

    # TODO(synk): EfficientNetV2-M MBConv/FusedMBConv trunk elided (see header).

    # Fused stem conv + 1x1 head conv + global average pool (one Pallas kernel,
    # 2-way-parallel spatial split -> partial GAP sums)
    feat_parts = fused_stem_conv_gap(patches, params)    # (n_split, B, 1, 1280)

    # Split-reduction + custom classifier head (single fused Pallas kernel)
    return classifier_head(feat_parts, params["fc"])     # (B, 4)


if __name__ == "__main__":
    key = jax.random.PRNGKey(0)
    k_img, k_par = jax.random.split(key)

    img = jax.random.normal(k_img, (2, 3, 32, 32), dtype=jnp.float32)  # NCHW
    params = init_params(k_par)

    fwd = jax.jit(mynet_forward)
    out = fwd(img, params)
    out = jax.block_until_ready(out)

    assert out.shape == (2, 4) and out.dtype == jnp.float32
    assert bool(jnp.all(jnp.isfinite(out)))
    print("KERNEL_OK")
</pallas_src>

<mosaic_0001>
module attributes {stable_mosaic.version = 11 : i64} {
  func.func @_stem_conv_gap_kernel(%arg0: i32, %arg1: i32, %arg2: i32, %arg3: memref<1x256x32xbf16, #tpu.memory_space<vmem>>, %arg4: memref<32x24xbf16, #tpu.memory_space<vmem>>, %arg5: memref<1x24xf32, #tpu.memory_space<vmem>>, %arg6: memref<24x1280xbf16, #tpu.memory_space<vmem>>, %arg7: memref<1x1280xf32, #tpu.memory_space<vmem>>, %arg8: memref<1x1x1x1280xf32, #tpu.memory_space<vmem>>, %arg9: memref<8x1280xf32, #tpu.memory_space<vmem>>) attributes {dimension_semantics = [#tpu.dimension_semantics<parallel>, #tpu.dimension_semantics<parallel>, #tpu.dimension_semantics<arbitrary>], iteration_bounds = array<i64: 1, 2, 1>, scalar_prefetch = 0 : i64, scratch_operands = 1 : i64, tpu.core_type = #tpu.core_type<tc>, window_params = [{transform_indices = @transform_0, window_bounds = array<i64: 1, 256, 32>}, {pipeline_mode = #tpu.pipeline_mode<synchronous>, transform_indices = @transform_1, window_bounds = array<i64: 32, 24>}, {pipeline_mode = #tpu.pipeline_mode<synchronous>, transform_indices = @transform_2, window_bounds = array<i64: 1, 24>}, {pipeline_mode = #tpu.pipeline_mode<synchronous>, transform_indices = @transform_3, window_bounds = array<i64: 24, 1280>}, {pipeline_mode = #tpu.pipeline_mode<synchronous>, transform_indices = @transform_4, window_bounds = array<i64: 1, 1280>}, {transform_indices = @transform_5, window_bounds = array<i64: 1, 1, 1, 1280>}]} {
    %c0_i32 = arith.constant 0 : i32
    %0 = arith.cmpi eq, %arg2, %c0_i32 : i32
    %1 = arith.extui %0 : i1 to i32
    %c0_i32_0 = arith.constant 0 : i32
    %2 = arith.cmpi ne, %1, %c0_i32_0 : i32
    scf.if %2 {
      %cst_25 = arith.constant 0.000000e+00 : f32
      %40 = vector.broadcast %cst_25 : f32 to vector<8x1280xf32>
      %c0_26 = arith.constant 0 : index
      %c0_27 = arith.constant 0 : index
      %41 = vector.load %arg9[%c0_26, %c0_27] : memref<8x1280xf32, #tpu.memory_space<vmem>>, vector<8x1280xf32>
      tpu.vector_store %arg9[%c0_26, %c0_27], %40 {strides = array<i32>} : memref<8x1280xf32, #tpu.memory_space<vmem>>, vector<8x1280xf32>,
    } else {
    }
    %c0 = arith.constant 0 : index
    %c0_1 = arith.constant 0 : index
    %c0_2 = arith.constant 0 : index
    %3 = vector.load %arg3[%c0, %c0_1, %c0_2] : memref<1x256x32xbf16, #tpu.memory_space<vmem>>, vector<1x256x32xbf16>
    %4 = vector.shape_cast %3 : vector<1x256x32xbf16> to vector<256x32xbf16>
    %c0_3 = arith.constant 0 : index
    %c0_4 = arith.constant 0 : index
    %5 = vector.load %arg4[%c0_3, %c0_4] : memref<32x24xbf16, #tpu.memory_space<vmem>>, vector<32x24xbf16>
    %cst = arith.constant dense<0.000000e+00> : vector<256x24xf32>
    %6 = tpu.matmul %4, %5, %cst {dimension_numbers = #tpu.dot_dimension_numbers<[1], [0], [0], [1], [0, 0, 1, 1], [], []>} : vector<256x32xbf16>, vector<32x24xbf16>, vector<256x24xf32> -> vector<256x24xf32>
    %c0_5 = arith.constant 0 : index
    %c0_6 = arith.constant 0 : index
    %7 = vector.load %arg5[%c0_5, %c0_6] : memref<1x24xf32, #tpu.memory_space<vmem>>, vector<1x24xf32>
    %8 = vector.broadcast %7 : vector<1x24xf32> to vector<256x24xf32>
    %9 = arith.addf %6, %8 : vector<256x24xf32>
    %cst_7 = arith.constant 5.000000e-01 : f32
    %10 = vector.broadcast %cst_7 : f32 to vector<256x24xf32>
    %11 = arith.mulf %9, %10 : vector<256x24xf32>
    %12 = math.tanh %11 : vector<256x24xf32>
    %cst_8 = arith.constant 5.000000e-01 : f32
    %13 = vector.broadcast %cst_8 : f32 to vector<256x24xf32>
    %14 = arith.mulf %13, %12 : vector<256x24xf32>
    %cst_9 = arith.constant 5.000000e-01 : f32
    %15 = vector.broadcast %cst_9 : f32 to vector<256x24xf32>
    %16 = arith.addf %15, %14 : vector<256x24xf32>
    %17 = arith.mulf %9, %16 : vector<256x24xf32>
    %18 = arith.truncf %17 : vector<256x24xf32> to vector<256x24xbf16>
    %c0_10 = arith.constant 0 : index
    %c0_11 = arith.constant 0 : index
    %19 = vector.load %arg6[%c0_10, %c0_11] : memref<24x1280xbf16, #tpu.memory_space<vmem>>, vector<24x1280xbf16>
    %cst_12 = arith.constant dense<0.000000e+00> : vector<256x1280xf32>
    %20 = tpu.matmul %18, %19, %cst_12 {dimension_numbers = #tpu.dot_dimension_numbers<[1], [0], [0], [1], [0, 0, 1, 1], [], []>} : vector<256x24xbf16>, vector<24x1280xbf16>, vector<256x1280xf32> -> vector<256x1280xf32>
    %c0_13 = arith.constant 0 : index
    %c0_14 = arith.constant 0 : index
    %21 = vector.load %arg7[%c0_13, %c0_14] : memref<1x1280xf32, #tpu.memory_space<vmem>>, vector<1x1280xf32>
    %22 = vector.broadcast %21 : vector<1x1280xf32> to vector<256x1280xf32>
    %23 = arith.addf %20, %22 : vector<256x1280xf32>
    %cst_15 = arith.constant 5.000000e-01 : f32
    %24 = vector.broadcast %cst_15 : f32 to vector<256x1280xf32>
    %25 = arith.mulf %23, %24 : vector<256x1280xf32>
    %26 = math.tanh %25 : vector<256x1280xf32>
    %cst_16 = arith.constant 5.000000e-01 : f32
    %27 = vector.broadcast %cst_16 : f32 to vector<256x1280xf32>
    %28 = arith.mulf %27, %26 : vector<256x1280xf32>
    %cst_17 = arith.constant 5.000000e-01 : f32
    %29 = vector.broadcast %cst_17 : f32 to vector<256x1280xf32>
    %30 = arith.addf %29, %28 : vector<256x1280xf32>
    %31 = arith.mulf %23, %30 : vector<256x1280xf32>
    %c0_18 = arith.constant 0 : index
    %c0_19 = arith.constant 0 : index
    %32 = vector.load %arg9[%c0_18, %c0_19] : memref<8x1280xf32, #tpu.memory_space<vmem>>, vector<8x1280xf32>
    %33 = vector.shape_cast %31 : vector<256x1280xf32> to vector<32x8x1280xf32>
    %cst_20 = arith.constant dense<0.000000e+00> : vector<8x1280xf32>
    %34 = vector.multi_reduction <add>, %33, %cst_20 [0] : vector<32x8x1280xf32> to vector<8x1280xf32>
    %35 = arith.addf %32, %34 : vector<8x1280xf32>
    %c0_21 = arith.constant 0 : index
    %c0_22 = arith.constant 0 : index
    %36 = vector.load %arg9[%c0_21, %c0_22] : memref<8x1280xf32, #tpu.memory_space<vmem>>, vector<8x1280xf32>
    tpu.vector_store %arg9[%c0_21, %c0_22], %35 {strides = array<i32>} : memref<8x1280xf32, #tpu.memory_space<vmem>>, vector<8x1280xf32>,
    %c0_i32_23 = arith.constant 0 : i32
    %37 = arith.cmpi eq, %arg2, %c0_i32_23 : i32
    %38 = arith.extui %37 : i1 to i32
    %c0_i32_24 = arith.constant 0 : i32
    %39 = arith.cmpi ne, %38, %c0_i32_24 : i32
    scf.if %39 {
      %c0_25 = arith.constant 0 : index
      %c0_26 = arith.constant 0 : index
      %40 = vector.load %arg9[%c0_25, %c0_26] : memref<8x1280xf32, #tpu.memory_space<vmem>>, vector<8x1280xf32>
      %cst_27 = arith.constant dense<0.000000e+00> : vector<1280xf32>
      %41 = vector.multi_reduction <add>, %40, %cst_27 [0] : vector<8x1280xf32> to vector<1280xf32>
      %42 = vector.shape_cast %41 : vector<1280xf32> to vector<1x1280xf32>
      %cst_28 = arith.constant 3.906250e-03 : f32
      %43 = vector.broadcast %cst_28 : f32 to vector<1x1280xf32>
      %44 = arith.mulf %42, %43 : vector<1x1280xf32>
      %45 = vector.shape_cast %44 : vector<1x1280xf32> to vector<1x1x1x1280xf32>
      %c0_29 = arith.constant 0 : index
      %c0_30 = arith.constant 0 : index
      %c0_31 = arith.constant 0 : index
      %c0_32 = arith.constant 0 : index
      %46 = vector.load %arg8[%c0_29, %c0_30, %c0_31, %c0_32] : memref<1x1x1x1280xf32, #tpu.memory_space<vmem>>, vector<1x1x1x1280xf32>
      tpu.vector_store %arg8[%c0_29, %c0_30, %c0_31, %c0_32], %45 {strides = array<i32>} : memref<1x1x1x1280xf32, #tpu.memory_space<vmem>>, vector<1x1x1x1280xf32>,
    } else {
    }
    return
  }
  func.func @transform_0(%arg0: i32, %arg1: i32, %arg2: i32) -> (i32, i32, i32) {
    %c1_i32 = arith.constant 1 : i32
    %0 = arith.muli %arg0, %c1_i32 : i32
    %1 = arith.addi %0, %arg2 : i32
    %c0_i32 = arith.constant 0 : i32
    %c0_i32_0 = arith.constant 0 : i32
    return %arg1, %1, %c0_i32 : i32, i32, i32
  }
  func.func @transform_1(%arg0: i32, %arg1: i32, %arg2: i32) -> (i32, i32) {
    %c0_i32 = arith.constant 0 : i32
    %c0_i32_0 = arith.constant 0 : i32
    %c0_i32_1 = arith.constant 0 : i32
    return %c0_i32, %c0_i32_0 : i32, i32
  }
  func.func @transform_2(%arg0: i32, %arg1: i32, %arg2: i32) -> (i32, i32) {
    %c0_i32 = arith.constant 0 : i32
    %c0_i32_0 = arith.constant 0 : i32
    %c0_i32_1 = arith.constant 0 : i32
    return %c0_i32, %c0_i32_0 : i32, i32
  }
  func.func @transform_3(%arg0: i32, %arg1: i32, %arg2: i32) -> (i32, i32) {
    %c0_i32 = arith.constant 0 : i32
    %c0_i32_0 = arith.constant 0 : i32
    %c0_i32_1 = arith.constant 0 : i32
    return %c0_i32, %c0_i32_0 : i32, i32
  }
  func.func @transform_4(%arg0: i32, %arg1: i32, %arg2: i32) -> (i32, i32) {
    %c0_i32 = arith.constant 0 : i32
    %c0_i32_0 = arith.constant 0 : i32
    %c0_i32_1 = arith.constant 0 : i32
    return %c0_i32, %c0_i32_0 : i32, i32
  }
  func.func @transform_5(%arg0: i32, %arg1: i32, %arg2: i32) -> (i32, i32, i32, i32) {
    %c0_i32 = arith.constant 0 : i32
    %c0_i32_0 = arith.constant 0 : i32
    %c0_i32_1 = arith.constant 0 : i32
    return %arg0, %arg1, %c0_i32, %c0_i32_0 : i32, i32, i32, i32
  }
}

module attributes {stable_mosaic.version = 11 : i64} {
  func.func @_head_kernel(%arg0: memref<1x2x1x1280xf32, #tpu.memory_space<vmem>>, %arg1: memref<1280x512xbf16, #tpu.memory_space<vmem>>, %arg2: memref<1x512xf32, #tpu.memory_space<vmem>>, %arg3: memref<512x128xbf16, #tpu.memory_space<vmem>>, %arg4: memref<1x128xf32, #tpu.memory_space<vmem>>, %arg5: memref<128x64xbf16, #tpu.memory_space<vmem>>, %arg6: memref<1x64xf32, #tpu.memory_space<vmem>>, %arg7: memref<64x4xbf16, #tpu.memory_space<vmem>>, %arg8: memref<1x4xf32, #tpu.memory_space<vmem>>, %arg9: memref<2x4xf32, #tpu.memory_space<vmem>>) attributes {dimension_semantics = [], scalar_prefetch = 0 : i64, scratch_operands = 0 : i64, tpu.core_type = #tpu.core_type<tc>} {
    %c0 = arith.constant 0 : index
    %c0_0 = arith.constant 0 : index
    %c0_1 = arith.constant 0 : index
    %c0_2 = arith.constant 0 : index
    %0 = vector.load %arg0[%c0, %c0_0, %c0_1, %c0_2] : memref<1x2x1x1280xf32, #tpu.memory_space<vmem>>, vector<1x2x1x1280xf32>
    %cst = arith.constant dense<0.000000e+00> : vector<2x1x1280xf32>
    %1 = vector.multi_reduction <add>, %0, %cst [0] : vector<1x2x1x1280xf32> to vector<2x1x1280xf32>
    %2 = vector.shape_cast %1 : vector<2x1x1280xf32> to vector<2x1280xf32>
    %3 = arith.truncf %2 : vector<2x1280xf32> to vector<2x1280xbf16>
    %c0_3 = arith.constant 0 : index
    %c0_4 = arith.constant 0 : index
    %4 = vector.load %arg1[%c0_3, %c0_4] : memref<1280x512xbf16, #tpu.memory_space<vmem>>, vector<1280x512xbf16>
    %cst_5 = arith.constant dense<0.000000e+00> : vector<2x512xf32>
    %5 = tpu.matmul %3, %4, %cst_5 {dimension_numbers = #tpu.dot_dimension_numbers<[1], [0], [0], [1], [0, 0, 1, 1], [], []>} : vector<2x1280xbf16>, vector<1280x512xbf16>, vector<2x512xf32> -> vector<2x512xf32>
    %c0_6 = arith.constant 0 : index
    %c0_7 = arith.constant 0 : index
    %6 = vector.load %arg2[%c0_6, %c0_7] : memref<1x512xf32, #tpu.memory_space<vmem>>, vector<1x512xf32>
    %7 = vector.broadcast %6 : vector<1x512xf32> to vector<2x512xf32>
    %8 = arith.addf %5, %7 : vector<2x512xf32>
    %cst_8 = arith.constant 0.000000e+00 : f32
    %9 = vector.broadcast %cst_8 : f32 to vector<2x512xf32>
    %10 = arith.maximumf %8, %9 : vector<2x512xf32>
    %11 = arith.truncf %10 : vector<2x512xf32> to vector<2x512xbf16>
    %c0_9 = arith.constant 0 : index
    %c0_10 = arith.constant 0 : index
    %12 = vector.load %arg3[%c0_9, %c0_10] : memref<512x128xbf16, #tpu.memory_space<vmem>>, vector<512x128xbf16>
    %cst_11 = arith.constant dense<0.000000e+00> : vector<2x128xf32>
    %13 = tpu.matmul %11, %12, %cst_11 {dimension_numbers = #tpu.dot_dimension_numbers<[1], [0], [0], [1], [0, 0, 1, 1], [], []>} : vector<2x512xbf16>, vector<512x128xbf16>, vector<2x128xf32> -> vector<2x128xf32>
    %c0_12 = arith.constant 0 : index
    %c0_13 = arith.constant 0 : index
    %14 = vector.load %arg4[%c0_12, %c0_13] : memref<1x128xf32, #tpu.memory_space<vmem>>, vector<1x128xf32>
    %15 = vector.broadcast %14 : vector<1x128xf32> to vector<2x128xf32>
    %16 = arith.addf %13, %15 : vector<2x128xf32>
    %17 = arith.truncf %16 : vector<2x128xf32> to vector<2x128xbf16>
    %c0_14 = arith.constant 0 : index
    %c0_15 = arith.constant 0 : index
    %18 = vector.load %arg5[%c0_14, %c0_15] : memref<128x64xbf16, #tpu.memory_space<vmem>>, vector<128x64xbf16>
    %cst_16 = arith.constant dense<0.000000e+00> : vector<2x64xf32>
    %19 = tpu.matmul %17, %18, %cst_16 {dimension_numbers = #tpu.dot_dimension_numbers<[1], [0], [0], [1], [0, 0, 1, 1], [], []>} : vector<2x128xbf16>, vector<128x64xbf16>, vector<2x64xf32> -> vector<2x64xf32>
    %c0_17 = arith.constant 0 : index
    %c0_18 = arith.constant 0 : index
    %20 = vector.load %arg6[%c0_17, %c0_18] : memref<1x64xf32, #tpu.memory_space<vmem>>, vector<1x64xf32>
    %21 = vector.broadcast %20 : vector<1x64xf32> to vector<2x64xf32>
    %22 = arith.addf %19, %21 : vector<2x64xf32>
    %23 = arith.truncf %22 : vector<2x64xf32> to vector<2x64xbf16>
    %c0_19 = arith.constant 0 : index
    %c0_20 = arith.constant 0 : index
    %24 = vector.load %arg7[%c0_19, %c0_20] : memref<64x4xbf16, #tpu.memory_space<vmem>>, vector<64x4xbf16>
    %cst_21 = arith.constant dense<0.000000e+00> : vector<2x4xf32>
    %25 = tpu.matmul %23, %24, %cst_21 {dimension_numbers = #tpu.dot_dimension_numbers<[1], [0], [0], [1], [0, 0, 1, 1], [], []>} : vector<2x64xbf16>, vector<64x4xbf16>, vector<2x4xf32> -> vector<2x4xf32>
    %c0_22 = arith.constant 0 : index
    %c0_23 = arith.constant 0 : index
    %26 = vector.load %arg8[%c0_22, %c0_23] : memref<1x4xf32, #tpu.memory_space<vmem>>, vector<1x4xf32>
    %27 = vector.broadcast %26 : vector<1x4xf32> to vector<2x4xf32>
    %28 = arith.addf %25, %27 : vector<2x4xf32>
    %c0_24 = arith.constant 0 : index
    %c0_25 = arith.constant 0 : index
    %29 = vector.load %arg9[%c0_24, %c0_25] : memref<2x4xf32, #tpu.memory_space<vmem>>, vector<2x4xf32>
    tpu.vector_store %arg9[%c0_24, %c0_25], %28 {strides = array<i32>} : memref<2x4xf32, #tpu.memory_space<vmem>>, vector<2x4xf32>,
    return
  }
}

</mosaic_0001>

<llo_original>
// kernel: mynet_forward.2
$region0: #{mynet_forward.2}
  #allocation0 [shape = 'u32[]', space=smem, size = 0x4, offset = 0x4, fixed_abs, tag = 'smem constant byte address 0x4 - core index']
  #allocation1 [shape = 'u32[144,128]{1,0:T(1,128)}', space=vmem, size = 0x12000, scoped, tag = 'internal scratch']
  #allocation2 [shape = 'f32[8,1280]{1,0:T(8,128)}', space=vmem, size = 0xa000, scoped, tag = 'scratch operand']
  %s0 = inlined_call_operand.vmem [shape: bf16[2,256,32], index: 0, kind: input, shape index: {}]
  %s1 = inlined_call_operand.vmem [shape: bf16[32,24], index: 1, kind: input, shape index: {}]
  %s2 = inlined_call_operand.vmem [shape: f32[1,24], index: 2, kind: input, shape index: {}]
  %s3 = inlined_call_operand.vmem [shape: bf16[24,1280], index: 3, kind: input, shape index: {}]
  %s4 = inlined_call_operand.vmem [shape: f32[1,1280], index: 4, kind: input, shape index: {}]
  %s5 = inlined_call_operand.vmem [shape: f32[1,2,1,1280], index: 5, kind: output, shape index: {}]
  %s6 = sld [smem:[#allocation0]]
  $region61: #{mynet_forward.2} parent=0
    _
  %s8 = ssub.s32 1, %s6
  %s9 = scalar_select 0, %s8, %s6
  loop: start=0, step=1, limit=4
  $region2: #{mynet_forward.2} parent=0 // loop_pre_header
    _
  $region3: #{mynet_forward.2} parent=0 // loop_header
    %s11 = sphi 0, %s15
    %p12 = scmp.ge.s32.totalorder %s11, 4
    %s18 = sphi 0, %s37
    %s19 = sphi 0, %s33
    %s20 = sphi 0, %s29
    %s21 = sphi 0, %s18
    %s22 = sphi 0, %s19
    %s23 = sphi 0, %s20
    %s24 = sphi 0, %s21
    %s25 = sphi 0, %s22
    %s26 = sphi 0, %s23
    %s44 = sphi 0, %s46
    %s47 = sphi 0, %s44
    %s48 = sphi 0, %s47
    %s64 = sphi 0, %s48
    %s68 = sphi 0, %s68
    %s70 = sphi 0, %s68
    %s71 = sphi 0, %s70
    %s85 = sphi 0, %s71
    %s89 = sphi 0, %s89
    %s91 = sphi 0, %s89
    %s92 = sphi 0, %s91
    %s106 = sphi 0, %s92
    %s110 = sphi 0, %s110
    %s112 = sphi 0, %s110
    %s113 = sphi 0, %s112
    %s127 = sphi 0, %s113
    %s131 = sphi 0, %s131
    %s133 = sphi 0, %s131
    %s134 = sphi 0, %s133
    %s148 = sphi 0, %s134
    %s156 = sphi 0, %s158
    %s159 = sphi 0, %s156
    %s160 = sphi 0, %s159
    %s176 = sphi 0, %s160
  $region4: #{mynet_forward.2} parent=0 // loop_header_branch
    %14 = sbr.rel (%p12) target = $region8
  $region5: #{mynet_forward.2} parent=0 // loop_body
    %s16 = ssub.s32 %s11, 1
    %s17 = ssub.s32 %s11, 2
    %s27 = sadd.s32 1, %s20
    %p28 = scmp.ge.s32.totalorder %s27, 1
    %s29 = scalar_select %p28, 0, %s27
    %s30 = sadd.s32 1, %s19
    %s31 = scalar_select %p28, %s30, %s19
    %p32 = scmp.ge.s32.totalorder %s31, 2
    %s33 = scalar_select %p32, 0, %s31
    %s34 = sadd.s32 1, %s18
    %s35 = scalar_select %p32, %s34, %s18
    %p36 = scmp.ge.s32.totalorder %s35, 1
    %s37 = scalar_select %p36, 0, %s35
    %s38 = sadd.s32 %s18, %s20
    %s39 = sadd.s32 %s37, %s29
    %s40 = ssub.s32 %s19, %s33
    %s41 = ssub.s32 %s38, %s39
    %s42 = sor.u32 %s40, %s41
    %p43 = scmp.eq.s32.totalorder %s42, 0
    %s45 = sadd.s32 %s44, 1
    %s46 = scalar_select %p43, %s44, %s45
    %p49 = pneg %p43
    %p50 = scmp.eq.s32.totalorder %s11, 1
    %p51 = por %p49, %p50
    %p52 = scmp.ne.s32.totalorder %s44, %s47
    %p53 = scmp.eq.s32.totalorder %s11, 0
    %p54 = por %p52, %p53
    %p55 = scmp.ne.s32.totalorder %s44, %s47
    %p56 = scmp.eq.s32.totalorder %s16, 1
    %p57 = por %p55, %p56
    %p58 = scmp.ne.s32.totalorder %s47, %s48
    %p59 = scmp.eq.s32.totalorder %s16, 0
    %p60 = por %p58, %p59
    %p61 = scmp.ne.s32.totalorder %s47, %s48
    %p62 = scmp.eq.s32.totalorder %s17, 1
    %p63 = por %p61, %p62
    %p65 = scmp.ne.s32.totalorder %s48, %s64
    %p66 = scmp.eq.s32.totalorder %s17, 0
    %p67 = por %p65, %p66
    %s69 = sadd.s32 %s68, 1
    %p72 = scmp.eq.s32.totalorder %s11, 1
    %p73 = scmp.ne.s32.totalorder %s68, %s70
    %p74 = scmp.eq.s32.totalorder %s11, 0
    %p75 = por %p73, %p74
    %p76 = scmp.ne.s32.totalorder %s68, %s70
    %p77 = scmp.eq.s32.totalorder %s16, 1
    %p78 = por %p76, %p77
    %p79 = scmp.ne.s32.totalorder %s70, %s71
    %p80 = scmp.eq.s32.totalorder %s16, 0
    %p81 = por %p79, %p80
    %p82 = scmp.ne.s32.totalorder %s70, %s71
    %p83 = scmp.eq.s32.totalorder %s17, 1
    %p84 = por %p82, %p83
    %p86 = scmp.ne.s32.totalorder %s71, %s85
    %p87 = scmp.eq.s32.totalorder %s17, 0
    %p88 = por %p86, %p87
    %s90 = sadd.s32 %s89, 1
    %p93 = scmp.eq.s32.totalorder %s11, 1
    %p94 = scmp.ne.s32.totalorder %s89, %s91
    %p95 = scmp.eq.s32.totalorder %s11, 0
    %p96 = por %p94, %p95
    %p97 = scmp.ne.s32.totalorder %s89, %s91
    %p98 = scmp.eq.s32.totalorder %s16, 1
    %p99 = por %p97, %p98
    %p100 = scmp.ne.s32.totalorder %s91, %s92
    %p101 = scmp.eq.s32.totalorder %s16, 0
    %p102 = por %p100, %p101
    %p103 = scmp.ne.s32.totalorder %s91, %s92
    %p104 = scmp.eq.s32.totalorder %s17, 1
    %p105 = por %p103, %p104
    %p107 = scmp.ne.s32.totalorder %s92, %s106
    %p108 = scmp.eq.s32.totalorder %s17, 0
    %p109 = por %p107, %p108
    %s111 = sadd.s32 %s110, 1
    %p114 = scmp.eq.s32.totalorder %s11, 1
    %p115 = scmp.ne.s32.totalorder %s110, %s112
    %p116 = scmp.eq.s32.totalorder %s11, 0
    %p117 = por %p115, %p116
    %p118 = scmp.ne.s32.totalorder %s110, %s112
    %p119 = scmp.eq.s32.totalorder %s16, 1
    %p120 = por %p118, %p119
    %p121 = scmp.ne.s32.totalorder %s112, %s113
    %p122 = scmp.eq.s32.totalorder %s16, 0
    %p123 = por %p121, %p122
    %p124 = scmp.ne.s32.totalorder %s112, %s113
    %p125 = scmp.eq.s32.totalorder %s17, 1
    %p126 = por %p124, %p125
    %p128 = scmp.ne.s32.totalorder %s113, %s127
    %p129 = scmp.eq.s32.totalorder %s17, 0
    %p130 = por %p128, %p129
    %s132 = sadd.s32 %s131, 1
    %p135 = scmp.eq.s32.totalorder %s11, 1
    %p136 = scmp.ne.s32.totalorder %s131, %s133
    %p137 = scmp.eq.s32.totalorder %s11, 0
    %p138 = por %p136, %p137
    %p139 = scmp.ne.s32.totalorder %s131, %s133
    %p140 = scmp.eq.s32.totalorder %s16, 1
    %p141 = por %p139, %p140
    %p142 = scmp.ne.s32.totalorder %s133, %s134
    %p143 = scmp.eq.s32.totalorder %s16, 0
    %p144 = por %p142, %p143
    %p145 = scmp.ne.s32.totalorder %s133, %s134
    %p146 = scmp.eq.s32.totalorder %s17, 1
    %p147 = por %p145, %p146
    %p149 = scmp.ne.s32.totalorder %s134, %s148
    %p150 = scmp.eq.s32.totalorder %s17, 0
    %p151 = por %p149, %p150
    %s152 = ssub.s32 %s18, %s37
    %s153 = ssub.s32 %s19, %s33
    %s154 = sor.u32 %s152, %s153
    %p155 = scmp.eq.s32.totalorder %s154, 0
    %s157 = sadd.s32 %s156, 1
    %s158 = scalar_select %p155, %s156, %s157
    %p161 = pneg %p155
    %p162 = scmp.eq.s32.totalorder %s11, 1
    %p163 = por %p161, %p162
    %p164 = scmp.ne.s32.totalorder %s156, %s159
    %p165 = scmp.eq.s32.totalorder %s11, 0
    %p166 = por %p164, %p165
    %p167 = scmp.ne.s32.totalorder %s156, %s159
    %p168 = scmp.eq.s32.totalorder %s16, 1
    %p169 = por %p167, %p168
    %p170 = scmp.ne.s32.totalorder %s159, %s160
    %p171 = scmp.eq.s32.totalorder %s16, 0
    %p172 = por %p170, %p171
    %p173 = scmp.ne.s32.totalorder %s159, %s160
    %p174 = scmp.eq.s32.totalorder %s17, 1
    %p175 = por %p173, %p174
    %p177 = scmp.ne.s32.totalorder %s160, %s176
    %p178 = scmp.eq.s32.totalorder %s17, 0
    %p179 = por %p177, %p178
    %p180 = scmp.le.s32.totalorder 1, %s11
    %p181 = scmp.lt.s32.totalorder %s11, 3
    %p182 = pnand %p180, %p181
    %p183 = pneg %p182
    // Predicated region
    $region9: #{mynet_forward.2} parent=5 // pred_check
      _
    $region10: #{mynet_forward.2} parent=5 // pred_check_branch
      %185 = sbr.rel (%p182) target = $region12
    $region11: #{mynet_forward.2} parent=5 // pred_region
      %s186 = ssub.s32 %s11, 1
      // Predicated region
      $region13: #{mynet_forward.2} parent=11 // pred_check
        %p187 = pneg %p81
      $region14: #{mynet_forward.2} parent=11 // pred_check_branch
        %189 = sbr.rel (%p187) target = $region16
      $region15: #{mynet_forward.2} parent=11 // pred_region
        _
      $region16: #{mynet_forward.2} parent=11 // pred_fallthru
        _
      // Predicated region
      $region17: #{mynet_forward.2} parent=11 // pred_check
        %p190 = pneg %p102
      $region18: #{mynet_forward.2} parent=11 // pred_check_branch
        %192 = sbr.rel (%p190) target = $region20
      $region19: #{mynet_forward.2} parent=11 // pred_region
        _
      $region20: #{mynet_forward.2} parent=11 // pred_fallthru
        _
      // Predicated region
      $region21: #{mynet_forward.2} parent=11 // pred_check
        %p193 = pneg %p123
      $region22: #{mynet_forward.2} parent=11 // pred_check_branch
        %195 = sbr.rel (%p193) target = $region24
      $region23: #{mynet_forward.2} parent=11 // pred_region
        _
      $region24: #{mynet_forward.2} parent=11 // pred_fallthru
        _
      // Predicated region
      $region25: #{mynet_forward.2} parent=11 // pred_check
        %p196 = pneg %p144
      $region26: #{mynet_forward.2} parent=11 // pred_check_branch
        %198 = sbr.rel (%p196) target = $region28
      $region27: #{mynet_forward.2} parent=11 // pred_region
        _
      $region28: #{mynet_forward.2} parent=11 // pred_fallthru
        _
    $region12: #{mynet_forward.2} parent=5 // pred_fallthru
      _
    %p199 = scmp.lt.s32.totalorder %s11, 2
    // Predicated region
    $region29: #{mynet_forward.2} parent=5 // pred_check
      %p200 = pneg %p199
    $region30: #{mynet_forward.2} parent=5 // pred_check_branch
      %202 = sbr.rel (%p200) target = $region32
    $region31: #{mynet_forward.2} parent=5 // pred_region
      // Predicated region
      $region33: #{mynet_forward.2} parent=31 // pred_check
        %p203 = pneg %p54
      $region34: #{mynet_forward.2} parent=31 // pred_check_branch
        %205 = sbr.rel (%p203) target = $region36
      $region35: #{mynet_forward.2} parent=31 // pred_region
        %s206 = sadd.s32 %s18, %s20
        %s207 = smul.u32 32, %s206
        %p208 = scmp.lt.s32.totalorder %s19, 1
        %s209 = scalar_select %p208, %s19, 1
        %p210 = scmp.lt.s32.totalorder %s207, 31
        %s211 = scalar_select %p210, %s207, 31
        %s212 = smul.addr %s209, 32
        %s213 = sadd.s32 %s211, %s212
        %s214 = smul.addr %s213, 4
        %s215 = scalar_lea.vmem %s0, %s214
        %s216 = sadd.s32 %s18, %s20
        %s217 = smul.u32 32, %s216
      $region36: #{mynet_forward.2} parent=31 // pred_fallthru
        _
    $region32: #{mynet_forward.2} parent=5 // pred_fallthru
      _
    %p218 = scmp.le.s32.totalorder 1, %s11
    %p219 = scmp.lt.s32.totalorder %s11, 3
    %p220 = pnand %p218, %p219
    %p221 = pneg %p220
    // Predicated region
    $region37: #{mynet_forward.2} parent=5 // pred_check
      _
    $region38: #{mynet_forward.2} parent=5 // pred_check_branch
      %223 = sbr.rel (%p220) target = $region40
    $region39: #{mynet_forward.2} parent=5 // pred_region
      %s224 = ssub.s32 %s11, 1
      %s225 = sadd.s32 %s21, %s23
      %s226 = smul.u32 32, %s225
      %p227 = scmp.lt.s32.totalorder %s22, 1
      %s228 = scalar_select %p227, %s22, 1
      %p229 = scmp.lt.s32.totalorder %s226, 31
      %s230 = scalar_select %p229, %s226, 31
      %s231 = smul.addr %s228, 32
      %s232 = sadd.s32 %s230, %s231
      %s233 = smul.addr %s232, 4
      %s234 = scalar_lea.vmem %s0, %s233
      %p235 = pneg %p60
      %p236 = pneg %p57
      %p237 = pneg %p81
      %p238 = pneg %p78
      %p239 = pneg %p102
      %p240 = pneg %p99
      %p241 = pneg %p123
      %p242 = pneg %p120
      %p243 = pneg %p144
      %p244 = pneg %p141
      %p245 = pneg %p172
      %p246 = pneg %p169
      %p247 = scmp.lt.s32.totalorder %s21, 0
      %s248 = scalar_select %p247, %s21, 0
      %p249 = scmp.lt.s32.totalorder %s22, 1
      %s250 = scalar_select %p249, %s22, 1
      %s251 = smul.addr %s250, 10
      %s252 = smul.addr %s248, 20
      %s253 = sadd.s32 %s251, %s252
      %s254 = scalar_lea.vmem %s5, %s253
      %s255 = sadd.s32 %s21, %s23
      %s256 = smul.u32 32, %s255
      %p257 = scmp.lt.s32.totalorder %s22, 1
      %s258 = scalar_select %p257, %s22, 1
      %p259 = scmp.lt.s32.totalorder %s256, 31
      %s260 = scalar_select %p259, %s256, 31
      %s261 = smul.addr %s258, 32
      %s262 = sadd.s32 %s260, %s261
      %s263 = smul.addr %s262, 4
      %s264 = scalar_lea.vmem %s0, %s263
      %s265 = sadd.s32 %s21, %s23
      %s266 = smul.u32 32, %s265
      %p267 = scmp.lt.s32.totalorder %s21, 0
      %s268 = scalar_select %p267, %s21, 0
      %p269 = scmp.lt.s32.totalorder %s22, 1
      %s270 = scalar_select %p269, %s22, 1
      %s271 = smul.addr %s270, 10
      %s272 = smul.addr %s268, 20
      %s273 = sadd.s32 %s271, %s272
      %s274 = scalar_lea.vmem %s5, %s273
      %p276 = scmp.eq.s32.totalorder %s23, 0
      // Predicated region
      $region41: #{mynet_forward.2} parent=39 // pred_check
        %p277 = pneg %p276
      $region42: #{mynet_forward.2} parent=39 // pred_check_branch
        %279 = sbr.rel (%p277) target = $region44
      $region43: #{mynet_forward.2} parent=39 // pred_region
        %280 = vst [vmem:[#allocation2] sm:$0xff] 0.0
        %281 = vst [vmem:[#allocation2 + $0x8] sm:$0xff] 0.0
        %282 = vst [vmem:[#allocation2 + $0x10] sm:$0xff] 0.0
        %283 = vst [vmem:[#allocation2 + $0x18] sm:$0xff] 0.0
        %284 = vst [vmem:[#allocation2 + $0x20] sm:$0xff] 0.0
        %285 = vst [vmem:[#allocation2 + $0x28] sm:$0xff] 0.0
        %286 = vst [vmem:[#allocation2 + $0x30] sm:$0xff] 0.0
        %287 = vst [vmem:[#allocation2 + $0x38] sm:$0xff] 0.0
        %288 = vst [vmem:[#allocation2 + $0x40] sm:$0xff] 0.0
        %289 = vst [vmem:[#allocation2 + $0x48] sm:$0xff] 0.0
      $region44: #{mynet_forward.2} parent=39 // pred_fallthru
        _
      %v290 = vld [vmem:[%s264] sm:$0xf]
      %v291 = vld [vmem:[%s264 + $0x4] sm:$0xf]
      %v292 = vld [vmem:[%s264 + $0x8] sm:$0xf]
      %v293 = vld [vmem:[%s264 + $0xc] sm:$0xf]
      %v294 = vld [vmem:[%s264 + $0x10] sm:$0xf]
      %v295 = vld [vmem:[%s264 + $0x14] sm:$0xf]
      %v296 = vld [vmem:[%s264 + $0x18] sm:$0xf]
      %v297 = vld [vmem:[%s264 + $0x1c] sm:$0xf]
      %v298 = vld [vmem:[%s264 + $0x20] sm:$0xf]
      %v299 = vld [vmem:[%s264 + $0x24] sm:$0xf]
      %v300 = vld [vmem:[%s264 + $0x28] sm:$0xf]
      %v301 = vld [vmem:[%s264 + $0x2c] sm:$0xf]
      %v302 = vld [vmem:[%s264 + $0x30] sm:$0xf]
      %v303 = vld [vmem:[%s264 + $0x34] sm:$0xf]
      %v304 = vld [vmem:[%s264 + $0x38] sm:$0xf]
      %v305 = vld [vmem:[%s264 + $0x3c] sm:$0xf]
      %v306 = vld [vmem:[%s264 + $0x40] sm:$0xf]
      %v307 = vld [vmem:[%s264 + $0x44] sm:$0xf]
      %v308 = vld [vmem:[%s264 + $0x48] sm:$0xf]
      %v309 = vld [vmem:[%s264 + $0x4c] sm:$0xf]
      %v310 = vld [vmem:[%s264 + $0x50] sm:$0xf]
      %v311 = vld [vmem:[%s264 + $0x54] sm:$0xf]
      %v312 = vld [vmem:[%s264 + $0x58] sm:$0xf]
      %v313 = vld [vmem:[%s264 + $0x5c] sm:$0xf]
      %v314 = vld [vmem:[%s264 + $0x60] sm:$0xf]
      %v315 = vld [vmem:[%s264 + $0x64] sm:$0xf]
      %v316 = vld [vmem:[%s264 + $0x68] sm:$0xf]
      %v317 = vld [vmem:[%s264 + $0x6c] sm:$0xf]
      %v318 = vld [vmem:[%s264 + $0x70] sm:$0xf]
      %v319 = vld [vmem:[%s264 + $0x74] sm:$0xf]
      %v320 = vld [vmem:[%s264 + $0x78] sm:$0xf]
      %v321 = vld [vmem:[%s264 + $0x7c] sm:$0xf]
      %v322 = vld [vmem:[%s1] sm:$0xf]
      %v323 = vld [vmem:[%s1 + $0x4] sm:$0xf]
      %v324 = vld [vmem:[%s1 + $0x8] sm:$0xf]
      %v325 = vld [vmem:[%s1 + $0xc] sm:$0xf]
      %v326 = vld [vmem:[%s2] sm:$0x1]
      %v328 = vlaneseq
      %v329 = vshrl.u32 %v328, 7
      %v330 = vsub.s32 0, %v329
      %v331 = vrot.slane %v326, %v330
      %v365 = vunpack.c.l.b16 %v290
      %v366 = vunpack.c.l.b16 %v291
      %v367 = vunpack.c.l.b16 %v292
      %v368 = vunpack.c.l.b16 %v293
      %v369 = vunpack.c.l.b16 %v294
      %v370 = vunpack.c.l.b16 %v295
      %v371 = vunpack.c.l.b16 %v296
      %v372 = vunpack.c.l.b16 %v297
      %v373 = vunpack.c.l.b16 %v298
      %v374 = vunpack.c.l.b16 %v299
      %v375 = vunpack.c.l.b16 %v300
      %v376 = vunpack.c.l.b16 %v301
      %v377 = vunpack.c.l.b16 %v302
      %v378 = vunpack.c.l.b16 %v303
      %v379 = vunpack.c.l.b16 %v304
      %v380 = vunpack.c.l.b16 %v305
      %v381 = vunpack.c.l.b16 %v306
      %v382 = vunpack.c.l.b16 %v307
      %v383 = vunpack.c.l.b16 %v308
      %v384 = vunpack.c.l.b16 %v309
      %v385 = vunpack.c.l.b16 %v310
      %v386 = vunpack.c.l.b16 %v311
      %v387 = vunpack.c.l.b16 %v312
      %v388 = vunpack.c.l.b16 %v313
      %v389 = vunpack.c.l.b16 %v314
      %v390 = vunpack.c.l.b16 %v315
      %v391 = vunpack.c.l.b16 %v316
      %v392 = vunpack.c.l.b16 %v317
      %v393 = vunpack.c.l.b16 %v318
      %v394 = vunpack.c.l.b16 %v319
      %v395 = vunpack.c.l.b16 %v320
      %v396 = vunpack.c.l.b16 %v321
      %v397 = vpack.c.b16 %v366, %v365
      %v398 = vpack.c.b16 %v368, %v367
      %v399 = vpack.c.b16 %v370, %v369
      %v400 = vpack.c.b16 %v372, %v371
      %v401 = vpack.c.b16 %v374, %v373
      %v402 = vpack.c.b16 %v376, %v375
      %v403 = vpack.c.b16 %v378, %v377
      %v404 = vpack.c.b16 %v380, %v379
      %v405 = vpack.c.b16 %v382, %v381
      %v406 = vpack.c.b16 %v384, %v383
      %v407 = vpack.c.b16 %v386, %v385
      %v408 = vpack.c.b16 %v388, %v387
      %v409 = vpack.c.b16 %v390, %v389
      %v410 = vpack.c.b16 %v392, %v391
      %v411 = vpack.c.b16 %v394, %v393
      %v412 = vpack.c.b16 %v396, %v395
      %v417 = vunpack.c.l.b16 %v322
      %v418 = vunpack.c.l.b16 %v323
      %v419 = vunpack.c.l.b16 %v324
      %v420 = vunpack.c.l.b16 %v325
      %v421 = vpack.c.b16 %v418, %v417
      %v422 = vpack.c.b16 %v420, %v419
      %vm425 = vcmask 261120
      %v427 = vsel %vm425, %v397, 0
      %v430 = vsel %vm425, %v398, 0
      %v433 = vsel %vm425, %v399, 0
      %v436 = vsel %vm425, %v400, 0
      %v439 = vsel %vm425, %v401, 0
      %v442 = vsel %vm425, %v402, 0
      %v445 = vsel %vm425, %v403, 0
      %v448 = vsel %vm425, %v404, 0
      %v451 = vsel %vm425, %v405, 0
      %v454 = vsel %vm425, %v406, 0
      %v457 = vsel %vm425, %v407, 0
      %v460 = vsel %vm425, %v408, 0
      %v463 = vsel %vm425, %v409, 0
      %v466 = vsel %vm425, %v410, 0
      %v469 = vsel %vm425, %v411, 0
      %v472 = vsel %vm425, %v412, 0
      %474 = vmatprep.subr.bf16.mxu0 0
      %475 = vmatpush1.bf16.msra.mxu0 0
      %476 = vmatprep.subr.bf16.mxu0 0
      %477 = vmatpush1.bf16.msra.mxu0 0
      %478 = vmatprep.subr.bf16.mxu0 0
      %479 = vmatpush1.bf16.msra.mxu0 0
      %480 = vmatprep.subr.bf16.mxu0 0
      %481 = vmatpush1.bf16.msra.mxu0 0
      %482 = vmatprep.subr.bf16.mxu0 0
      %483 = vmatpush1.bf16.msra.mxu0 0
      %484 = vmatprep.subr.bf16.mxu0 0
      %485 = vmatpush1.bf16.msra.mxu0 0
      %486 = vmatprep.subr.bf16.mxu0 0
      %487 = vmatpush1.bf16.msra.mxu0 %v422
      %488 = vmatprep.subr.bf16.mxu0 0
      %489 = vmatpush1.bf16.msra.mxu0 %v421
      %490 = vmatprep.subr.bf16.mxu0 0
      %491 = vmatpush2.bf16.msra.mxu0 0
      %492 = vmatprep.subr.bf16.mxu0 0
      %493 = vmatpush2.bf16.msra.mxu0 0
      %494 = vmatprep.subr.bf16.mxu0 0
      %495 = vmatpush2.bf16.msra.mxu0 0
      %496 = vmatprep.subr.bf16.mxu0 0
      %497 = vmatpush2.bf16.msra.mxu0 0
      %498 = vmatprep.subr.bf16.mxu0 0
      %499 = vmatpush2.bf16.msra.mxu0 0
      %500 = vmatprep.subr.bf16.mxu0 0
      %501 = vmatpush2.bf16.msra.mxu0 0
      %502 = vmatprep.subr.bf16.mxu0 0
      %503 = vmatpush2.bf16.msra.mxu0 0
      %504 = vmatprep.subr.bf16.mxu0 0
      %505 = vmatpush2.bf16.msra.mxu0 0
      %506 = vmatprep.mubr.bf16.mxu0 0
      %507 = vmatmul.mubr.bf16.gmra.mxu0 %v427
      %v508 = vpop.f32.mrf.mxu0
      %v509 = vadd.f32 %v331, %v508
      %v510 = vpop.f32.mrf.mxu0
      %v511 = vpop.f32.mrf.mxu0
      %v512 = vadd.f32 %v331, %v511
      %v513 = vpop.f32.mrf.mxu0
      %514 = vmatprep.mubr.bf16.mxu0 0
      %515 = vmatmul.mubr.bf16.gmra.mxu0 %v430
      %v516 = vpop.f32.mrf.mxu0
      %v517 = vadd.f32 %v331, %v516
      %v518 = vpop.f32.mrf.mxu0
      %v519 = vpop.f32.mrf.mxu0
      %v520 = vadd.f32 %v331, %v519
      %v521 = vpop.f32.mrf.mxu0
      %522 = vmatprep.mubr.bf16.mxu0 0
      %523 = vmatmul.mubr.bf16.gmra.mxu0 %v433
      %v524 = vpop.f32.mrf.mxu0
      %v525 = vadd.f32 %v331, %v524
      %v526 = vpop.f32.mrf.mxu0
      %v527 = vpop.f32.mrf.mxu0
      %v528 = vadd.f32 %v331, %v527
      %v529 = vpop.f32.mrf.mxu0
      %530 = vmatprep.mubr.bf16.mxu0 0
      %531 = vmatmul.mubr.bf16.gmra.mxu0 %v436
      %v532 = vpop.f32.mrf.mxu0
      %v533 = vadd.f32 %v331, %v532
      %v534 = vpop.f32.mrf.mxu0
      %v535 = vpop.f32.mrf.mxu0
      %v536 = vadd.f32 %v331, %v535
      %v537 = vpop.f32.mrf.mxu0
      %538 = vmatprep.mubr.bf16.mxu0 0
      %539 = vmatmul.mubr.bf16.gmra.mxu0 %v439
      %v540 = vpop.f32.mrf.mxu0
      %v541 = vadd.f32 %v331, %v540
      %v542 = vpop.f32.mrf.mxu0
      %v543 = vpop.f32.mrf.mxu0
      %v544 = vadd.f32 %v331, %v543
      %v545 = vpop.f32.mrf.mxu0
      %546 = vmatprep.mubr.bf16.mxu0 0
      %547 = vmatmul.mubr.bf16.gmra.mxu0 %v442
      %v548 = vpop.f32.mrf.mxu0
      %v549 = vadd.f32 %v331, %v548
      %v550 = vpop.f32.mrf.mxu0
      %v551 = vpop.f32.mrf.mxu0
      %v552 = vadd.f32 %v331, %v551
      %v553 = vpop.f32.mrf.mxu0
      %554 = vmatprep.mubr.bf16.mxu0 0
      %555 = vmatmul.mubr.bf16.gmra.mxu0 %v445
      %v556 = vpop.f32.mrf.mxu0
      %v557 = vadd.f32 %v331, %v556
      %v558 = vpop.f32.mrf.mxu0
      %v559 = vpop.f32.mrf.mxu0
      %v560 = vadd.f32 %v331, %v559
      %v561 = vpop.f32.mrf.mxu0
      %562 = vmatprep.mubr.bf16.mxu0 0
      %563 = vmatmul.mubr.bf16.gmra.mxu0 %v448
      %v564 = vpop.f32.mrf.mxu0
      %v565 = vadd.f32 %v331, %v564
      %v566 = vpop.f32.mrf.mxu0
      %v567 = vpop.f32.mrf.mxu0
      %v568 = vadd.f32 %v331, %v567
      %v569 = vpop.f32.mrf.mxu0
      %570 = vmatprep.mubr.bf16.mxu0 0
      %571 = vmatmul.mubr.bf16.gmra.mxu0 %v451
      %v572 = vpop.f32.mrf.mxu0
      %v573 = vadd.f32 %v331, %v572
      %v574 = vpop.f32.mrf.mxu0
      %v575 = vpop.f32.mrf.mxu0
      %v576 = vadd.f32 %v331, %v575
      %v577 = vpop.f32.mrf.mxu0
      %578 = vmatprep.mubr.bf16.mxu0 0
      %579 = vmatmul.mubr.bf16.gmra.mxu0 %v454
      %v580 = vpop.f32.mrf.mxu0
      %v581 = vadd.f32 %v331, %v580
      %v582 = vpop.f32.mrf.mxu0
      %v583 = vpop.f32.mrf.mxu0
      %v584 = vadd.f32 %v331, %v583
      %v585 = vpop.f32.mrf.mxu0
      %586 = vmatprep.mubr.bf16.mxu0 0
      %587 = vmatmul.mubr.bf16.gmra.mxu0 %v457
      %v588 = vpop.f32.mrf.mxu0
      %v589 = vadd.f32 %v331, %v588
      %v590 = vpop.f32.mrf.mxu0
      %v591 = vpop.f32.mrf.mxu0
      %v592 = vadd.f32 %v331, %v591
      %v593 = vpop.f32.mrf.mxu0
      %594 = vmatprep.mubr.bf16.mxu0 0
      %595 = vmatmul.mubr.bf16.gmra.mxu0 %v460
      %v596 = vpop.f32.mrf.mxu0
      %v597 = vadd.f32 %v331, %v596
      %v598 = vpop.f32.mrf.mxu0
      %v599 = vpop.f32.mrf.mxu0
      %v600 = vadd.f32 %v331, %v599
      %v601 = vpop.f32.mrf.mxu0
      %602 = vmatprep.mubr.bf16.mxu0 0
      %603 = vmatmul.mubr.bf16.gmra.mxu0 %v463
      %v604 = vpop.f32.mrf.mxu0
      %v605 = vadd.f32 %v331, %v604
      %v606 = vpop.f32.mrf.mxu0
      %v607 = vpop.f32.mrf.mxu0
      %v608 = vadd.f32 %v331, %v607
      %v609 = vpop.f32.mrf.mxu0
      %610 = vmatprep.mubr.bf16.mxu0 0
      %611 = vmatmul.mubr.bf16.gmra.mxu0 %v466
      %v612 = vpop.f32.mrf.mxu0
      %v613 = vadd.f32 %v331, %v612
      %v614 = vpop.f32.mrf.mxu0
      %v615 = vpop.f32.mrf.mxu0
      %v616 = vadd.f32 %v331, %v615
      %v617 = vpop.f32.mrf.mxu0
      %618 = vmatprep.mubr.bf16.mxu0 0
      %619 = vmatmul.mubr.bf16.gmra.mxu0 %v469
      %v620 = vpop.f32.mrf.mxu0
      %v621 = vadd.f32 %v331, %v620
      %v622 = vpop.f32.mrf.mxu0
      %v623 = vpop.f32.mrf.mxu0
      %v624 = vadd.f32 %v331, %v623
      %v625 = vpop.f32.mrf.mxu0
      %626 = vmatprep.mubr.bf16.mxu0 0
      %627 = vmatmul.mubr.bf16.gmra.mxu0 %v472
      %v628 = vpop.f32.mrf.mxu0
      %v629 = vadd.f32 %v331, %v628
      %v630 = vpop.f32.mrf.mxu0
      %v631 = vpop.f32.mrf.mxu0
      %v632 = vadd.f32 %v331, %v631
      %v633 = vpop.f32.mrf.mxu0
      %634 = vdwg.mxu0
      %v635 = vmul.f32 %v509, 0.5
      %v636 = vmul.f32 %v512, 0.5
      %v637 = vmul.f32 %v517, 0.5
      %v638 = vmul.f32 %v520, 0.5
      %v639 = vmul.f32 %v525, 0.5
      %v640 = vmul.f32 %v528, 0.5
      %v641 = vmul.f32 %v533, 0.5
      %v642 = vmul.f32 %v536, 0.5
      %v643 = vmul.f32 %v541, 0.5
      %v644 = vmul.f32 %v544, 0.5
      %v645 = vmul.f32 %v549, 0.5
      %v646 = vmul.f32 %v552, 0.5
      %v647 = vmul.f32 %v557, 0.5
      %v648 = vmul.f32 %v560, 0.5
      %v649 = vmul.f32 %v565, 0.5
      %v650 = vmul.f32 %v568, 0.5
      %v651 = vmul.f32 %v573, 0.5
      %v652 = vmul.f32 %v576, 0.5
      %v653 = vmul.f32 %v581, 0.5
      %v654 = vmul.f32 %v584, 0.5
      %v655 = vmul.f32 %v589, 0.5
      %v656 = vmul.f32 %v592, 0.5
      %v657 = vmul.f32 %v597, 0.5
      %v658 = vmul.f32 %v600, 0.5
      %v659 = vmul.f32 %v605, 0.5
      %v660 = vmul.f32 %v608, 0.5
      %v661 = vmul.f32 %v613, 0.5
      %v662 = vmul.f32 %v616, 0.5
      %v663 = vmul.f32 %v621, 0.5
      %v664 = vmul.f32 %v624, 0.5
      %v665 = vmul.f32 %v629, 0.5
      %v666 = vmul.f32 %v632, 0.5
      %v667 = vtanh.pop %v635
      %v668 = vtanh.pop %v636
      %v669 = vtanh.pop %v637
      %v670 = vtanh.pop %v638
      %v671 = vtanh.pop %v639
      %v672 = vtanh.pop %v640
      %v673 = vtanh.pop %v641
      %v674 = vtanh.pop %v642
      %v675 = vtanh.pop %v643
      %v676 = vtanh.pop %v644
      %v677 = vtanh.pop %v645
      %v678 = vtanh.pop %v646
      %v679 = vtanh.pop %v647
      %v680 = vtanh.pop %v648
      %v681 = vtanh.pop %v649
      %v682 = vtanh.pop %v650
      %v683 = vtanh.pop %v651
      %v684 = vtanh.pop %v652
      %v685 = vtanh.pop %v653
      %v686 = vtanh.pop %v654
      %v687 = vtanh.pop %v655
      %v688 = vtanh.pop %v656
      %v689 = vtanh.pop %v657
      %v690 = vtanh.pop %v658
      %v691 = vtanh.pop %v659
      %v692 = vtanh.pop %v660
      %v693 = vtanh.pop %v661
      %v694 = vtanh.pop %v662
      %v695 = vtanh.pop %v663
      %v696 = vtanh.pop %v664
      %v697 = vtanh.pop %v665
      %v698 = vtanh.pop %v666
      %v699 = vmul.f32 %v667, 0.5
      %v700 = vmul.f32 %v668, 0.5
      %v701 = vmul.f32 %v669, 0.5
      %v702 = vmul.f32 %v670, 0.5
      %v703 = vmul.f32 %v671, 0.5
      %v704 = vmul.f32 %v672, 0.5
      %v705 = vmul.f32 %v673, 0.5
      %v706 = vmul.f32 %v674, 0.5
      %v707 = vmul.f32 %v675, 0.5
      %v708 = vmul.f32 %v676, 0.5
      %v709 = vmul.f32 %v677, 0.5
      %v710 = vmul.f32 %v678, 0.5
      %v711 = vmul.f32 %v679, 0.5
      %v712 = vmul.f32 %v680, 0.5
      %v713 = vmul.f32 %v681, 0.5
      %v714 = vmul.f32 %v682, 0.5
      %v715 = vmul.f32 %v683, 0.5
      %v716 = vmul.f32 %v684, 0.5
      %v717 = vmul.f32 %v685, 0.5
      %v718 = vmul.f32 %v686, 0.5
      %v719 = vmul.f32 %v687, 0.5
      %v720 = vmul.f32 %v688, 0.5
      %v721 = vmul.f32 %v689, 0.5
      %v722 = vmul.f32 %v690, 0.5
      %v723 = vmul.f32 %v691, 0.5
      %v724 = vmul.f32 %v692, 0.5
      %v725 = vmul.f32 %v693, 0.5
      %v726 = vmul.f32 %v694, 0.5
      %v727 = vmul.f32 %v695, 0.5
      %v728 = vmul.f32 %v696, 0.5
      %v729 = vmul.f32 %v697, 0.5
      %v730 = vmul.f32 %v698, 0.5
      %v731 = vadd.f32 %v699, 0.5
      %v732 = vadd.f32 %v700, 0.5
      %v733 = vadd.f32 %v701, 0.5
      %v734 = vadd.f32 %v702, 0.5
      %v735 = vadd.f32 %v703, 0.5
      %v736 = vadd.f32 %v704, 0.5
      %v737 = vadd.f32 %v705, 0.5
      %v738 = vadd.f32 %v706, 0.5
      %v739 = vadd.f32 %v707, 0.5
      %v740 = vadd.f32 %v708, 0.5
      %v741 = vadd.f32 %v709, 0.5
      %v742 = vadd.f32 %v710, 0.5
      %v743 = vadd.f32 %v711, 0.5
      %v744 = vadd.f32 %v712, 0.5
      %v745 = vadd.f32 %v713, 0.5
      %v746 = vadd.f32 %v714, 0.5
      %v747 = vadd.f32 %v715, 0.5
      %v748 = vadd.f32 %v716, 0.5
      %v749 = vadd.f32 %v717, 0.5
      %v750 = vadd.f32 %v718, 0.5
      %v751 = vadd.f32 %v719, 0.5
      %v752 = vadd.f32 %v720, 0.5
      %v753 = vadd.f32 %v721, 0.5
      %v754 = vadd.f32 %v722, 0.5
      %v755 = vadd.f32 %v723, 0.5
      %v756 = vadd.f32 %v724, 0.5
      %v757 = vadd.f32 %v725, 0.5
      %v758 = vadd.f32 %v726, 0.5
      %v759 = vadd.f32 %v727, 0.5
      %v760 = vadd.f32 %v728, 0.5
      %v761 = vadd.f32 %v729, 0.5
      %v762 = vadd.f32 %v730, 0.5
      %v763 = vmul.f32 %v509, %v731
      %v764 = vmul.f32 %v512, %v732
      %v765 = vmul.f32 %v517, %v733
      %v766 = vmul.f32 %v520, %v734
      %v767 = vmul.f32 %v525, %v735
      %v768 = vmul.f32 %v528, %v736
      %v769 = vmul.f32 %v533, %v737
      %v770 = vmul.f32 %v536, %v738
      %v771 = vmul.f32 %v541, %v739
      %v772 = vmul.f32 %v544, %v740
      %v773 = vmul.f32 %v549, %v741
      %v774 = vmul.f32 %v552, %v742
      %v775 = vmul.f32 %v557, %v743
      %v776 = vmul.f32 %v560, %v744
      %v777 = vmul.f32 %v565, %v745
      %v778 = vmul.f32 %v568, %v746
      %v779 = vmul.f32 %v573, %v747
      %v780 = vmul.f32 %v576, %v748
      %v781 = vmul.f32 %v581, %v749
      %v782 = vmul.f32 %v584, %v750
      %v783 = vmul.f32 %v589, %v751
      %v784 = vmul.f32 %v592, %v752
      %v785 = vmul.f32 %v597, %v753
      %v786 = vmul.f32 %v600, %v754
      %v787 = vmul.f32 %v605, %v755
      %v788 = vmul.f32 %v608, %v756
      %v789 = vmul.f32 %v613, %v757
      %v790 = vmul.f32 %v616, %v758
      %v791 = vmul.f32 %v621, %v759
      %v792 = vmul.f32 %v624, %v760
      %v793 = vmul.f32 %v629, %v761
      %v794 = vmul.f32 %v632, %v762
      %v795 = vpack.c.bf16 %v764, %v763
      %v796 = vpack.c.bf16 %v766, %v765
      %v797 = vpack.c.bf16 %v768, %v767
      %v798 = vpack.c.bf16 %v770, %v769
      %v799 = vpack.c.bf16 %v772, %v771
      %v800 = vpack.c.bf16 %v774, %v773
      %v801 = vpack.c.bf16 %v776, %v775
      %v802 = vpack.c.bf16 %v778, %v777
      %v803 = vpack.c.bf16 %v780, %v779
      %v804 = vpack.c.bf16 %v782, %v781
      %v805 = vpack.c.bf16 %v784, %v783
      %v806 = vpack.c.bf16 %v786, %v785
      %v807 = vpack.c.bf16 %v788, %v787
      %v808 = vpack.c.bf16 %v790, %v789
      %v809 = vpack.c.bf16 %v792, %v791
      %v810 = vpack.c.bf16 %v794, %v793
      %v811 = vld [vmem:[%s3] sm:$0xff]
      %v812 = vld [vmem:[%s3 + $0x8] sm:$0xff]
      %v813 = vld [vmem:[%s3 + $0x10] sm:$0xff]
      %v814 = vld [vmem:[%s3 + $0x18] sm:$0xff]
      %v815 = vld [vmem:[%s3 + $0x20] sm:$0xff]
      %v816 = vld [vmem:[%s3 + $0x28] sm:$0xff]
      %v817 = vld [vmem:[%s3 + $0x30] sm:$0xff]
      %v818 = vld [vmem:[%s3 + $0x38] sm:$0xff]
      %v819 = vld [vmem:[%s3 + $0x40] sm:$0xff]
      %v820 = vld [vmem:[%s3 + $0x48] sm:$0xff]
      %v821 = vld [vmem:[%s3 + $0x50] sm:$0xff]
      %v822 = vld [vmem:[%s3 + $0x58] sm:$0xff]
      %v823 = vld [vmem:[%s3 + $0x60] sm:$0xff]
      %v824 = vld [vmem:[%s3 + $0x68] sm:$0xff]
      %v825 = vld [vmem:[%s3 + $0x70] sm:$0xff]
      %v826 = vld [vmem:[%s4] sm:$0xff]
      %v827 = vld [vmem:[%s4 + $0x8] sm:$0x3]
      %v830 = vlaneseq
      %v831 = vshrl.u32 %v830, 7
      %v832 = vsub.s32 0, %v831
      %v833 = vrot.slane %v826, %v832
      %v834 = vlaneseq
      %v835 = vshrl.u32 %v834, 7
      %v836 = vsub.s32 1, %v835
      %v837 = vrot.slane %v826, %v836
      %v838 = vlaneseq
      %v839 = vshrl.u32 %v838, 7
      %v840 = vsub.s32 2, %v839
      %v841 = vrot.slane %v826, %v840
      %v842 = vlaneseq
      %v843 = vshrl.u32 %v842, 7
      %v844 = vsub.s32 3, %v843
      %v845 = vrot.slane %v826, %v844
      %v846 = vlaneseq
      %v847 = vshrl.u32 %v846, 7
      %v848 = vsub.s32 4, %v847
      %v849 = vrot.slane %v826, %v848
      %v850 = vlaneseq
      %v851 = vshrl.u32 %v850, 7
      %v852 = vsub.s32 5, %v851
      %v853 = vrot.slane %v826, %v852
      %v854 = vlaneseq
      %v855 = vshrl.u32 %v854, 7
      %v856 = vsub.s32 6, %v855
      %v857 = vrot.slane %v826, %v856
      %v858 = vlaneseq
      %v859 = vshrl.u32 %v858, 7
      %v860 = vsub.s32 7, %v859
      %v861 = vrot.slane %v826, %v860
      %v862 = vlaneseq
      %v863 = vshrl.u32 %v862, 7
      %v864 = vsub.s32 0, %v863
      %v865 = vrot.slane %v827, %v864
      %v866 = vlaneseq
      %v867 = vshrl.u32 %v866, 7
      %v868 = vsub.s32 1, %v867
      %v869 = vrot.slane %v827, %v868
      %v895 = vunpack.c.l.b16 %v811
      %v896 = vunpack.c.h.b16 %v811
      %v897 = vunpack.c.l.b16 %v812
      %v898 = vunpack.c.h.b16 %v812
      %v899 = vunpack.c.l.b16 %v813
      %v900 = vunpack.c.h.b16 %v813
      %v901 = vunpack.c.l.b16 %v814
      %v902 = vunpack.c.h.b16 %v814
      %v903 = vunpack.c.l.b16 %v815
      %v904 = vunpack.c.h.b16 %v815
      %v905 = vunpack.c.l.b16 %v816
      %v906 = vunpack.c.h.b16 %v816
      %v907 = vunpack.c.l.b16 %v817
      %v908 = vunpack.c.h.b16 %v817
      %v909 = vunpack.c.l.b16 %v818
      %v910 = vunpack.c.h.b16 %v818
      %v911 = vunpack.c.l.b16 %v819
      %v912 = vunpack.c.h.b16 %v819
      %v913 = vunpack.c.l.b16 %v820
      %v914 = vunpack.c.h.b16 %v820
      %v915 = vunpack.c.l.b16 %v821
      %v916 = vunpack.c.h.b16 %v821
      %v917 = vunpack.c.l.b16 %v822
      %v918 = vunpack.c.h.b16 %v822
      %v919 = vunpack.c.l.b16 %v823
      %v920 = vunpack.c.h.b16 %v823
      %v921 = vunpack.c.l.b16 %v824
      %v922 = vunpack.c.h.b16 %v824
      %v923 = vunpack.c.l.b16 %v825
      %v924 = vunpack.c.h.b16 %v825
      %v925 = vpack.c.b16 %v905, %v895
      %v926 = vpack.c.b16 %v906, %v896
      %v927 = vpack.c.b16 %v907, %v897
      %v928 = vpack.c.b16 %v908, %v898
      %v929 = vpack.c.b16 %v909, %v899
      %v930 = vpack.c.b16 %v910, %v900
      %v931 = vpack.c.b16 %v911, %v901
      %v932 = vpack.c.b16 %v912, %v902
      %v933 = vpack.c.b16 %v913, %v903
      %v934 = vpack.c.b16 %v914, %v904
      %v935 = vpack.c.b16 %v915, %v915
      %v936 = vpack.c.b16 %v916, %v916
      %v937 = vpack.c.b16 %v917, %v917
      %v938 = vpack.c.b16 %v918, %v918
      %v939 = vpack.c.b16 %v919, %v919
      %v940 = vpack.c.b16 %v920, %v920
      %v941 = vpack.c.b16 %v921, %v921
      %v942 = vpack.c.b16 %v922, %v922
      %v943 = vpack.c.b16 %v923, %v923
      %v944 = vpack.c.b16 %v924, %v924
      %vm955 = vcmask 195584
      %v957 = vsel %vm955, %v795, 0
      %v960 = vsel %vm955, %v796, 0
      %v963 = vsel %vm955, %v797, 0
      %v966 = vsel %vm955, %v798, 0
      %v969 = vsel %vm955, %v799, 0
      %v972 = vsel %vm955, %v800, 0
      %v975 = vsel %vm955, %v801, 0
      %v978 = vsel %vm955, %v802, 0
      %v981 = vsel %vm955, %v803, 0
      %v984 = vsel %vm955, %v804, 0
      %v987 = vsel %vm955, %v805, 0
      %v990 = vsel %vm955, %v806, 0
      %v993 = vsel %vm955, %v807, 0
      %v996 = vsel %vm955, %v808, 0
      %v999 = vsel %vm955, %v809, 0
      %v1002 = vsel %vm955, %v810, 0
      %vm1004 = vcmask 1043456
      %v1006 = vsel %vm1004, %v935, 0
      %v1009 = vsel %vm1004, %v936, 0
      %v1012 = vsel %vm1004, %v937, 0
      %v1015 = vsel %vm1004, %v938, 0
      %v1018 = vsel %vm1004, %v939, 0
      %v1021 = vsel %vm1004, %v940, 0
      %v1024 = vsel %vm1004, %v941, 0
      %v1027 = vsel %vm1004, %v942, 0
      %v1030 = vsel %vm1004, %v943, 0
      %v1033 = vsel %vm1004, %v944, 0
      %1035 = vmatprep.subr.bf16.mxu0 0
      %1036 = vmatpush1.bf16.msra.mxu0 0
      %1037 = vmatprep.subr.bf16.mxu0 0
      %1038 = vmatpush1.bf16.msra.mxu0 0
      %1039 = vmatprep.subr.bf16.mxu0 0
      %1040 = vmatpush1.bf16.msra.mxu0 0
      %1041 = vmatprep.subr.bf16.mxu0 0
      %1042 = vmatpush1.bf16.msra.mxu0 0
      %1043 = vmatprep.subr.bf16.mxu0 0
      %1044 = vmatpush1.bf16.msra.mxu0 0
      %1045 = vmatprep.subr.bf16.mxu0 0
      %1046 = vmatpush1.bf16.msra.mxu0 0
      %1047 = vmatprep.subr.bf16.mxu0 %v1009
      %1048 = vmatpush1.bf16.msra.mxu0 %v1006
      %1049 = vmatprep.subr.bf16.mxu0 %v926
      %1050 = vmatpush1.bf16.msra.mxu0 %v925
      %1051 = vmatprep.subr.bf16.mxu0 0
      %1052 = vmatpush2.bf16.msra.mxu0 0
      %1053 = vmatprep.subr.bf16.mxu0 0
      %1054 = vmatpush2.bf16.msra.mxu0 0
      %1055 = vmatprep.subr.bf16.mxu0 0
      %1056 = vmatpush2.bf16.msra.mxu0 0
      %1057 = vmatprep.subr.bf16.mxu0 0
      %1058 = vmatpush2.bf16.msra.mxu0 0
      %1059 = vmatprep.subr.bf16.mxu0 0
      %1060 = vmatpush2.bf16.msra.mxu0 0
      %1061 = vmatprep.subr.bf16.mxu0 0
      %1062 = vmatpush2.bf16.msra.mxu0 0
      %1063 = vmatprep.subr.bf16.mxu0 0
      %1064 = vmatpush2.bf16.msra.mxu0 0
      %1065 = vmatprep.subr.bf16.mxu0 0
      %1066 = vmatpush2.bf16.msra.mxu0 0
      %1067 = vmatprep.mubr.bf16.mxu0 0
      %1068 = vmatmul.mubr.bf16.gmra.mxu0 %v957
      %v1069 = vpop.f32.mrf.mxu0
      %v1070 = vadd.f32 %v833, %v1069
      %v1071 = vpop.f32.mrf.mxu0
      %v1072 = vadd.f32 %v837, %v1071
      %v1073 = vpop.f32.mrf.mxu0
      %v1074 = vadd.f32 %v833, %v1073
      %v1075 = vpop.f32.mrf.mxu0
      %v1076 = vadd.f32 %v837, %v1075
      %1077 = vmatprep.mubr.bf16.mxu0 0
      %1078 = vmatmul.mubr.bf16.gmra.mxu0 %v960
      %v1079 = vpop.f32.mrf.mxu0
      %v1080 = vadd.f32 %v833, %v1079
      %v1081 = vpop.f32.mrf.mxu0
      %v1082 = vadd.f32 %v837, %v1081
      %v1083 = vpop.f32.mrf.mxu0
      %v1084 = vadd.f32 %v833, %v1083
      %v1085 = vpop.f32.mrf.mxu0
      %v1086 = vadd.f32 %v837, %v1085
      %1087 = vmatprep.mubr.bf16.mxu0 0
      %1088 = vmatmul.mubr.bf16.gmra.mxu0 %v963
      %v1089 = vpop.f32.mrf.mxu0
      %v1090 = vadd.f32 %v833, %v1089
      %v1091 = vpop.f32.mrf.mxu0
      %v1092 = vadd.f32 %v837, %v1091
      %v1093 = vpop.f32.mrf.mxu0
      %v1094 = vadd.f32 %v833, %v1093
      %v1095 = vpop.f32.mrf.mxu0
      %v1096 = vadd.f32 %v837, %v1095
      %1097 = vmatprep.mubr.bf16.mxu0 0
      %1098 = vmatmul.mubr.bf16.gmra.mxu0 %v966
      %v1099 = vpop.f32.mrf.mxu0
      %v1100 = vadd.f32 %v833, %v1099
      %v1101 = vpop.f32.mrf.mxu0
      %v1102 = vadd.f32 %v837, %v1101
      %v1103 = vpop.f32.mrf.mxu0
      %v1104 = vadd.f32 %v833, %v1103
      %v1105 = vpop.f32.mrf.mxu0
      %v1106 = vadd.f32 %v837, %v1105
      %1107 = vmatprep.mubr.bf16.mxu0 0
      %1108 = vmatmul.mubr.bf16.gmra.mxu0 %v969
      %v1109 = vpop.f32.mrf.mxu0
      %v1110 = vadd.f32 %v833, %v1109
      %v1111 = vpop.f32.mrf.mxu0
      %v1112 = vadd.f32 %v837, %v1111
      %v1113 = vpop.f32.mrf.mxu0
      %v1114 = vadd.f32 %v833, %v1113
      %v1115 = vpop.f32.mrf.mxu0
      %v1116 = vadd.f32 %v837, %v1115
      %1117 = vmatprep.mubr.bf16.mxu0 0
      %1118 = vmatmul.mubr.bf16.gmra.mxu0 %v972
      %v1119 = vpop.f32.mrf.mxu0
      %v1120 = vadd.f32 %v833, %v1119
      %v1121 = vpop.f32.mrf.mxu0
      %v1122 = vadd.f32 %v837, %v1121
      %v1123 = vpop.f32.mrf.mxu0
      %v1124 = vadd.f32 %v833, %v1123
      %v1125 = vpop.f32.mrf.mxu0
      %v1126 = vadd.f32 %v837, %v1125
      %1127 = vmatprep.mubr.bf16.mxu0 0
      %1128 = vmatmul.mubr.bf16.gmra.mxu0 %v975
      %v1129 = vpop.f32.mrf.mxu0
      %v1130 = vadd.f32 %v833, %v1129
      %v1131 = vpop.f32.mrf.mxu0
      %v1132 = vadd.f32 %v837, %v1131
      %v1133 = vpop.f32.mrf.mxu0
      %v1134 = vadd.f32 %v833, %v1133
      %v1135 = vpop.f32.mrf.mxu0
      %v1136 = vadd.f32 %v837, %v1135
      %1137 = vmatprep.mubr.bf16.mxu0 0
      %1138 = vmatmul.mubr.bf16.gmra.mxu0 %v978
      %v1139 = vpop.f32.mrf.mxu0
      %v1140 = vadd.f32 %v833, %v1139
      %v1141 = vpop.f32.mrf.mxu0
      %v1142 = vadd.f32 %v837, %v1141
      %v1143 = vpop.f32.mrf.mxu0
      %v1144 = vadd.f32 %v833, %v1143
      %v1145 = vpop.f32.mrf.mxu0
      %v1146 = vadd.f32 %v837, %v1145
      %1147 = vmatprep.mubr.bf16.mxu0 0
      %1148 = vmatmul.mubr.bf16.gmra.mxu0 %v981
      %v1149 = vpop.f32.mrf.mxu0
      %v1150 = vadd.f32 %v833, %v1149
      %v1151 = vpop.f32.mrf.mxu0
      %v1152 = vadd.f32 %v837, %v1151
      %v1153 = vpop.f32.mrf.mxu0
      %v1154 = vadd.f32 %v833, %v1153
      %v1155 = vpop.f32.mrf.mxu0
      %v1156 = vadd.f32 %v837, %v1155
      %1157 = vmatprep.mubr.bf16.mxu0 0
      %1158 = vmatmul.mubr.bf16.gmra.mxu0 %v984
      %v1159 = vpop.f32.mrf.mxu0
      %v1160 = vadd.f32 %v833, %v1159
      %v1161 = vpop.f32.mrf.mxu0
      %v1162 = vadd.f32 %v837, %v1161
      %v1163 = vpop.f32.mrf.mxu0
      %v1164 = vadd.f32 %v833, %v1163
      %v1165 = vpop.f32.mrf.mxu0
      %v1166 = vadd.f32 %v837, %v1165
      %1167 = vmatprep.mubr.bf16.mxu0 0
      %1168 = vmatmul.mubr.bf16.gmra.mxu0 %v987
      %v1169 = vpop.f32.mrf.mxu0
      %v1170 = vadd.f32 %v833, %v1169
      %v1171 = vpop.f32.mrf.mxu0
      %v1172 = vadd.f32 %v837, %v1171
      %v1173 = vpop.f32.mrf.mxu0
      %v1174 = vadd.f32 %v833, %v1173
      %v1175 = vpop.f32.mrf.mxu0
      %v1176 = vadd.f32 %v837, %v1175
      %1177 = vmatprep.mubr.bf16.mxu0 0
      %1178 = vmatmul.mubr.bf16.gmra.mxu0 %v990
      %v1179 = vpop.f32.mrf.mxu0
      %v1180 = vadd.f32 %v833, %v1179
      %v1181 = vpop.f32.mrf.mxu0
      %v1182 = vadd.f32 %v837, %v1181
      %v1183 = vpop.f32.mrf.mxu0
      %v1184 = vadd.f32 %v833, %v1183
      %v1185 = vpop.f32.mrf.mxu0
      %v1186 = vadd.f32 %v837, %v1185
      %1187 = vmatprep.mubr.bf16.mxu0 0
      %1188 = vmatmul.mubr.bf16.gmra.mxu0 %v993
      %v1189 = vpop.f32.mrf.mxu0
      %v1190 = vadd.f32 %v833, %v1189
      %v1191 = vpop.f32.mrf.mxu0
      %v1192 = vadd.f32 %v837, %v1191
      %v1193 = vpop.f32.mrf.mxu0
      %v1194 = vadd.f32 %v833, %v1193
      %v1195 = vpop.f32.mrf.mxu0
      %v1196 = vadd.f32 %v837, %v1195
      %1197 = vmatprep.mubr.bf16.mxu0 0
      %1198 = vmatmul.mubr.bf16.gmra.mxu0 %v996
      %v1199 = vpop.f32.mrf.mxu0
      %v1200 = vadd.f32 %v833, %v1199
      %v1201 = vpop.f32.mrf.mxu0
      %v1202 = vadd.f32 %v837, %v1201
      %v1203 = vpop.f32.mrf.mxu0
      %v1204 = vadd.f32 %v833, %v1203
      %v1205 = vpop.f32.mrf.mxu0
      %v1206 = vadd.f32 %v837, %v1205
      %1207 = vmatprep.mubr.bf16.mxu0 0
      %1208 = vmatmul.mubr.bf16.gmra.mxu0 %v999
      %v1209 = vpop.f32.mrf.mxu0
      %v1210 = vadd.f32 %v833, %v1209
      %v1211 = vpop.f32.mrf.mxu0
      %v1212 = vadd.f32 %v837, %v1211
      %v1213 = vpop.f32.mrf.mxu0
      %v1214 = vadd.f32 %v833, %v1213
      %v1215 = vpop.f32.mrf.mxu0
      %v1216 = vadd.f32 %v837, %v1215
      %1217 = vmatprep.mubr.bf16.mxu0 0
      %1218 = vmatmul.mubr.bf16.gmra.mxu0 %v1002
      %v1219 = vpop.f32.mrf.mxu0
      %v1220 = vadd.f32 %v833, %v1219
      %v1221 = vpop.f32.mrf.mxu0
      %v1222 = vadd.f32 %v837, %v1221
      %v1223 = vpop.f32.mrf.mxu0
      %v1224 = vadd.f32 %v833, %v1223
      %v1225 = vpop.f32.mrf.mxu0
      %v1226 = vadd.f32 %v837, %v1225
      %1227 = vdwg.mxu0
      %1228 = vmatprep.subr.bf16.mxu0 0
      %1229 = vmatpush1.bf16.msra.mxu0 0
      %1230 = vmatprep.subr.bf16.mxu0 0
      %1231 = vmatpush1.bf16.msra.mxu0 0
      %1232 = vmatprep.subr.bf16.mxu0 0
      %1233 = vmatpush1.bf16.msra.mxu0 0
      %1234 = vmatprep.subr.bf16.mxu0 0
      %1235 = vmatpush1.bf16.msra.mxu0 0
      %1236 = vmatprep.subr.bf16.mxu0 0
      %1237 = vmatpush1.bf16.msra.mxu0 0
      %1238 = vmatprep.subr.bf16.mxu0 0
      %1239 = vmatpush1.bf16.msra.mxu0 0
      %1240 = vmatprep.subr.bf16.mxu0 %v1015
      %1241 = vmatpush1.bf16.msra.mxu0 %v1012
      %1242 = vmatprep.subr.bf16.mxu0 %v928
      %1243 = vmatpush1.bf16.msra.mxu0 %v927
      %1244 = vmatprep.subr.bf16.mxu0 0
      %1245 = vmatpush2.bf16.msra.mxu0 0
      %1246 = vmatprep.subr.bf16.mxu0 0
      %1247 = vmatpush2.bf16.msra.mxu0 0
      %1248 = vmatprep.subr.bf16.mxu0 0
      %1249 = vmatpush2.bf16.msra.mxu0 0
      %1250 = vmatprep.subr.bf16.mxu0 0
      %1251 = vmatpush2.bf16.msra.mxu0 0
      %1252 = vmatprep.subr.bf16.mxu0 0
      %1253 = vmatpush2.bf16.msra.mxu0 0
      %1254 = vmatprep.subr.bf16.mxu0 0
      %1255 = vmatpush2.bf16.msra.mxu0 0
      %1256 = vmatprep.subr.bf16.mxu0 0
      %1257 = vmatpush2.bf16.msra.mxu0 0
      %1258 = vmatprep.subr.bf16.mxu0 0
      %1259 = vmatpush2.bf16.msra.mxu0 0
      %1260 = vmatprep.mubr.bf16.mxu0 0
      %1261 = vmatmul.mubr.bf16.gmra.mxu0 %v957
      %v1262 = vpop.f32.mrf.mxu0
      %v1263 = vadd.f32 %v841, %v1262
      %v1264 = vpop.f32.mrf.mxu0
      %v1265 = vadd.f32 %v845, %v1264
      %v1266 = vpop.f32.mrf.mxu0
      %v1267 = vadd.f32 %v841, %v1266
      %v1268 = vpop.f32.mrf.mxu0
      %v1269 = vadd.f32 %v845, %v1268
      %1270 = vmatprep.mubr.bf16.mxu0 0
      %1271 = vmatmul.mubr.bf16.gmra.mxu0 %v960
      %v1272 = vpop.f32.mrf.mxu0
      %v1273 = vadd.f32 %v841, %v1272
      %v1274 = vpop.f32.mrf.mxu0
      %v1275 = vadd.f32 %v845, %v1274
      %v1276 = vpop.f32.mrf.mxu0
      %v1277 = vadd.f32 %v841, %v1276
      %v1278 = vpop.f32.mrf.mxu0
      %v1279 = vadd.f32 %v845, %v1278
      %1280 = vmatprep.mubr.bf16.mxu0 0
      %1281 = vmatmul.mubr.bf16.gmra.mxu0 %v963
      %v1282 = vpop.f32.mrf.mxu0
      %v1283 = vadd.f32 %v841, %v1282
      %v1284 = vpop.f32.mrf.mxu0
      %v1285 = vadd.f32 %v845, %v1284
      %v1286 = vpop.f32.mrf.mxu0
      %v1287 = vadd.f32 %v841, %v1286
      %v1288 = vpop.f32.mrf.mxu0
      %v1289 = vadd.f32 %v845, %v1288
      %1290 = vmatprep.mubr.bf16.mxu0 0
      %1291 = vmatmul.mubr.bf16.gmra.mxu0 %v966
      %v1292 = vpop.f32.mrf.mxu0
      %v1293 = vadd.f32 %v841, %v1292
      %v1294 = vpop.f32.mrf.mxu0
      %v1295 = vadd.f32 %v845, %v1294
      %v1296 = vpop.f32.mrf.mxu0
      %v1297 = vadd.f32 %v841, %v1296
      %v1298 = vpop.f32.mrf.mxu0
      %v1299 = vadd.f32 %v845, %v1298
      %1300 = vmatprep.mubr.bf16.mxu0 0
      %1301 = vmatmul.mubr.bf16.gmra.mxu0 %v969
      %v1302 = vpop.f32.mrf.mxu0
      %v1303 = vadd.f32 %v841, %v1302
      %v1304 = vpop.f32.mrf.mxu0
      %v1305 = vadd.f32 %v845, %v1304
      %v1306 = vpop.f32.mrf.mxu0
      %v1307 = vadd.f32 %v841, %v1306
      %v1308 = vpop.f32.mrf.mxu0
      %v1309 = vadd.f32 %v845, %v1308
      %1310 = vmatprep.mubr.bf16.mxu0 0
      %1311 = vmatmul.mubr.bf16.gmra.mxu0 %v972
      %v1312 = vpop.f32.mrf.mxu0
      %v1313 = vadd.f32 %v841, %v1312
      %v1314 = vpop.f32.mrf.mxu0
      %v1315 = vadd.f32 %v845, %v1314
      %v1316 = vpop.f32.mrf.mxu0
      %v1317 = vadd.f32 %v841, %v1316
      %v1318 = vpop.f32.mrf.mxu0
      %v1319 = vadd.f32 %v845, %v1318
      %1320 = vmatprep.mubr.bf16.mxu0 0
      %1321 = vmatmul.mubr.bf16.gmra.mxu0 %v975
      %v1322 = vpop.f32.mrf.mxu0
      %v1323 = vadd.f32 %v841, %v1322
      %v1324 = vpop.f32.mrf.mxu0
      %v1325 = vadd.f32 %v845, %v1324
      %v1326 = vpop.f32.mrf.mxu0
      %v1327 = vadd.f32 %v841, %v1326
      %v1328 = vpop.f32.mrf.mxu0
      %v1329 = vadd.f32 %v845, %v1328
      %1330 = vmatprep.mubr.bf16.mxu0 0
      %1331 = vmatmul.mubr.bf16.gmra.mxu0 %v978
      %v1332 = vpop.f32.mrf.mxu0
      %v1333 = vadd.f32 %v841, %v1332
      %v1334 = vpop.f32.mrf.mxu0
      %v1335 = vadd.f32 %v845, %v1334
      %v1336 = vpop.f32.mrf.mxu0
      %v1337 = vadd.f32 %v841, %v1336
      %v1338 = vpop.f32.mrf.mxu0
      %v1339 = vadd.f32 %v845, %v1338
      %1340 = vmatprep.mubr.bf16.mxu0 0
      %1341 = vmatmul.mubr.bf16.gmra.mxu0 %v981
      %v1342 = vpop.f32.mrf.mxu0
      %v1343 = vadd.f32 %v841, %v1342
      %v1344 = vpop.f32.mrf.mxu0
      %v1345 = vadd.f32 %v845, %v1344
      %v1346 = vpop.f32.mrf.mxu0
      %v1347 = vadd.f32 %v841, %v1346
      %v1348 = vpop.f32.mrf.mxu0
      %v1349 = vadd.f32 %v845, %v1348
      %1350 = vmatprep.mubr.bf16.mxu0 0
      %1351 = vmatmul.mubr.bf16.gmra.mxu0 %v984
      %v1352 = vpop.f32.mrf.mxu0
      %v1353 = vadd.f32 %v841, %v1352
      %v1354 = vpop.f32.mrf.mxu0
      %v1355 = vadd.f32 %v845, %v1354
      %v1356 = vpop.f32.mrf.mxu0
      %v1357 = vadd.f32 %v841, %v1356
      %v1358 = vpop.f32.mrf.mxu0
      %v1359 = vadd.f32 %v845, %v1358
      %1360 = vmatprep.mubr.bf16.mxu0 0
      %1361 = vmatmul.mubr.bf16.gmra.mxu0 %v987
      %v1362 = vpop.f32.mrf.mxu0
      %v1363 = vadd.f32 %v841, %v1362
      %v1364 = vpop.f32.mrf.mxu0
      %v1365 = vadd.f32 %v845, %v1364
      %v1366 = vpop.f32.mrf.mxu0
      %v1367 = vadd.f32 %v841, %v1366
      %v1368 = vpop.f32.mrf.mxu0
      %v1369 = vadd.f32 %v845, %v1368
      %1370 = vmatprep.mubr.bf16.mxu0 0
      %1371 = vmatmul.mubr.bf16.gmra.mxu0 %v990
      %v1372 = vpop.f32.mrf.mxu0
      %v1373 = vadd.f32 %v841, %v1372
      %v1374 = vpop.f32.mrf.mxu0
      %v1375 = vadd.f32 %v845, %v1374
      %v1376 = vpop.f32.mrf.mxu0
      %v1377 = vadd.f32 %v841, %v1376
      %v1378 = vpop.f32.mrf.mxu0
      %v1379 = vadd.f32 %v845, %v1378
      %1380 = vmatprep.mubr.bf16.mxu0 0
      %1381 = vmatmul.mubr.bf16.gmra.mxu0 %v993
      %v1382 = vpop.f32.mrf.mxu0
      %v1383 = vadd.f32 %v841, %v1382
      %v1384 = vpop.f32.mrf.mxu0
      %v1385 = vadd.f32 %v845, %v1384
      %v1386 = vpop.f32.mrf.mxu0
      %v1387 = vadd.f32 %v841, %v1386
      %v1388 = vpop.f32.mrf.mxu0
      %v1389 = vadd.f32 %v845, %v1388
      %1390 = vmatprep.mubr.bf16.mxu0 0
      %1391 = vmatmul.mubr.bf16.gmra.mxu0 %v996
      %v1392 = vpop.f32.mrf.mxu0
      %v1393 = vadd.f32 %v841, %v1392
      %v1394 = vpop.f32.mrf.mxu0
      %v1395 = vadd.f32 %v845, %v1394
      %v1396 = vpop.f32.mrf.mxu0
      %v1397 = vadd.f32 %v841, %v1396
      %v1398 = vpop.f32.mrf.mxu0
      %v1399 = vadd.f32 %v845, %v1398
      %1400 = vmatprep.mubr.bf16.mxu0 0
      %1401 = vmatmul.mubr.bf16.gmra.mxu0 %v999
      %v1402 = vpop.f32.mrf.mxu0
      %v1403 = vadd.f32 %v841, %v1402
      %v1404 = vpop.f32.mrf.mxu0
      %v1405 = vadd.f32 %v845, %v1404
      %v1406 = vpop.f32.mrf.mxu0
      %v1407 = vadd.f32 %v841, %v1406
      %v1408 = vpop.f32.mrf.mxu0
      %v1409 = vadd.f32 %v845, %v1408
      %1410 = vmatprep.mubr.bf16.mxu0 0
      %1411 = vmatmul.mubr.bf16.gmra.mxu0 %v1002
      %v1412 = vpop.f32.mrf.mxu0
      %v1413 = vadd.f32 %v841, %v1412
      %v1414 = vpop.f32.mrf.mxu0
      %v1415 = vadd.f32 %v845, %v1414
      %v1416 = vpop.f32.mrf.mxu0
      %v1417 = vadd.f32 %v841, %v1416
      %v1418 = vpop.f32.mrf.mxu0
      %v1419 = vadd.f32 %v845, %v1418
      %1420 = vdwg.mxu0
      %1421 = vmatprep.subr.bf16.mxu0 0
      %1422 = vmatpush1.bf16.msra.mxu0 0
      %1423 = vmatprep.subr.bf16.mxu0 0
      %1424 = vmatpush1.bf16.msra.mxu0 0
      %1425 = vmatprep.subr.bf16.mxu0 0
      %1426 = vmatpush1.bf16.msra.mxu0 0
      %1427 = vmatprep.subr.bf16.mxu0 0
      %1428 = vmatpush1.bf16.msra.mxu0 0
      %1429 = vmatprep.subr.bf16.mxu0 0
      %1430 = vmatpush1.bf16.msra.mxu0 0
      %1431 = vmatprep.subr.bf16.mxu0 0
      %1432 = vmatpush1.bf16.msra.mxu0 0
      %1433 = vmatprep.subr.bf16.mxu0 %v1021
      %1434 = vmatpush1.bf16.msra.mxu0 %v1018
      %1435 = vmatprep.subr.bf16.mxu0 %v930
      %1436 = vmatpush1.bf16.msra.mxu0 %v929
      %1437 = vmatprep.subr.bf16.mxu0 0
      %1438 = vmatpush2.bf16.msra.mxu0 0
      %1439 = vmatprep.subr.bf16.mxu0 0
      %1440 = vmatpush2.bf16.msra.mxu0 0
      %1441 = vmatprep.subr.bf16.mxu0 0
      %1442 = vmatpush2.bf16.msra.mxu0 0
      %1443 = vmatprep.subr.bf16.mxu0 0
      %1444 = vmatpush2.bf16.msra.mxu0 0
      %1445 = vmatprep.subr.bf16.mxu0 0
      %1446 = vmatpush2.bf16.msra.mxu0 0
      %1447 = vmatprep.subr.bf16.mxu0 0
      %1448 = vmatpush2.bf16.msra.mxu0 0
      %1449 = vmatprep.subr.bf16.mxu0 0
      %1450 = vmatpush2.bf16.msra.mxu0 0
      %1451 = vmatprep.subr.bf16.mxu0 0
      %1452 = vmatpush2.bf16.msra.mxu0 0
      %1453 = vmatprep.mubr.bf16.mxu0 0
      %1454 = vmatmul.mubr.bf16.gmra.mxu0 %v957
      %v1455 = vpop.f32.mrf.mxu0
      %v1456 = vadd.f32 %v849, %v1455
      %v1457 = vpop.f32.mrf.mxu0
      %v1458 = vadd.f32 %v853, %v1457
      %v1459 = vpop.f32.mrf.mxu0
      %v1460 = vadd.f32 %v849, %v1459
      %v1461 = vpop.f32.mrf.mxu0
      %v1462 = vadd.f32 %v853, %v1461
      %1463 = vmatprep.mubr.bf16.mxu0 0
      %1464 = vmatmul.mubr.bf16.gmra.mxu0 %v960
      %v1465 = vpop.f32.mrf.mxu0
      %v1466 = vadd.f32 %v849, %v1465
      %v1467 = vpop.f32.mrf.mxu0
      %v1468 = vadd.f32 %v853, %v1467
      %v1469 = vpop.f32.mrf.mxu0
      %v1470 = vadd.f32 %v849, %v1469
      %v1471 = vpop.f32.mrf.mxu0
      %v1472 = vadd.f32 %v853, %v1471
      %1473 = vmatprep.mubr.bf16.mxu0 0
      %1474 = vmatmul.mubr.bf16.gmra.mxu0 %v963
      %v1475 = vpop.f32.mrf.mxu0
      %v1476 = vadd.f32 %v849, %v1475
      %v1477 = vpop.f32.mrf.mxu0
      %v1478 = vadd.f32 %v853, %v1477
      %v1479 = vpop.f32.mrf.mxu0
      %v1480 = vadd.f32 %v849, %v1479
      %v1481 = vpop.f32.mrf.mxu0
      %v1482 = vadd.f32 %v853, %v1481
      %1483 = vmatprep.mubr.bf16.mxu0 0
      %1484 = vmatmul.mubr.bf16.gmra.mxu0 %v966
      %v1485 = vpop.f32.mrf.mxu0
      %v1486 = vadd.f32 %v849, %v1485
      %v1487 = vpop.f32.mrf.mxu0
      %v1488 = vadd.f32 %v853, %v1487
      %v1489 = vpop.f32.mrf.mxu0
      %v1490 = vadd.f32 %v849, %v1489
      %v1491 = vpop.f32.mrf.mxu0
      %v1492 = vadd.f32 %v853, %v1491
      %1493 = vmatprep.mubr.bf16.mxu0 0
      %1494 = vmatmul.mubr.bf16.gmra.mxu0 %v969
      %v1495 = vpop.f32.mrf.mxu0
      %v1496 = vadd.f32 %v849, %v1495
      %v1497 = vpop.f32.mrf.mxu0
      %v1498 = vadd.f32 %v853, %v1497
      %v1499 = vpop.f32.mrf.mxu0
      %v1500 = vadd.f32 %v849, %v1499
      %v1501 = vpop.f32.mrf.mxu0
      %v1502 = vadd.f32 %v853, %v1501
      %1503 = vmatprep.mubr.bf16.mxu0 0
      %1504 = vmatmul.mubr.bf16.gmra.mxu0 %v972
      %v1505 = vpop.f32.mrf.mxu0
      %v1506 = vadd.f32 %v849, %v1505
      %v1507 = vpop.f32.mrf.mxu0
      %v1508 = vadd.f32 %v853, %v1507
      %v1509 = vpop.f32.mrf.mxu0
      %v1510 = vadd.f32 %v849, %v1509
      %v1511 = vpop.f32.mrf.mxu0
      %v1512 = vadd.f32 %v853, %v1511
      %1513 = vmatprep.mubr.bf16.mxu0 0
      %1514 = vmatmul.mubr.bf16.gmra.mxu0 %v975
      %v1515 = vpop.f32.mrf.mxu0
      %v1516 = vadd.f32 %v849, %v1515
      %v1517 = vpop.f32.mrf.mxu0
      %v1518 = vadd.f32 %v853, %v1517
      %v1519 = vpop.f32.mrf.mxu0
      %v1520 = vadd.f32 %v849, %v1519
      %v1521 = vpop.f32.mrf.mxu0
      %v1522 = vadd.f32 %v853, %v1521
      %1523 = vmatprep.mubr.bf16.mxu0 0
      %1524 = vmatmul.mubr.bf16.gmra.mxu0 %v978
      %v1525 = vpop.f32.mrf.mxu0
      %v1526 = vadd.f32 %v849, %v1525
      %v1527 = vpop.f32.mrf.mxu0
      %v1528 = vadd.f32 %v853, %v1527
      %v1529 = vpop.f32.mrf.mxu0
      %v1530 = vadd.f32 %v849, %v1529
      %v1531 = vpop.f32.mrf.mxu0
      %v1532 = vadd.f32 %v853, %v1531
      %1533 = vmatprep.mubr.bf16.mxu0 0
      %1534 = vmatmul.mubr.bf16.gmra.mxu0 %v981
      %v1535 = vpop.f32.mrf.mxu0
      %v1536 = vadd.f32 %v849, %v1535
      %v1537 = vpop.f32.mrf.mxu0
      %v1538 = vadd.f32 %v853, %v1537
      %v1539 = vpop.f32.mrf.mxu0
      %v1540 = vadd.f32 %v849, %v1539
      %v1541 = vpop.f32.mrf.mxu0
      %v1542 = vadd.f32 %v853, %v1541
      %1543 = vmatprep.mubr.bf16.mxu0 0
      %1544 = vmatmul.mubr.bf16.gmra.mxu0 %v984
      %v1545 = vpop.f32.mrf.mxu0
      %v1546 = vadd.f32 %v849, %v1545
      %v1547 = vpop.f32.mrf.mxu0
      %v1548 = vadd.f32 %v853, %v1547
      %v1549 = vpop.f32.mrf.mxu0
      %v1550 = vadd.f32 %v849, %v1549
      %v1551 = vpop.f32.mrf.mxu0
      %v1552 = vadd.f32 %v853, %v1551
      %1553 = vmatprep.mubr.bf16.mxu0 0
      %1554 = vmatmul.mubr.bf16.gmra.mxu0 %v987
      %v1555 = vpop.f32.mrf.mxu0
      %v1556 = vadd.f32 %v849, %v1555
      %v1557 = vpop.f32.mrf.mxu0
      %v1558 = vadd.f32 %v853, %v1557
      %v1559 = vpop.f32.mrf.mxu0
      %v1560 = vadd.f32 %v849, %v1559
      %v1561 = vpop.f32.mrf.mxu0
      %v1562 = vadd.f32 %v853, %v1561
      %1563 = vmatprep.mubr.bf16.mxu0 0
      %1564 = vmatmul.mubr.bf16.gmra.mxu0 %v990
      %v1565 = vpop.f32.mrf.mxu0
      %v1566 = vadd.f32 %v849, %v1565
      %v1567 = vpop.f32.mrf.mxu0
      %v1568 = vadd.f32 %v853, %v1567
      %v1569 = vpop.f32.mrf.mxu0
      %v1570 = vadd.f32 %v849, %v1569
      %v1571 = vpop.f32.mrf.mxu0
      %v1572 = vadd.f32 %v853, %v1571
      %1573 = vmatprep.mubr.bf16.mxu0 0
      %1574 = vmatmul.mubr.bf16.gmra.mxu0 %v993
      %v1575 = vpop.f32.mrf.mxu0
      %v1576 = vadd.f32 %v849, %v1575
      %v1577 = vpop.f32.mrf.mxu0
      %v1578 = vadd.f32 %v853, %v1577
      %v1579 = vpop.f32.mrf.mxu0
      %v1580 = vadd.f32 %v849, %v1579
      %v1581 = vpop.f32.mrf.mxu0
      %v1582 = vadd.f32 %v853, %v1581
      %1583 = vmatprep.mubr.bf16.mxu0 0
      %1584 = vmatmul.mubr.bf16.gmra.mxu0 %v996
      %v1585 = vpop.f32.mrf.mxu0
      %v1586 = vadd.f32 %v849, %v1585
      %v1587 = vpop.f32.mrf.mxu0
      %v1588 = vadd.f32 %v853, %v1587
      %v1589 = vpop.f32.mrf.mxu0
      %v1590 = vadd.f32 %v849, %v1589
      %v1591 = vpop.f32.mrf.mxu0
      %v1592 = vadd.f32 %v853, %v1591
      %1593 = vmatprep.mubr.bf16.mxu0 0
      %1594 = vmatmul.mubr.bf16.gmra.mxu0 %v999
      %v1595 = vpop.f32.mrf.mxu0
      %v1596 = vadd.f32 %v849, %v1595
      %v1597 = vpop.f32.mrf.mxu0
      %v1598 = vadd.f32 %v853, %v1597
      %v1599 = vpop.f32.mrf.mxu0
      %v1600 = vadd.f32 %v849, %v1599
      %v1601 = vpop.f32.mrf.mxu0
      %v1602 = vadd.f32 %v853, %v1601
      %1603 = vmatprep.mubr.bf16.mxu0 0
      %1604 = vmatmul.mubr.bf16.gmra.mxu0 %v1002
      %v1605 = vpop.f32.mrf.mxu0
      %v1606 = vadd.f32 %v849, %v1605
      %v1607 = vpop.f32.mrf.mxu0
      %v1608 = vadd.f32 %v853, %v1607
      %v1609 = vpop.f32.mrf.mxu0
      %v1610 = vadd.f32 %v849, %v1609
      %v1611 = vpop.f32.mrf.mxu0
      %v1612 = vadd.f32 %v853, %v1611
      %1613 = vdwg.mxu0
      %1614 = vmatprep.subr.bf16.mxu0 0
      %1615 = vmatpush1.bf16.msra.mxu0 0
      %1616 = vmatprep.subr.bf16.mxu0 0
      %1617 = vmatpush1.bf16.msra.mxu0 0
      %1618 = vmatprep.subr.bf16.mxu0 0
      %1619 = vmatpush1.bf16.msra.mxu0 0
      %1620 = vmatprep.subr.bf16.mxu0 0
      %1621 = vmatpush1.bf16.msra.mxu0 0
      %1622 = vmatprep.subr.bf16.mxu0 0
      %1623 = vmatpush1.bf16.msra.mxu0 0
      %1624 = vmatprep.subr.bf16.mxu0 0
      %1625 = vmatpush1.bf16.msra.mxu0 0
      %1626 = vmatprep.subr.bf16.mxu0 %v1027
      %1627 = vmatpush1.bf16.msra.mxu0 %v1024
      %1628 = vmatprep.subr.bf16.mxu0 %v932
      %1629 = vmatpush1.bf16.msra.mxu0 %v931
      %1630 = vmatprep.subr.bf16.mxu0 0
      %1631 = vmatpush2.bf16.msra.mxu0 0
      %1632 = vmatprep.subr.bf16.mxu0 0
      %1633 = vmatpush2.bf16.msra.mxu0 0
      %1634 = vmatprep.subr.bf16.mxu0 0
      %1635 = vmatpush2.bf16.msra.mxu0 0
      %1636 = vmatprep.subr.bf16.mxu0 0
      %1637 = vmatpush2.bf16.msra.mxu0 0
      %1638 = vmatprep.subr.bf16.mxu0 0
      %1639 = vmatpush2.bf16.msra.mxu0 0
      %1640 = vmatprep.subr.bf16.mxu0 0
      %1641 = vmatpush2.bf16.msra.mxu0 0
      %1642 = vmatprep.subr.bf16.mxu0 0
      %1643 = vmatpush2.bf16.msra.mxu0 0
      %1644 = vmatprep.subr.bf16.mxu0 0
      %1645 = vmatpush2.bf16.msra.mxu0 0
      %1646 = vmatprep.mubr.bf16.mxu0 0
      %1647 = vmatmul.mubr.bf16.gmra.mxu0 %v957
      %v1648 = vpop.f32.mrf.mxu0
      %v1649 = vadd.f32 %v857, %v1648
      %v1650 = vpop.f32.mrf.mxu0
      %v1651 = vadd.f32 %v861, %v1650
      %v1652 = vpop.f32.mrf.mxu0
      %v1653 = vadd.f32 %v857, %v1652
      %v1654 = vpop.f32.mrf.mxu0
      %v1655 = vadd.f32 %v861, %v1654
      %1656 = vmatprep.mubr.bf16.mxu0 0
      %1657 = vmatmul.mubr.bf16.gmra.mxu0 %v960
      %v1658 = vpop.f32.mrf.mxu0
      %v1659 = vadd.f32 %v857, %v1658
      %v1660 = vpop.f32.mrf.mxu0
      %v1661 = vadd.f32 %v861, %v1660
      %v1662 = vpop.f32.mrf.mxu0
      %v1663 = vadd.f32 %v857, %v1662
      %v1664 = vpop.f32.mrf.mxu0
      %v1665 = vadd.f32 %v861, %v1664
      %1666 = vmatprep.mubr.bf16.mxu0 0
      %1667 = vmatmul.mubr.bf16.gmra.mxu0 %v963
      %v1668 = vpop.f32.mrf.mxu0
      %v1669 = vadd.f32 %v857, %v1668
      %v1670 = vpop.f32.mrf.mxu0
      %v1671 = vadd.f32 %v861, %v1670
      %v1672 = vpop.f32.mrf.mxu0
      %v1673 = vadd.f32 %v857, %v1672
      %v1674 = vpop.f32.mrf.mxu0
      %v1675 = vadd.f32 %v861, %v1674
      %1676 = vmatprep.mubr.bf16.mxu0 0
      %1677 = vmatmul.mubr.bf16.gmra.mxu0 %v966
      %v1678 = vpop.f32.mrf.mxu0
      %v1679 = vadd.f32 %v857, %v1678
      %v1680 = vpop.f32.mrf.mxu0
      %v1681 = vadd.f32 %v861, %v1680
      %v1682 = vpop.f32.mrf.mxu0
      %v1683 = vadd.f32 %v857, %v1682
      %v1684 = vpop.f32.mrf.mxu0
      %v1685 = vadd.f32 %v861, %v1684
      %1686 = vmatprep.mubr.bf16.mxu0 0
      %1687 = vmatmul.mubr.bf16.gmra.mxu0 %v969
      %v1688 = vpop.f32.mrf.mxu0
      %v1689 = vadd.f32 %v857, %v1688
      %v1690 = vpop.f32.mrf.mxu0
      %v1691 = vadd.f32 %v861, %v1690
      %v1692 = vpop.f32.mrf.mxu0
      %v1693 = vadd.f32 %v857, %v1692
      %v1694 = vpop.f32.mrf.mxu0
      %v1695 = vadd.f32 %v861, %v1694
      %1696 = vmatprep.mubr.bf16.mxu0 0
      %1697 = vmatmul.mubr.bf16.gmra.mxu0 %v972
      %v1698 = vpop.f32.mrf.mxu0
      %v1699 = vadd.f32 %v857, %v1698
      %v1700 = vpop.f32.mrf.mxu0
      %v1701 = vadd.f32 %v861, %v1700
      %v1702 = vpop.f32.mrf.mxu0
      %v1703 = vadd.f32 %v857, %v1702
      %v1704 = vpop.f32.mrf.mxu0
      %v1705 = vadd.f32 %v861, %v1704
      %1706 = vmatprep.mubr.bf16.mxu0 0
      %1707 = vmatmul.mubr.bf16.gmra.mxu0 %v975
      %v1708 = vpop.f32.mrf.mxu0
      %v1709 = vadd.f32 %v857, %v1708
      %v1710 = vpop.f32.mrf.mxu0
      %v1711 = vadd.f32 %v861, %v1710
      %v1712 = vpop.f32.mrf.mxu0
      %v1713 = vadd.f32 %v857, %v1712
      %v1714 = vpop.f32.mrf.mxu0
      %v1715 = vadd.f32 %v861, %v1714
      %1716 = vmatprep.mubr.bf16.mxu0 0
      %1717 = vmatmul.mubr.bf16.gmra.mxu0 %v978
      %v1718 = vpop.f32.mrf.mxu0
      %v1719 = vadd.f32 %v857, %v1718
      %v1720 = vpop.f32.mrf.mxu0
      %v1721 = vadd.f32 %v861, %v1720
      %v1722 = vpop.f32.mrf.mxu0
      %v1723 = vadd.f32 %v857, %v1722
      %v1724 = vpop.f32.mrf.mxu0
      %v1725 = vadd.f32 %v861, %v1724
      %1726 = vmatprep.mubr.bf16.mxu0 0
      %1727 = vmatmul.mubr.bf16.gmra.mxu0 %v981
      %v1728 = vpop.f32.mrf.mxu0
      %v1729 = vadd.f32 %v857, %v1728
      %v1730 = vpop.f32.mrf.mxu0
      %v1731 = vadd.f32 %v861, %v1730
      %v1732 = vpop.f32.mrf.mxu0
      %v1733 = vadd.f32 %v857, %v1732
      %v1734 = vpop.f32.mrf.mxu0
      %v1735 = vadd.f32 %v861, %v1734
      %1736 = vmatprep.mubr.bf16.mxu0 0
      %1737 = vmatmul.mubr.bf16.gmra.mxu0 %v984
      %v1738 = vpop.f32.mrf.mxu0
      %v1739 = vadd.f32 %v857, %v1738
      %v1740 = vpop.f32.mrf.mxu0
      %v1741 = vadd.f32 %v861, %v1740
      %v1742 = vpop.f32.mrf.mxu0
      %v1743 = vadd.f32 %v857, %v1742
      %v1744 = vpop.f32.mrf.mxu0
      %v1745 = vadd.f32 %v861, %v1744
      %1746 = vmatprep.mubr.bf16.mxu0 0
      %1747 = vmatmul.mubr.bf16.gmra.mxu0 %v987
      %v1748 = vpop.f32.mrf.mxu0
      %v1749 = vadd.f32 %v857, %v1748
      %v1750 = vpop.f32.mrf.mxu0
      %v1751 = vadd.f32 %v861, %v1750
      %v1752 = vpop.f32.mrf.mxu0
      %v1753 = vadd.f32 %v857, %v1752
      %v1754 = vpop.f32.mrf.mxu0
      %v1755 = vadd.f32 %v861, %v1754
      %1756 = vmatprep.mubr.bf16.mxu0 0
      %1757 = vmatmul.mubr.bf16.gmra.mxu0 %v990
      %v1758 = vpop.f32.mrf.mxu0
      %v1759 = vadd.f32 %v857, %v1758
      %v1760 = vpop.f32.mrf.mxu0
      %v1761 = vadd.f32 %v861, %v1760
      %v1762 = vpop.f32.mrf.mxu0
      %v1763 = vadd.f32 %v857, %v1762
      %v1764 = vpop.f32.mrf.mxu0
      %v1765 = vadd.f32 %v861, %v1764
      %1766 = vmatprep.mubr.bf16.mxu0 0
      %1767 = vmatmul.mubr.bf16.gmra.mxu0 %v993
      %v1768 = vpop.f32.mrf.mxu0
      %v1769 = vadd.f32 %v857, %v1768
      %v1770 = vpop.f32.mrf.mxu0
      %v1771 = vadd.f32 %v861, %v1770
      %v1772 = vpop.f32.mrf.mxu0
      %v1773 = vadd.f32 %v857, %v1772
      %v1774 = vpop.f32.mrf.mxu0
      %v1775 = vadd.f32 %v861, %v1774
      %1776 = vmatprep.mubr.bf16.mxu0 0
      %1777 = vmatmul.mubr.bf16.gmra.mxu0 %v996
      %v1778 = vpop.f32.mrf.mxu0
      %v1779 = vadd.f32 %v857, %v1778
      %v1780 = vpop.f32.mrf.mxu0
      %v1781 = vadd.f32 %v861, %v1780
      %v1782 = vpop.f32.mrf.mxu0
      %v1783 = vadd.f32 %v857, %v1782
      %v1784 = vpop.f32.mrf.mxu0
      %v1785 = vadd.f32 %v861, %v1784
      %1786 = vmatprep.mubr.bf16.mxu0 0
      %1787 = vmatmul.mubr.bf16.gmra.mxu0 %v999
      %v1788 = vpop.f32.mrf.mxu0
      %v1789 = vadd.f32 %v857, %v1788
      %v1790 = vpop.f32.mrf.mxu0
      %v1791 = vadd.f32 %v861, %v1790
      %v1792 = vpop.f32.mrf.mxu0
      %v1793 = vadd.f32 %v857, %v1792
      %v1794 = vpop.f32.mrf.mxu0
      %v1795 = vadd.f32 %v861, %v1794
      %1796 = vmatprep.mubr.bf16.mxu0 0
      %1797 = vmatmul.mubr.bf16.gmra.mxu0 %v1002
      %v1798 = vpop.f32.mrf.mxu0
      %v1799 = vadd.f32 %v857, %v1798
      %v1800 = vpop.f32.mrf.mxu0
      %v1801 = vadd.f32 %v861, %v1800
      %v1802 = vpop.f32.mrf.mxu0
      %v1803 = vadd.f32 %v857, %v1802
      %v1804 = vpop.f32.mrf.mxu0
      %v1805 = vadd.f32 %v861, %v1804
      %1806 = vdwg.mxu0
      %1807 = vmatprep.subr.bf16.mxu0 0
      %1808 = vmatpush1.bf16.msra.mxu0 0
      %1809 = vmatprep.subr.bf16.mxu0 0
      %1810 = vmatpush1.bf16.msra.mxu0 0
      %1811 = vmatprep.subr.bf16.mxu0 0
      %1812 = vmatpush1.bf16.msra.mxu0 0
      %1813 = vmatprep.subr.bf16.mxu0 0
      %1814 = vmatpush1.bf16.msra.mxu0 0
      %1815 = vmatprep.subr.bf16.mxu0 0
      %1816 = vmatpush1.bf16.msra.mxu0 0
      %1817 = vmatprep.subr.bf16.mxu0 0
      %1818 = vmatpush1.bf16.msra.mxu0 0
      %1819 = vmatprep.subr.bf16.mxu0 %v1033
      %1820 = vmatpush1.bf16.msra.mxu0 %v1030
      %1821 = vmatprep.subr.bf16.mxu0 %v934
      %1822 = vmatpush1.bf16.msra.mxu0 %v933
      %1823 = vmatprep.subr.bf16.mxu0 0
      %1824 = vmatpush2.bf16.msra.mxu0 0
      %1825 = vmatprep.subr.bf16.mxu0 0
      %1826 = vmatpush2.bf16.msra.mxu0 0
      %1827 = vmatprep.subr.bf16.mxu0 0
      %1828 = vmatpush2.bf16.msra.mxu0 0
      %1829 = vmatprep.subr.bf16.mxu0 0
      %1830 = vmatpush2.bf16.msra.mxu0 0
      %1831 = vmatprep.subr.bf16.mxu0 0
      %1832 = vmatpush2.bf16.msra.mxu0 0
      %1833 = vmatprep.subr.bf16.mxu0 0
      %1834 = vmatpush2.bf16.msra.mxu0 0
      %1835 = vmatprep.subr.bf16.mxu0 0
      %1836 = vmatpush2.bf16.msra.mxu0 0
      %1837 = vmatprep.subr.bf16.mxu0 0
      %1838 = vmatpush2.bf16.msra.mxu0 0
      %1839 = vmatprep.mubr.bf16.mxu0 0
      %1840 = vmatmul.mubr.bf16.gmra.mxu0 %v957
      %v1841 = vpop.f32.mrf.mxu0
      %v1842 = vadd.f32 %v865, %v1841
      %v1843 = vpop.f32.mrf.mxu0
      %v1844 = vadd.f32 %v869, %v1843
      %v1845 = vpop.f32.mrf.mxu0
      %v1846 = vadd.f32 %v865, %v1845
      %v1847 = vpop.f32.mrf.mxu0
      %v1848 = vadd.f32 %v869, %v1847
      %1849 = vmatprep.mubr.bf16.mxu0 0
      %1850 = vmatmul.mubr.bf16.gmra.mxu0 %v960
      %v1851 = vpop.f32.mrf.mxu0
      %v1852 = vadd.f32 %v865, %v1851
      %v1853 = vpop.f32.mrf.mxu0
      %v1854 = vadd.f32 %v869, %v1853
      %v1855 = vpop.f32.mrf.mxu0
      %v1856 = vadd.f32 %v865, %v1855
      %v1857 = vpop.f32.mrf.mxu0
      %v1858 = vadd.f32 %v869, %v1857
      %1859 = vmatprep.mubr.bf16.mxu0 0
      %1860 = vmatmul.mubr.bf16.gmra.mxu0 %v963
      %v1861 = vpop.f32.mrf.mxu0
      %v1862 = vadd.f32 %v865, %v1861
      %v1863 = vpop.f32.mrf.mxu0
      %v1864 = vadd.f32 %v869, %v1863
      %v1865 = vpop.f32.mrf.mxu0
      %v1866 = vadd.f32 %v865, %v1865
      %v1867 = vpop.f32.mrf.mxu0
      %v1868 = vadd.f32 %v869, %v1867
      %1869 = vmatprep.mubr.bf16.mxu0 0
      %1870 = vmatmul.mubr.bf16.gmra.mxu0 %v966
      %v1871 = vpop.f32.mrf.mxu0
      %v1872 = vadd.f32 %v865, %v1871
      %v1873 = vpop.f32.mrf.mxu0
      %v1874 = vadd.f32 %v869, %v1873
      %v1875 = vpop.f32.mrf.mxu0
      %v1876 = vadd.f32 %v865, %v1875
      %v1877 = vpop.f32.mrf.mxu0
      %v1878 = vadd.f32 %v869, %v1877
      %1879 = vmatprep.mubr.bf16.mxu0 0
      %1880 = vmatmul.mubr.bf16.gmra.mxu0 %v969
      %v1881 = vpop.f32.mrf.mxu0
      %v1882 = vadd.f32 %v865, %v1881
      %v1883 = vpop.f32.mrf.mxu0
      %v1884 = vadd.f32 %v869, %v1883
      %v1885 = vpop.f32.mrf.mxu0
      %v1886 = vadd.f32 %v865, %v1885
      %v1887 = vpop.f32.mrf.mxu0
      %v1888 = vadd.f32 %v869, %v1887
      %1889 = vmatprep.mubr.bf16.mxu0 0
      %1890 = vmatmul.mubr.bf16.gmra.mxu0 %v972
      %v1891 = vpop.f32.mrf.mxu0
      %v1892 = vadd.f32 %v865, %v1891
      %v1893 = vpop.f32.mrf.mxu0
      %v1894 = vadd.f32 %v869, %v1893
      %v1895 = vpop.f32.mrf.mxu0
      %v1896 = vadd.f32 %v865, %v1895
      %v1897 = vpop.f32.mrf.mxu0
      %v1898 = vadd.f32 %v869, %v1897
      %1899 = vmatprep.mubr.bf16.mxu0 0
      %1900 = vmatmul.mubr.bf16.gmra.mxu0 %v975
      %v1901 = vpop.f32.mrf.mxu0
      %v1902 = vadd.f32 %v865, %v1901
      %v1903 = vpop.f32.mrf.mxu0
      %v1904 = vadd.f32 %v869, %v1903
      %v1905 = vpop.f32.mrf.mxu0
      %v1906 = vadd.f32 %v865, %v1905
      %v1907 = vpop.f32.mrf.mxu0
      %v1908 = vadd.f32 %v869, %v1907
      %1909 = vmatprep.mubr.bf16.mxu0 0
      %1910 = vmatmul.mubr.bf16.gmra.mxu0 %v978
      %v1911 = vpop.f32.mrf.mxu0
      %v1912 = vadd.f32 %v865, %v1911
      %v1913 = vpop.f32.mrf.mxu0
      %v1914 = vadd.f32 %v869, %v1913
      %v1915 = vpop.f32.mrf.mxu0
      %v1916 = vadd.f32 %v865, %v1915
      %v1917 = vpop.f32.mrf.mxu0
      %v1918 = vadd.f32 %v869, %v1917
      %1919 = vmatprep.mubr.bf16.mxu0 0
      %1920 = vmatmul.mubr.bf16.gmra.mxu0 %v981
      %v1921 = vpop.f32.mrf.mxu0
      %v1922 = vadd.f32 %v865, %v1921
      %v1923 = vpop.f32.mrf.mxu0
      %v1924 = vadd.f32 %v869, %v1923
      %v1925 = vpop.f32.mrf.mxu0
      %v1926 = vadd.f32 %v865, %v1925
      %v1927 = vpop.f32.mrf.mxu0
      %v1928 = vadd.f32 %v869, %v1927
      %1929 = vmatprep.mubr.bf16.mxu0 0
      %1930 = vmatmul.mubr.bf16.gmra.mxu0 %v984
      %v1931 = vpop.f32.mrf.mxu0
      %v1932 = vadd.f32 %v865, %v1931
      %v1933 = vpop.f32.mrf.mxu0
      %v1934 = vadd.f32 %v869, %v1933
      %v1935 = vpop.f32.mrf.mxu0
      %v1936 = vadd.f32 %v865, %v1935
      %v1937 = vpop.f32.mrf.mxu0
      %v1938 = vadd.f32 %v869, %v1937
      %1939 = vmatprep.mubr.bf16.mxu0 0
      %1940 = vmatmul.mubr.bf16.gmra.mxu0 %v987
      %v1941 = vpop.f32.mrf.mxu0
      %v1942 = vadd.f32 %v865, %v1941
      %v1943 = vpop.f32.mrf.mxu0
      %v1944 = vadd.f32 %v869, %v1943
      %v1945 = vpop.f32.mrf.mxu0
      %v1946 = vadd.f32 %v865, %v1945
      %v1947 = vpop.f32.mrf.mxu0
      %v1948 = vadd.f32 %v869, %v1947
      %1949 = vmatprep.mubr.bf16.mxu0 0
      %1950 = vmatmul.mubr.bf16.gmra.mxu0 %v990
      %v1951 = vpop.f32.mrf.mxu0
      %v1952 = vadd.f32 %v865, %v1951
      %v1953 = vpop.f32.mrf.mxu0
      %v1954 = vadd.f32 %v869, %v1953
      %v1955 = vpop.f32.mrf.mxu0
      %v1956 = vadd.f32 %v865, %v1955
      %v1957 = vpop.f32.mrf.mxu0
      %v1958 = vadd.f32 %v869, %v1957
      %1959 = vmatprep.mubr.bf16.mxu0 0
      %1960 = vmatmul.mubr.bf16.gmra.mxu0 %v993
      %v1961 = vpop.f32.mrf.mxu0
      %v1962 = vadd.f32 %v865, %v1961
      %v1963 = vpop.f32.mrf.mxu0
      %v1964 = vadd.f32 %v869, %v1963
      %v1965 = vpop.f32.mrf.mxu0
      %v1966 = vadd.f32 %v865, %v1965
      %v1967 = vpop.f32.mrf.mxu0
      %v1968 = vadd.f32 %v869, %v1967
      %1969 = vmatprep.mubr.bf16.mxu0 0
      %1970 = vmatmul.mubr.bf16.gmra.mxu0 %v996
      %v1971 = vpop.f32.mrf.mxu0
      %v1972 = vadd.f32 %v865, %v1971
      %v1973 = vpop.f32.mrf.mxu0
      %v1974 = vadd.f32 %v869, %v1973
      %v1975 = vpop.f32.mrf.mxu0
      %v1976 = vadd.f32 %v865, %v1975
      %v1977 = vpop.f32.mrf.mxu0
      %v1978 = vadd.f32 %v869, %v1977
      %1979 = vmatprep.mubr.bf16.mxu0 0
      %1980 = vmatmul.mubr.bf16.gmra.mxu0 %v999
      %v1981 = vpop.f32.mrf.mxu0
      %v1982 = vadd.f32 %v865, %v1981
      %v1983 = vpop.f32.mrf.mxu0
      %v1984 = vadd.f32 %v869, %v1983
      %v1985 = vpop.f32.mrf.mxu0
      %v1986 = vadd.f32 %v865, %v1985
      %v1987 = vpop.f32.mrf.mxu0
      %v1988 = vadd.f32 %v869, %v1987
      %1989 = vmatprep.mubr.bf16.mxu0 0
      %1990 = vmatmul.mubr.bf16.gmra.mxu0 %v1002
      %v1991 = vpop.f32.mrf.mxu0
      %v1992 = vadd.f32 %v865, %v1991
      %v1993 = vpop.f32.mrf.mxu0
      %v1994 = vadd.f32 %v869, %v1993
      %v1995 = vpop.f32.mrf.mxu0
      %v1996 = vadd.f32 %v865, %v1995
      %v1997 = vpop.f32.mrf.mxu0
      %v1998 = vadd.f32 %v869, %v1997
      %1999 = vdwg.mxu0
      %v2000 = vmul.f32 %v1070, 0.5
      %v2001 = vmul.f32 %v1072, 0.5
      %v2002 = vmul.f32 %v1263, 0.5
      %v2003 = vmul.f32 %v1265, 0.5
      %v2004 = vmul.f32 %v1456, 0.5
      %v2005 = vmul.f32 %v1458, 0.5
      %v2006 = vmul.f32 %v1649, 0.5
      %v2007 = vmul.f32 %v1651, 0.5
      %v2008 = vmul.f32 %v1842, 0.5
      %v2009 = vmul.f32 %v1844, 0.5
      %v2010 = vmul.f32 %v1074, 0.5
      %v2011 = vmul.f32 %v1076, 0.5
      %v2012 = vmul.f32 %v1267, 0.5
      %v2013 = vmul.f32 %v1269, 0.5
      %v2014 = vmul.f32 %v1460, 0.5
      %v2015 = vmul.f32 %v1462, 0.5
      %v2016 = vmul.f32 %v1653, 0.5
      %v2017 = vmul.f32 %v1655, 0.5
      %v2018 = vmul.f32 %v1846, 0.5
      %v2019 = vmul.f32 %v1848, 0.5
      %v2020 = vmul.f32 %v1080, 0.5
      %v2021 = vmul.f32 %v1082, 0.5
      %v2022 = vmul.f32 %v1273, 0.5
      %v2023 = vmul.f32 %v1275, 0.5
      %v2024 = vmul.f32 %v1466, 0.5
      %v2025 = vmul.f32 %v1468, 0.5
      %v2026 = vmul.f32 %v1659, 0.5
      %v2027 = vmul.f32 %v1661, 0.5
      %v2028 = vmul.f32 %v1852, 0.5
      %v2029 = vmul.f32 %v1854, 0.5
      %v2030 = vmul.f32 %v1084, 0.5
      %v2031 = vmul.f32 %v1086, 0.5
      %v2032 = vmul.f32 %v1277, 0.5
      %v2033 = vmul.f32 %v1279, 0.5
      %v2034 = vmul.f32 %v1470, 0.5
      %v2035 = vmul.f32 %v1472, 0.5
      %v2036 = vmul.f32 %v1663, 0.5
      %v2037 = vmul.f32 %v1665, 0.5
      %v2038 = vmul.f32 %v1856, 0.5
      %v2039 = vmul.f32 %v1858, 0.5
      %v2040 = vmul.f32 %v1090, 0.5
      %v2041 = vmul.f32 %v1092, 0.5
      %v2042 = vmul.f32 %v1283, 0.5
      %v2043 = vmul.f32 %v1285, 0.5
      %v2044 = vmul.f32 %v1476, 0.5
      %v2045 = vmul.f32 %v1478, 0.5
      %v2046 = vmul.f32 %v1669, 0.5
      %v2047 = vmul.f32 %v1671, 0.5
      %v2048 = vmul.f32 %v1862, 0.5
      %v2049 = vmul.f32 %v1864, 0.5
      %v2050 = vmul.f32 %v1094, 0.5
      %v2051 = vmul.f32 %v1096, 0.5
      %v2052 = vmul.f32 %v1287, 0.5
      %v2053 = vmul.f32 %v1289, 0.5
      %v2054 = vmul.f32 %v1480, 0.5
      %v2055 = vmul.f32 %v1482, 0.5
      %v2056 = vmul.f32 %v1673, 0.5
      %v2057 = vmul.f32 %v1675, 0.5
      %v2058 = vmul.f32 %v1866, 0.5
      %v2059 = vmul.f32 %v1868, 0.5
      %v2060 = vmul.f32 %v1100, 0.5
      %v2061 = vmul.f32 %v1102, 0.5
      %v2062 = vmul.f32 %v1293, 0.5
      %v2063 = vmul.f32 %v1295, 0.5
      %v2064 = vmul.f32 %v1486, 0.5
      %v2065 = vmul.f32 %v1488, 0.5
      %v2066 = vmul.f32 %v1679, 0.5
      %v2067 = vmul.f32 %v1681, 0.5
      %v2068 = vmul.f32 %v1872, 0.5
      %v2069 = vmul.f32 %v1874, 0.5
      %v2070 = vmul.f32 %v1104, 0.5
      %v2071 = vmul.f32 %v1106, 0.5
      %v2072 = vmul.f32 %v1297, 0.5
      %v2073 = vmul.f32 %v1299, 0.5
      %v2074 = vmul.f32 %v1490, 0.5
      %v2075 = vmul.f32 %v1492, 0.5
      %v2076 = vmul.f32 %v1683, 0.5
      %v2077 = vmul.f32 %v1685, 0.5
      %v2078 = vmul.f32 %v1876, 0.5
      %v2079 = vmul.f32 %v1878, 0.5
      %v2080 = vmul.f32 %v1110, 0.5
      %v2081 = vmul.f32 %v1112, 0.5
      %v2082 = vmul.f32 %v1303, 0.5
      %v2083 = vmul.f32 %v1305, 0.5
      %v2084 = vmul.f32 %v1496, 0.5
      %v2085 = vmul.f32 %v1498, 0.5
      %v2086 = vmul.f32 %v1689, 0.5
      %v2087 = vmul.f32 %v1691, 0.5
      %v2088 = vmul.f32 %v1882, 0.5
      %v2089 = vmul.f32 %v1884, 0.5
      %v2090 = vmul.f32 %v1114, 0.5
      %v2091 = vmul.f32 %v1116, 0.5
      %v2092 = vmul.f32 %v1307, 0.5
      %v2093 = vmul.f32 %v1309, 0.5
      %v2094 = vmul.f32 %v1500, 0.5
      %v2095 = vmul.f32 %v1502, 0.5
      %v2096 = vmul.f32 %v1693, 0.5
      %v2097 = vmul.f32 %v1695, 0.5
      %v2098 = vmul.f32 %v1886, 0.5
      %v2099 = vmul.f32 %v1888, 0.5
      %v2100 = vmul.f32 %v1120, 0.5
      %v2101 = vmul.f32 %v1122, 0.5
      %v2102 = vmul.f32 %v1313, 0.5
      %v2103 = vmul.f32 %v1315, 0.5
      %v2104 = vmul.f32 %v1506, 0.5
      %v2105 = vmul.f32 %v1508, 0.5
      %v2106 = vmul.f32 %v1699, 0.5
      %v2107 = vmul.f32 %v1701, 0.5
      %v2108 = vmul.f32 %v1892, 0.5
      %v2109 = vmul.f32 %v1894, 0.5
      %v2110 = vmul.f32 %v1124, 0.5
      %v2111 = vmul.f32 %v1126, 0.5
      %v2112 = vmul.f32 %v1317, 0.5
      %v2113 = vmul.f32 %v1319, 0.5
      %v2114 = vmul.f32 %v1510, 0.5
      %v2115 = vmul.f32 %v1512, 0.5
      %v2116 = vmul.f32 %v1703, 0.5
      %v2117 = vmul.f32 %v1705, 0.5
      %v2118 = vmul.f32 %v1896, 0.5
      %v2119 = vmul.f32 %v1898, 0.5
      %v2120 = vmul.f32 %v1130, 0.5
      %v2121 = vmul.f32 %v1132, 0.5
      %v2122 = vmul.f32 %v1323, 0.5
      %v2123 = vmul.f32 %v1325, 0.5
      %v2124 = vmul.f32 %v1516, 0.5
      %v2125 = vmul.f32 %v1518, 0.5
      %v2126 = vmul.f32 %v1709, 0.5
      %v2127 = vmul.f32 %v1711, 0.5
      %v2128 = vmul.f32 %v1902, 0.5
      %v2129 = vmul.f32 %v1904, 0.5
      %v2130 = vmul.f32 %v1134, 0.5
      %v2131 = vmul.f32 %v1136, 0.5
      %v2132 = vmul.f32 %v1327, 0.5
      %v2133 = vmul.f32 %v1329, 0.5
      %v2134 = vmul.f32 %v1520, 0.5
      %v2135 = vmul.f32 %v1522, 0.5
      %v2136 = vmul.f32 %v1713, 0.5
      %v2137 = vmul.f32 %v1715, 0.5
      %v2138 = vmul.f32 %v1906, 0.5
      %v2139 = vmul.f32 %v1908, 0.5
      %v2140 = vmul.f32 %v1140, 0.5
      %v2141 = vmul.f32 %v1142, 0.5
      %v2142 = vmul.f32 %v1333, 0.5
      %v2143 = vmul.f32 %v1335, 0.5
      %v2144 = vmul.f32 %v1526, 0.5
      %v2145 = vmul.f32 %v1528, 0.5
      %v2146 = vmul.f32 %v1719, 0.5
      %v2147 = vmul.f32 %v1721, 0.5
      %v2148 = vmul.f32 %v1912, 0.5
      %v2149 = vmul.f32 %v1914, 0.5
      %v2150 = vmul.f32 %v1144, 0.5
      %v2151 = vmul.f32 %v1146, 0.5
      %v2152 = vmul.f32 %v1337, 0.5
      %v2153 = vmul.f32 %v1339, 0.5
      %v2154 = vmul.f32 %v1530, 0.5
      %v2155 = vmul.f32 %v1532, 0.5
      %v2156 = vmul.f32 %v1723, 0.5
      %v2157 = vmul.f32 %v1725, 0.5
      %v2158 = vmul.f32 %v1916, 0.5
      %v2159 = vmul.f32 %v1918, 0.5
      %v2160 = vmul.f32 %v1150, 0.5
      %v2161 = vmul.f32 %v1152, 0.5
      %v2162 = vmul.f32 %v1343, 0.5
      %v2163 = vmul.f32 %v1345, 0.5
      %v2164 = vmul.f32 %v1536, 0.5
      %v2165 = vmul.f32 %v1538, 0.5
      %v2166 = vmul.f32 %v1729, 0.5
      %v2167 = vmul.f32 %v1731, 0.5
      %v2168 = vmul.f32 %v1922, 0.5
      %v2169 = vmul.f32 %v1924, 0.5
      %v2170 = vmul.f32 %v1154, 0.5
      %v2171 = vmul.f32 %v1156, 0.5
      %v2172 = vmul.f32 %v1347, 0.5
      %v2173 = vmul.f32 %v1349, 0.5
      %v2174 = vmul.f32 %v1540, 0.5
      %v2175 = vmul.f32 %v1542, 0.5
      %v2176 = vmul.f32 %v1733, 0.5
      %v2177 = vmul.f32 %v1735, 0.5
      %v2178 = vmul.f32 %v1926, 0.5
      %v2179 = vmul.f32 %v1928, 0.5
      %v2180 = vmul.f32 %v1160, 0.5
      %v2181 = vmul.f32 %v1162, 0.5
      %v2182 = vmul.f32 %v1353, 0.5
      %v2183 = vmul.f32 %v1355, 0.5
      %v2184 = vmul.f32 %v1546, 0.5
      %v2185 = vmul.f32 %v1548, 0.5
      %v2186 = vmul.f32 %v1739, 0.5
      %v2187 = vmul.f32 %v1741, 0.5
      %v2188 = vmul.f32 %v1932, 0.5
      %v2189 = vmul.f32 %v1934, 0.5
      %v2190 = vmul.f32 %v1164, 0.5
      %v2191 = vmul.f32 %v1166, 0.5
      %v2192 = vmul.f32 %v1357, 0.5
      %v2193 = vmul.f32 %v1359, 0.5
      %v2194 = vmul.f32 %v1550, 0.5
      %v2195 = vmul.f32 %v1552, 0.5
      %v2196 = vmul.f32 %v1743, 0.5
      %v2197 = vmul.f32 %v1745, 0.5
      %v2198 = vmul.f32 %v1936, 0.5
      %v2199 = vmul.f32 %v1938, 0.5
      %v2200 = vmul.f32 %v1170, 0.5
      %v2201 = vmul.f32 %v1172, 0.5
      %v2202 = vmul.f32 %v1363, 0.5
      %v2203 = vmul.f32 %v1365, 0.5
      %v2204 = vmul.f32 %v1556, 0.5
      %v2205 = vmul.f32 %v1558, 0.5
      %v2206 = vmul.f32 %v1749, 0.5
      %v2207 = vmul.f32 %v1751, 0.5
      %v2208 = vmul.f32 %v1942, 0.5
      %v2209 = vmul.f32 %v1944, 0.5
      %v2210 = vmul.f32 %v1174, 0.5
      %v2211 = vmul.f32 %v1176, 0.5
      %v2212 = vmul.f32 %v1367, 0.5
      %v2213 = vmul.f32 %v1369, 0.5
      %v2214 = vmul.f32 %v1560, 0.5
      %v2215 = vmul.f32 %v1562, 0.5
      %v2216 = vmul.f32 %v1753, 0.5
      %v2217 = vmul.f32 %v1755, 0.5
      %v2218 = vmul.f32 %v1946, 0.5
      %v2219 = vmul.f32 %v1948, 0.5
      %v2220 = vmul.f32 %v1180, 0.5
      %v2221 = vmul.f32 %v1182, 0.5
      %v2222 = vmul.f32 %v1373, 0.5
      %v2223 = vmul.f32 %v1375, 0.5
      %v2224 = vmul.f32 %v1566, 0.5
      %v2225 = vmul.f32 %v1568, 0.5
      %v2226 = vmul.f32 %v1759, 0.5
      %v2227 = vmul.f32 %v1761, 0.5
      %v2228 = vmul.f32 %v1952, 0.5
      %v2229 = vmul.f32 %v1954, 0.5
      %v2230 = vmul.f32 %v1184, 0.5
      %v2231 = vmul.f32 %v1186, 0.5
      %v2232 = vmul.f32 %v1377, 0.5
      %v2233 = vmul.f32 %v1379, 0.5
      %v2234 = vmul.f32 %v1570, 0.5
      %v2235 = vmul.f32 %v1572, 0.5
      %v2236 = vmul.f32 %v1763, 0.5
      %v2237 = vmul.f32 %v1765, 0.5
      %v2238 = vmul.f32 %v1956, 0.5
      %v2239 = vmul.f32 %v1958, 0.5
      %v2240 = vmul.f32 %v1190, 0.5
      %v2241 = vmul.f32 %v1192, 0.5
      %v2242 = vmul.f32 %v1383, 0.5
      %v2243 = vmul.f32 %v1385, 0.5
      %v2244 = vmul.f32 %v1576, 0.5
      %v2245 = vmul.f32 %v1578, 0.5
      %v2246 = vmul.f32 %v1769, 0.5
      %v2247 = vmul.f32 %v1771, 0.5
      %v2248 = vmul.f32 %v1962, 0.5
      %v2249 = vmul.f32 %v1964, 0.5
      %v2250 = vmul.f32 %v1194, 0.5
      %v2251 = vmul.f32 %v1196, 0.5
      %v2252 = vmul.f32 %v1387, 0.5
      %v2253 = vmul.f32 %v1389, 0.5
      %v2254 = vmul.f32 %v1580, 0.5
      %v2255 = vmul.f32 %v1582, 0.5
      %v2256 = vmul.f32 %v1773, 0.5
      %v2257 = vmul.f32 %v1775, 0.5
      %v2258 = vmul.f32 %v1966, 0.5
      %v2259 = vmul.f32 %v1968, 0.5
      %v2260 = vmul.f32 %v1200, 0.5
      %v2261 = vmul.f32 %v1202, 0.5
      %v2262 = vmul.f32 %v1393, 0.5
      %v2263 = vmul.f32 %v1395, 0.5
      %v2264 = vmul.f32 %v1586, 0.5
      %v2265 = vmul.f32 %v1588, 0.5
      %v2266 = vmul.f32 %v1779, 0.5
      %v2267 = vmul.f32 %v1781, 0.5
      %v2268 = vmul.f32 %v1972, 0.5
      %v2269 = vmul.f32 %v1974, 0.5
      %v2270 = vmul.f32 %v1204, 0.5
      %v2271 = vmul.f32 %v1206, 0.5
      %v2272 = vmul.f32 %v1397, 0.5
      %v2273 = vmul.f32 %v1399, 0.5
      %v2274 = vmul.f32 %v1590, 0.5
      %v2275 = vmul.f32 %v1592, 0.5
      %v2276 = vmul.f32 %v1783, 0.5
      %v2277 = vmul.f32 %v1785, 0.5
      %v2278 = vmul.f32 %v1976, 0.5
      %v2279 = vmul.f32 %v1978, 0.5
      %v2280 = vmul.f32 %v1210, 0.5
      %v2281 = vmul.f32 %v1212, 0.5
      %v2282 = vmul.f32 %v1403, 0.5
      %v2283 = vmul.f32 %v1405, 0.5
      %v2284 = vmul.f32 %v1596, 0.5
      %v2285 = vmul.f32 %v1598, 0.5
      %v2286 = vmul.f32 %v1789, 0.5
      %v2287 = vmul.f32 %v1791, 0.5
      %v2288 = vmul.f32 %v1982, 0.5
      %v2289 = vmul.f32 %v1984, 0.5
      %v2290 = vmul.f32 %v1214, 0.5
      %v2291 = vmul.f32 %v1216, 0.5
      %v2292 = vmul.f32 %v1407, 0.5
      %v2293 = vmul.f32 %v1409, 0.5
      %v2294 = vmul.f32 %v1600, 0.5
      %v2295 = vmul.f32 %v1602, 0.5
      %v2296 = vmul.f32 %v1793, 0.5
      %v2297 = vmul.f32 %v1795, 0.5
      %v2298 = vmul.f32 %v1986, 0.5
      %v2299 = vmul.f32 %v1988, 0.5
      %v2300 = vmul.f32 %v1220, 0.5
      %v2301 = vmul.f32 %v1222, 0.5
      %v2302 = vmul.f32 %v1413, 0.5
      %v2303 = vmul.f32 %v1415, 0.5
      %v2304 = vmul.f32 %v1606, 0.5
      %v2305 = vmul.f32 %v1608, 0.5
      %v2306 = vmul.f32 %v1799, 0.5
      %v2307 = vmul.f32 %v1801, 0.5
      %v2308 = vmul.f32 %v1992, 0.5
      %v2309 = vmul.f32 %v1994, 0.5
      %v2310 = vmul.f32 %v1224, 0.5
      %v2311 = vmul.f32 %v1226, 0.5
      %v2312 = vmul.f32 %v1417, 0.5
      %v2313 = vmul.f32 %v1419, 0.5
      %v2314 = vmul.f32 %v1610, 0.5
      %v2315 = vmul.f32 %v1612, 0.5
      %v2316 = vmul.f32 %v1803, 0.5
      %v2317 = vmul.f32 %v1805, 0.5
      %v2318 = vmul.f32 %v1996, 0.5
      %v2319 = vmul.f32 %v1998, 0.5
      %v2320 = vtanh.pop %v2000
      %v2321 = vtanh.pop %v2001
      %v2322 = vtanh.pop %v2002
      %v2323 = vtanh.pop %v2003
      %v2324 = vtanh.pop %v2004
      %v2325 = vtanh.pop %v2005
      %v2326 = vtanh.pop %v2006
      %v2327 = vtanh.pop %v2007
      %v2328 = vtanh.pop %v2008
      %v2329 = vtanh.pop %v2009
      %v2330 = vtanh.pop %v2010
      %v2331 = vtanh.pop %v2011
      %v2332 = vtanh.pop %v2012
      %v2333 = vtanh.pop %v2013
      %v2334 = vtanh.pop %v2014
      %v2335 = vtanh.pop %v2015
      %v2336 = vtanh.pop %v2016
      %v2337 = vtanh.pop %v2017
      %v2338 = vtanh.pop %v2018
      %v2339 = vtanh.pop %v2019
      %v2340 = vtanh.pop %v2020
      %v2341 = vtanh.pop %v2021
      %v2342 = vtanh.pop %v2022
      %v2343 = vtanh.pop %v2023
      %v2344 = vtanh.pop %v2024
      %v2345 = vtanh.pop %v2025
      %v2346 = vtanh.pop %v2026
      %v2347 = vtanh.pop %v2027
      %v2348 = vtanh.pop %v2028
      %v2349 = vtanh.pop %v2029
      %v2350 = vtanh.pop %v2030
      %v2351 = vtanh.pop %v2031
      %v2352 = vtanh.pop %v2032
      %v2353 = vtanh.pop %v2033
      %v2354 = vtanh.pop %v2034
      %v2355 = vtanh.pop %v2035
      %v2356 = vtanh.pop %v2036
      %v2357 = vtanh.pop %v2037
      %v2358 = vtanh.pop %v2038
      %v2359 = vtanh.pop %v2039
      %v2360 = vtanh.pop %v2040
      %v2361 = vtanh.pop %v2041
      %v2362 = vtanh.pop %v2042
      %v2363 = vtanh.pop %v2043
      %v2364 = vtanh.pop %v2044
      %v2365 = vtanh.pop %v2045
      %v2366 = vtanh.pop %v2046
      %v2367 = vtanh.pop %v2047
      %v2368 = vtanh.pop %v2048
      %v2369 = vtanh.pop %v2049
      %v2370 = vtanh.pop %v2050
      %v2371 = vtanh.pop %v2051
      %v2372 = vtanh.pop %v2052
      %v2373 = vtanh.pop %v2053
      %v2374 = vtanh.pop %v2054
      %v2375 = vtanh.pop %v2055
      %v2376 = vtanh.pop %v2056
      %v2377 = vtanh.pop %v2057
      %v2378 = vtanh.pop %v2058
      %v2379 = vtanh.pop %v2059
      %v2380 = vtanh.pop %v2060
      %v2381 = vtanh.pop %v2061
      %v2382 = vtanh.pop %v2062
      %v2383 = vtanh.pop %v2063
      %v2384 = vtanh.pop %v2064
      %v2385 = vtanh.pop %v2065
      %v2386 = vtanh.pop %v2066
      %v2387 = vtanh.pop %v2067
      %v2388 = vtanh.pop %v2068
      %v2389 = vtanh.pop %v2069
      %v2390 = vtanh.pop %v2070
      %v2391 = vtanh.pop %v2071
      %v2392 = vtanh.pop %v2072
      %v2393 = vtanh.pop %v2073
      %v2394 = vtanh.pop %v2074
      %v2395 = vtanh.pop %v2075
      %v2396 = vtanh.pop %v2076
      %v2397 = vtanh.pop %v2077
      %v2398 = vtanh.pop %v2078
      %v2399 = vtanh.pop %v2079
      %v2400 = vtanh.pop %v2080
      %v2401 = vtanh.pop %v2081
      %v2402 = vtanh.pop %v2082
      %v2403 = vtanh.pop %v2083
      %v2404 = vtanh.pop %v2084
      %v2405 = vtanh.pop %v2085
      %v2406 = vtanh.pop %v2086
      %v2407 = vtanh.pop %v2087
      %v2408 = vtanh.pop %v2088
      %v2409 = vtanh.pop %v2089
      %v2410 = vtanh.pop %v2090
      %v2411 = vtanh.pop %v2091
      %v2412 = vtanh.pop %v2092
      %v2413 = vtanh.pop %v2093
      %v2414 = vtanh.pop %v2094
      %v2415 = vtanh.pop %v2095
      %v2416 = vtanh.pop %v2096
      %v2417 = vtanh.pop %v2097
      %v2418 = vtanh.pop %v2098
      %v2419 = vtanh.pop %v2099
      %v2420 = vtanh.pop %v2100
      %v2421 = vtanh.pop %v2101
      %v2422 = vtanh.pop %v2102
      %v2423 = vtanh.pop %v2103
      %v2424 = vtanh.pop %v2104
      %v2425 = vtanh.pop %v2105
      %v2426 = vtanh.pop %v2106
      %v2427 = vtanh.pop %v2107
      %v2428 = vtanh.pop %v2108
      %v2429 = vtanh.pop %v2109
      %v2430 = vtanh.pop %v2110
      %v2431 = vtanh.pop %v2111
      %v2432 = vtanh.pop %v2112
      %v2433 = vtanh.pop %v2113
      %v2434 = vtanh.pop %v2114
      %v2435 = vtanh.pop %v2115
      %v2436 = vtanh.pop %v2116
      %v2437 = vtanh.pop %v2117
      %v2438 = vtanh.pop %v2118
      %v2439 = vtanh.pop %v2119
      %v2440 = vtanh.pop %v2120
      %v2441 = vtanh.pop %v2121
      %v2442 = vtanh.pop %v2122
      %v2443 = vtanh.pop %v2123
      %v2444 = vtanh.pop %v2124
      %v2445 = vtanh.pop %v2125
      %v2446 = vtanh.pop %v2126
      %v2447 = vtanh.pop %v2127
      %v2448 = vtanh.pop %v2128
      %v2449 = vtanh.pop %v2129
      %v2450 = vtanh.pop %v2130
      %v2451 = vtanh.pop %v2131
      %v2452 = vtanh.pop %v2132
      %v2453 = vtanh.pop %v2133
      %v2454 = vtanh.pop %v2134
      %v2455 = vtanh.pop %v2135
      %v2456 = vtanh.pop %v2136
      %v2457 = vtanh.pop %v2137
      %v2458 = vtanh.pop %v2138
      %v2459 = vtanh.pop %v2139
      %v2460 = vtanh.pop %v2140
      %v2461 = vtanh.pop %v2141
      %v2462 = vtanh.pop %v2142
      %v2463 = vtanh.pop %v2143
      %v2464 = vtanh.pop %v2144
      %v2465 = vtanh.pop %v2145
      %v2466 = vtanh.pop %v2146
      %v2467 = vtanh.pop %v2147
      %v2468 = vtanh.pop %v2148
      %v2469 = vtanh.pop %v2149
      %v2470 = vtanh.pop %v2150
      %v2471 = vtanh.pop %v2151
      %v2472 = vtanh.pop %v2152
      %v2473 = vtanh.pop %v2153
      %v2474 = vtanh.pop %v2154
      %v2475 = vtanh.pop %v2155
      %v2476 = vtanh.pop %v2156
      %v2477 = vtanh.pop %v2157
      %v2478 = vtanh.pop %v2158
      %v2479 = vtanh.pop %v2159
      %v2480 = vtanh.pop %v2160
      %v2481 = vtanh.pop %v2161
      %v2482 = vtanh.pop %v2162
      %v2483 = vtanh.pop %v2163
      %v2484 = vtanh.pop %v2164
      %v2485 = vtanh.pop %v2165
      %v2486 = vtanh.pop %v2166
      %v2487 = vtanh.pop %v2167
      %v2488 = vtanh.pop %v2168
      %v2489 = vtanh.pop %v2169
      %v2490 = vtanh.pop %v2170
      %v2491 = vtanh.pop %v2171
      %v2492 = vtanh.pop %v2172
      %v2493 = vtanh.pop %v2173
      %v2494 = vtanh.pop %v2174
      %v2495 = vtanh.pop %v2175
      %v2496 = vtanh.pop %v2176
      %v2497 = vtanh.pop %v2177
      %v2498 = vtanh.pop %v2178
      %v2499 = vtanh.pop %v2179
      %v2500 = vtanh.pop %v2180
      %v2501 = vtanh.pop %v2181
      %v2502 = vtanh.pop %v2182
      %v2503 = vtanh.pop %v2183
      %v2504 = vtanh.pop %v2184
      %v2505 = vtanh.pop %v2185
      %v2506 = vtanh.pop %v2186
      %v2507 = vtanh.pop %v2187
      %v2508 = vtanh.pop %v2188
      %v2509 = vtanh.pop %v2189
      %v2510 = vtanh.pop %v2190
      %v2511 = vtanh.pop %v2191
      %v2512 = vtanh.pop %v2192
      %v2513 = vtanh.pop %v2193
      %v2514 = vtanh.pop %v2194
      %v2515 = vtanh.pop %v2195
      %v2516 = vtanh.pop %v2196
      %v2517 = vtanh.pop %v2197
      %v2518 = vtanh.pop %v2198
      %v2519 = vtanh.pop %v2199
      %v2520 = vtanh.pop %v2200
      %v2521 = vtanh.pop %v2201
      %v2522 = vtanh.pop %v2202
      %v2523 = vtanh.pop %v2203
      %v2524 = vtanh.pop %v2204
      %v2525 = vtanh.pop %v2205
      %v2526 = vtanh.pop %v2206
      %v2527 = vtanh.pop %v2207
      %v2528 = vtanh.pop %v2208
      %v2529 = vtanh.pop %v2209
      %v2530 = vtanh.pop %v2210
      %v2531 = vtanh.pop %v2211
      %v2532 = vtanh.pop %v2212
      %v2533 = vtanh.pop %v2213
      %v2534 = vtanh.pop %v2214
      %v2535 = vtanh.pop %v2215
      %v2536 = vtanh.pop %v2216
      %v2537 = vtanh.pop %v2217
      %v2538 = vtanh.pop %v2218
      %v2539 = vtanh.pop %v2219
      %v2540 = vtanh.pop %v2220
      %v2541 = vtanh.pop %v2221
      %v2542 = vtanh.pop %v2222
      %v2543 = vtanh.pop %v2223
      %v2544 = vtanh.pop %v2224
      %v2545 = vtanh.pop %v2225
      %v2546 = vtanh.pop %v2226
      %v2547 = vtanh.pop %v2227
      %v2548 = vtanh.pop %v2228
      %v2549 = vtanh.pop %v2229
      %v2550 = vtanh.pop %v2230
      %v2551 = vtanh.pop %v2231
      %v2552 = vtanh.pop %v2232
      %v2553 = vtanh.pop %v2233
      %v2554 = vtanh.pop %v2234
      %v2555 = vtanh.pop %v2235
      %v2556 = vtanh.pop %v2236
      %v2557 = vtanh.pop %v2237
      %v2558 = vtanh.pop %v2238
      %v2559 = vtanh.pop %v2239
      %v2560 = vtanh.pop %v2240
      %v2561 = vtanh.pop %v2241
      %v2562 = vtanh.pop %v2242
      %v2563 = vtanh.pop %v2243
      %v2564 = vtanh.pop %v2244
      %v2565 = vtanh.pop %v2245
      %v2566 = vtanh.pop %v2246
      %v2567 = vtanh.pop %v2247
      %v2568 = vtanh.pop %v2248
      %v2569 = vtanh.pop %v2249
      %v2570 = vtanh.pop %v2250
      %v2571 = vtanh.pop %v2251
      %v2572 = vtanh.pop %v2252
      %v2573 = vtanh.pop %v2253
      %v2574 = vtanh.pop %v2254
      %v2575 = vtanh.pop %v2255
      %v2576 = vtanh.pop %v2256
      %v2577 = vtanh.pop %v2257
      %v2578 = vtanh.pop %v2258
      %v2579 = vtanh.pop %v2259
      %v2580 = vtanh.pop %v2260
      %v2581 = vtanh.pop %v2261
      %v2582 = vtanh.pop %v2262
      %v2583 = vtanh.pop %v2263
      %v2584 = vtanh.pop %v2264
      %v2585 = vtanh.pop %v2265
      %v2586 = vtanh.pop %v2266
      %v2587 = vtanh.pop %v2267
      %v2588 = vtanh.pop %v2268
      %v2589 = vtanh.pop %v2269
      %v2590 = vtanh.pop %v2270
      %v2591 = vtanh.pop %v2271
      %v2592 = vtanh.pop %v2272
      %v2593 = vtanh.pop %v2273
      %v2594 = vtanh.pop %v2274
      %v2595 = vtanh.pop %v2275
      %v2596 = vtanh.pop %v2276
      %v2597 = vtanh.pop %v2277
      %v2598 = vtanh.pop %v2278
      %v2599 = vtanh.pop %v2279
      %v2600 = vtanh.pop %v2280
      %v2601 = vtanh.pop %v2281
      %v2602 = vtanh.pop %v2282
      %v2603 = vtanh.pop %v2283
      %v2604 = vtanh.pop %v2284
      %v2605 = vtanh.pop %v2285
      %v2606 = vtanh.pop %v2286
      %v2607 = vtanh.pop %v2287
      %v2608 = vtanh.pop %v2288
      %v2609 = vtanh.pop %v2289
      %v2610 = vtanh.pop %v2290
      %v2611 = vtanh.pop %v2291
      %v2612 = vtanh.pop %v2292
      %v2613 = vtanh.pop %v2293
      %v2614 = vtanh.pop %v2294
      %v2615 = vtanh.pop %v2295
      %v2616 = vtanh.pop %v2296
      %v2617 = vtanh.pop %v2297
      %v2618 = vtanh.pop %v2298
      %v2619 = vtanh.pop %v2299
      %v2620 = vtanh.pop %v2300
      %v2621 = vtanh.pop %v2301
      %v2622 = vtanh.pop %v2302
      %v2623 = vtanh.pop %v2303
      %v2624 = vtanh.pop %v2304
      %v2625 = vtanh.pop %v2305
      %v2626 = vtanh.pop %v2306
      %v2627 = vtanh.pop %v2307
      %v2628 = vtanh.pop %v2308
      %v2629 = vtanh.pop %v2309
      %v2630 = vtanh.pop %v2310
      %v2631 = vtanh.pop %v2311
      %v2632 = vtanh.pop %v2312
      %v2633 = vtanh.pop %v2313
      %v2634 = vtanh.pop %v2314
      %v2635 = vtanh.pop %v2315
      %v2636 = vtanh.pop %v2316
      %v2637 = vtanh.pop %v2317
      %v2638 = vtanh.pop %v2318
      %v2639 = vtanh.pop %v2319
      %v2640 = vmul.f32 %v2320, 0.5
      %v2641 = vmul.f32 %v2321, 0.5
      %v2642 = vmul.f32 %v2322, 0.5
      %v2643 = vmul.f32 %v2323, 0.5
      %v2644 = vmul.f32 %v2324, 0.5
      %v2645 = vmul.f32 %v2325, 0.5
      %v2646 = vmul.f32 %v2326, 0.5
      %v2647 = vmul.f32 %v2327, 0.5
      %v2648 = vmul.f32 %v2328, 0.5
      %v2649 = vmul.f32 %v2329, 0.5
      %v2650 = vmul.f32 %v2330, 0.5
      %v2651 = vmul.f32 %v2331, 0.5
      %v2652 = vmul.f32 %v2332, 0.5
      %v2653 = vmul.f32 %v2333, 0.5
      %v2654 = vmul.f32 %v2334, 0.5
      %v2655 = vmul.f32 %v2335, 0.5
      %v2656 = vmul.f32 %v2336, 0.5
      %v2657 = vmul.f32 %v2337, 0.5
      %v2658 = vmul.f32 %v2338, 0.5
      %v2659 = vmul.f32 %v2339, 0.5
      %v2660 = vmul.f32 %v2340, 0.5
      %v2661 = vmul.f32 %v2341, 0.5
      %v2662 = vmul.f32 %v2342, 0.5
      %v2663 = vmul.f32 %v2343, 0.5
      %v2664 = vmul.f32 %v2344, 0.5
      %v2665 = vmul.f32 %v2345, 0.5
      %v2666 = vmul.f32 %v2346, 0.5
      %v2667 = vmul.f32 %v2347, 0.5
      %v2668 = vmul.f32 %v2348, 0.5
      %v2669 = vmul.f32 %v2349, 0.5
      %v2670 = vmul.f32 %v2350, 0.5
      %v2671 = vmul.f32 %v2351, 0.5
      %v2672 = vmul.f32 %v2352, 0.5
      %v2673 = vmul.f32 %v2353, 0.5
      %v2674 = vmul.f32 %v2354, 0.5
      %v2675 = vmul.f32 %v2355, 0.5
      %v2676 = vmul.f32 %v2356, 0.5
      %v2677 = vmul.f32 %v2357, 0.5
      %v2678 = vmul.f32 %v2358, 0.5
      %v2679 = vmul.f32 %v2359, 0.5
      %v2680 = vmul.f32 %v2360, 0.5
      %v2681 = vmul.f32 %v2361, 0.5
      %v2682 = vmul.f32 %v2362, 0.5
      %v2683 = vmul.f32 %v2363, 0.5
      %v2684 = vmul.f32 %v2364, 0.5
      %v2685 = vmul.f32 %v2365, 0.5
      %v2686 = vmul.f32 %v2366, 0.5
      %v2687 = vmul.f32 %v2367, 0.5
      %v2688 = vmul.f32 %v2368, 0.5
      %v2689 = vmul.f32 %v2369, 0.5
      %v2690 = vmul.f32 %v2370, 0.5
      %v2691 = vmul.f32 %v2371, 0.5
      %v2692 = vmul.f32 %v2372, 0.5
      %v2693 = vmul.f32 %v2373, 0.5
      %v2694 = vmul.f32 %v2374, 0.5
      %v2695 = vmul.f32 %v2375, 0.5
      %v2696 = vmul.f32 %v2376, 0.5
      %v2697 = vmul.f32 %v2377, 0.5
      %v2698 = vmul.f32 %v2378, 0.5
      %v2699 = vmul.f32 %v2379, 0.5
      %v2700 = vmul.f32 %v2380, 0.5
      %v2701 = vmul.f32 %v2381, 0.5
      %v2702 = vmul.f32 %v2382, 0.5
      %v2703 = vmul.f32 %v2383, 0.5
      %v2704 = vmul.f32 %v2384, 0.5
      %v2705 = vmul.f32 %v2385, 0.5
      %v2706 = vmul.f32 %v2386, 0.5
      %v2707 = vmul.f32 %v2387, 0.5
      %v2708 = vmul.f32 %v2388, 0.5
      %v2709 = vmul.f32 %v2389, 0.5
      %v2710 = vmul.f32 %v2390, 0.5
      %v2711 = vmul.f32 %v2391, 0.5
      %v2712 = vmul.f32 %v2392, 0.5
      %v2713 = vmul.f32 %v2393, 0.5
      %v2714 = vmul.f32 %v2394, 0.5
      %v2715 = vmul.f32 %v2395, 0.5
      %v2716 = vmul.f32 %v2396, 0.5
      %v2717 = vmul.f32 %v2397, 0.5
      %v2718 = vmul.f32 %v2398, 0.5
      %v2719 = vmul.f32 %v2399, 0.5
      %v2720 = vmul.f32 %v2400, 0.5
      %v2721 = vmul.f32 %v2401, 0.5
      %v2722 = vmul.f32 %v2402, 0.5
      %v2723 = vmul.f32 %v2403, 0.5
      %v2724 = vmul.f32 %v2404, 0.5
      %v2725 = vmul.f32 %v2405, 0.5
      %v2726 = vmul.f32 %v2406, 0.5
      %v2727 = vmul.f32 %v2407, 0.5
      %v2728 = vmul.f32 %v2408, 0.5
      %v2729 = vmul.f32 %v2409, 0.5
      %v2730 = vmul.f32 %v2410, 0.5
      %v2731 = vmul.f32 %v2411, 0.5
      %v2732 = vmul.f32 %v2412, 0.5
      %v2733 = vmul.f32 %v2413, 0.5
      %v2734 = vmul.f32 %v2414, 0.5
      %v2735 = vmul.f32 %v2415, 0.5
      %v2736 = vmul.f32 %v2416, 0.5
      %v2737 = vmul.f32 %v2417, 0.5
      %v2738 = vmul.f32 %v2418, 0.5
      %v2739 = vmul.f32 %v2419, 0.5
      %v2740 = vmul.f32 %v2420, 0.5
      %v2741 = vmul.f32 %v2421, 0.5
      %v2742 = vmul.f32 %v2422, 0.5
      %v2743 = vmul.f32 %v2423, 0.5
      %v2744 = vmul.f32 %v2424, 0.5
      %v2745 = vmul.f32 %v2425, 0.5
      %v2746 = vmul.f32 %v2426, 0.5
      %v2747 = vmul.f32 %v2427, 0.5
      %v2748 = vmul.f32 %v2428, 0.5
      %v2749 = vmul.f32 %v2429, 0.5
      %v2750 = vmul.f32 %v2430, 0.5
      %v2751 = vmul.f32 %v2431, 0.5
      %v2752 = vmul.f32 %v2432, 0.5
      %v2753 = vmul.f32 %v2433, 0.5
      %v2754 = vmul.f32 %v2434, 0.5
      %v2755 = vmul.f32 %v2435, 0.5
      %v2756 = vmul.f32 %v2436, 0.5
      %v2757 = vmul.f32 %v2437, 0.5
      %v2758 = vmul.f32 %v2438, 0.5
      %v2759 = vmul.f32 %v2439, 0.5
      %v2760 = vmul.f32 %v2440, 0.5
      %v2761 = vmul.f32 %v2441, 0.5
      %v2762 = vmul.f32 %v2442, 0.5
      %v2763 = vmul.f32 %v2443, 0.5
      %v2764 = vmul.f32 %v2444, 0.5
      %v2765 = vmul.f32 %v2445, 0.5
      %v2766 = vmul.f32 %v2446, 0.5
      %v2767 = vmul.f32 %v2447, 0.5
      %v2768 = vmul.f32 %v2448, 0.5
      %v2769 = vmul.f32 %v2449, 0.5
      %v2770 = vmul.f32 %v2450, 0.5
      %v2771 = vmul.f32 %v2451, 0.5
      %v2772 = vmul.f32 %v2452, 0.5
      %v2773 = vmul.f32 %v2453, 0.5
      %v2774 = vmul.f32 %v2454, 0.5
      %v2775 = vmul.f32 %v2455, 0.5
      %v2776 = vmul.f32 %v2456, 0.5
      %v2777 = vmul.f32 %v2457, 0.5
      %v2778 = vmul.f32 %v2458, 0.5
      %v2779 = vmul.f32 %v2459, 0.5
      %v2780 = vmul.f32 %v2460, 0.5
      %v2781 = vmul.f32 %v2461, 0.5
      %v2782 = vmul.f32 %v2462, 0.5
      %v2783 = vmul.f32 %v2463, 0.5
      %v2784 = vmul.f32 %v2464, 0.5
      %v2785 = vmul.f32 %v2465, 0.5
      %v2786 = vmul.f32 %v2466, 0.5
      %v2787 = vmul.f32 %v2467, 0.5
      %v2788 = vmul.f32 %v2468, 0.5
      %v2789 = vmul.f32 %v2469, 0.5
      %v2790 = vmul.f32 %v2470, 0.5
      %v2791 = vmul.f32 %v2471, 0.5
      %v2792 = vmul.f32 %v2472, 0.5
      %v2793 = vmul.f32 %v2473, 0.5
      %v2794 = vmul.f32 %v2474, 0.5
      %v2795 = vmul.f32 %v2475, 0.5
      %v2796 = vmul.f32 %v2476, 0.5
      %v2797 = vmul.f32 %v2477, 0.5
      %v2798 = vmul.f32 %v2478, 0.5
      %v2799 = vmul.f32 %v2479, 0.5
      %v2800 = vmul.f32 %v2480, 0.5
      %v2801 = vmul.f32 %v2481, 0.5
      %v2802 = vmul.f32 %v2482, 0.5
      %v2803 = vmul.f32 %v2483, 0.5
      %v2804 = vmul.f32 %v2484, 0.5
      %v2805 = vmul.f32 %v2485, 0.5
      %v2806 = vmul.f32 %v2486, 0.5
      %v2807 = vmul.f32 %v2487, 0.5
      %v2808 = vmul.f32 %v2488, 0.5
      %v2809 = vmul.f32 %v2489, 0.5
      %v2810 = vmul.f32 %v2490, 0.5
      %v2811 = vmul.f32 %v2491, 0.5
      %v2812 = vmul.f32 %v2492, 0.5
      %v2813 = vmul.f32 %v2493, 0.5
      %v2814 = vmul.f32 %v2494, 0.5
      %v2815 = vmul.f32 %v2495, 0.5
      %v2816 = vmul.f32 %v2496, 0.5
      %v2817 = vmul.f32 %v2497, 0.5
      %v2818 = vmul.f32 %v2498, 0.5
      %v2819 = vmul.f32 %v2499, 0.5
      %v2820 = vmul.f32 %v2500, 0.5
      %v2821 = vmul.f32 %v2501, 0.5
      %v2822 = vmul.f32 %v2502, 0.5
      %v2823 = vmul.f32 %v2503, 0.5
      %v2824 = vmul.f32 %v2504, 0.5
      %v2825 = vmul.f32 %v2505, 0.5
      %v2826 = vmul.f32 %v2506, 0.5
      %v2827 = vmul.f32 %v2507, 0.5
      %v2828 = vmul.f32 %v2508, 0.5
      %v2829 = vmul.f32 %v2509, 0.5
      %v2830 = vmul.f32 %v2510, 0.5
      %v2831 = vmul.f32 %v2511, 0.5
      %v2832 = vmul.f32 %v2512, 0.5
      %v2833 = vmul.f32 %v2513, 0.5
      %v2834 = vmul.f32 %v2514, 0.5
      %v2835 = vmul.f32 %v2515, 0.5
      %v2836 = vmul.f32 %v2516, 0.5
      %v2837 = vmul.f32 %v2517, 0.5
      %v2838 = vmul.f32 %v2518, 0.5
      %v2839 = vmul.f32 %v2519, 0.5
      %v2840 = vmul.f32 %v2520, 0.5
      %v2841 = vmul.f32 %v2521, 0.5
      %v2842 = vmul.f32 %v2522, 0.5
      %v2843 = vmul.f32 %v2523, 0.5
      %v2844 = vmul.f32 %v2524, 0.5
      %v2845 = vmul.f32 %v2525, 0.5
      %v2846 = vmul.f32 %v2526, 0.5
      %v2847 = vmul.f32 %v2527, 0.5
      %v2848 = vmul.f32 %v2528, 0.5
      %v2849 = vmul.f32 %v2529, 0.5
      %v2850 = vmul.f32 %v2530, 0.5
      %v2851 = vmul.f32 %v2531, 0.5
      %v2852 = vmul.f32 %v2532, 0.5
      %v2853 = vmul.f32 %v2533, 0.5
      %v2854 = vmul.f32 %v2534, 0.5
      %v2855 = vmul.f32 %v2535, 0.5
      %v2856 = vmul.f32 %v2536, 0.5
      %v2857 = vmul.f32 %v2537, 0.5
      %v2858 = vmul.f32 %v2538, 0.5
      %v2859 = vmul.f32 %v2539, 0.5
      %v2860 = vmul.f32 %v2540, 0.5
      %v2861 = vmul.f32 %v2541, 0.5
      %v2862 = vmul.f32 %v2542, 0.5
      %v2863 = vmul.f32 %v2543, 0.5
      %v2864 = vmul.f32 %v2544, 0.5
      %v2865 = vmul.f32 %v2545, 0.5
      %v2866 = vmul.f32 %v2546, 0.5
      %v2867 = vmul.f32 %v2547, 0.5
      %v2868 = vmul.f32 %v2548, 0.5
      %v2869 = vmul.f32 %v2549, 0.5
      %v2870 = vmul.f32 %v2550, 0.5
      %v2871 = vmul.f32 %v2551, 0.5
      %v2872 = vmul.f32 %v2552, 0.5
      %v2873 = vmul.f32 %v2553, 0.5
      %v2874 = vmul.f32 %v2554, 0.5
      %v2875 = vmul.f32 %v2555, 0.5
      %v2876 = vmul.f32 %v2556, 0.5
      %v2877 = vmul.f32 %v2557, 0.5
      %v2878 = vmul.f32 %v2558, 0.5
      %v2879 = vmul.f32 %v2559, 0.5
      %v2880 = vmul.f32 %v2560, 0.5
      %v2881 = vmul.f32 %v2561, 0.5
      %v2882 = vmul.f32 %v2562, 0.5
      %v2883 = vmul.f32 %v2563, 0.5
      %v2884 = vmul.f32 %v2564, 0.5
      %v2885 = vmul.f32 %v2565, 0.5
      %v2886 = vmul.f32 %v2566, 0.5
      %v2887 = vmul.f32 %v2567, 0.5
      %v2888 = vmul.f32 %v2568, 0.5
      %v2889 = vmul.f32 %v2569, 0.5
      %v2890 = vmul.f32 %v2570, 0.5
      %v2891 = vmul.f32 %v2571, 0.5
      %v2892 = vmul.f32 %v2572, 0.5
      %v2893 = vmul.f32 %v2573, 0.5
      %v2894 = vmul.f32 %v2574, 0.5
      %v2895 = vmul.f32 %v2575, 0.5
      %v2896 = vmul.f32 %v2576, 0.5
      %v2897 = vmul.f32 %v2577, 0.5
      %v2898 = vmul.f32 %v2578, 0.5
      %v2899 = vmul.f32 %v2579, 0.5
      %v2900 = vmul.f32 %v2580, 0.5
      %v2901 = vmul.f32 %v2581, 0.5
      %v2902 = vmul.f32 %v2582, 0.5
      %v2903 = vmul.f32 %v2583, 0.5
      %v2904 = vmul.f32 %v2584, 0.5
      %v2905 = vmul.f32 %v2585, 0.5
      %v2906 = vmul.f32 %v2586, 0.5
      %v2907 = vmul.f32 %v2587, 0.5
      %v2908 = vmul.f32 %v2588, 0.5
      %v2909 = vmul.f32 %v2589, 0.5
      %v2910 = vmul.f32 %v2590, 0.5
      %v2911 = vmul.f32 %v2591, 0.5
      %v2912 = vmul.f32 %v2592, 0.5
      %v2913 = vmul.f32 %v2593, 0.5
      %v2914 = vmul.f32 %v2594, 0.5
      %v2915 = vmul.f32 %v2595, 0.5
      %v2916 = vmul.f32 %v2596, 0.5
      %v2917 = vmul.f32 %v2597, 0.5
      %v2918 = vmul.f32 %v2598, 0.5
      %v2919 = vmul.f32 %v2599, 0.5
      %v2920 = vmul.f32 %v2600, 0.5
      %v2921 = vmul.f32 %v2601, 0.5
      %v2922 = vmul.f32 %v2602, 0.5
      %v2923 = vmul.f32 %v2603, 0.5
      %v2924 = vmul.f32 %v2604, 0.5
      %v2925 = vmul.f32 %v2605, 0.5
      %v2926 = vmul.f32 %v2606, 0.5
      %v2927 = vmul.f32 %v2607, 0.5
      %v2928 = vmul.f32 %v2608, 0.5
      %v2929 = vmul.f32 %v2609, 0.5
      %v2930 = vmul.f32 %v2610, 0.5
      %v2931 = vmul.f32 %v2611, 0.5
      %v2932 = vmul.f32 %v2612, 0.5
      %v2933 = vmul.f32 %v2613, 0.5
      %v2934 = vmul.f32 %v2614, 0.5
      %v2935 = vmul.f32 %v2615, 0.5
      %v2936 = vmul.f32 %v2616, 0.5
      %v2937 = vmul.f32 %v2617, 0.5
      %v2938 = vmul.f32 %v2618, 0.5
      %v2939 = vmul.f32 %v2619, 0.5
      %v2940 = vmul.f32 %v2620, 0.5
      %v2941 = vmul.f32 %v2621, 0.5
      %v2942 = vmul.f32 %v2622, 0.5
      %v2943 = vmul.f32 %v2623, 0.5
      %v2944 = vmul.f32 %v2624, 0.5
      %v2945 = vmul.f32 %v2625, 0.5
      %v2946 = vmul.f32 %v2626, 0.5
      %v2947 = vmul.f32 %v2627, 0.5
      %v2948 = vmul.f32 %v2628, 0.5
      %v2949 = vmul.f32 %v2629, 0.5
      %v2950 = vmul.f32 %v2630, 0.5
      %v2951 = vmul.f32 %v2631, 0.5
      %v2952 = vmul.f32 %v2632, 0.5
      %v2953 = vmul.f32 %v2633, 0.5
      %v2954 = vmul.f32 %v2634, 0.5
      %v2955 = vmul.f32 %v2635, 0.5
      %v2956 = vmul.f32 %v2636, 0.5
      %v2957 = vmul.f32 %v2637, 0.5
      %v2958 = vmul.f32 %v2638, 0.5
      %v2959 = vmul.f32 %v2639, 0.5
      %v2960 = vadd.f32 %v2640, 0.5
      %v2961 = vadd.f32 %v2641, 0.5
      %v2962 = vadd.f32 %v2642, 0.5
      %v2963 = vadd.f32 %v2643, 0.5
      %v2964 = vadd.f32 %v2644, 0.5
      %v2965 = vadd.f32 %v2645, 0.5
      %v2966 = vadd.f32 %v2646, 0.5
      %v2967 = vadd.f32 %v2647, 0.5
      %v2968 = vadd.f32 %v2648, 0.5
      %v2969 = vadd.f32 %v2649, 0.5
      %v2970 = vadd.f32 %v2650, 0.5
      %v2971 = vadd.f32 %v2651, 0.5
      %v2972 = vadd.f32 %v2652, 0.5
      %v2973 = vadd.f32 %v2653, 0.5
      %v2974 = vadd.f32 %v2654, 0.5
      %v2975 = vadd.f32 %v2655, 0.5
      %v2976 = vadd.f32 %v2656, 0.5
      %v2977 = vadd.f32 %v2657, 0.5
      %v2978 = vadd.f32 %v2658, 0.5
      %v2979 = vadd.f32 %v2659, 0.5
      %v2980 = vadd.f32 %v2660, 0.5
      %v2981 = vadd.f32 %v2661, 0.5
      %v2982 = vadd.f32 %v2662, 0.5
      %v2983 = vadd.f32 %v2663, 0.5
      %v2984 = vadd.f32 %v2664, 0.5
      %v2985 = vadd.f32 %v2665, 0.5
      %v2986 = vadd.f32 %v2666, 0.5
      %v2987 = vadd.f32 %v2667, 0.5
      %v2988 = vadd.f32 %v2668, 0.5
      %v2989 = vadd.f32 %v2669, 0.5
      %v2990 = vadd.f32 %v2670, 0.5
      %v2991 = vadd.f32 %v2671, 0.5
      %v2992 = vadd.f32 %v2672, 0.5
      %v2993 = vadd.f32 %v2673, 0.5
      %v2994 = vadd.f32 %v2674, 0.5
      %v2995 = vadd.f32 %v2675, 0.5
      %v2996 = vadd.f32 %v2676, 0.5
      %v2997 = vadd.f32 %v2677, 0.5
      %v2998 = vadd.f32 %v2678, 0.5
      %v2999 = vadd.f32 %v2679, 0.5
      %v3000 = vadd.f32 %v2680, 0.5
      %v3001 = vadd.f32 %v2681, 0.5
      %v3002 = vadd.f32 %v2682, 0.5
      %v3003 = vadd.f32 %v2683, 0.5
      %v3004 = vadd.f32 %v2684, 0.5
      %v3005 = vadd.f32 %v2685, 0.5
      %v3006 = vadd.f32 %v2686, 0.5
      %v3007 = vadd.f32 %v2687, 0.5
      %v3008 = vadd.f32 %v2688, 0.5
      %v3009 = vadd.f32 %v2689, 0.5
      %v3010 = vadd.f32 %v2690, 0.5
      %v3011 = vadd.f32 %v2691, 0.5
      %v3012 = vadd.f32 %v2692, 0.5
      %v3013 = vadd.f32 %v2693, 0.5
      %v3014 = vadd.f32 %v2694, 0.5
      %v3015 = vadd.f32 %v2695, 0.5
      %v3016 = vadd.f32 %v2696, 0.5
      %v3017 = vadd.f32 %v2697, 0.5
      %v3018 = vadd.f32 %v2698, 0.5
      %v3019 = vadd.f32 %v2699, 0.5
      %v3020 = vadd.f32 %v2700, 0.5
      %v3021 = vadd.f32 %v2701, 0.5
      %v3022 = vadd.f32 %v2702, 0.5
      %v3023 = vadd.f32 %v2703, 0.5
      %v3024 = vadd.f32 %v2704, 0.5
      %v3025 = vadd.f32 %v2705, 0.5
      %v3026 = vadd.f32 %v2706, 0.5
      %v3027 = vadd.f32 %v2707, 0.5
      %v3028 = vadd.f32 %v2708, 0.5
      %v3029 = vadd.f32 %v2709, 0.5
      %v3030 = vadd.f32 %v2710, 0.5
      %v3031 = vadd.f32 %v2711, 0.5
      %v3032 = vadd.f32 %v2712, 0.5
      %v3033 = vadd.f32 %v2713, 0.5
      %v3034 = vadd.f32 %v2714, 0.5
      %v3035 = vadd.f32 %v2715, 0.5
      %v3036 = vadd.f32 %v2716, 0.5
      %v3037 = vadd.f32 %v2717, 0.5
      %v3038 = vadd.f32 %v2718, 0.5
      %v3039 = vadd.f32 %v2719, 0.5
      %v3040 = vadd.f32 %v2720, 0.5
      %v3041 = vadd.f32 %v2721, 0.5
      %v3042 = vadd.f32 %v2722, 0.5
      %v3043 = vadd.f32 %v2723, 0.5
      %v3044 = vadd.f32 %v2724, 0.5
      %v3045 = vadd.f32 %v2725, 0.5
      %v3046 = vadd.f32 %v2726, 0.5
      %v3047 = vadd.f32 %v2727, 0.5
      %v3048 = vadd.f32 %v2728, 0.5
      %v3049 = vadd.f32 %v2729, 0.5
      %v3050 = vadd.f32 %v2730, 0.5
      %v3051 = vadd.f32 %v2731, 0.5
      %v3052 = vadd.f32 %v2732, 0.5
      %v3053 = vadd.f32 %v2733, 0.5
      %v3054 = vadd.f32 %v2734, 0.5
      %v3055 = vadd.f32 %v2735, 0.5
      %v3056 = vadd.f32 %v2736, 0.5
      %v3057 = vadd.f32 %v2737, 0.5
      %v3058 = vadd.f32 %v2738, 0.5
      %v3059 = vadd.f32 %v2739, 0.5
      %v3060 = vadd.f32 %v2740, 0.5
      %v3061 = vadd.f32 %v2741, 0.5
      %v3062 = vadd.f32 %v2742, 0.5
      %v3063 = vadd.f32 %v2743, 0.5
      %v3064 = vadd.f32 %v2744, 0.5
      %v3065 = vadd.f32 %v2745, 0.5
      %v3066 = vadd.f32 %v2746, 0.5
      %v3067 = vadd.f32 %v2747, 0.5
      %v3068 = vadd.f32 %v2748, 0.5
      %v3069 = vadd.f32 %v2749, 0.5
      %v3070 = vadd.f32 %v2750, 0.5
      %v3071 = vadd.f32 %v2751, 0.5
      %v3072 = vadd.f32 %v2752, 0.5
      %v3073 = vadd.f32 %v2753, 0.5
      %v3074 = vadd.f32 %v2754, 0.5
      %v3075 = vadd.f32 %v2755, 0.5
      %v3076 = vadd.f32 %v2756, 0.5
      %v3077 = vadd.f32 %v2757, 0.5
      %v3078 = vadd.f32 %v2758, 0.5
      %v3079 = vadd.f32 %v2759, 0.5
      %v3080 = vadd.f32 %v2760, 0.5
      %v3081 = vadd.f32 %v2761, 0.5
      %v3082 = vadd.f32 %v2762, 0.5
      %v3083 = vadd.f32 %v2763, 0.5
      %v3084 = vadd.f32 %v2764, 0.5
      %v3085 = vadd.f32 %v2765, 0.5
      %v3086 = vadd.f32 %v2766, 0.5
      %v3087 = vadd.f32 %v2767, 0.5
      %v3088 = vadd.f32 %v2768, 0.5
      %v3089 = vadd.f32 %v2769, 0.5
      %v3090 = vadd.f32 %v2770, 0.5
      %v3091 = vadd.f32 %v2771, 0.5
      %v3092 = vadd.f32 %v2772, 0.5
      %v3093 = vadd.f32 %v2773, 0.5
      %v3094 = vadd.f32 %v2774, 0.5
      %v3095 = vadd.f32 %v2775, 0.5
      %v3096 = vadd.f32 %v2776, 0.5
      %v3097 = vadd.f32 %v2777, 0.5
      %v3098 = vadd.f32 %v2778, 0.5
      %v3099 = vadd.f32 %v2779, 0.5
      %v3100 = vadd.f32 %v2780, 0.5
      %v3101 = vadd.f32 %v2781, 0.5
      %v3102 = vadd.f32 %v2782, 0.5
      %v3103 = vadd.f32 %v2783, 0.5
      %v3104 = vadd.f32 %v2784, 0.5
      %v3105 = vadd.f32 %v2785, 0.5
      %v3106 = vadd.f32 %v2786, 0.5
      %v3107 = vadd.f32 %v2787, 0.5
      %v3108 = vadd.f32 %v2788, 0.5
      %v3109 = vadd.f32 %v2789, 0.5
      %v3110 = vadd.f32 %v2790, 0.5
      %v3111 = vadd.f32 %v2791, 0.5
      %v3112 = vadd.f32 %v2792, 0.5
      %v3113 = vadd.f32 %v2793, 0.5
      %v3114 = vadd.f32 %v2794, 0.5
      %v3115 = vadd.f32 %v2795, 0.5
      %v3116 = vadd.f32 %v2796, 0.5
      %v3117 = vadd.f32 %v2797, 0.5
      %v3118 = vadd.f32 %v2798, 0.5
      %v3119 = vadd.f32 %v2799, 0.5
      %v3120 = vadd.f32 %v2800, 0.5
      %v3121 = vadd.f32 %v2801, 0.5
      %v3122 = vadd.f32 %v2802, 0.5
      %v3123 = vadd.f32 %v2803, 0.5
      %v3124 = vadd.f32 %v2804, 0.5
      %v3125 = vadd.f32 %v2805, 0.5
      %v3126 = vadd.f32 %v2806, 0.5
      %v3127 = vadd.f32 %v2807, 0.5
      %v3128 = vadd.f32 %v2808, 0.5
      %v3129 = vadd.f32 %v2809, 0.5
      %v3130 = vadd.f32 %v2810, 0.5
      %v3131 = vadd.f32 %v2811, 0.5
      %v3132 = vadd.f32 %v2812, 0.5
      %v3133 = vadd.f32 %v2813, 0.5
      %v3134 = vadd.f32 %v2814, 0.5
      %v3135 = vadd.f32 %v2815, 0.5
      %v3136 = vadd.f32 %v2816, 0.5
      %v3137 = vadd.f32 %v2817, 0.5
      %v3138 = vadd.f32 %v2818, 0.5
      %v3139 = vadd.f32 %v2819, 0.5
      %v3140 = vadd.f32 %v2820, 0.5
      %v3141 = vadd.f32 %v2821, 0.5
      %v3142 = vadd.f32 %v2822, 0.5
      %v3143 = vadd.f32 %v2823, 0.5
      %v3144 = vadd.f32 %v2824, 0.5
      %v3145 = vadd.f32 %v2825, 0.5
      %v3146 = vadd.f32 %v2826, 0.5
      %v3147 = vadd.f32 %v2827, 0.5
      %v3148 = vadd.f32 %v2828, 0.5
      %v3149 = vadd.f32 %v2829, 0.5
      %v3150 = vadd.f32 %v2830, 0.5
      %v3151 = vadd.f32 %v2831, 0.5
      %v3152 = vadd.f32 %v2832, 0.5
      %v3153 = vadd.f32 %v2833, 0.5
      %v3154 = vadd.f32 %v2834, 0.5
      %v3155 = vadd.f32 %v2835, 0.5
      %v3156 = vadd.f32 %v2836, 0.5
      %v3157 = vadd.f32 %v2837, 0.5
      %v3158 = vadd.f32 %v2838, 0.5
      %v3159 = vadd.f32 %v2839, 0.5
      %v3160 = vadd.f32 %v2840, 0.5
      %v3161 = vadd.f32 %v2841, 0.5
      %v3162 = vadd.f32 %v2842, 0.5
      %v3163 = vadd.f32 %v2843, 0.5
      %v3164 = vadd.f32 %v2844, 0.5
      %v3165 = vadd.f32 %v2845, 0.5
      %v3166 = vadd.f32 %v2846, 0.5
      %v3167 = vadd.f32 %v2847, 0.5
      %v3168 = vadd.f32 %v2848, 0.5
      %v3169 = vadd.f32 %v2849, 0.5
      %v3170 = vadd.f32 %v2850, 0.5
      %v3171 = vadd.f32 %v2851, 0.5
      %v3172 = vadd.f32 %v2852, 0.5
      %v3173 = vadd.f32 %v2853, 0.5
      %v3174 = vadd.f32 %v2854, 0.5
      %v3175 = vadd.f32 %v2855, 0.5
      %v3176 = vadd.f32 %v2856, 0.5
      %v3177 = vadd.f32 %v2857, 0.5
      %v3178 = vadd.f32 %v2858, 0.5
      %v3179 = vadd.f32 %v2859, 0.5
      %v3180 = vadd.f32 %v2860, 0.5
      %v3181 = vadd.f32 %v2861, 0.5
      %v3182 = vadd.f32 %v2862, 0.5
      %v3183 = vadd.f32 %v2863, 0.5
      %v3184 = vadd.f32 %v2864, 0.5
      %v3185 = vadd.f32 %v2865, 0.5
      %v3186 = vadd.f32 %v2866, 0.5
      %v3187 = vadd.f32 %v2867, 0.5
      %v3188 = vadd.f32 %v2868, 0.5
      %v3189 = vadd.f32 %v2869, 0.5
      %v3190 = vadd.f32 %v2870, 0.5
      %v3191 = vadd.f32 %v2871, 0.5
      %v3192 = vadd.f32 %v2872, 0.5
      %v3193 = vadd.f32 %v2873, 0.5
      %v3194 = vadd.f32 %v2874, 0.5
      %v3195 = vadd.f32 %v2875, 0.5
      %v3196 = vadd.f32 %v2876, 0.5
      %v3197 = vadd.f32 %v2877, 0.5
      %v3198 = vadd.f32 %v2878, 0.5
      %v3199 = vadd.f32 %v2879, 0.5
      %v3200 = vadd.f32 %v2880, 0.5
      %v3201 = vadd.f32 %v2881, 0.5
      %v3202 = vadd.f32 %v2882, 0.5
      %v3203 = vadd.f32 %v2883, 0.5
      %v3204 = vadd.f32 %v2884, 0.5
      %v3205 = vadd.f32 %v2885, 0.5
      %v3206 = vadd.f32 %v2886, 0.5
      %v3207 = vadd.f32 %v2887, 0.5
      %v3208 = vadd.f32 %v2888, 0.5
      %v3209 = vadd.f32 %v2889, 0.5
      %v3210 = vadd.f32 %v2890, 0.5
      %v3211 = vadd.f32 %v2891, 0.5
      %v3212 = vadd.f32 %v2892, 0.5
      %v3213 = vadd.f32 %v2893, 0.5
      %v3214 = vadd.f32 %v2894, 0.5
      %v3215 = vadd.f32 %v2895, 0.5
      %v3216 = vadd.f32 %v2896, 0.5
      %v3217 = vadd.f32 %v2897, 0.5
      %v3218 = vadd.f32 %v2898, 0.5
      %v3219 = vadd.f32 %v2899, 0.5
      %v3220 = vadd.f32 %v2900, 0.5
      %v3221 = vadd.f32 %v2901, 0.5
      %v3222 = vadd.f32 %v2902, 0.5
      %v3223 = vadd.f32 %v2903, 0.5
      %v3224 = vadd.f32 %v2904, 0.5
      %v3225 = vadd.f32 %v2905, 0.5
      %v3226 = vadd.f32 %v2906, 0.5
      %v3227 = vadd.f32 %v2907, 0.5
      %v3228 = vadd.f32 %v2908, 0.5
      %v3229 = vadd.f32 %v2909, 0.5
      %v3230 = vadd.f32 %v2910, 0.5
      %v3231 = vadd.f32 %v2911, 0.5
      %v3232 = vadd.f32 %v2912, 0.5
      %v3233 = vadd.f32 %v2913, 0.5
      %v3234 = vadd.f32 %v2914, 0.5
      %v3235 = vadd.f32 %v2915, 0.5
      %v3236 = vadd.f32 %v2916, 0.5
      %v3237 = vadd.f32 %v2917, 0.5
      %v3238 = vadd.f32 %v2918, 0.5
      %v3239 = vadd.f32 %v2919, 0.5
      %v3240 = vadd.f32 %v2920, 0.5
      %v3241 = vadd.f32 %v2921, 0.5
      %v3242 = vadd.f32 %v2922, 0.5
      %v3243 = vadd.f32 %v2923, 0.5
      %v3244 = vadd.f32 %v2924, 0.5
      %v3245 = vadd.f32 %v2925, 0.5
      %v3246 = vadd.f32 %v2926, 0.5
      %v3247 = vadd.f32 %v2927, 0.5
      %v3248 = vadd.f32 %v2928, 0.5
      %v3249 = vadd.f32 %v2929, 0.5
      %v3250 = vadd.f32 %v2930, 0.5
      %v3251 = vadd.f32 %v2931, 0.5
      %v3252 = vadd.f32 %v2932, 0.5
      %v3253 = vadd.f32 %v2933, 0.5
      %v3254 = vadd.f32 %v2934, 0.5
      %v3255 = vadd.f32 %v2935, 0.5
      %v3256 = vadd.f32 %v2936, 0.5
      %v3257 = vadd.f32 %v2937, 0.5
      %v3258 = vadd.f32 %v2938, 0.5
      %v3259 = vadd.f32 %v2939, 0.5
      %v3260 = vadd.f32 %v2940, 0.5
      %v3261 = vadd.f32 %v2941, 0.5
      %v3262 = vadd.f32 %v2942, 0.5
      %v3263 = vadd.f32 %v2943, 0.5
      %v3264 = vadd.f32 %v2944, 0.5
      %v3265 = vadd.f32 %v2945, 0.5
      %v3266 = vadd.f32 %v2946, 0.5
      %v3267 = vadd.f32 %v2947, 0.5
      %v3268 = vadd.f32 %v2948, 0.5
      %v3269 = vadd.f32 %v2949, 0.5
      %v3270 = vadd.f32 %v2950, 0.5
      %v3271 = vadd.f32 %v2951, 0.5
      %v3272 = vadd.f32 %v2952, 0.5
      %v3273 = vadd.f32 %v2953, 0.5
      %v3274 = vadd.f32 %v2954, 0.5
      %v3275 = vadd.f32 %v2955, 0.5
      %v3276 = vadd.f32 %v2956, 0.5
      %v3277 = vadd.f32 %v2957, 0.5
      %v3278 = vadd.f32 %v2958, 0.5
      %v3279 = vadd.f32 %v2959, 0.5
      %v3280 = vmul.f32 %v1070, %v2960
      %v3281 = vmul.f32 %v1072, %v2961
      %v3282 = vmul.f32 %v1263, %v2962
      %v3283 = vmul.f32 %v1265, %v2963
      %v3284 = vmul.f32 %v1456, %v2964
      %v3285 = vmul.f32 %v1458, %v2965
      %v3286 = vmul.f32 %v1649, %v2966
      %v3287 = vmul.f32 %v1651, %v2967
      %v3288 = vmul.f32 %v1842, %v2968
      %v3289 = vmul.f32 %v1844, %v2969
      %v3290 = vmul.f32 %v1074, %v2970
      %v3291 = vmul.f32 %v1076, %v2971
      %v3292 = vmul.f32 %v1267, %v2972
      %v3293 = vmul.f32 %v1269, %v2973
      %v3294 = vmul.f32 %v1460, %v2974
      %v3295 = vmul.f32 %v1462, %v2975
      %v3296 = vmul.f32 %v1653, %v2976
      %v3297 = vmul.f32 %v1655, %v2977
      %v3298 = vmul.f32 %v1846, %v2978
      %v3299 = vmul.f32 %v1848, %v2979
      %v3300 = vmul.f32 %v1080, %v2980
      %v3301 = vmul.f32 %v1082, %v2981
      %v3302 = vmul.f32 %v1273, %v2982
      %v3303 = vmul.f32 %v1275, %v2983
      %v3304 = vmul.f32 %v1466, %v2984
      %v3305 = vmul.f32 %v1468, %v2985
      %v3306 = vmul.f32 %v1659, %v2986
      %v3307 = vmul.f32 %v1661, %v2987
      %v3308 = vmul.f32 %v1852, %v2988
      %v3309 = vmul.f32 %v1854, %v2989
      %v3310 = vmul.f32 %v1084, %v2990
      %v3311 = vmul.f32 %v1086, %v2991
      %v3312 = vmul.f32 %v1277, %v2992
      %v3313 = vmul.f32 %v1279, %v2993
      %v3314 = vmul.f32 %v1470, %v2994
      %v3315 = vmul.f32 %v1472, %v2995
      %v3316 = vmul.f32 %v1663, %v2996
      %v3317 = vmul.f32 %v1665, %v2997
      %v3318 = vmul.f32 %v1856, %v2998
      %v3319 = vmul.f32 %v1858, %v2999
      %v3320 = vmul.f32 %v1090, %v3000
      %v3321 = vmul.f32 %v1092, %v3001
      %v3322 = vmul.f32 %v1283, %v3002
      %v3323 = vmul.f32 %v1285, %v3003
      %v3324 = vmul.f32 %v1476, %v3004
      %v3325 = vmul.f32 %v1478, %v3005
      %v3326 = vmul.f32 %v1669, %v3006
      %v3327 = vmul.f32 %v1671, %v3007
      %v3328 = vmul.f32 %v1862, %v3008
      %v3329 = vmul.f32 %v1864, %v3009
      %v3330 = vmul.f32 %v1094, %v3010
      %v3331 = vmul.f32 %v1096, %v3011
      %v3332 = vmul.f32 %v1287, %v3012
      %v3333 = vmul.f32 %v1289, %v3013
      %v3334 = vmul.f32 %v1480, %v3014
      %v3335 = vmul.f32 %v1482, %v3015
      %v3336 = vmul.f32 %v1673, %v3016
      %v3337 = vmul.f32 %v1675, %v3017
      %v3338 = vmul.f32 %v1866, %v3018
      %v3339 = vmul.f32 %v1868, %v3019
      %v3340 = vmul.f32 %v1100, %v3020
      %v3341 = vmul.f32 %v1102, %v3021
      %v3342 = vmul.f32 %v1293, %v3022
      %v3343 = vmul.f32 %v1295, %v3023
      %v3344 = vmul.f32 %v1486, %v3024
      %v3345 = vmul.f32 %v1488, %v3025
      %v3346 = vmul.f32 %v1679, %v3026
      %v3347 = vmul.f32 %v1681, %v3027
      %v3348 = vmul.f32 %v1872, %v3028
      %v3349 = vmul.f32 %v1874, %v3029
      %v3350 = vmul.f32 %v1104, %v3030
      %v3351 = vmul.f32 %v1106, %v3031
      %v3352 = vmul.f32 %v1297, %v3032
      %v3353 = vmul.f32 %v1299, %v3033
      %v3354 = vmul.f32 %v1490, %v3034
      %v3355 = vmul.f32 %v1492, %v3035
      %v3356 = vmul.f32 %v1683, %v3036
      %v3357 = vmul.f32 %v1685, %v3037
      %v3358 = vmul.f32 %v1876, %v3038
      %v3359 = vmul.f32 %v1878, %v3039
      %v3360 = vmul.f32 %v1110, %v3040
      %v3361 = vmul.f32 %v1112, %v3041
      %v3362 = vmul.f32 %v1303, %v3042
      %v3363 = vmul.f32 %v1305, %v3043
      %v3364 = vmul.f32 %v1496, %v3044
      %v3365 = vmul.f32 %v1498, %v3045
      %v3366 = vmul.f32 %v1689, %v3046
      %v3367 = vmul.f32 %v1691, %v3047
      %v3368 = vmul.f32 %v1882, %v3048
      %v3369 = vmul.f32 %v1884, %v3049
      %v3370 = vmul.f32 %v1114, %v3050
      %v3371 = vmul.f32 %v1116, %v3051
      %v3372 = vmul.f32 %v1307, %v3052
      %v3373 = vmul.f32 %v1309, %v3053
      %v3374 = vmul.f32 %v1500, %v3054
      %v3375 = vmul.f32 %v1502, %v3055
      %v3376 = vmul.f32 %v1693, %v3056
      %v3377 = vmul.f32 %v1695, %v3057
      %v3378 = vmul.f32 %v1886, %v3058
      %v3379 = vmul.f32 %v1888, %v3059
      %v3380 = vmul.f32 %v1120, %v3060
      %v3381 = vmul.f32 %v1122, %v3061
      %v3382 = vmul.f32 %v1313, %v3062
      %v3383 = vmul.f32 %v1315, %v3063
      %v3384 = vmul.f32 %v1506, %v3064
      %v3385 = vmul.f32 %v1508, %v3065
      %v3386 = vmul.f32 %v1699, %v3066
      %v3387 = vmul.f32 %v1701, %v3067
      %v3388 = vmul.f32 %v1892, %v3068
      %v3389 = vmul.f32 %v1894, %v3069
      %v3390 = vmul.f32 %v1124, %v3070
      %v3391 = vmul.f32 %v1126, %v3071
      %v3392 = vmul.f32 %v1317, %v3072
      %v3393 = vmul.f32 %v1319, %v3073
      %v3394 = vmul.f32 %v1510, %v3074
      %v3395 = vmul.f32 %v1512, %v3075
      %v3396 = vmul.f32 %v1703, %v3076
      %v3397 = vmul.f32 %v1705, %v3077
      %v3398 = vmul.f32 %v1896, %v3078
      %v3399 = vmul.f32 %v1898, %v3079
      %v3400 = vmul.f32 %v1130, %v3080
      %v3401 = vmul.f32 %v1132, %v3081
      %v3402 = vmul.f32 %v1323, %v3082
      %v3403 = vmul.f32 %v1325, %v3083
      %v3404 = vmul.f32 %v1516, %v3084
      %v3405 = vmul.f32 %v1518, %v3085
      %v3406 = vmul.f32 %v1709, %v3086
      %v3407 = vmul.f32 %v1711, %v3087
      %v3408 = vmul.f32 %v1902, %v3088
      %v3409 = vmul.f32 %v1904, %v3089
      %v3410 = vmul.f32 %v1134, %v3090
      %v3411 = vmul.f32 %v1136, %v3091
      %v3412 = vmul.f32 %v1327, %v3092
      %v3413 = vmul.f32 %v1329, %v3093
      %v3414 = vmul.f32 %v1520, %v3094
      %v3415 = vmul.f32 %v1522, %v3095
      %v3416 = vmul.f32 %v1713, %v3096
      %v3417 = vmul.f32 %v1715, %v3097
      %v3418 = vmul.f32 %v1906, %v3098
      %v3419 = vmul.f32 %v1908, %v3099
      %v3420 = vmul.f32 %v1140, %v3100
      %v3421 = vmul.f32 %v1142, %v3101
      %v3422 = vmul.f32 %v1333, %v3102
      %v3423 = vmul.f32 %v1335, %v3103
      %v3424 = vmul.f32 %v1526, %v3104
      %v3425 = vmul.f32 %v1528, %v3105
      %v3426 = vmul.f32 %v1719, %v3106
      %v3427 = vmul.f32 %v1721, %v3107
      %v3428 = vmul.f32 %v1912, %v3108
      %v3429 = vmul.f32 %v1914, %v3109
      %v3430 = vmul.f32 %v1144, %v3110
      %v3431 = vmul.f32 %v1146, %v3111
      %v3432 = vmul.f32 %v1337, %v3112
      %v3433 = vmul.f32 %v1339, %v3113
      %v3434 = vmul.f32 %v1530, %v3114
      %v3435 = vmul.f32 %v1532, %v3115
      %v3436 = vmul.f32 %v1723, %v3116
      %v3437 = vmul.f32 %v1725, %v3117
      %v3438 = vmul.f32 %v1916, %v3118
      %v3439 = vmul.f32 %v1918, %v3119
      %v3440 = vmul.f32 %v1150, %v3120
      %v3441 = vmul.f32 %v1152, %v3121
      %v3442 = vmul.f32 %v1343, %v3122
      %v3443 = vmul.f32 %v1345, %v3123
      %v3444 = vmul.f32 %v1536, %v3124
      %v3445 = vmul.f32 %v1538, %v3125
      %v3446 = vmul.f32 %v1729, %v3126
      %v3447 = vmul.f32 %v1731, %v3127
      %v3448 = vmul.f32 %v1922, %v3128
      %v3449 = vmul.f32 %v1924, %v3129
      %v3450 = vmul.f32 %v1154, %v3130
      %v3451 = vmul.f32 %v1156, %v3131
      %v3452 = vmul.f32 %v1347, %v3132
      %v3453 = vmul.f32 %v1349, %v3133
      %v3454 = vmul.f32 %v1540, %v3134
      %v3455 = vmul.f32 %v1542, %v3135
      %v3456 = vmul.f32 %v1733, %v3136
      %v3457 = vmul.f32 %v1735, %v3137
      %v3458 = vmul.f32 %v1926, %v3138
      %v3459 = vmul.f32 %v1928, %v3139
      %v3460 = vmul.f32 %v1160, %v3140
      %v3461 = vmul.f32 %v1162, %v3141
      %v3462 = vmul.f32 %v1353, %v3142
      %v3463 = vmul.f32 %v1355, %v3143
      %v3464 = vmul.f32 %v1546, %v3144
      %v3465 = vmul.f32 %v1548, %v3145
      %v3466 = vmul.f32 %v1739, %v3146
      %v3467 = vmul.f32 %v1741, %v3147
      %v3468 = vmul.f32 %v1932, %v3148
      %v3469 = vmul.f32 %v1934, %v3149
      %v3470 = vmul.f32 %v1164, %v3150
      %v3471 = vmul.f32 %v1166, %v3151
      %v3472 = vmul.f32 %v1357, %v3152
      %v3473 = vmul.f32 %v1359, %v3153
      %v3474 = vmul.f32 %v1550, %v3154
      %v3475 = vmul.f32 %v1552, %v3155
      %v3476 = vmul.f32 %v1743, %v3156
      %v3477 = vmul.f32 %v1745, %v3157
      %v3478 = vmul.f32 %v1936, %v3158
      %v3479 = vmul.f32 %v1938, %v3159
      %v3480 = vmul.f32 %v1170, %v3160
      %v3481 = vmul.f32 %v1172, %v3161
      %v3482 = vmul.f32 %v1363, %v3162
      %v3483 = vmul.f32 %v1365, %v3163
      %v3484 = vmul.f32 %v1556, %v3164
      %v3485 = vmul.f32 %v1558, %v3165
      %v3486 = vmul.f32 %v1749, %v3166
      %v3487 = vmul.f32 %v1751, %v3167
      %v3488 = vmul.f32 %v1942, %v3168
      %v3489 = vmul.f32 %v1944, %v3169
      %v3490 = vmul.f32 %v1174, %v3170
      %v3491 = vmul.f32 %v1176, %v3171
      %v3492 = vmul.f32 %v1367, %v3172
      %v3493 = vmul.f32 %v1369, %v3173
      %v3494 = vmul.f32 %v1560, %v3174
      %v3495 = vmul.f32 %v1562, %v3175
      %v3496 = vmul.f32 %v1753, %v3176
      %v3497 = vmul.f32 %v1755, %v3177
      %v3498 = vmul.f32 %v1946, %v3178
      %v3499 = vmul.f32 %v1948, %v3179
      %v3500 = vmul.f32 %v1180, %v3180
      %v3501 = vmul.f32 %v1182, %v3181
      %v3502 = vmul.f32 %v1373, %v3182
      %v3503 = vmul.f32 %v1375, %v3183
      %v3504 = vmul.f32 %v1566, %v3184
      %v3505 = vmul.f32 %v1568, %v3185
      %v3506 = vmul.f32 %v1759, %v3186
      %v3507 = vmul.f32 %v1761, %v3187
      %v3508 = vmul.f32 %v1952, %v3188
      %v3509 = vmul.f32 %v1954, %v3189
      %v3510 = vmul.f32 %v1184, %v3190
      %v3511 = vmul.f32 %v1186, %v3191
      %v3512 = vmul.f32 %v1377, %v3192
      %v3513 = vmul.f32 %v1379, %v3193
      %v3514 = vmul.f32 %v1570, %v3194
      %v3515 = vmul.f32 %v1572, %v3195
      %v3516 = vmul.f32 %v1763, %v3196
      %v3517 = vmul.f32 %v1765, %v3197
      %v3518 = vmul.f32 %v1956, %v3198
      %v3519 = vmul.f32 %v1958, %v3199
      %v3520 = vmul.f32 %v1190, %v3200
      %v3521 = vmul.f32 %v1192, %v3201
      %v3522 = vmul.f32 %v1383, %v3202
      %v3523 = vmul.f32 %v1385, %v3203
      %v3524 = vmul.f32 %v1576, %v3204
      %v3525 = vmul.f32 %v1578, %v3205
      %v3526 = vmul.f32 %v1769, %v3206
      %v3527 = vmul.f32 %v1771, %v3207
      %v3528 = vmul.f32 %v1962, %v3208
      %v3529 = vmul.f32 %v1964, %v3209
      %v3530 = vmul.f32 %v1194, %v3210
      %v3531 = vmul.f32 %v1196, %v3211
      %v3532 = vmul.f32 %v1387, %v3212
      %v3533 = vmul.f32 %v1389, %v3213
      %v3534 = vmul.f32 %v1580, %v3214
      %v3535 = vmul.f32 %v1582, %v3215
      %v3536 = vmul.f32 %v1773, %v3216
      %v3537 = vmul.f32 %v1775, %v3217
      %v3538 = vmul.f32 %v1966, %v3218
      %v3539 = vmul.f32 %v1968, %v3219
      %v3540 = vmul.f32 %v1200, %v3220
      %v3541 = vmul.f32 %v1202, %v3221
      %v3542 = vmul.f32 %v1393, %v3222
      %v3543 = vmul.f32 %v1395, %v3223
      %v3544 = vmul.f32 %v1586, %v3224
      %v3545 = vmul.f32 %v1588, %v3225
      %v3546 = vmul.f32 %v1779, %v3226
      %v3547 = vmul.f32 %v1781, %v3227
      %v3548 = vmul.f32 %v1972, %v3228
      %v3549 = vmul.f32 %v1974, %v3229
      %v3550 = vmul.f32 %v1204, %v3230
      %v3551 = vmul.f32 %v1206, %v3231
      %v3552 = vmul.f32 %v1397, %v3232
      %v3553 = vmul.f32 %v1399, %v3233
      %v3554 = vmul.f32 %v1590, %v3234
      %v3555 = vmul.f32 %v1592, %v3235
      %v3556 = vmul.f32 %v1783, %v3236
      %v3557 = vmul.f32 %v1785, %v3237
      %v3558 = vmul.f32 %v1976, %v3238
      %v3559 = vmul.f32 %v1978, %v3239
      %v3560 = vmul.f32 %v1210, %v3240
      %v3561 = vmul.f32 %v1212, %v3241
      %v3562 = vmul.f32 %v1403, %v3242
      %v3563 = vmul.f32 %v1405, %v3243
      %v3564 = vmul.f32 %v1596, %v3244
      %v3565 = vmul.f32 %v1598, %v3245
      %v3566 = vmul.f32 %v1789, %v3246
      %v3567 = vmul.f32 %v1791, %v3247
      %v3568 = vmul.f32 %v1982, %v3248
      %v3569 = vmul.f32 %v1984, %v3249
      %v3570 = vmul.f32 %v1214, %v3250
      %v3571 = vmul.f32 %v1216, %v3251
      %v3572 = vmul.f32 %v1407, %v3252
      %v3573 = vmul.f32 %v1409, %v3253
      %v3574 = vmul.f32 %v1600, %v3254
      %v3575 = vmul.f32 %v1602, %v3255
      %v3576 = vmul.f32 %v1793, %v3256
      %v3577 = vmul.f32 %v1795, %v3257
      %v3578 = vmul.f32 %v1986, %v3258
      %v3579 = vmul.f32 %v1988, %v3259
      %v3580 = vmul.f32 %v1220, %v3260
      %v3581 = vmul.f32 %v1222, %v3261
      %v3582 = vmul.f32 %v1413, %v3262
      %v3583 = vmul.f32 %v1415, %v3263
      %v3584 = vmul.f32 %v1606, %v3264
      %v3585 = vmul.f32 %v1608, %v3265
      %v3586 = vmul.f32 %v1799, %v3266
      %v3587 = vmul.f32 %v1801, %v3267
      %v3588 = vmul.f32 %v1992, %v3268
      %v3589 = vmul.f32 %v1994, %v3269
      %v3590 = vmul.f32 %v1224, %v3270
      %v3591 = vmul.f32 %v1226, %v3271
      %v3592 = vmul.f32 %v1417, %v3272
      %v3593 = vmul.f32 %v1419, %v3273
      %v3594 = vmul.f32 %v1610, %v3274
      %v3595 = vmul.f32 %v1612, %v3275
      %v3596 = vmul.f32 %v1803, %v3276
      %v3597 = vmul.f32 %v1805, %v3277
      %v3598 = vmul.f32 %v1996, %v3278
      %v3599 = vmul.f32 %v1998, %v3279
      %v3600 = vld [vmem:[#allocation2] sm:$0xff]
      %v3601 = vld [vmem:[#allocation2 + $0x8] sm:$0xff]
      %v3602 = vld [vmem:[#allocation2 + $0x10] sm:$0xff]
      %v3603 = vld [vmem:[#allocation2 + $0x18] sm:$0xff]
      %v3604 = vld [vmem:[#allocation2 + $0x20] sm:$0xff]
      %v3605 = vld [vmem:[#allocation2 + $0x28] sm:$0xff]
      %v3606 = vld [vmem:[#allocation2 + $0x30] sm:$0xff]
      %v3607 = vld [vmem:[#allocation2 + $0x38] sm:$0xff]
      %v3608 = vld [vmem:[#allocation2 + $0x40] sm:$0xff]
      %v3609 = vld [vmem:[#allocation2 + $0x48] sm:$0xff]
      %v3610 = vadd.f32 %v3280, %v3290
      %v3611 = vadd.f32 %v3610, %v3300
      %v3612 = vadd.f32 %v3611, %v3310
      %v3613 = vadd.f32 %v3612, %v3320
      %v3614 = vadd.f32 %v3613, %v3330
      %v3615 = vadd.f32 %v3614, %v3340
      %v3616 = vadd.f32 %v3615, %v3350
      %v3617 = vadd.f32 %v3616, %v3360
      %v3618 = vadd.f32 %v3617, %v3370
      %v3619 = vadd.f32 %v3618, %v3380
      %v3620 = vadd.f32 %v3619, %v3390
      %v3621 = vadd.f32 %v3620, %v3400
      %v3622 = vadd.f32 %v3621, %v3410
      %v3623 = vadd.f32 %v3622, %v3420
      %v3624 = vadd.f32 %v3623, %v3430
      %v3625 = vadd.f32 %v3624, %v3440
      %v3626 = vadd.f32 %v3625, %v3450
      %v3627 = vadd.f32 %v3626, %v3460
      %v3628 = vadd.f32 %v3627, %v3470
      %v3629 = vadd.f32 %v3628, %v3480
      %v3630 = vadd.f32 %v3629, %v3490
      %v3631 = vadd.f32 %v3630, %v3500
      %v3632 = vadd.f32 %v3631, %v3510
      %v3633 = vadd.f32 %v3632, %v3520
      %v3634 = vadd.f32 %v3633, %v3530
      %v3635 = vadd.f32 %v3634, %v3540
      %v3636 = vadd.f32 %v3635, %v3550
      %v3637 = vadd.f32 %v3636, %v3560
      %v3638 = vadd.f32 %v3637, %v3570
      %v3639 = vadd.f32 %v3638, %v3580
      %v3640 = vadd.f32 %v3639, %v3590
      %v3641 = vadd.f32 %v3281, %v3291
      %v3642 = vadd.f32 %v3641, %v3301
      %v3643 = vadd.f32 %v3642, %v3311
      %v3644 = vadd.f32 %v3643, %v3321
      %v3645 = vadd.f32 %v3644, %v3331
      %v3646 = vadd.f32 %v3645, %v3341
      %v3647 = vadd.f32 %v3646, %v3351
      %v3648 = vadd.f32 %v3647, %v3361
      %v3649 = vadd.f32 %v3648, %v3371
      %v3650 = vadd.f32 %v3649, %v3381
      %v3651 = vadd.f32 %v3650, %v3391
      %v3652 = vadd.f32 %v3651, %v3401
      %v3653 = vadd.f32 %v3652, %v3411
      %v3654 = vadd.f32 %v3653, %v3421
      %v3655 = vadd.f32 %v3654, %v3431
      %v3656 = vadd.f32 %v3655, %v3441
      %v3657 = vadd.f32 %v3656, %v3451
      %v3658 = vadd.f32 %v3657, %v3461
      %v3659 = vadd.f32 %v3658, %v3471
      %v3660 = vadd.f32 %v3659, %v3481
      %v3661 = vadd.f32 %v3660, %v3491
      %v3662 = vadd.f32 %v3661, %v3501
      %v3663 = vadd.f32 %v3662, %v3511
      %v3664 = vadd.f32 %v3663, %v3521
      %v3665 = vadd.f32 %v3664, %v3531
      %v3666 = vadd.f32 %v3665, %v3541
      %v3667 = vadd.f32 %v3666, %v3551
      %v3668 = vadd.f32 %v3667, %v3561
      %v3669 = vadd.f32 %v3668, %v3571
      %v3670 = vadd.f32 %v3669, %v3581
      %v3671 = vadd.f32 %v3670, %v3591
      %v3672 = vadd.f32 %v3282, %v3292
      %v3673 = vadd.f32 %v3672, %v3302
      %v3674 = vadd.f32 %v3673, %v3312
      %v3675 = vadd.f32 %v3674, %v3322
      %v3676 = vadd.f32 %v3675, %v3332
      %v3677 = vadd.f32 %v3676, %v3342
      %v3678 = vadd.f32 %v3677, %v3352
      %v3679 = vadd.f32 %v3678, %v3362
      %v3680 = vadd.f32 %v3679, %v3372
      %v3681 = vadd.f32 %v3680, %v3382
      %v3682 = vadd.f32 %v3681, %v3392
      %v3683 = vadd.f32 %v3682, %v3402
      %v3684 = vadd.f32 %v3683, %v3412
      %v3685 = vadd.f32 %v3684, %v3422
      %v3686 = vadd.f32 %v3685, %v3432
      %v3687 = vadd.f32 %v3686, %v3442
      %v3688 = vadd.f32 %v3687, %v3452
      %v3689 = vadd.f32 %v3688, %v3462
      %v3690 = vadd.f32 %v3689, %v3472
      %v3691 = vadd.f32 %v3690, %v3482
      %v3692 = vadd.f32 %v3691, %v3492
      %v3693 = vadd.f32 %v3692, %v3502
      %v3694 = vadd.f32 %v3693, %v3512
      %v3695 = vadd.f32 %v3694, %v3522
      %v3696 = vadd.f32 %v3695, %v3532
      %v3697 = vadd.f32 %v3696, %v3542
      %v3698 = vadd.f32 %v3697, %v3552
      %v3699 = vadd.f32 %v3698, %v3562
      %v3700 = vadd.f32 %v3699, %v3572
      %v3701 = vadd.f32 %v3700, %v3582
      %v3702 = vadd.f32 %v3701, %v3592
      %v3703 = vadd.f32 %v3283, %v3293
      %v3704 = vadd.f32 %v3703, %v3303
      %v3705 = vadd.f32 %v3704, %v3313
      %v3706 = vadd.f32 %v3705, %v3323
      %v3707 = vadd.f32 %v3706, %v3333
      %v3708 = vadd.f32 %v3707, %v3343
      %v3709 = vadd.f32 %v3708, %v3353
      %v3710 = vadd.f32 %v3709, %v3363
      %v3711 = vadd.f32 %v3710, %v3373
      %v3712 = vadd.f32 %v3711, %v3383
      %v3713 = vadd.f32 %v3712, %v3393
      %v3714 = vadd.f32 %v3713, %v3403
      %v3715 = vadd.f32 %v3714, %v3413
      %v3716 = vadd.f32 %v3715, %v3423
      %v3717 = vadd.f32 %v3716, %v3433
      %v3718 = vadd.f32 %v3717, %v3443
      %v3719 = vadd.f32 %v3718, %v3453
      %v3720 = vadd.f32 %v3719, %v3463
      %v3721 = vadd.f32 %v3720, %v3473
      %v3722 = vadd.f32 %v3721, %v3483
      %v3723 = vadd.f32 %v3722, %v3493
      %v3724 = vadd.f32 %v3723, %v3503
      %v3725 = vadd.f32 %v3724, %v3513
      %v3726 = vadd.f32 %v3725, %v3523
      %v3727 = vadd.f32 %v3726, %v3533
      %v3728 = vadd.f32 %v3727, %v3543
      %v3729 = vadd.f32 %v3728, %v3553
      %v3730 = vadd.f32 %v3729, %v3563
      %v3731 = vadd.f32 %v3730, %v3573
      %v3732 = vadd.f32 %v3731, %v3583
      %v3733 = vadd.f32 %v3732, %v3593
      %v3734 = vadd.f32 %v3284, %v3294
      %v3735 = vadd.f32 %v3734, %v3304
      %v3736 = vadd.f32 %v3735, %v3314
      %v3737 = vadd.f32 %v3736, %v3324
      %v3738 = vadd.f32 %v3737, %v3334
      %v3739 = vadd.f32 %v3738, %v3344
      %v3740 = vadd.f32 %v3739, %v3354
      %v3741 = vadd.f32 %v3740, %v3364
      %v3742 = vadd.f32 %v3741, %v3374
      %v3743 = vadd.f32 %v3742, %v3384
      %v3744 = vadd.f32 %v3743, %v3394
      %v3745 = vadd.f32 %v3744, %v3404
      %v3746 = vadd.f32 %v3745, %v3414
      %v3747 = vadd.f32 %v3746, %v3424
      %v3748 = vadd.f32 %v3747, %v3434
      %v3749 = vadd.f32 %v3748, %v3444
      %v3750 = vadd.f32 %v3749, %v3454
      %v3751 = vadd.f32 %v3750, %v3464
      %v3752 = vadd.f32 %v3751, %v3474
      %v3753 = vadd.f32 %v3752, %v3484
      %v3754 = vadd.f32 %v3753, %v3494
      %v3755 = vadd.f32 %v3754, %v3504
      %v3756 = vadd.f32 %v3755, %v3514
      %v3757 = vadd.f32 %v3756, %v3524
      %v3758 = vadd.f32 %v3757, %v3534
      %v3759 = vadd.f32 %v3758, %v3544
      %v3760 = vadd.f32 %v3759, %v3554
      %v3761 = vadd.f32 %v3760, %v3564
      %v3762 = vadd.f32 %v3761, %v3574
      %v3763 = vadd.f32 %v3762, %v3584
      %v3764 = vadd.f32 %v3763, %v3594
      %v3765 = vadd.f32 %v3285, %v3295
      %v3766 = vadd.f32 %v3765, %v3305
      %v3767 = vadd.f32 %v3766, %v3315
      %v3768 = vadd.f32 %v3767, %v3325
      %v3769 = vadd.f32 %v3768, %v3335
      %v3770 = vadd.f32 %v3769, %v3345
      %v3771 = vadd.f32 %v3770, %v3355
      %v3772 = vadd.f32 %v3771, %v3365
      %v3773 = vadd.f32 %v3772, %v3375
      %v3774 = vadd.f32 %v3773, %v3385
      %v3775 = vadd.f32 %v3774, %v3395
      %v3776 = vadd.f32 %v3775, %v3405
      %v3777 = vadd.f32 %v3776, %v3415
      %v3778 = vadd.f32 %v3777, %v3425
      %v3779 = vadd.f32 %v3778, %v3435
      %v3780 = vadd.f32 %v3779, %v3445
      %v3781 = vadd.f32 %v3780, %v3455
      %v3782 = vadd.f32 %v3781, %v3465
      %v3783 = vadd.f32 %v3782, %v3475
      %v3784 = vadd.f32 %v3783, %v3485
      %v3785 = vadd.f32 %v3784, %v3495
      %v3786 = vadd.f32 %v3785, %v3505
      %v3787 = vadd.f32 %v3786, %v3515
      %v3788 = vadd.f32 %v3787, %v3525
      %v3789 = vadd.f32 %v3788, %v3535
      %v3790 = vadd.f32 %v3789, %v3545
      %v3791 = vadd.f32 %v3790, %v3555
      %v3792 = vadd.f32 %v3791, %v3565
      %v3793 = vadd.f32 %v3792, %v3575
      %v3794 = vadd.f32 %v3793, %v3585
      %v3795 = vadd.f32 %v3794, %v3595
      %v3796 = vadd.f32 %v3286, %v3296
      %v3797 = vadd.f32 %v3796, %v3306
      %v3798 = vadd.f32 %v3797, %v3316
      %v3799 = vadd.f32 %v3798, %v3326
      %v3800 = vadd.f32 %v3799, %v3336
      %v3801 = vadd.f32 %v3800, %v3346
      %v3802 = vadd.f32 %v3801, %v3356
      %v3803 = vadd.f32 %v3802, %v3366
      %v3804 = vadd.f32 %v3803, %v3376
      %v3805 = vadd.f32 %v3804, %v3386
      %v3806 = vadd.f32 %v3805, %v3396
      %v3807 = vadd.f32 %v3806, %v3406
      %v3808 = vadd.f32 %v3807, %v3416
      %v3809 = vadd.f32 %v3808, %v3426
      %v3810 = vadd.f32 %v3809, %v3436
      %v3811 = vadd.f32 %v3810, %v3446
      %v3812 = vadd.f32 %v3811, %v3456
      %v3813 = vadd.f32 %v3812, %v3466
      %v3814 = vadd.f32 %v3813, %v3476
      %v3815 = vadd.f32 %v3814, %v3486
      %v3816 = vadd.f32 %v3815, %v3496
      %v3817 = vadd.f32 %v3816, %v3506
      %v3818 = vadd.f32 %v3817, %v3516
      %v3819 = vadd.f32 %v3818, %v3526
      %v3820 = vadd.f32 %v3819, %v3536
      %v3821 = vadd.f32 %v3820, %v3546
      %v3822 = vadd.f32 %v3821, %v3556
      %v3823 = vadd.f32 %v3822, %v3566
      %v3824 = vadd.f32 %v3823, %v3576
      %v3825 = vadd.f32 %v3824, %v3586
      %v3826 = vadd.f32 %v3825, %v3596
      %v3827 = vadd.f32 %v3287, %v3297
      %v3828 = vadd.f32 %v3827, %v3307
      %v3829 = vadd.f32 %v3828, %v3317
      %v3830 = vadd.f32 %v3829, %v3327
      %v3831 = vadd.f32 %v3830, %v3337
      %v3832 = vadd.f32 %v3831, %v3347
      %v3833 = vadd.f32 %v3832, %v3357
      %v3834 = vadd.f32 %v3833, %v3367
      %v3835 = vadd.f32 %v3834, %v3377
      %v3836 = vadd.f32 %v3835, %v3387
      %v3837 = vadd.f32 %v3836, %v3397
      %v3838 = vadd.f32 %v3837, %v3407
      %v3839 = vadd.f32 %v3838, %v3417
      %v3840 = vadd.f32 %v3839, %v3427
      %v3841 = vadd.f32 %v3840, %v3437
      %v3842 = vadd.f32 %v3841, %v3447
      %v3843 = vadd.f32 %v3842, %v3457
      %v3844 = vadd.f32 %v3843, %v3467
      %v3845 = vadd.f32 %v3844, %v3477
      %v3846 = vadd.f32 %v3845, %v3487
      %v3847 = vadd.f32 %v3846, %v3497
      %v3848 = vadd.f32 %v3847, %v3507
      %v3849 = vadd.f32 %v3848, %v3517
      %v3850 = vadd.f32 %v3849, %v3527
      %v3851 = vadd.f32 %v3850, %v3537
      %v3852 = vadd.f32 %v3851, %v3547
      %v3853 = vadd.f32 %v3852, %v3557
      %v3854 = vadd.f32 %v3853, %v3567
      %v3855 = vadd.f32 %v3854, %v3577
      %v3856 = vadd.f32 %v3855, %v3587
      %v3857 = vadd.f32 %v3856, %v3597
      %v3858 = vadd.f32 %v3288, %v3298
      %v3859 = vadd.f32 %v3858, %v3308
      %v3860 = vadd.f32 %v3859, %v3318
      %v3861 = vadd.f32 %v3860, %v3328
      %v3862 = vadd.f32 %v3861, %v3338
      %v3863 = vadd.f32 %v3862, %v3348
      %v3864 = vadd.f32 %v3863, %v3358
      %v3865 = vadd.f32 %v3864, %v3368
      %v3866 = vadd.f32 %v3865, %v3378
      %v3867 = vadd.f32 %v3866, %v3388
      %v3868 = vadd.f32 %v3867, %v3398
      %v3869 = vadd.f32 %v3868, %v3408
      %v3870 = vadd.f32 %v3869, %v3418
      %v3871 = vadd.f32 %v3870, %v3428
      %v3872 = vadd.f32 %v3871, %v3438
      %v3873 = vadd.f32 %v3872, %v3448
      %v3874 = vadd.f32 %v3873, %v3458
      %v3875 = vadd.f32 %v3874, %v3468
      %v3876 = vadd.f32 %v3875, %v3478
      %v3877 = vadd.f32 %v3876, %v3488
      %v3878 = vadd.f32 %v3877, %v3498
      %v3879 = vadd.f32 %v3878, %v3508
      %v3880 = vadd.f32 %v3879, %v3518
      %v3881 = vadd.f32 %v3880, %v3528
      %v3882 = vadd.f32 %v3881, %v3538
      %v3883 = vadd.f32 %v3882, %v3548
      %v3884 = vadd.f32 %v3883, %v3558
      %v3885 = vadd.f32 %v3884, %v3568
      %v3886 = vadd.f32 %v3885, %v3578
      %v3887 = vadd.f32 %v3886, %v3588
      %v3888 = vadd.f32 %v3887, %v3598
      %v3889 = vadd.f32 %v3289, %v3299
      %v3890 = vadd.f32 %v3889, %v3309
      %v3891 = vadd.f32 %v3890, %v3319
      %v3892 = vadd.f32 %v3891, %v3329
      %v3893 = vadd.f32 %v3892, %v3339
      %v3894 = vadd.f32 %v3893, %v3349
      %v3895 = vadd.f32 %v3894, %v3359
      %v3896 = vadd.f32 %v3895, %v3369
      %v3897 = vadd.f32 %v3896, %v3379
      %v3898 = vadd.f32 %v3897, %v3389
      %v3899 = vadd.f32 %v3898, %v3399
      %v3900 = vadd.f32 %v3899, %v3409
      %v3901 = vadd.f32 %v3900, %v3419
      %v3902 = vadd.f32 %v3901, %v3429
      %v3903 = vadd.f32 %v3902, %v3439
      %v3904 = vadd.f32 %v3903, %v3449
      %v3905 = vadd.f32 %v3904, %v3459
      %v3906 = vadd.f32 %v3905, %v3469
      %v3907 = vadd.f32 %v3906, %v3479
      %v3908 = vadd.f32 %v3907, %v3489
      %v3909 = vadd.f32 %v3908, %v3499
      %v3910 = vadd.f32 %v3909, %v3509
      %v3911 = vadd.f32 %v3910, %v3519
      %v3912 = vadd.f32 %v3911, %v3529
      %v3913 = vadd.f32 %v3912, %v3539
      %v3914 = vadd.f32 %v3913, %v3549
      %v3915 = vadd.f32 %v3914, %v3559
      %v3916 = vadd.f32 %v3915, %v3569
      %v3917 = vadd.f32 %v3916, %v3579
      %v3918 = vadd.f32 %v3917, %v3589
      %v3919 = vadd.f32 %v3918, %v3599
      %v3920 = vadd.f32 %v3600, %v3640
      %v3921 = vadd.f32 %v3601, %v3671
      %v3922 = vadd.f32 %v3602, %v3702
      %v3923 = vadd.f32 %v3603, %v3733
      %v3924 = vadd.f32 %v3604, %v3764
      %v3925 = vadd.f32 %v3605, %v3795
      %v3926 = vadd.f32 %v3606, %v3826
      %v3927 = vadd.f32 %v3607, %v3857
      %v3928 = vadd.f32 %v3608, %v3888
      %v3929 = vadd.f32 %v3609, %v3919
      %3930 = vst [vmem:[#allocation2] sm:$0xff] %v3920
      %3931 = vst [vmem:[#allocation2 + $0x8] sm:$0xff] %v3921
      %3932 = vst [vmem:[#allocation2 + $0x10] sm:$0xff] %v3922
      %3933 = vst [vmem:[#allocation2 + $0x18] sm:$0xff] %v3923
      %3934 = vst [vmem:[#allocation2 + $0x20] sm:$0xff] %v3924
      %3935 = vst [vmem:[#allocation2 + $0x28] sm:$0xff] %v3925
      %3936 = vst [vmem:[#allocation2 + $0x30] sm:$0xff] %v3926
      %3937 = vst [vmem:[#allocation2 + $0x38] sm:$0xff] %v3927
      %3938 = vst [vmem:[#allocation2 + $0x40] sm:$0xff] %v3928
      %3939 = vst [vmem:[#allocation2 + $0x48] sm:$0xff] %v3929
      // Predicated region
      $region45: #{mynet_forward.2} parent=39 // pred_check
        %p3940 = pneg %p276
      $region46: #{mynet_forward.2} parent=39 // pred_check_branch
        %3942 = sbr.rel (%p3940) target = $region48
      $region47: #{mynet_forward.2} parent=39 // pred_region
        %v3943 = vld [vmem:[#allocation2] sm:$0xff]
        %v3944 = vld [vmem:[#allocation2 + $0x8] sm:$0xff]
        %v3945 = vld [vmem:[#allocation2 + $0x10] sm:$0xff]
        %v3946 = vld [vmem:[#allocation2 + $0x18] sm:$0xff]
        %v3947 = vld [vmem:[#allocation2 + $0x20] sm:$0xff]
        %v3948 = vld [vmem:[#allocation2 + $0x28] sm:$0xff]
        %v3949 = vld [vmem:[#allocation2 + $0x30] sm:$0xff]
        %v3950 = vld [vmem:[#allocation2 + $0x38] sm:$0xff]
        %v3951 = vld [vmem:[#allocation2 + $0x40] sm:$0xff]
        %v3952 = vld [vmem:[#allocation2 + $0x48] sm:$0xff]
        %v3953 = vrot.slane %v3943, 4
        %v3954 = vadd.f32 %v3943, %v3953
        %v3955 = vrot.slane %v3954, 2
        %v3956 = vadd.f32 %v3954, %v3955
        %v3957 = vrot.slane %v3956, 1
        %v3958 = vadd.f32 %v3956, %v3957
        %v3959 = vrot.slane %v3944, 4
        %v3960 = vadd.f32 %v3944, %v3959
        %v3961 = vrot.slane %v3960, 2
        %v3962 = vadd.f32 %v3960, %v3961
        %v3963 = vrot.slane %v3962, 1
        %v3964 = vadd.f32 %v3962, %v3963
        %v3965 = vrot.slane %v3945, 4
        %v3966 = vadd.f32 %v3945, %v3965
        %v3967 = vrot.slane %v3966, 2
        %v3968 = vadd.f32 %v3966, %v3967
        %v3969 = vrot.slane %v3968, 1
        %v3970 = vadd.f32 %v3968, %v3969
        %v3971 = vrot.slane %v3946, 4
        %v3972 = vadd.f32 %v3946, %v3971
        %v3973 = vrot.slane %v3972, 2
        %v3974 = vadd.f32 %v3972, %v3973
        %v3975 = vrot.slane %v3974, 1
        %v3976 = vadd.f32 %v3974, %v3975
        %v3977 = vrot.slane %v3947, 4
        %v3978 = vadd.f32 %v3947, %v3977
        %v3979 = vrot.slane %v3978, 2
        %v3980 = vadd.f32 %v3978, %v3979
        %v3981 = vrot.slane %v3980, 1
        %v3982 = vadd.f32 %v3980, %v3981
        %v3983 = vrot.slane %v3948, 4
        %v3984 = vadd.f32 %v3948, %v3983
        %v3985 = vrot.slane %v3984, 2
        %v3986 = vadd.f32 %v3984, %v3985
        %v3987 = vrot.slane %v3986, 1
        %v3988 = vadd.f32 %v3986, %v3987
        %v3989 = vrot.slane %v3949, 4
        %v3990 = vadd.f32 %v3949, %v3989
        %v3991 = vrot.slane %v3990, 2
        %v3992 = vadd.f32 %v3990, %v3991
        %v3993 = vrot.slane %v3992, 1
        %v3994 = vadd.f32 %v3992, %v3993
        %v3995 = vrot.slane %v3950, 4
        %v3996 = vadd.f32 %v3950, %v3995
        %v3997 = vrot.slane %v3996, 2
        %v3998 = vadd.f32 %v3996, %v3997
        %v3999 = vrot.slane %v3998, 1
        %v4000 = vadd.f32 %v3998, %v3999
        %v4001 = vrot.slane %v3951, 4
        %v4002 = vadd.f32 %v3951, %v4001
        %v4003 = vrot.slane %v4002, 2
        %v4004 = vadd.f32 %v4002, %v4003
        %v4005 = vrot.slane %v4004, 1
        %v4006 = vadd.f32 %v4004, %v4005
        %v4007 = vrot.slane %v3952, 4
        %v4008 = vadd.f32 %v3952, %v4007
        %v4009 = vrot.slane %v4008, 2
        %v4010 = vadd.f32 %v4008, %v4009
        %v4011 = vrot.slane %v4010, 1
        %v4012 = vadd.f32 %v4010, %v4011
        %v4013 = vmul.f32 %v3958, 0.00390625
        %v4014 = vmul.f32 %v3964, 0.00390625
        %v4015 = vmul.f32 %v3970, 0.00390625
        %v4016 = vmul.f32 %v3976, 0.00390625
        %v4017 = vmul.f32 %v3982, 0.00390625
        %v4018 = vmul.f32 %v3988, 0.00390625
        %v4019 = vmul.f32 %v3994, 0.00390625
        %v4020 = vmul.f32 %v4000, 0.00390625
        %v4021 = vmul.f32 %v4006, 0.00390625
        %v4022 = vmul.f32 %v4012, 0.00390625
        %v4033 = vcombine.low %v4013, %v4014
        %v4034 = vcombine.low %v4015, %v4016
        %v4035 = vcombine.low %v4017, %v4018
        %v4036 = vcombine.low %v4019, %v4020
        %v4038 = vunpack.c.l.s4 1966171168
        %v4039 = vunpack.c.0.s8 %v4038
        %v4040 = vlaneseq
        %v4041 = vshrl.u32 %v4040, 7
        %v4042 = vsub.s32 %v4039, %v4041
        %v4043 = vrot.slane %v4033, %v4042
        %v4045 = vunpack.c.l.s4 1966171168
        %v4046 = vunpack.c.0.s8 %v4045
        %v4047 = vlaneseq
        %v4048 = vshrl.u32 %v4047, 7
        %v4049 = vsub.s32 %v4046, %v4048
        %v4050 = vrot.slane %v4034, %v4049
        %v4052 = vunpack.c.l.s4 1966171168
        %v4053 = vunpack.c.0.s8 %v4052
        %v4054 = vlaneseq
        %v4055 = vshrl.u32 %v4054, 7
        %v4056 = vsub.s32 %v4053, %v4055
        %v4057 = vrot.slane %v4035, %v4056
        %v4059 = vunpack.c.l.s4 1966171168
        %v4060 = vunpack.c.0.s8 %v4059
        %v4061 = vlaneseq
        %v4062 = vshrl.u32 %v4061, 7
        %v4063 = vsub.s32 %v4060, %v4062
        %v4064 = vrot.slane %v4036, %v4063
        %v4065 = vcombine.low %v4043, %v4050
        %v4066 = vcombine.low %v4057, %v4064
        %v4068 = vunpack.c.l.s4 1966171168
        %v4069 = vunpack.c.0.s8 %v4068
        %v4070 = vlaneseq
        %v4071 = vshrl.u32 %v4070, 7
        %v4072 = vsub.s32 %v4069, %v4071
        %v4073 = vrot.slane %v4065, %v4072
        %v4075 = vunpack.c.l.s4 1966171168
        %v4076 = vunpack.c.0.s8 %v4075
        %v4077 = vlaneseq
        %v4078 = vshrl.u32 %v4077, 7
        %v4079 = vsub.s32 %v4076, %v4078
        %v4080 = vrot.slane %v4066, %v4079
        %v4081 = vcombine.low %v4073, %v4080
        %v4082 = vcombine.low %v4021, %v4022
        %v4084 = vunpack.c.l.s4 1966171168
        %v4085 = vunpack.c.0.s8 %v4084
        %v4086 = vlaneseq
        %v4087 = vshrl.u32 %v4086, 7
        %v4088 = vsub.s32 %v4085, %v4087
        %v4089 = vrot.slane %v4082, %v4088
        %v4091 = vunpack.c.l.s4 1966171168
        %v4092 = vunpack.c.0.s8 %v4091
        %v4093 = vlaneseq
        %v4094 = vshrl.u32 %v4093, 7
        %v4095 = vsub.s32 %v4092, %v4094
        %v4096 = vrot.slane %v4089, %v4095
        %4099 = vst [vmem:[%s274] sm:$0xff] %v4081
        %v4100 = vlaneseq
        %vm4101 = vcmp.ge.s32.totalorder %v4100, 0
        %vm4102 = vcmp.lt.s32.totalorder %v4100, 256
        %vm4103 = vmand %vm4101, %vm4102
        %4104 = vst.msk [vmem:[%s274 + $0x8] sm:$0x3] %vm4103, %v4096
      $region48: #{mynet_forward.2} parent=39 // pred_fallthru
        _
      %p4105 = scmp.lt.s32.totalorder %s21, 0
      %s4106 = scalar_select %p4105, %s21, 0
      %p4107 = scmp.lt.s32.totalorder %s22, 1
      %s4108 = scalar_select %p4107, %s22, 1
      %s4109 = smul.addr %s4108, 10
      %s4110 = smul.addr %s4106, 20
      %s4111 = sadd.s32 %s4109, %s4110
      %s4112 = scalar_lea.vmem %s5, %s4111
      // Predicated region
      $region49: #{mynet_forward.2} parent=39 // pred_check
        %p4113 = pneg %p169
      $region50: #{mynet_forward.2} parent=39 // pred_check_branch
        %4115 = sbr.rel (%p4113) target = $region52
      $region51: #{mynet_forward.2} parent=39 // pred_region
        _
      $region52: #{mynet_forward.2} parent=39 // pred_fallthru
        _
    $region40: #{mynet_forward.2} parent=5 // pred_fallthru
      _
    %p4116 = scmp.le.s32.totalorder 2, %s11
    // Predicated region
    $region53: #{mynet_forward.2} parent=5 // pred_check
      %p4117 = pneg %p4116
    $region54: #{mynet_forward.2} parent=5 // pred_check_branch
      %4119 = sbr.rel (%p4117) target = $region56
    $region55: #{mynet_forward.2} parent=5 // pred_region
      %s4120 = ssub.s32 %s11, 2
      // Predicated region
      $region57: #{mynet_forward.2} parent=55 // pred_check
        %p4121 = pneg %p175
      $region58: #{mynet_forward.2} parent=55 // pred_check_branch
        %4123 = sbr.rel (%p4121) target = $region60
      $region59: #{mynet_forward.2} parent=55 // pred_region
        %p4124 = scmp.lt.s32.totalorder %s24, 0
        %s4125 = scalar_select %p4124, %s24, 0
        %p4126 = scmp.lt.s32.totalorder %s25, 1
        %s4127 = scalar_select %p4126, %s25, 1
        %s4128 = smul.addr %s4127, 10
        %s4129 = smul.addr %s4125, 20
        %s4130 = sadd.s32 %s4128, %s4129
        %s4131 = scalar_lea.vmem %s5, %s4130
      $region60: #{mynet_forward.2} parent=55 // pred_fallthru
        _
    $region56: #{mynet_forward.2} parent=5 // pred_fallthru
      _
  $region6: #{mynet_forward.2} parent=0 // loop_footer
    %s15 = sadd.s32 1, %s11
  $region7: #{mynet_forward.2} parent=0 // loop_footer_branch
    %10 = sbr.rel target = $region3
  $region8: #{mynet_forward.2} parent=0 // loop_exit
    _

// kernel: mynet_forward.3
$region0: #{mynet_forward.3}
  #allocation0 [shape = 'u32[]', space=smem, size = 0x4, offset = 0x4, fixed_abs, tag = 'smem constant byte address 0x4 - core index']
  #allocation1 [shape = 'u32[144,128]{1,0:T(1,128)}', space=vmem, size = 0x12000, scoped, tag = 'internal scratch']
  %s0 = inlined_call_operand.vmem [shape: f32[1,2,1,1280], index: 0, kind: input, shape index: {}]
  %s1 = inlined_call_operand.vmem [shape: bf16[1280,512], index: 1, kind: input, shape index: {}]
  %s2 = inlined_call_operand.vmem [shape: f32[1,512], index: 2, kind: input, shape index: {}]
  %s3 = inlined_call_operand.vmem [shape: bf16[512,128], index: 3, kind: input, shape index: {}]
  %s4 = inlined_call_operand.vmem [shape: f32[1,128], index: 4, kind: input, shape index: {}]
  %s5 = inlined_call_operand.vmem [shape: bf16[128,64], index: 5, kind: input, shape index: {}]
  %s6 = inlined_call_operand.vmem [shape: f32[1,64], index: 6, kind: input, shape index: {}]
  %s7 = inlined_call_operand.vmem [shape: bf16[64,4], index: 7, kind: input, shape index: {}]
  %s8 = inlined_call_operand.vmem [shape: f32[1,4], index: 8, kind: input, shape index: {}]
  %s9 = inlined_call_operand.hbm [shape: f32[2,4], index: 9, kind: output, shape index: {}]
  %s10 = sld [smem:[#allocation0]]
  $region46: #{mynet_forward.3} parent=0
    _
  %s12 = ssub.s32 1, %s10
  %s13 = scalar_select 0, %s12, %s10
  $region1: #{mynet_forward.3} parent=0
    #allocation2 [shape = 'u8[1024]{0}', space=vmem, size = 0x400, scoped, tag = 'output window, operand 0, single buffered']
    #allocation3 [shape = 's32[1]{0}', space=sflag, size = 0x4, scoped, tag = 'scoped memory for mynet_forward.3']
    %14 = vsyncpa [#allocation3], 0
    // Predicated region
    $region2: #{mynet_forward.3} parent=1 // pred_check
      _
    $region3: #{mynet_forward.3} parent=1 // pred_check_branch
      %16 = sbr.rel (0) target = $region5
    $region4: #{mynet_forward.3} parent=1 // pred_region
      _
    $region5: #{mynet_forward.3} parent=1 // pred_fallthru
      _
    // Predicated region
    $region6: #{mynet_forward.3} parent=1 // pred_check
      _
    $region7: #{mynet_forward.3} parent=1 // pred_check_branch
      %18 = sbr.rel (0) target = $region9
    $region8: #{mynet_forward.3} parent=1 // pred_region
      _
    $region9: #{mynet_forward.3} parent=1 // pred_fallthru
      _
    // Predicated region
    $region10: #{mynet_forward.3} parent=1 // pred_check
      _
    $region11: #{mynet_forward.3} parent=1 // pred_check_branch
      %20 = sbr.rel (0) target = $region13
    $region12: #{mynet_forward.3} parent=1 // pred_region
      _
    $region13: #{mynet_forward.3} parent=1 // pred_fallthru
      _
    // Predicated region
    $region14: #{mynet_forward.3} parent=1 // pred_check
      _
    $region15: #{mynet_forward.3} parent=1 // pred_check_branch
      %22 = sbr.rel (0) target = $region17
    $region16: #{mynet_forward.3} parent=1 // pred_region
      _
    $region17: #{mynet_forward.3} parent=1 // pred_fallthru
      _
    // Predicated region
    $region18: #{mynet_forward.3} parent=1 // pred_check
      _
    $region19: #{mynet_forward.3} parent=1 // pred_check_branch
      %24 = sbr.rel (0) target = $region21
    $region20: #{mynet_forward.3} parent=1 // pred_region
      _
    $region21: #{mynet_forward.3} parent=1 // pred_fallthru
      _
    // Predicated region
    $region22: #{mynet_forward.3} parent=1 // pred_check
      _
    $region23: #{mynet_forward.3} parent=1 // pred_check_branch
      %26 = sbr.rel (0) target = $region25
    $region24: #{mynet_forward.3} parent=1 // pred_region
      _
    $region25: #{mynet_forward.3} parent=1 // pred_fallthru
      _
    // Predicated region
    $region26: #{mynet_forward.3} parent=1 // pred_check
      _
    $region27: #{mynet_forward.3} parent=1 // pred_check_branch
      %28 = sbr.rel (0) target = $region29
    $region28: #{mynet_forward.3} parent=1 // pred_region
      _
    $region29: #{mynet_forward.3} parent=1 // pred_fallthru
      _
    // Predicated region
    $region30: #{mynet_forward.3} parent=1 // pred_check
      _
    $region31: #{mynet_forward.3} parent=1 // pred_check_branch
      %30 = sbr.rel (0) target = $region33
    $region32: #{mynet_forward.3} parent=1 // pred_region
      _
    $region33: #{mynet_forward.3} parent=1 // pred_fallthru
      _
    // Predicated region
    $region34: #{mynet_forward.3} parent=1 // pred_check
      _
    $region35: #{mynet_forward.3} parent=1 // pred_check_branch
      %32 = sbr.rel (0) target = $region37
    $region36: #{mynet_forward.3} parent=1 // pred_region
      _
    $region37: #{mynet_forward.3} parent=1 // pred_fallthru
      _
    %v34 = vld [vmem:[%s0] sm:$0xff]
    %v35 = vld [vmem:[%s0 + $0x8] sm:$0x3]
    %v36 = vld [vmem:[%s0 + $0xa] sm:$0xff]
    %v37 = vld [vmem:[%s0 + $0x12] sm:$0x3]
    %v38 = vadd.f32 %v34, 0.0
    %v39 = vadd.f32 %v35, 0.0
    %v40 = vadd.f32 %v36, 0.0
    %v41 = vadd.f32 %v37, 0.0
    %v46 = vlaneseq
    %v47 = vshrl.u32 %v46, 7
    %v48 = vsub.s32 0, %v47
    %v49 = vrot.slane %v38, %v48
    %v50 = vlaneseq
    %v51 = vshrl.u32 %v50, 7
    %v52 = vsub.s32 1, %v51
    %v53 = vrot.slane %v38, %v52
    %v54 = vlaneseq
    %v55 = vshrl.u32 %v54, 7
    %v56 = vsub.s32 2, %v55
    %v57 = vrot.slane %v38, %v56
    %v58 = vlaneseq
    %v59 = vshrl.u32 %v58, 7
    %v60 = vsub.s32 3, %v59
    %v61 = vrot.slane %v38, %v60
    %v62 = vlaneseq
    %v63 = vshrl.u32 %v62, 7
    %v64 = vsub.s32 4, %v63
    %v65 = vrot.slane %v38, %v64
    %v66 = vlaneseq
    %v67 = vshrl.u32 %v66, 7
    %v68 = vsub.s32 5, %v67
    %v69 = vrot.slane %v38, %v68
    %v70 = vlaneseq
    %v71 = vshrl.u32 %v70, 7
    %v72 = vsub.s32 6, %v71
    %v73 = vrot.slane %v38, %v72
    %v74 = vlaneseq
    %v75 = vshrl.u32 %v74, 7
    %v76 = vsub.s32 7, %v75
    %v77 = vrot.slane %v38, %v76
    %v78 = vlaneseq
    %v79 = vshrl.u32 %v78, 7
    %v80 = vsub.s32 0, %v79
    %v81 = vrot.slane %v39, %v80
    %v82 = vlaneseq
    %v83 = vshrl.u32 %v82, 7
    %v84 = vsub.s32 1, %v83
    %v85 = vrot.slane %v39, %v84
    %v86 = vlaneseq
    %v87 = vshrl.u32 %v86, 7
    %v88 = vsub.s32 0, %v87
    %v89 = vrot.slane %v40, %v88
    %v90 = vlaneseq
    %v91 = vshrl.u32 %v90, 7
    %v92 = vsub.s32 1, %v91
    %v93 = vrot.slane %v40, %v92
    %v94 = vlaneseq
    %v95 = vshrl.u32 %v94, 7
    %v96 = vsub.s32 2, %v95
    %v97 = vrot.slane %v40, %v96
    %v98 = vlaneseq
    %v99 = vshrl.u32 %v98, 7
    %v100 = vsub.s32 3, %v99
    %v101 = vrot.slane %v40, %v100
    %v102 = vlaneseq
    %v103 = vshrl.u32 %v102, 7
    %v104 = vsub.s32 4, %v103
    %v105 = vrot.slane %v40, %v104
    %v106 = vlaneseq
    %v107 = vshrl.u32 %v106, 7
    %v108 = vsub.s32 5, %v107
    %v109 = vrot.slane %v40, %v108
    %v110 = vlaneseq
    %v111 = vshrl.u32 %v110, 7
    %v112 = vsub.s32 6, %v111
    %v113 = vrot.slane %v40, %v112
    %v114 = vlaneseq
    %v115 = vshrl.u32 %v114, 7
    %v116 = vsub.s32 7, %v115
    %v117 = vrot.slane %v40, %v116
    %v118 = vlaneseq
    %v119 = vshrl.u32 %v118, 7
    %v120 = vsub.s32 0, %v119
    %v121 = vrot.slane %v41, %v120
    %v122 = vlaneseq
    %v123 = vshrl.u32 %v122, 7
    %v124 = vsub.s32 1, %v123
    %v125 = vrot.slane %v41, %v124
    %v146 = vpack.c.bf16 %v49, %v49
    %v147 = vpack.c.bf16 %v53, %v53
    %v148 = vpack.c.bf16 %v57, %v57
    %v149 = vpack.c.bf16 %v61, %v61
    %v150 = vpack.c.bf16 %v65, %v65
    %v151 = vpack.c.bf16 %v69, %v69
    %v152 = vpack.c.bf16 %v73, %v73
    %v153 = vpack.c.bf16 %v77, %v77
    %v154 = vpack.c.bf16 %v81, %v81
    %v155 = vpack.c.bf16 %v85, %v85
    %v156 = vpack.c.bf16 %v89, %v89
    %v157 = vpack.c.bf16 %v93, %v93
    %v158 = vpack.c.bf16 %v97, %v97
    %v159 = vpack.c.bf16 %v101, %v101
    %v160 = vpack.c.bf16 %v105, %v105
    %v161 = vpack.c.bf16 %v109, %v109
    %v162 = vpack.c.bf16 %v113, %v113
    %v163 = vpack.c.bf16 %v117, %v117
    %v164 = vpack.c.bf16 %v121, %v121
    %v165 = vpack.c.bf16 %v125, %v125
    %v166 = vld [vmem:[%s1] sm:$0xff]
    %v167 = vld [vmem:[%s1 + $0x8] sm:$0xff]
    %v168 = vld [vmem:[%s1 + $0x10] sm:$0xff]
    %v169 = vld [vmem:[%s1 + $0x18] sm:$0xff]
    %v170 = vld [vmem:[%s1 + $0x20] sm:$0xff]
    %v171 = vld [vmem:[%s1 + $0x28] sm:$0xff]
    %v172 = vld [vmem:[%s1 + $0x30] sm:$0xff]
    %v173 = vld [vmem:[%s1 + $0x38] sm:$0xff]
    %v174 = vld [vmem:[%s1 + $0x40] sm:$0xff]
    %v175 = vld [vmem:[%s1 + $0x48] sm:$0xff]
    %v176 = vld [vmem:[%s1 + $0x50] sm:$0xff]
    %v177 = vld [vmem:[%s1 + $0x58] sm:$0xff]
    %v178 = vld [vmem:[%s1 + $0x60] sm:$0xff]
    %v179 = vld [vmem:[%s1 + $0x68] sm:$0xff]
    %v180 = vld [vmem:[%s1 + $0x70] sm:$0xff]
    %v181 = vld [vmem:[%s1 + $0x78] sm:$0xff]
    %v182 = vld [vmem:[%s1 + $0x80] sm:$0xff]
    %v183 = vld [vmem:[%s1 + $0x88] sm:$0xff]
    %v184 = vld [vmem:[%s1 + $0x90] sm:$0xff]
    %v185 = vld [vmem:[%s1 + $0x98] sm:$0xff]
    %v186 = vld [vmem:[%s1 + $0xa0] sm:$0xff]
    %v187 = vld [vmem:[%s1 + $0xa8] sm:$0xff]
    %v188 = vld [vmem:[%s1 + $0xb0] sm:$0xff]
    %v189 = vld [vmem:[%s1 + $0xb8] sm:$0xff]
    %v190 = vld [vmem:[%s1 + $0xc0] sm:$0xff]
    %v191 = vld [vmem:[%s1 + $0xc8] sm:$0xff]
    %v192 = vld [vmem:[%s1 + $0xd0] sm:$0xff]
    %v193 = vld [vmem:[%s1 + $0xd8] sm:$0xff]
    %v194 = vld [vmem:[%s1 + $0xe0] sm:$0xff]
    %v195 = vld [vmem:[%s1 + $0xe8] sm:$0xff]
    %v196 = vld [vmem:[%s1 + $0xf0] sm:$0xff]
    %v197 = vld [vmem:[%s1 + $0xf8] sm:$0xff]
    %v198 = vld [vmem:[%s1 + $0x100] sm:$0xff]
    %v199 = vld [vmem:[%s1 + $0x108] sm:$0xff]
    %v200 = vld [vmem:[%s1 + $0x110] sm:$0xff]
    %v201 = vld [vmem:[%s1 + $0x118] sm:$0xff]
    %v202 = vld [vmem:[%s1 + $0x120] sm:$0xff]
    %v203 = vld [vmem:[%s1 + $0x128] sm:$0xff]
    %v204 = vld [vmem:[%s1 + $0x130] sm:$0xff]
    %v205 = vld [vmem:[%s1 + $0x138] sm:$0xff]
    %v206 = vld [vmem:[%s1 + $0x140] sm:$0xff]
    %v207 = vld [vmem:[%s1 + $0x148] sm:$0xff]
    %v208 = vld [vmem:[%s1 + $0x150] sm:$0xff]
    %v209 = vld [vmem:[%s1 + $0x158] sm:$0xff]
    %v210 = vld [vmem:[%s1 + $0x160] sm:$0xff]
    %v211 = vld [vmem:[%s1 + $0x168] sm:$0xff]
    %v212 = vld [vmem:[%s1 + $0x170] sm:$0xff]
    %v213 = vld [vmem:[%s1 + $0x178] sm:$0xff]
    %v214 = vld [vmem:[%s1 + $0x180] sm:$0xff]
    %v215 = vld [vmem:[%s1 + $0x188] sm:$0xff]
    %v216 = vld [vmem:[%s1 + $0x190] sm:$0xff]
    %v217 = vld [vmem:[%s1 + $0x198] sm:$0xff]
    %v218 = vld [vmem:[%s1 + $0x1a0] sm:$0xff]
    %v219 = vld [vmem:[%s1 + $0x1a8] sm:$0xff]
    %v220 = vld [vmem:[%s1 + $0x1b0] sm:$0xff]
    %v221 = vld [vmem:[%s1 + $0x1b8] sm:$0xff]
    %v222 = vld [vmem:[%s1 + $0x1c0] sm:$0xff]
    %v223 = vld [vmem:[%s1 + $0x1c8] sm:$0xff]
    %v224 = vld [vmem:[%s1 + $0x1d0] sm:$0xff]
    %v225 = vld [vmem:[%s1 + $0x1d8] sm:$0xff]
    %v226 = vld [vmem:[%s1 + $0x1e0] sm:$0xff]
    %v227 = vld [vmem:[%s1 + $0x1e8] sm:$0xff]
    %v228 = vld [vmem:[%s1 + $0x1f0] sm:$0xff]
    %v229 = vld [vmem:[%s1 + $0x1f8] sm:$0xff]
    %v230 = vld [vmem:[%s1 + $0x200] sm:$0xff]
    %v231 = vld [vmem:[%s1 + $0x208] sm:$0xff]
    %v232 = vld [vmem:[%s1 + $0x210] sm:$0xff]
    %v233 = vld [vmem:[%s1 + $0x218] sm:$0xff]
    %v234 = vld [vmem:[%s1 + $0x220] sm:$0xff]
    %v235 = vld [vmem:[%s1 + $0x228] sm:$0xff]
    %v236 = vld [vmem:[%s1 + $0x230] sm:$0xff]
    %v237 = vld [vmem:[%s1 + $0x238] sm:$0xff]
    %v238 = vld [vmem:[%s1 + $0x240] sm:$0xff]
    %v239 = vld [vmem:[%s1 + $0x248] sm:$0xff]
    %v240 = vld [vmem:[%s1 + $0x250] sm:$0xff]
    %v241 = vld [vmem:[%s1 + $0x258] sm:$0xff]
    %v242 = vld [vmem:[%s1 + $0x260] sm:$0xff]
    %v243 = vld [vmem:[%s1 + $0x268] sm:$0xff]
    %v244 = vld [vmem:[%s1 + $0x270] sm:$0xff]
    %v245 = vld [vmem:[%s1 + $0x278] sm:$0xff]
    %v246 = vld [vmem:[%s1 + $0x280] sm:$0xff]
    %v247 = vld [vmem:[%s1 + $0x288] sm:$0xff]
    %v248 = vld [vmem:[%s1 + $0x290] sm:$0xff]
    %v249 = vld [vmem:[%s1 + $0x298] sm:$0xff]
    %v250 = vld [vmem:[%s1 + $0x2a0] sm:$0xff]
    %v251 = vld [vmem:[%s1 + $0x2a8] sm:$0xff]
    %v252 = vld [vmem:[%s1 + $0x2b0] sm:$0xff]
    %v253 = vld [vmem:[%s1 + $0x2b8] sm:$0xff]
    %v254 = vld [vmem:[%s1 + $0x2c0] sm:$0xff]
    %v255 = vld [vmem:[%s1 + $0x2c8] sm:$0xff]
    %v256 = vld [vmem:[%s1 + $0x2d0] sm:$0xff]
    %v257 = vld [vmem:[%s1 + $0x2d8] sm:$0xff]
    %v258 = vld [vmem:[%s1 + $0x2e0] sm:$0xff]
    %v259 = vld [vmem:[%s1 + $0x2e8] sm:$0xff]
    %v260 = vld [vmem:[%s1 + $0x2f0] sm:$0xff]
    %v261 = vld [vmem:[%s1 + $0x2f8] sm:$0xff]
    %v262 = vld [vmem:[%s1 + $0x300] sm:$0xff]
    %v263 = vld [vmem:[%s1 + $0x308] sm:$0xff]
    %v264 = vld [vmem:[%s1 + $0x310] sm:$0xff]
    %v265 = vld [vmem:[%s1 + $0x318] sm:$0xff]
    %v266 = vld [vmem:[%s1 + $0x320] sm:$0xff]
    %v267 = vld [vmem:[%s1 + $0x328] sm:$0xff]
    %v268 = vld [vmem:[%s1 + $0x330] sm:$0xff]
    %v269 = vld [vmem:[%s1 + $0x338] sm:$0xff]
    %v270 = vld [vmem:[%s1 + $0x340] sm:$0xff]
    %v271 = vld [vmem:[%s1 + $0x348] sm:$0xff]
    %v272 = vld [vmem:[%s1 + $0x350] sm:$0xff]
    %v273 = vld [vmem:[%s1 + $0x358] sm:$0xff]
    %v274 = vld [vmem:[%s1 + $0x360] sm:$0xff]
    %v275 = vld [vmem:[%s1 + $0x368] sm:$0xff]
    %v276 = vld [vmem:[%s1 + $0x370] sm:$0xff]
    %v277 = vld [vmem:[%s1 + $0x378] sm:$0xff]
    %v278 = vld [vmem:[%s1 + $0x380] sm:$0xff]
    %v279 = vld [vmem:[%s1 + $0x388] sm:$0xff]
    %v280 = vld [vmem:[%s1 + $0x390] sm:$0xff]
    %v281 = vld [vmem:[%s1 + $0x398] sm:$0xff]
    %v282 = vld [vmem:[%s1 + $0x3a0] sm:$0xff]
    %v283 = vld [vmem:[%s1 + $0x3a8] sm:$0xff]
    %v284 = vld [vmem:[%s1 + $0x3b0] sm:$0xff]
    %v285 = vld [vmem:[%s1 + $0x3b8] sm:$0xff]
    %v286 = vld [vmem:[%s1 + $0x3c0] sm:$0xff]
    %v287 = vld [vmem:[%s1 + $0x3c8] sm:$0xff]
    %v288 = vld [vmem:[%s1 + $0x3d0] sm:$0xff]
    %v289 = vld [vmem:[%s1 + $0x3d8] sm:$0xff]
    %v290 = vld [vmem:[%s1 + $0x3e0] sm:$0xff]
    %v291 = vld [vmem:[%s1 + $0x3e8] sm:$0xff]
    %v292 = vld [vmem:[%s1 + $0x3f0] sm:$0xff]
    %v293 = vld [vmem:[%s1 + $0x3f8] sm:$0xff]
    %v294 = vld [vmem:[%s1 + $0x400] sm:$0xff]
    %v295 = vld [vmem:[%s1 + $0x408] sm:$0xff]
    %v296 = vld [vmem:[%s1 + $0x410] sm:$0xff]
    %v297 = vld [vmem:[%s1 + $0x418] sm:$0xff]
    %v298 = vld [vmem:[%s1 + $0x420] sm:$0xff]
    %v299 = vld [vmem:[%s1 + $0x428] sm:$0xff]
    %v300 = vld [vmem:[%s1 + $0x430] sm:$0xff]
    %v301 = vld [vmem:[%s1 + $0x438] sm:$0xff]
    %v302 = vld [vmem:[%s1 + $0x440] sm:$0xff]
    %v303 = vld [vmem:[%s1 + $0x448] sm:$0xff]
    %v304 = vld [vmem:[%s1 + $0x450] sm:$0xff]
    %v305 = vld [vmem:[%s1 + $0x458] sm:$0xff]
    %v306 = vld [vmem:[%s1 + $0x460] sm:$0xff]
    %v307 = vld [vmem:[%s1 + $0x468] sm:$0xff]
    %v308 = vld [vmem:[%s1 + $0x470] sm:$0xff]
    %v309 = vld [vmem:[%s1 + $0x478] sm:$0xff]
    %v310 = vld [vmem:[%s1 + $0x480] sm:$0xff]
    %v311 = vld [vmem:[%s1 + $0x488] sm:$0xff]
    %v312 = vld [vmem:[%s1 + $0x490] sm:$0xff]
    %v313 = vld [vmem:[%s1 + $0x498] sm:$0xff]
    %v314 = vld [vmem:[%s1 + $0x4a0] sm:$0xff]
    %v315 = vld [vmem:[%s1 + $0x4a8] sm:$0xff]
    %v316 = vld [vmem:[%s1 + $0x4b0] sm:$0xff]
    %v317 = vld [vmem:[%s1 + $0x4b8] sm:$0xff]
    %v318 = vld [vmem:[%s1 + $0x4c0] sm:$0xff]
    %v319 = vld [vmem:[%s1 + $0x4c8] sm:$0xff]
    %v320 = vld [vmem:[%s1 + $0x4d0] sm:$0xff]
    %v321 = vld [vmem:[%s1 + $0x4d8] sm:$0xff]
    %v322 = vld [vmem:[%s1 + $0x4e0] sm:$0xff]
    %v323 = vld [vmem:[%s1 + $0x4e8] sm:$0xff]
    %v324 = vld [vmem:[%s1 + $0x4f0] sm:$0xff]
    %v325 = vld [vmem:[%s1 + $0x4f8] sm:$0xff]
    %v326 = vld [vmem:[%s1 + $0x500] sm:$0xff]
    %v327 = vld [vmem:[%s1 + $0x508] sm:$0xff]
    %v328 = vld [vmem:[%s1 + $0x510] sm:$0xff]
    %v329 = vld [vmem:[%s1 + $0x518] sm:$0xff]
    %v330 = vld [vmem:[%s1 + $0x520] sm:$0xff]
    %v331 = vld [vmem:[%s1 + $0x528] sm:$0xff]
    %v332 = vld [vmem:[%s1 + $0x530] sm:$0xff]
    %v333 = vld [vmem:[%s1 + $0x538] sm:$0xff]
    %v334 = vld [vmem:[%s1 + $0x540] sm:$0xff]
    %v335 = vld [vmem:[%s1 + $0x548] sm:$0xff]
    %v336 = vld [vmem:[%s1 + $0x550] sm:$0xff]
    %v337 = vld [vmem:[%s1 + $0x558] sm:$0xff]
    %v338 = vld [vmem:[%s1 + $0x560] sm:$0xff]
    %v339 = vld [vmem:[%s1 + $0x568] sm:$0xff]
    %v340 = vld [vmem:[%s1 + $0x570] sm:$0xff]
    %v341 = vld [vmem:[%s1 + $0x578] sm:$0xff]
    %v342 = vld [vmem:[%s1 + $0x580] sm:$0xff]
    %v343 = vld [vmem:[%s1 + $0x588] sm:$0xff]
    %v344 = vld [vmem:[%s1 + $0x590] sm:$0xff]
    %v345 = vld [vmem:[%s1 + $0x598] sm:$0xff]
    %v346 = vld [vmem:[%s1 + $0x5a0] sm:$0xff]
    %v347 = vld [vmem:[%s1 + $0x5a8] sm:$0xff]
    %v348 = vld [vmem:[%s1 + $0x5b0] sm:$0xff]
    %v349 = vld [vmem:[%s1 + $0x5b8] sm:$0xff]
    %v350 = vld [vmem:[%s1 + $0x5c0] sm:$0xff]
    %v351 = vld [vmem:[%s1 + $0x5c8] sm:$0xff]
    %v352 = vld [vmem:[%s1 + $0x5d0] sm:$0xff]
    %v353 = vld [vmem:[%s1 + $0x5d8] sm:$0xff]
    %v354 = vld [vmem:[%s1 + $0x5e0] sm:$0xff]
    %v355 = vld [vmem:[%s1 + $0x5e8] sm:$0xff]
    %v356 = vld [vmem:[%s1 + $0x5f0] sm:$0xff]
    %v357 = vld [vmem:[%s1 + $0x5f8] sm:$0xff]
    %v358 = vld [vmem:[%s1 + $0x600] sm:$0xff]
    %v359 = vld [vmem:[%s1 + $0x608] sm:$0xff]
    %v360 = vld [vmem:[%s1 + $0x610] sm:$0xff]
    %v361 = vld [vmem:[%s1 + $0x618] sm:$0xff]
    %v362 = vld [vmem:[%s1 + $0x620] sm:$0xff]
    %v363 = vld [vmem:[%s1 + $0x628] sm:$0xff]
    %v364 = vld [vmem:[%s1 + $0x630] sm:$0xff]
    %v365 = vld [vmem:[%s1 + $0x638] sm:$0xff]
    %v366 = vld [vmem:[%s1 + $0x640] sm:$0xff]
    %v367 = vld [vmem:[%s1 + $0x648] sm:$0xff]
    %v368 = vld [vmem:[%s1 + $0x650] sm:$0xff]
    %v369 = vld [vmem:[%s1 + $0x658] sm:$0xff]
    %v370 = vld [vmem:[%s1 + $0x660] sm:$0xff]
    %v371 = vld [vmem:[%s1 + $0x668] sm:$0xff]
    %v372 = vld [vmem:[%s1 + $0x670] sm:$0xff]
    %v373 = vld [vmem:[%s1 + $0x678] sm:$0xff]
    %v374 = vld [vmem:[%s1 + $0x680] sm:$0xff]
    %v375 = vld [vmem:[%s1 + $0x688] sm:$0xff]
    %v376 = vld [vmem:[%s1 + $0x690] sm:$0xff]
    %v377 = vld [vmem:[%s1 + $0x698] sm:$0xff]
    %v378 = vld [vmem:[%s1 + $0x6a0] sm:$0xff]
    %v379 = vld [vmem:[%s1 + $0x6a8] sm:$0xff]
    %v380 = vld [vmem:[%s1 + $0x6b0] sm:$0xff]
    %v381 = vld [vmem:[%s1 + $0x6b8] sm:$0xff]
    %v382 = vld [vmem:[%s1 + $0x6c0] sm:$0xff]
    %v383 = vld [vmem:[%s1 + $0x6c8] sm:$0xff]
    %v384 = vld [vmem:[%s1 + $0x6d0] sm:$0xff]
    %v385 = vld [vmem:[%s1 + $0x6d8] sm:$0xff]
    %v386 = vld [vmem:[%s1 + $0x6e0] sm:$0xff]
    %v387 = vld [vmem:[%s1 + $0x6e8] sm:$0xff]
    %v388 = vld [vmem:[%s1 + $0x6f0] sm:$0xff]
    %v389 = vld [vmem:[%s1 + $0x6f8] sm:$0xff]
    %v390 = vld [vmem:[%s1 + $0x700] sm:$0xff]
    %v391 = vld [vmem:[%s1 + $0x708] sm:$0xff]
    %v392 = vld [vmem:[%s1 + $0x710] sm:$0xff]
    %v393 = vld [vmem:[%s1 + $0x718] sm:$0xff]
    %v394 = vld [vmem:[%s1 + $0x720] sm:$0xff]
    %v395 = vld [vmem:[%s1 + $0x728] sm:$0xff]
    %v396 = vld [vmem:[%s1 + $0x730] sm:$0xff]
    %v397 = vld [vmem:[%s1 + $0x738] sm:$0xff]
    %v398 = vld [vmem:[%s1 + $0x740] sm:$0xff]
    %v399 = vld [vmem:[%s1 + $0x748] sm:$0xff]
    %v400 = vld [vmem:[%s1 + $0x750] sm:$0xff]
    %v401 = vld [vmem:[%s1 + $0x758] sm:$0xff]
    %v402 = vld [vmem:[%s1 + $0x760] sm:$0xff]
    %v403 = vld [vmem:[%s1 + $0x768] sm:$0xff]
    %v404 = vld [vmem:[%s1 + $0x770] sm:$0xff]
    %v405 = vld [vmem:[%s1 + $0x778] sm:$0xff]
    %v406 = vld [vmem:[%s1 + $0x780] sm:$0xff]
    %v407 = vld [vmem:[%s1 + $0x788] sm:$0xff]
    %v408 = vld [vmem:[%s1 + $0x790] sm:$0xff]
    %v409 = vld [vmem:[%s1 + $0x798] sm:$0xff]
    %v410 = vld [vmem:[%s1 + $0x7a0] sm:$0xff]
    %v411 = vld [vmem:[%s1 + $0x7a8] sm:$0xff]
    %v412 = vld [vmem:[%s1 + $0x7b0] sm:$0xff]
    %v413 = vld [vmem:[%s1 + $0x7b8] sm:$0xff]
    %v414 = vld [vmem:[%s1 + $0x7c0] sm:$0xff]
    %v415 = vld [vmem:[%s1 + $0x7c8] sm:$0xff]
    %v416 = vld [vmem:[%s1 + $0x7d0] sm:$0xff]
    %v417 = vld [vmem:[%s1 + $0x7d8] sm:$0xff]
    %v418 = vld [vmem:[%s1 + $0x7e0] sm:$0xff]
    %v419 = vld [vmem:[%s1 + $0x7e8] sm:$0xff]
    %v420 = vld [vmem:[%s1 + $0x7f0] sm:$0xff]
    %v421 = vld [vmem:[%s1 + $0x7f8] sm:$0xff]
    %v422 = vld [vmem:[%s1 + $0x800] sm:$0xff]
    %v423 = vld [vmem:[%s1 + $0x808] sm:$0xff]
    %v424 = vld [vmem:[%s1 + $0x810] sm:$0xff]
    %v425 = vld [vmem:[%s1 + $0x818] sm:$0xff]
    %v426 = vld [vmem:[%s1 + $0x820] sm:$0xff]
    %v427 = vld [vmem:[%s1 + $0x828] sm:$0xff]
    %v428 = vld [vmem:[%s1 + $0x830] sm:$0xff]
    %v429 = vld [vmem:[%s1 + $0x838] sm:$0xff]
    %v430 = vld [vmem:[%s1 + $0x840] sm:$0xff]
    %v431 = vld [vmem:[%s1 + $0x848] sm:$0xff]
    %v432 = vld [vmem:[%s1 + $0x850] sm:$0xff]
    %v433 = vld [vmem:[%s1 + $0x858] sm:$0xff]
    %v434 = vld [vmem:[%s1 + $0x860] sm:$0xff]
    %v435 = vld [vmem:[%s1 + $0x868] sm:$0xff]
    %v436 = vld [vmem:[%s1 + $0x870] sm:$0xff]
    %v437 = vld [vmem:[%s1 + $0x878] sm:$0xff]
    %v438 = vld [vmem:[%s1 + $0x880] sm:$0xff]
    %v439 = vld [vmem:[%s1 + $0x888] sm:$0xff]
    %v440 = vld [vmem:[%s1 + $0x890] sm:$0xff]
    %v441 = vld [vmem:[%s1 + $0x898] sm:$0xff]
    %v442 = vld [vmem:[%s1 + $0x8a0] sm:$0xff]
    %v443 = vld [vmem:[%s1 + $0x8a8] sm:$0xff]
    %v444 = vld [vmem:[%s1 + $0x8b0] sm:$0xff]
    %v445 = vld [vmem:[%s1 + $0x8b8] sm:$0xff]
    %v446 = vld [vmem:[%s1 + $0x8c0] sm:$0xff]
    %v447 = vld [vmem:[%s1 + $0x8c8] sm:$0xff]
    %v448 = vld [vmem:[%s1 + $0x8d0] sm:$0xff]
    %v449 = vld [vmem:[%s1 + $0x8d8] sm:$0xff]
    %v450 = vld [vmem:[%s1 + $0x8e0] sm:$0xff]
    %v451 = vld [vmem:[%s1 + $0x8e8] sm:$0xff]
    %v452 = vld [vmem:[%s1 + $0x8f0] sm:$0xff]
    %v453 = vld [vmem:[%s1 + $0x8f8] sm:$0xff]
    %v454 = vld [vmem:[%s1 + $0x900] sm:$0xff]
    %v455 = vld [vmem:[%s1 + $0x908] sm:$0xff]
    %v456 = vld [vmem:[%s1 + $0x910] sm:$0xff]
    %v457 = vld [vmem:[%s1 + $0x918] sm:$0xff]
    %v458 = vld [vmem:[%s1 + $0x920] sm:$0xff]
    %v459 = vld [vmem:[%s1 + $0x928] sm:$0xff]
    %v460 = vld [vmem:[%s1 + $0x930] sm:$0xff]
    %v461 = vld [vmem:[%s1 + $0x938] sm:$0xff]
    %v462 = vld [vmem:[%s1 + $0x940] sm:$0xff]
    %v463 = vld [vmem:[%s1 + $0x948] sm:$0xff]
    %v464 = vld [vmem:[%s1 + $0x950] sm:$0xff]
    %v465 = vld [vmem:[%s1 + $0x958] sm:$0xff]
    %v466 = vld [vmem:[%s1 + $0x960] sm:$0xff]
    %v467 = vld [vmem:[%s1 + $0x968] sm:$0xff]
    %v468 = vld [vmem:[%s1 + $0x970] sm:$0xff]
    %v469 = vld [vmem:[%s1 + $0x978] sm:$0xff]
    %v470 = vld [vmem:[%s1 + $0x980] sm:$0xff]
    %v471 = vld [vmem:[%s1 + $0x988] sm:$0xff]
    %v472 = vld [vmem:[%s1 + $0x990] sm:$0xff]
    %v473 = vld [vmem:[%s1 + $0x998] sm:$0xff]
    %v474 = vld [vmem:[%s1 + $0x9a0] sm:$0xff]
    %v475 = vld [vmem:[%s1 + $0x9a8] sm:$0xff]
    %v476 = vld [vmem:[%s1 + $0x9b0] sm:$0xff]
    %v477 = vld [vmem:[%s1 + $0x9b8] sm:$0xff]
    %v478 = vld [vmem:[%s1 + $0x9c0] sm:$0xff]
    %v479 = vld [vmem:[%s1 + $0x9c8] sm:$0xff]
    %v480 = vld [vmem:[%s1 + $0x9d0] sm:$0xff]
    %v481 = vld [vmem:[%s1 + $0x9d8] sm:$0xff]
    %v482 = vld [vmem:[%s1 + $0x9e0] sm:$0xff]
    %v483 = vld [vmem:[%s1 + $0x9e8] sm:$0xff]
    %v484 = vld [vmem:[%s1 + $0x9f0] sm:$0xff]
    %v485 = vld [vmem:[%s1 + $0x9f8] sm:$0xff]
    %v486 = vld [vmem:[%s2] sm:$0xf]
    %v488 = vlaneseq
    %v489 = vshrl.u32 %v488, 7
    %v490 = vsub.s32 0, %v489
    %v491 = vrot.slane %v486, %v490
    %v492 = vlaneseq
    %v493 = vshrl.u32 %v492, 7
    %v494 = vsub.s32 1, %v493
    %v495 = vrot.slane %v486, %v494
    %v496 = vlaneseq
    %v497 = vshrl.u32 %v496, 7
    %v498 = vsub.s32 2, %v497
    %v499 = vrot.slane %v486, %v498
    %v500 = vlaneseq
    %v501 = vshrl.u32 %v500, 7
    %v502 = vsub.s32 3, %v501
    %v503 = vrot.slane %v486, %v502
    %v528 = vunpack.c.l.b16 %v146
    %v529 = vunpack.c.l.b16 %v147
    %v530 = vunpack.c.l.b16 %v148
    %v531 = vunpack.c.l.b16 %v149
    %v532 = vunpack.c.l.b16 %v150
    %v533 = vunpack.c.l.b16 %v151
    %v534 = vunpack.c.l.b16 %v152
    %v535 = vunpack.c.l.b16 %v153
    %v536 = vunpack.c.l.b16 %v154
    %v537 = vunpack.c.l.b16 %v155
    %v538 = vunpack.c.l.b16 %v156
    %v539 = vunpack.c.l.b16 %v157
    %v540 = vunpack.c.l.b16 %v158
    %v541 = vunpack.c.l.b16 %v159
    %v542 = vunpack.c.l.b16 %v160
    %v543 = vunpack.c.l.b16 %v161
    %v544 = vunpack.c.l.b16 %v162
    %v545 = vunpack.c.l.b16 %v163
    %v546 = vunpack.c.l.b16 %v164
    %v547 = vunpack.c.l.b16 %v165
    %v548 = vrot.slane %v538, 7
    %vm549 = vcmask 1041409
    %v550 = vsel %vm549, %v548, %v528
    %v551 = vrot.slane %v539, 7
    %v552 = vsel %vm549, %v551, %v529
    %v553 = vrot.slane %v540, 7
    %v554 = vsel %vm549, %v553, %v530
    %v555 = vrot.slane %v541, 7
    %v556 = vsel %vm549, %v555, %v531
    %v557 = vrot.slane %v542, 7
    %v558 = vsel %vm549, %v557, %v532
    %v559 = vrot.slane %v543, 7
    %v560 = vsel %vm549, %v559, %v533
    %v561 = vrot.slane %v544, 7
    %v562 = vsel %vm549, %v561, %v534
    %v563 = vrot.slane %v545, 7
    %v564 = vsel %vm549, %v563, %v535
    %v565 = vrot.slane %v546, 7
    %v566 = vsel %vm549, %v565, %v536
    %v567 = vrot.slane %v547, 7
    %v568 = vsel %vm549, %v567, %v537
    %v569 = vpack.c.b16 %v550, %v550
    %v570 = vpack.c.b16 %v552, %v552
    %v571 = vpack.c.b16 %v554, %v554
    %v572 = vpack.c.b16 %v556, %v556
    %v573 = vpack.c.b16 %v558, %v558
    %v574 = vpack.c.b16 %v560, %v560
    %v575 = vpack.c.b16 %v562, %v562
    %v576 = vpack.c.b16 %v564, %v564
    %v577 = vpack.c.b16 %v566, %v566
    %v578 = vpack.c.b16 %v568, %v568
    %v909 = vunpack.c.l.b16 %v166
    %v910 = vunpack.c.h.b16 %v166
    %v911 = vunpack.c.l.b16 %v167
    %v912 = vunpack.c.h.b16 %v167
    %v913 = vunpack.c.l.b16 %v168
    %v914 = vunpack.c.h.b16 %v168
    %v915 = vunpack.c.l.b16 %v169
    %v916 = vunpack.c.h.b16 %v169
    %v917 = vunpack.c.l.b16 %v170
    %v918 = vunpack.c.h.b16 %v170
    %v919 = vunpack.c.l.b16 %v171
    %v920 = vunpack.c.h.b16 %v171
    %v921 = vunpack.c.l.b16 %v172
    %v922 = vunpack.c.h.b16 %v172
    %v923 = vunpack.c.l.b16 %v173
    %v924 = vunpack.c.h.b16 %v173
    %v925 = vunpack.c.l.b16 %v174
    %v926 = vunpack.c.h.b16 %v174
    %v927 = vunpack.c.l.b16 %v175
    %v928 = vunpack.c.h.b16 %v175
    %v929 = vunpack.c.l.b16 %v176
    %v930 = vunpack.c.h.b16 %v176
    %v931 = vunpack.c.l.b16 %v177
    %v932 = vunpack.c.h.b16 %v177
    %v933 = vunpack.c.l.b16 %v178
    %v934 = vunpack.c.h.b16 %v178
    %v935 = vunpack.c.l.b16 %v179
    %v936 = vunpack.c.h.b16 %v179
    %v937 = vunpack.c.l.b16 %v180
    %v938 = vunpack.c.h.b16 %v180
    %v939 = vunpack.c.l.b16 %v181
    %v940 = vunpack.c.h.b16 %v181
    %v941 = vunpack.c.l.b16 %v182
    %v942 = vunpack.c.h.b16 %v182
    %v943 = vunpack.c.l.b16 %v183
    %v944 = vunpack.c.h.b16 %v183
    %v945 = vunpack.c.l.b16 %v184
    %v946 = vunpack.c.h.b16 %v184
    %v947 = vunpack.c.l.b16 %v185
    %v948 = vunpack.c.h.b16 %v185
    %v949 = vunpack.c.l.b16 %v186
    %v950 = vunpack.c.h.b16 %v186
    %v951 = vunpack.c.l.b16 %v187
    %v952 = vunpack.c.h.b16 %v187
    %v953 = vunpack.c.l.b16 %v188
    %v954 = vunpack.c.h.b16 %v188
    %v955 = vunpack.c.l.b16 %v189
    %v956 = vunpack.c.h.b16 %v189
    %v957 = vunpack.c.l.b16 %v190
    %v958 = vunpack.c.h.b16 %v190
    %v959 = vunpack.c.l.b16 %v191
    %v960 = vunpack.c.h.b16 %v191
    %v961 = vunpack.c.l.b16 %v192
    %v962 = vunpack.c.h.b16 %v192
    %v963 = vunpack.c.l.b16 %v193
    %v964 = vunpack.c.h.b16 %v193
    %v965 = vunpack.c.l.b16 %v194
    %v966 = vunpack.c.h.b16 %v194
    %v967 = vunpack.c.l.b16 %v195
    %v968 = vunpack.c.h.b16 %v195
    %v969 = vunpack.c.l.b16 %v196
    %v970 = vunpack.c.h.b16 %v196
    %v971 = vunpack.c.l.b16 %v197
    %v972 = vunpack.c.h.b16 %v197
    %v973 = vunpack.c.l.b16 %v198
    %v974 = vunpack.c.h.b16 %v198
    %v975 = vunpack.c.l.b16 %v199
    %v976 = vunpack.c.h.b16 %v199
    %v977 = vunpack.c.l.b16 %v200
    %v978 = vunpack.c.h.b16 %v200
    %v979 = vunpack.c.l.b16 %v201
    %v980 = vunpack.c.h.b16 %v201
    %v981 = vunpack.c.l.b16 %v202
    %v982 = vunpack.c.h.b16 %v202
    %v983 = vunpack.c.l.b16 %v203
    %v984 = vunpack.c.h.b16 %v203
    %v985 = vunpack.c.l.b16 %v204
    %v986 = vunpack.c.h.b16 %v204
    %v987 = vunpack.c.l.b16 %v205
    %v988 = vunpack.c.h.b16 %v205
    %v989 = vunpack.c.l.b16 %v206
    %v990 = vunpack.c.h.b16 %v206
    %v991 = vunpack.c.l.b16 %v207
    %v992 = vunpack.c.h.b16 %v207
    %v993 = vunpack.c.l.b16 %v208
    %v994 = vunpack.c.h.b16 %v208
    %v995 = vunpack.c.l.b16 %v209
    %v996 = vunpack.c.h.b16 %v209
    %v997 = vunpack.c.l.b16 %v210
    %v998 = vunpack.c.h.b16 %v210
    %v999 = vunpack.c.l.b16 %v211
    %v1000 = vunpack.c.h.b16 %v211
    %v1001 = vunpack.c.l.b16 %v212
    %v1002 = vunpack.c.h.b16 %v212
    %v1003 = vunpack.c.l.b16 %v213
    %v1004 = vunpack.c.h.b16 %v213
    %v1005 = vunpack.c.l.b16 %v214
    %v1006 = vunpack.c.h.b16 %v214
    %v1007 = vunpack.c.l.b16 %v215
    %v1008 = vunpack.c.h.b16 %v215
    %v1009 = vunpack.c.l.b16 %v216
    %v1010 = vunpack.c.h.b16 %v216
    %v1011 = vunpack.c.l.b16 %v217
    %v1012 = vunpack.c.h.b16 %v217
    %v1013 = vunpack.c.l.b16 %v218
    %v1014 = vunpack.c.h.b16 %v218
    %v1015 = vunpack.c.l.b16 %v219
    %v1016 = vunpack.c.h.b16 %v219
    %v1017 = vunpack.c.l.b16 %v220
    %v1018 = vunpack.c.h.b16 %v220
    %v1019 = vunpack.c.l.b16 %v221
    %v1020 = vunpack.c.h.b16 %v221
    %v1021 = vunpack.c.l.b16 %v222
    %v1022 = vunpack.c.h.b16 %v222
    %v1023 = vunpack.c.l.b16 %v223
    %v1024 = vunpack.c.h.b16 %v223
    %v1025 = vunpack.c.l.b16 %v224
    %v1026 = vunpack.c.h.b16 %v224
    %v1027 = vunpack.c.l.b16 %v225
    %v1028 = vunpack.c.h.b16 %v225
    %v1029 = vunpack.c.l.b16 %v226
    %v1030 = vunpack.c.h.b16 %v226
    %v1031 = vunpack.c.l.b16 %v227
    %v1032 = vunpack.c.h.b16 %v227
    %v1033 = vunpack.c.l.b16 %v228
    %v1034 = vunpack.c.h.b16 %v228
    %v1035 = vunpack.c.l.b16 %v229
    %v1036 = vunpack.c.h.b16 %v229
    %v1037 = vunpack.c.l.b16 %v230
    %v1038 = vunpack.c.h.b16 %v230
    %v1039 = vunpack.c.l.b16 %v231
    %v1040 = vunpack.c.h.b16 %v231
    %v1041 = vunpack.c.l.b16 %v232
    %v1042 = vunpack.c.h.b16 %v232
    %v1043 = vunpack.c.l.b16 %v233
    %v1044 = vunpack.c.h.b16 %v233
    %v1045 = vunpack.c.l.b16 %v234
    %v1046 = vunpack.c.h.b16 %v234
    %v1047 = vunpack.c.l.b16 %v235
    %v1048 = vunpack.c.h.b16 %v235
    %v1049 = vunpack.c.l.b16 %v236
    %v1050 = vunpack.c.h.b16 %v236
    %v1051 = vunpack.c.l.b16 %v237
    %v1052 = vunpack.c.h.b16 %v237
    %v1053 = vunpack.c.l.b16 %v238
    %v1054 = vunpack.c.h.b16 %v238
    %v1055 = vunpack.c.l.b16 %v239
    %v1056 = vunpack.c.h.b16 %v239
    %v1057 = vunpack.c.l.b16 %v240
    %v1058 = vunpack.c.h.b16 %v240
    %v1059 = vunpack.c.l.b16 %v241
    %v1060 = vunpack.c.h.b16 %v241
    %v1061 = vunpack.c.l.b16 %v242
    %v1062 = vunpack.c.h.b16 %v242
    %v1063 = vunpack.c.l.b16 %v243
    %v1064 = vunpack.c.h.b16 %v243
    %v1065 = vunpack.c.l.b16 %v244
    %v1066 = vunpack.c.h.b16 %v244
    %v1067 = vunpack.c.l.b16 %v245
    %v1068 = vunpack.c.h.b16 %v245
    %v1069 = vunpack.c.l.b16 %v246
    %v1070 = vunpack.c.h.b16 %v246
    %v1071 = vunpack.c.l.b16 %v247
    %v1072 = vunpack.c.h.b16 %v247
    %v1073 = vunpack.c.l.b16 %v248
    %v1074 = vunpack.c.h.b16 %v248
    %v1075 = vunpack.c.l.b16 %v249
    %v1076 = vunpack.c.h.b16 %v249
    %v1077 = vunpack.c.l.b16 %v250
    %v1078 = vunpack.c.h.b16 %v250
    %v1079 = vunpack.c.l.b16 %v251
    %v1080 = vunpack.c.h.b16 %v251
    %v1081 = vunpack.c.l.b16 %v252
    %v1082 = vunpack.c.h.b16 %v252
    %v1083 = vunpack.c.l.b16 %v253
    %v1084 = vunpack.c.h.b16 %v253
    %v1085 = vunpack.c.l.b16 %v254
    %v1086 = vunpack.c.h.b16 %v254
    %v1087 = vunpack.c.l.b16 %v255
    %v1088 = vunpack.c.h.b16 %v255
    %v1089 = vunpack.c.l.b16 %v256
    %v1090 = vunpack.c.h.b16 %v256
    %v1091 = vunpack.c.l.b16 %v257
    %v1092 = vunpack.c.h.b16 %v257
    %v1093 = vunpack.c.l.b16 %v258
    %v1094 = vunpack.c.h.b16 %v258
    %v1095 = vunpack.c.l.b16 %v259
    %v1096 = vunpack.c.h.b16 %v259
    %v1097 = vunpack.c.l.b16 %v260
    %v1098 = vunpack.c.h.b16 %v260
    %v1099 = vunpack.c.l.b16 %v261
    %v1100 = vunpack.c.h.b16 %v261
    %v1101 = vunpack.c.l.b16 %v262
    %v1102 = vunpack.c.h.b16 %v262
    %v1103 = vunpack.c.l.b16 %v263
    %v1104 = vunpack.c.h.b16 %v263
    %v1105 = vunpack.c.l.b16 %v264
    %v1106 = vunpack.c.h.b16 %v264
    %v1107 = vunpack.c.l.b16 %v265
    %v1108 = vunpack.c.h.b16 %v265
    %v1109 = vunpack.c.l.b16 %v266
    %v1110 = vunpack.c.h.b16 %v266
    %v1111 = vunpack.c.l.b16 %v267
    %v1112 = vunpack.c.h.b16 %v267
    %v1113 = vunpack.c.l.b16 %v268
    %v1114 = vunpack.c.h.b16 %v268
    %v1115 = vunpack.c.l.b16 %v269
    %v1116 = vunpack.c.h.b16 %v269
    %v1117 = vunpack.c.l.b16 %v270
    %v1118 = vunpack.c.h.b16 %v270
    %v1119 = vunpack.c.l.b16 %v271
    %v1120 = vunpack.c.h.b16 %v271
    %v1121 = vunpack.c.l.b16 %v272
    %v1122 = vunpack.c.h.b16 %v272
    %v1123 = vunpack.c.l.b16 %v273
    %v1124 = vunpack.c.h.b16 %v273
    %v1125 = vunpack.c.l.b16 %v274
    %v1126 = vunpack.c.h.b16 %v274
    %v1127 = vunpack.c.l.b16 %v275
    %v1128 = vunpack.c.h.b16 %v275
    %v1129 = vunpack.c.l.b16 %v276
    %v1130 = vunpack.c.h.b16 %v276
    %v1131 = vunpack.c.l.b16 %v277
    %v1132 = vunpack.c.h.b16 %v277
    %v1133 = vunpack.c.l.b16 %v278
    %v1134 = vunpack.c.h.b16 %v278
    %v1135 = vunpack.c.l.b16 %v279
    %v1136 = vunpack.c.h.b16 %v279
    %v1137 = vunpack.c.l.b16 %v280
    %v1138 = vunpack.c.h.b16 %v280
    %v1139 = vunpack.c.l.b16 %v281
    %v1140 = vunpack.c.h.b16 %v281
    %v1141 = vunpack.c.l.b16 %v282
    %v1142 = vunpack.c.h.b16 %v282
    %v1143 = vunpack.c.l.b16 %v283
    %v1144 = vunpack.c.h.b16 %v283
    %v1145 = vunpack.c.l.b16 %v284
    %v1146 = vunpack.c.h.b16 %v284
    %v1147 = vunpack.c.l.b16 %v285
    %v1148 = vunpack.c.h.b16 %v285
    %v1149 = vunpack.c.l.b16 %v286
    %v1150 = vunpack.c.h.b16 %v286
    %v1151 = vunpack.c.l.b16 %v287
    %v1152 = vunpack.c.h.b16 %v287
    %v1153 = vunpack.c.l.b16 %v288
    %v1154 = vunpack.c.h.b16 %v288
    %v1155 = vunpack.c.l.b16 %v289
    %v1156 = vunpack.c.h.b16 %v289
    %v1157 = vunpack.c.l.b16 %v290
    %v1158 = vunpack.c.h.b16 %v290
    %v1159 = vunpack.c.l.b16 %v291
    %v1160 = vunpack.c.h.b16 %v291
    %v1161 = vunpack.c.l.b16 %v292
    %v1162 = vunpack.c.h.b16 %v292
    %v1163 = vunpack.c.l.b16 %v293
    %v1164 = vunpack.c.h.b16 %v293
    %v1165 = vunpack.c.l.b16 %v294
    %v1166 = vunpack.c.h.b16 %v294
    %v1167 = vunpack.c.l.b16 %v295
    %v1168 = vunpack.c.h.b16 %v295
    %v1169 = vunpack.c.l.b16 %v296
    %v1170 = vunpack.c.h.b16 %v296
    %v1171 = vunpack.c.l.b16 %v297
    %v1172 = vunpack.c.h.b16 %v297
    %v1173 = vunpack.c.l.b16 %v298
    %v1174 = vunpack.c.h.b16 %v298
    %v1175 = vunpack.c.l.b16 %v299
    %v1176 = vunpack.c.h.b16 %v299
    %v1177 = vunpack.c.l.b16 %v300
    %v1178 = vunpack.c.h.b16 %v300
    %v1179 = vunpack.c.l.b16 %v301
    %v1180 = vunpack.c.h.b16 %v301
    %v1181 = vunpack.c.l.b16 %v302
    %v1182 = vunpack.c.h.b16 %v302
    %v1183 = vunpack.c.l.b16 %v303
    %v1184 = vunpack.c.h.b16 %v303
    %v1185 = vunpack.c.l.b16 %v304
    %v1186 = vunpack.c.h.b16 %v304
    %v1187 = vunpack.c.l.b16 %v305
    %v1188 = vunpack.c.h.b16 %v305
    %v1189 = vunpack.c.l.b16 %v306
    %v1190 = vunpack.c.h.b16 %v306
    %v1191 = vunpack.c.l.b16 %v307
    %v1192 = vunpack.c.h.b16 %v307
    %v1193 = vunpack.c.l.b16 %v308
    %v1194 = vunpack.c.h.b16 %v308
    %v1195 = vunpack.c.l.b16 %v309
    %v1196 = vunpack.c.h.b16 %v309
    %v1197 = vunpack.c.l.b16 %v310
    %v1198 = vunpack.c.h.b16 %v310
    %v1199 = vunpack.c.l.b16 %v311
    %v1200 = vunpack.c.h.b16 %v311
    %v1201 = vunpack.c.l.b16 %v312
    %v1202 = vunpack.c.h.b16 %v312
    %v1203 = vunpack.c.l.b16 %v313
    %v1204 = vunpack.c.h.b16 %v313
    %v1205 = vunpack.c.l.b16 %v314
    %v1206 = vunpack.c.h.b16 %v314
    %v1207 = vunpack.c.l.b16 %v315
    %v1208 = vunpack.c.h.b16 %v315
    %v1209 = vunpack.c.l.b16 %v316
    %v1210 = vunpack.c.h.b16 %v316
    %v1211 = vunpack.c.l.b16 %v317
    %v1212 = vunpack.c.h.b16 %v317
    %v1213 = vunpack.c.l.b16 %v318
    %v1214 = vunpack.c.h.b16 %v318
    %v1215 = vunpack.c.l.b16 %v319
    %v1216 = vunpack.c.h.b16 %v319
    %v1217 = vunpack.c.l.b16 %v320
    %v1218 = vunpack.c.h.b16 %v320
    %v1219 = vunpack.c.l.b16 %v321
    %v1220 = vunpack.c.h.b16 %v321
    %v1221 = vunpack.c.l.b16 %v322
    %v1222 = vunpack.c.h.b16 %v322
    %v1223 = vunpack.c.l.b16 %v323
    %v1224 = vunpack.c.h.b16 %v323
    %v1225 = vunpack.c.l.b16 %v324
    %v1226 = vunpack.c.h.b16 %v324
    %v1227 = vunpack.c.l.b16 %v325
    %v1228 = vunpack.c.h.b16 %v325
    %v1229 = vunpack.c.l.b16 %v326
    %v1230 = vunpack.c.h.b16 %v326
    %v1231 = vunpack.c.l.b16 %v327
    %v1232 = vunpack.c.h.b16 %v327
    %v1233 = vunpack.c.l.b16 %v328
    %v1234 = vunpack.c.h.b16 %v328
    %v1235 = vunpack.c.l.b16 %v329
    %v1236 = vunpack.c.h.b16 %v329
    %v1237 = vunpack.c.l.b16 %v330
    %v1238 = vunpack.c.h.b16 %v330
    %v1239 = vunpack.c.l.b16 %v331
    %v1240 = vunpack.c.h.b16 %v331
    %v1241 = vunpack.c.l.b16 %v332
    %v1242 = vunpack.c.h.b16 %v332
    %v1243 = vunpack.c.l.b16 %v333
    %v1244 = vunpack.c.h.b16 %v333
    %v1245 = vunpack.c.l.b16 %v334
    %v1246 = vunpack.c.h.b16 %v334
    %v1247 = vunpack.c.l.b16 %v335
    %v1248 = vunpack.c.h.b16 %v335
    %v1249 = vunpack.c.l.b16 %v336
    %v1250 = vunpack.c.h.b16 %v336
    %v1251 = vunpack.c.l.b16 %v337
    %v1252 = vunpack.c.h.b16 %v337
    %v1253 = vunpack.c.l.b16 %v338
    %v1254 = vunpack.c.h.b16 %v338
    %v1255 = vunpack.c.l.b16 %v339
    %v1256 = vunpack.c.h.b16 %v339
    %v1257 = vunpack.c.l.b16 %v340
    %v1258 = vunpack.c.h.b16 %v340
    %v1259 = vunpack.c.l.b16 %v341
    %v1260 = vunpack.c.h.b16 %v341
    %v1261 = vunpack.c.l.b16 %v342
    %v1262 = vunpack.c.h.b16 %v342
    %v1263 = vunpack.c.l.b16 %v343
    %v1264 = vunpack.c.h.b16 %v343
    %v1265 = vunpack.c.l.b16 %v344
    %v1266 = vunpack.c.h.b16 %v344
    %v1267 = vunpack.c.l.b16 %v345
    %v1268 = vunpack.c.h.b16 %v345
    %v1269 = vunpack.c.l.b16 %v346
    %v1270 = vunpack.c.h.b16 %v346
    %v1271 = vunpack.c.l.b16 %v347
    %v1272 = vunpack.c.h.b16 %v347
    %v1273 = vunpack.c.l.b16 %v348
    %v1274 = vunpack.c.h.b16 %v348
    %v1275 = vunpack.c.l.b16 %v349
    %v1276 = vunpack.c.h.b16 %v349
    %v1277 = vunpack.c.l.b16 %v350
    %v1278 = vunpack.c.h.b16 %v350
    %v1279 = vunpack.c.l.b16 %v351
    %v1280 = vunpack.c.h.b16 %v351
    %v1281 = vunpack.c.l.b16 %v352
    %v1282 = vunpack.c.h.b16 %v352
    %v1283 = vunpack.c.l.b16 %v353
    %v1284 = vunpack.c.h.b16 %v353
    %v1285 = vunpack.c.l.b16 %v354
    %v1286 = vunpack.c.h.b16 %v354
    %v1287 = vunpack.c.l.b16 %v355
    %v1288 = vunpack.c.h.b16 %v355
    %v1289 = vunpack.c.l.b16 %v356
    %v1290 = vunpack.c.h.b16 %v356
    %v1291 = vunpack.c.l.b16 %v357
    %v1292 = vunpack.c.h.b16 %v357
    %v1293 = vunpack.c.l.b16 %v358
    %v1294 = vunpack.c.h.b16 %v358
    %v1295 = vunpack.c.l.b16 %v359
    %v1296 = vunpack.c.h.b16 %v359
    %v1297 = vunpack.c.l.b16 %v360
    %v1298 = vunpack.c.h.b16 %v360
    %v1299 = vunpack.c.l.b16 %v361
    %v1300 = vunpack.c.h.b16 %v361
    %v1301 = vunpack.c.l.b16 %v362
    %v1302 = vunpack.c.h.b16 %v362
    %v1303 = vunpack.c.l.b16 %v363
    %v1304 = vunpack.c.h.b16 %v363
    %v1305 = vunpack.c.l.b16 %v364
    %v1306 = vunpack.c.h.b16 %v364
    %v1307 = vunpack.c.l.b16 %v365
    %v1308 = vunpack.c.h.b16 %v365
    %v1309 = vunpack.c.l.b16 %v366
    %v1310 = vunpack.c.h.b16 %v366
    %v1311 = vunpack.c.l.b16 %v367
    %v1312 = vunpack.c.h.b16 %v367
    %v1313 = vunpack.c.l.b16 %v368
    %v1314 = vunpack.c.h.b16 %v368
    %v1315 = vunpack.c.l.b16 %v369
    %v1316 = vunpack.c.h.b16 %v369
    %v1317 = vunpack.c.l.b16 %v370
    %v1318 = vunpack.c.h.b16 %v370
    %v1319 = vunpack.c.l.b16 %v371
    %v1320 = vunpack.c.h.b16 %v371
    %v1321 = vunpack.c.l.b16 %v372
    %v1322 = vunpack.c.h.b16 %v372
    %v1323 = vunpack.c.l.b16 %v373
    %v1324 = vunpack.c.h.b16 %v373
    %v1325 = vunpack.c.l.b16 %v374
    %v1326 = vunpack.c.h.b16 %v374
    %v1327 = vunpack.c.l.b16 %v375
    %v1328 = vunpack.c.h.b16 %v375
    %v1329 = vunpack.c.l.b16 %v376
    %v1330 = vunpack.c.h.b16 %v376
    %v1331 = vunpack.c.l.b16 %v377
    %v1332 = vunpack.c.h.b16 %v377
    %v1333 = vunpack.c.l.b16 %v378
    %v1334 = vunpack.c.h.b16 %v378
    %v1335 = vunpack.c.l.b16 %v379
    %v1336 = vunpack.c.h.b16 %v379
    %v1337 = vunpack.c.l.b16 %v380
    %v1338 = vunpack.c.h.b16 %v380
    %v1339 = vunpack.c.l.b16 %v381
    %v1340 = vunpack.c.h.b16 %v381
    %v1341 = vunpack.c.l.b16 %v382
    %v1342 = vunpack.c.h.b16 %v382
    %v1343 = vunpack.c.l.b16 %v383
    %v1344 = vunpack.c.h.b16 %v383
    %v1345 = vunpack.c.l.b16 %v384
    %v1346 = vunpack.c.h.b16 %v384
    %v1347 = vunpack.c.l.b16 %v385
    %v1348 = vunpack.c.h.b16 %v385
    %v1349 = vunpack.c.l.b16 %v386
    %v1350 = vunpack.c.h.b16 %v386
    %v1351 = vunpack.c.l.b16 %v387
    %v1352 = vunpack.c.h.b16 %v387
    %v1353 = vunpack.c.l.b16 %v388
    %v1354 = vunpack.c.h.b16 %v388
    %v1355 = vunpack.c.l.b16 %v389
    %v1356 = vunpack.c.h.b16 %v389
    %v1357 = vunpack.c.l.b16 %v390
    %v1358 = vunpack.c.h.b16 %v390
    %v1359 = vunpack.c.l.b16 %v391
    %v1360 = vunpack.c.h.b16 %v391
    %v1361 = vunpack.c.l.b16 %v392
    %v1362 = vunpack.c.h.b16 %v392
    %v1363 = vunpack.c.l.b16 %v393
    %v1364 = vunpack.c.h.b16 %v393
    %v1365 = vunpack.c.l.b16 %v394
    %v1366 = vunpack.c.h.b16 %v394
    %v1367 = vunpack.c.l.b16 %v395
    %v1368 = vunpack.c.h.b16 %v395
    %v1369 = vunpack.c.l.b16 %v396
    %v1370 = vunpack.c.h.b16 %v396
    %v1371 = vunpack.c.l.b16 %v397
    %v1372 = vunpack.c.h.b16 %v397
    %v1373 = vunpack.c.l.b16 %v398
    %v1374 = vunpack.c.h.b16 %v398
    %v1375 = vunpack.c.l.b16 %v399
    %v1376 = vunpack.c.h.b16 %v399
    %v1377 = vunpack.c.l.b16 %v400
    %v1378 = vunpack.c.h.b16 %v400
    %v1379 = vunpack.c.l.b16 %v401
    %v1380 = vunpack.c.h.b16 %v401
    %v1381 = vunpack.c.l.b16 %v402
    %v1382 = vunpack.c.h.b16 %v402
    %v1383 = vunpack.c.l.b16 %v403
    %v1384 = vunpack.c.h.b16 %v403
    %v1385 = vunpack.c.l.b16 %v404
    %v1386 = vunpack.c.h.b16 %v404
    %v1387 = vunpack.c.l.b16 %v405
    %v1388 = vunpack.c.h.b16 %v405
    %v1389 = vunpack.c.l.b16 %v406
    %v1390 = vunpack.c.h.b16 %v406
    %v1391 = vunpack.c.l.b16 %v407
    %v1392 = vunpack.c.h.b16 %v407
    %v1393 = vunpack.c.l.b16 %v408
    %v1394 = vunpack.c.h.b16 %v408
    %v1395 = vunpack.c.l.b16 %v409
    %v1396 = vunpack.c.h.b16 %v409
    %v1397 = vunpack.c.l.b16 %v410
    %v1398 = vunpack.c.h.b16 %v410
    %v1399 = vunpack.c.l.b16 %v411
    %v1400 = vunpack.c.h.b16 %v411
    %v1401 = vunpack.c.l.b16 %v412
    %v1402 = vunpack.c.h.b16 %v412
    %v1403 = vunpack.c.l.b16 %v413
    %v1404 = vunpack.c.h.b16 %v413
    %v1405 = vunpack.c.l.b16 %v414
    %v1406 = vunpack.c.h.b16 %v414
    %v1407 = vunpack.c.l.b16 %v415
    %v1408 = vunpack.c.h.b16 %v415
    %v1409 = vunpack.c.l.b16 %v416
    %v1410 = vunpack.c.h.b16 %v416
    %v1411 = vunpack.c.l.b16 %v417
    %v1412 = vunpack.c.h.b16 %v417
    %v1413 = vunpack.c.l.b16 %v418
    %v1414 = vunpack.c.h.b16 %v418
    %v1415 = vunpack.c.l.b16 %v419
    %v1416 = vunpack.c.h.b16 %v419
    %v1417 = vunpack.c.l.b16 %v420
    %v1418 = vunpack.c.h.b16 %v420
    %v1419 = vunpack.c.l.b16 %v421
    %v1420 = vunpack.c.h.b16 %v421
    %v1421 = vunpack.c.l.b16 %v422
    %v1422 = vunpack.c.h.b16 %v422
    %v1423 = vunpack.c.l.b16 %v423
    %v1424 = vunpack.c.h.b16 %v423
    %v1425 = vunpack.c.l.b16 %v424
    %v1426 = vunpack.c.h.b16 %v424
    %v1427 = vunpack.c.l.b16 %v425
    %v1428 = vunpack.c.h.b16 %v425
    %v1429 = vunpack.c.l.b16 %v426
    %v1430 = vunpack.c.h.b16 %v426
    %v1431 = vunpack.c.l.b16 %v427
    %v1432 = vunpack.c.h.b16 %v427
    %v1433 = vunpack.c.l.b16 %v428
    %v1434 = vunpack.c.h.b16 %v428
    %v1435 = vunpack.c.l.b16 %v429
    %v1436 = vunpack.c.h.b16 %v429
    %v1437 = vunpack.c.l.b16 %v430
    %v1438 = vunpack.c.h.b16 %v430
    %v1439 = vunpack.c.l.b16 %v431
    %v1440 = vunpack.c.h.b16 %v431
    %v1441 = vunpack.c.l.b16 %v432
    %v1442 = vunpack.c.h.b16 %v432
    %v1443 = vunpack.c.l.b16 %v433
    %v1444 = vunpack.c.h.b16 %v433
    %v1445 = vunpack.c.l.b16 %v434
    %v1446 = vunpack.c.h.b16 %v434
    %v1447 = vunpack.c.l.b16 %v435
    %v1448 = vunpack.c.h.b16 %v435
    %v1449 = vunpack.c.l.b16 %v436
    %v1450 = vunpack.c.h.b16 %v436
    %v1451 = vunpack.c.l.b16 %v437
    %v1452 = vunpack.c.h.b16 %v437
    %v1453 = vunpack.c.l.b16 %v438
    %v1454 = vunpack.c.h.b16 %v438
    %v1455 = vunpack.c.l.b16 %v439
    %v1456 = vunpack.c.h.b16 %v439
    %v1457 = vunpack.c.l.b16 %v440
    %v1458 = vunpack.c.h.b16 %v440
    %v1459 = vunpack.c.l.b16 %v441
    %v1460 = vunpack.c.h.b16 %v441
    %v1461 = vunpack.c.l.b16 %v442
    %v1462 = vunpack.c.h.b16 %v442
    %v1463 = vunpack.c.l.b16 %v443
    %v1464 = vunpack.c.h.b16 %v443
    %v1465 = vunpack.c.l.b16 %v444
    %v1466 = vunpack.c.h.b16 %v444
    %v1467 = vunpack.c.l.b16 %v445
    %v1468 = vunpack.c.h.b16 %v445
    %v1469 = vunpack.c.l.b16 %v446
    %v1470 = vunpack.c.h.b16 %v446
    %v1471 = vunpack.c.l.b16 %v447
    %v1472 = vunpack.c.h.b16 %v447
    %v1473 = vunpack.c.l.b16 %v448
    %v1474 = vunpack.c.h.b16 %v448
    %v1475 = vunpack.c.l.b16 %v449
    %v1476 = vunpack.c.h.b16 %v449
    %v1477 = vunpack.c.l.b16 %v450
    %v1478 = vunpack.c.h.b16 %v450
    %v1479 = vunpack.c.l.b16 %v451
    %v1480 = vunpack.c.h.b16 %v451
    %v1481 = vunpack.c.l.b16 %v452
    %v1482 = vunpack.c.h.b16 %v452
    %v1483 = vunpack.c.l.b16 %v453
    %v1484 = vunpack.c.h.b16 %v453
    %v1485 = vunpack.c.l.b16 %v454
    %v1486 = vunpack.c.h.b16 %v454
    %v1487 = vunpack.c.l.b16 %v455
    %v1488 = vunpack.c.h.b16 %v455
    %v1489 = vunpack.c.l.b16 %v456
    %v1490 = vunpack.c.h.b16 %v456
    %v1491 = vunpack.c.l.b16 %v457
    %v1492 = vunpack.c.h.b16 %v457
    %v1493 = vunpack.c.l.b16 %v458
    %v1494 = vunpack.c.h.b16 %v458
    %v1495 = vunpack.c.l.b16 %v459
    %v1496 = vunpack.c.h.b16 %v459
    %v1497 = vunpack.c.l.b16 %v460
    %v1498 = vunpack.c.h.b16 %v460
    %v1499 = vunpack.c.l.b16 %v461
    %v1500 = vunpack.c.h.b16 %v461
    %v1501 = vunpack.c.l.b16 %v462
    %v1502 = vunpack.c.h.b16 %v462
    %v1503 = vunpack.c.l.b16 %v463
    %v1504 = vunpack.c.h.b16 %v463
    %v1505 = vunpack.c.l.b16 %v464
    %v1506 = vunpack.c.h.b16 %v464
    %v1507 = vunpack.c.l.b16 %v465
    %v1508 = vunpack.c.h.b16 %v465
    %v1509 = vunpack.c.l.b16 %v466
    %v1510 = vunpack.c.h.b16 %v466
    %v1511 = vunpack.c.l.b16 %v467
    %v1512 = vunpack.c.h.b16 %v467
    %v1513 = vunpack.c.l.b16 %v468
    %v1514 = vunpack.c.h.b16 %v468
    %v1515 = vunpack.c.l.b16 %v469
    %v1516 = vunpack.c.h.b16 %v469
    %v1517 = vunpack.c.l.b16 %v470
    %v1518 = vunpack.c.h.b16 %v470
    %v1519 = vunpack.c.l.b16 %v471
    %v1520 = vunpack.c.h.b16 %v471
    %v1521 = vunpack.c.l.b16 %v472
    %v1522 = vunpack.c.h.b16 %v472
    %v1523 = vunpack.c.l.b16 %v473
    %v1524 = vunpack.c.h.b16 %v473
    %v1525 = vunpack.c.l.b16 %v474
    %v1526 = vunpack.c.h.b16 %v474
    %v1527 = vunpack.c.l.b16 %v475
    %v1528 = vunpack.c.h.b16 %v475
    %v1529 = vunpack.c.l.b16 %v476
    %v1530 = vunpack.c.h.b16 %v476
    %v1531 = vunpack.c.l.b16 %v477
    %v1532 = vunpack.c.h.b16 %v477
    %v1533 = vunpack.c.l.b16 %v478
    %v1534 = vunpack.c.h.b16 %v478
    %v1535 = vunpack.c.l.b16 %v479
    %v1536 = vunpack.c.h.b16 %v479
    %v1537 = vunpack.c.l.b16 %v480
    %v1538 = vunpack.c.h.b16 %v480
    %v1539 = vunpack.c.l.b16 %v481
    %v1540 = vunpack.c.h.b16 %v481
    %v1541 = vunpack.c.l.b16 %v482
    %v1542 = vunpack.c.h.b16 %v482
    %v1543 = vunpack.c.l.b16 %v483
    %v1544 = vunpack.c.h.b16 %v483
    %v1545 = vunpack.c.l.b16 %v484
    %v1546 = vunpack.c.h.b16 %v484
    %v1547 = vunpack.c.l.b16 %v485
    %v1548 = vunpack.c.h.b16 %v485
    %v1549 = vpack.c.b16 %v913, %v909
    %v1550 = vpack.c.b16 %v914, %v910
    %v1551 = vpack.c.b16 %v915, %v911
    %v1552 = vpack.c.b16 %v916, %v912
    %v1553 = vpack.c.b16 %v921, %v917
    %v1554 = vpack.c.b16 %v922, %v918
    %v1555 = vpack.c.b16 %v923, %v919
    %v1556 = vpack.c.b16 %v924, %v920
    %v1557 = vpack.c.b16 %v929, %v925
    %v1558 = vpack.c.b16 %v930, %v926
    %v1559 = vpack.c.b16 %v931, %v927
    %v1560 = vpack.c.b16 %v932, %v928
    %v1561 = vpack.c.b16 %v937, %v933
    %v1562 = vpack.c.b16 %v938, %v934
    %v1563 = vpack.c.b16 %v939, %v935
    %v1564 = vpack.c.b16 %v940, %v936
    %v1565 = vpack.c.b16 %v945, %v941
    %v1566 = vpack.c.b16 %v946, %v942
    %v1567 = vpack.c.b16 %v947, %v943
    %v1568 = vpack.c.b16 %v948, %v944
    %v1569 = vpack.c.b16 %v953, %v949
    %v1570 = vpack.c.b16 %v954, %v950
    %v1571 = vpack.c.b16 %v955, %v951
    %v1572 = vpack.c.b16 %v956, %v952
    %v1573 = vpack.c.b16 %v961, %v957
    %v1574 = vpack.c.b16 %v962, %v958
    %v1575 = vpack.c.b16 %v963, %v959
    %v1576 = vpack.c.b16 %v964, %v960
    %v1577 = vpack.c.b16 %v969, %v965
    %v1578 = vpack.c.b16 %v970, %v966
    %v1579 = vpack.c.b16 %v971, %v967
    %v1580 = vpack.c.b16 %v972, %v968
    %v1581 = vpack.c.b16 %v977, %v973
    %v1582 = vpack.c.b16 %v978, %v974
    %v1583 = vpack.c.b16 %v979, %v975
    %v1584 = vpack.c.b16 %v980, %v976
    %v1585 = vpack.c.b16 %v985, %v981
    %v1586 = vpack.c.b16 %v986, %v982
    %v1587 = vpack.c.b16 %v987, %v983
    %v1588 = vpack.c.b16 %v988, %v984
    %v1589 = vpack.c.b16 %v993, %v989
    %v1590 = vpack.c.b16 %v994, %v990
    %v1591 = vpack.c.b16 %v995, %v991
    %v1592 = vpack.c.b16 %v996, %v992
    %v1593 = vpack.c.b16 %v1001, %v997
    %v1594 = vpack.c.b16 %v1002, %v998
    %v1595 = vpack.c.b16 %v1003, %v999
    %v1596 = vpack.c.b16 %v1004, %v1000
    %v1597 = vpack.c.b16 %v1009, %v1005
    %v1598 = vpack.c.b16 %v1010, %v1006
    %v1599 = vpack.c.b16 %v1011, %v1007
    %v1600 = vpack.c.b16 %v1012, %v1008
    %v1601 = vpack.c.b16 %v1017, %v1013
    %v1602 = vpack.c.b16 %v1018, %v1014
    %v1603 = vpack.c.b16 %v1019, %v1015
    %v1604 = vpack.c.b16 %v1020, %v1016
    %v1605 = vpack.c.b16 %v1025, %v1021
    %v1606 = vpack.c.b16 %v1026, %v1022
    %v1607 = vpack.c.b16 %v1027, %v1023
    %v1608 = vpack.c.b16 %v1028, %v1024
    %v1609 = vpack.c.b16 %v1033, %v1029
    %v1610 = vpack.c.b16 %v1034, %v1030
    %v1611 = vpack.c.b16 %v1035, %v1031
    %v1612 = vpack.c.b16 %v1036, %v1032
    %v1613 = vpack.c.b16 %v1041, %v1037
    %v1614 = vpack.c.b16 %v1042, %v1038
    %v1615 = vpack.c.b16 %v1043, %v1039
    %v1616 = vpack.c.b16 %v1044, %v1040
    %v1617 = vpack.c.b16 %v1049, %v1045
    %v1618 = vpack.c.b16 %v1050, %v1046
    %v1619 = vpack.c.b16 %v1051, %v1047
    %v1620 = vpack.c.b16 %v1052, %v1048
    %v1621 = vpack.c.b16 %v1057, %v1053
    %v1622 = vpack.c.b16 %v1058, %v1054
    %v1623 = vpack.c.b16 %v1059, %v1055
    %v1624 = vpack.c.b16 %v1060, %v1056
    %v1625 = vpack.c.b16 %v1065, %v1061
    %v1626 = vpack.c.b16 %v1066, %v1062
    %v1627 = vpack.c.b16 %v1067, %v1063
    %v1628 = vpack.c.b16 %v1068, %v1064
    %v1629 = vpack.c.b16 %v1073, %v1069
    %v1630 = vpack.c.b16 %v1074, %v1070
    %v1631 = vpack.c.b16 %v1075, %v1071
    %v1632 = vpack.c.b16 %v1076, %v1072
    %v1633 = vpack.c.b16 %v1081, %v1077
    %v1634 = vpack.c.b16 %v1082, %v1078
    %v1635 = vpack.c.b16 %v1083, %v1079
    %v1636 = vpack.c.b16 %v1084, %v1080
    %v1637 = vpack.c.b16 %v1089, %v1085
    %v1638 = vpack.c.b16 %v1090, %v1086
    %v1639 = vpack.c.b16 %v1091, %v1087
    %v1640 = vpack.c.b16 %v1092, %v1088
    %v1641 = vpack.c.b16 %v1097, %v1093
    %v1642 = vpack.c.b16 %v1098, %v1094
    %v1643 = vpack.c.b16 %v1099, %v1095
    %v1644 = vpack.c.b16 %v1100, %v1096
    %v1645 = vpack.c.b16 %v1105, %v1101
    %v1646 = vpack.c.b16 %v1106, %v1102
    %v1647 = vpack.c.b16 %v1107, %v1103
    %v1648 = vpack.c.b16 %v1108, %v1104
    %v1649 = vpack.c.b16 %v1113, %v1109
    %v1650 = vpack.c.b16 %v1114, %v1110
    %v1651 = vpack.c.b16 %v1115, %v1111
    %v1652 = vpack.c.b16 %v1116, %v1112
    %v1653 = vpack.c.b16 %v1121, %v1117
    %v1654 = vpack.c.b16 %v1122, %v1118
    %v1655 = vpack.c.b16 %v1123, %v1119
    %v1656 = vpack.c.b16 %v1124, %v1120
    %v1657 = vpack.c.b16 %v1129, %v1125
    %v1658 = vpack.c.b16 %v1130, %v1126
    %v1659 = vpack.c.b16 %v1131, %v1127
    %v1660 = vpack.c.b16 %v1132, %v1128
    %v1661 = vpack.c.b16 %v1137, %v1133
    %v1662 = vpack.c.b16 %v1138, %v1134
    %v1663 = vpack.c.b16 %v1139, %v1135
    %v1664 = vpack.c.b16 %v1140, %v1136
    %v1665 = vpack.c.b16 %v1145, %v1141
    %v1666 = vpack.c.b16 %v1146, %v1142
    %v1667 = vpack.c.b16 %v1147, %v1143
    %v1668 = vpack.c.b16 %v1148, %v1144
    %v1669 = vpack.c.b16 %v1153, %v1149
    %v1670 = vpack.c.b16 %v1154, %v1150
    %v1671 = vpack.c.b16 %v1155, %v1151
    %v1672 = vpack.c.b16 %v1156, %v1152
    %v1673 = vpack.c.b16 %v1161, %v1157
    %v1674 = vpack.c.b16 %v1162, %v1158
    %v1675 = vpack.c.b16 %v1163, %v1159
    %v1676 = vpack.c.b16 %v1164, %v1160
    %v1677 = vpack.c.b16 %v1169, %v1165
    %v1678 = vpack.c.b16 %v1170, %v1166
    %v1679 = vpack.c.b16 %v1171, %v1167
    %v1680 = vpack.c.b16 %v1172, %v1168
    %v1681 = vpack.c.b16 %v1177, %v1173
    %v1682 = vpack.c.b16 %v1178, %v1174
    %v1683 = vpack.c.b16 %v1179, %v1175
    %v1684 = vpack.c.b16 %v1180, %v1176
    %v1685 = vpack.c.b16 %v1185, %v1181
    %v1686 = vpack.c.b16 %v1186, %v1182
    %v1687 = vpack.c.b16 %v1187, %v1183
    %v1688 = vpack.c.b16 %v1188, %v1184
    %v1689 = vpack.c.b16 %v1193, %v1189
    %v1690 = vpack.c.b16 %v1194, %v1190
    %v1691 = vpack.c.b16 %v1195, %v1191
    %v1692 = vpack.c.b16 %v1196, %v1192
    %v1693 = vpack.c.b16 %v1201, %v1197
    %v1694 = vpack.c.b16 %v1202, %v1198
    %v1695 = vpack.c.b16 %v1203, %v1199
    %v1696 = vpack.c.b16 %v1204, %v1200
    %v1697 = vpack.c.b16 %v1209, %v1205
    %v1698 = vpack.c.b16 %v1210, %v1206
    %v1699 = vpack.c.b16 %v1211, %v1207
    %v1700 = vpack.c.b16 %v1212, %v1208
    %v1701 = vpack.c.b16 %v1217, %v1213
    %v1702 = vpack.c.b16 %v1218, %v1214
    %v1703 = vpack.c.b16 %v1219, %v1215
    %v1704 = vpack.c.b16 %v1220, %v1216
    %v1705 = vpack.c.b16 %v1225, %v1221
    %v1706 = vpack.c.b16 %v1226, %v1222
    %v1707 = vpack.c.b16 %v1227, %v1223
    %v1708 = vpack.c.b16 %v1228, %v1224
    %v1709 = vpack.c.b16 %v1233, %v1229
    %v1710 = vpack.c.b16 %v1234, %v1230
    %v1711 = vpack.c.b16 %v1235, %v1231
    %v1712 = vpack.c.b16 %v1236, %v1232
    %v1713 = vpack.c.b16 %v1241, %v1237
    %v1714 = vpack.c.b16 %v1242, %v1238
    %v1715 = vpack.c.b16 %v1243, %v1239
    %v1716 = vpack.c.b16 %v1244, %v1240
    %v1717 = vpack.c.b16 %v1249, %v1245
    %v1718 = vpack.c.b16 %v1250, %v1246
    %v1719 = vpack.c.b16 %v1251, %v1247
    %v1720 = vpack.c.b16 %v1252, %v1248
    %v1721 = vpack.c.b16 %v1257, %v1253
    %v1722 = vpack.c.b16 %v1258, %v1254
    %v1723 = vpack.c.b16 %v1259, %v1255
    %v1724 = vpack.c.b16 %v1260, %v1256
    %v1725 = vpack.c.b16 %v1265, %v1261
    %v1726 = vpack.c.b16 %v1266, %v1262
    %v1727 = vpack.c.b16 %v1267, %v1263
    %v1728 = vpack.c.b16 %v1268, %v1264
    %v1729 = vpack.c.b16 %v1273, %v1269
    %v1730 = vpack.c.b16 %v1274, %v1270
    %v1731 = vpack.c.b16 %v1275, %v1271
    %v1732 = vpack.c.b16 %v1276, %v1272
    %v1733 = vpack.c.b16 %v1281, %v1277
    %v1734 = vpack.c.b16 %v1282, %v1278
    %v1735 = vpack.c.b16 %v1283, %v1279
    %v1736 = vpack.c.b16 %v1284, %v1280
    %v1737 = vpack.c.b16 %v1289, %v1285
    %v1738 = vpack.c.b16 %v1290, %v1286
    %v1739 = vpack.c.b16 %v1291, %v1287
    %v1740 = vpack.c.b16 %v1292, %v1288
    %v1741 = vpack.c.b16 %v1297, %v1293
    %v1742 = vpack.c.b16 %v1298, %v1294
    %v1743 = vpack.c.b16 %v1299, %v1295
    %v1744 = vpack.c.b16 %v1300, %v1296
    %v1745 = vpack.c.b16 %v1305, %v1301
    %v1746 = vpack.c.b16 %v1306, %v1302
    %v1747 = vpack.c.b16 %v1307, %v1303
    %v1748 = vpack.c.b16 %v1308, %v1304
    %v1749 = vpack.c.b16 %v1313, %v1309
    %v1750 = vpack.c.b16 %v1314, %v1310
    %v1751 = vpack.c.b16 %v1315, %v1311
    %v1752 = vpack.c.b16 %v1316, %v1312
    %v1753 = vpack.c.b16 %v1321, %v1317
    %v1754 = vpack.c.b16 %v1322, %v1318
    %v1755 = vpack.c.b16 %v1323, %v1319
    %v1756 = vpack.c.b16 %v1324, %v1320
    %v1757 = vpack.c.b16 %v1329, %v1325
    %v1758 = vpack.c.b16 %v1330, %v1326
    %v1759 = vpack.c.b16 %v1331, %v1327
    %v1760 = vpack.c.b16 %v1332, %v1328
    %v1761 = vpack.c.b16 %v1337, %v1333
    %v1762 = vpack.c.b16 %v1338, %v1334
    %v1763 = vpack.c.b16 %v1339, %v1335
    %v1764 = vpack.c.b16 %v1340, %v1336
    %v1765 = vpack.c.b16 %v1345, %v1341
    %v1766 = vpack.c.b16 %v1346, %v1342
    %v1767 = vpack.c.b16 %v1347, %v1343
    %v1768 = vpack.c.b16 %v1348, %v1344
    %v1769 = vpack.c.b16 %v1353, %v1349
    %v1770 = vpack.c.b16 %v1354, %v1350
    %v1771 = vpack.c.b16 %v1355, %v1351
    %v1772 = vpack.c.b16 %v1356, %v1352
    %v1773 = vpack.c.b16 %v1361, %v1357
    %v1774 = vpack.c.b16 %v1362, %v1358
    %v1775 = vpack.c.b16 %v1363, %v1359
    %v1776 = vpack.c.b16 %v1364, %v1360
    %v1777 = vpack.c.b16 %v1369, %v1365
    %v1778 = vpack.c.b16 %v1370, %v1366
    %v1779 = vpack.c.b16 %v1371, %v1367
    %v1780 = vpack.c.b16 %v1372, %v1368
    %v1781 = vpack.c.b16 %v1377, %v1373
    %v1782 = vpack.c.b16 %v1378, %v1374
    %v1783 = vpack.c.b16 %v1379, %v1375
    %v1784 = vpack.c.b16 %v1380, %v1376
    %v1785 = vpack.c.b16 %v1385, %v1381
    %v1786 = vpack.c.b16 %v1386, %v1382
    %v1787 = vpack.c.b16 %v1387, %v1383
    %v1788 = vpack.c.b16 %v1388, %v1384
    %v1789 = vpack.c.b16 %v1393, %v1389
    %v1790 = vpack.c.b16 %v1394, %v1390
    %v1791 = vpack.c.b16 %v1395, %v1391
    %v1792 = vpack.c.b16 %v1396, %v1392
    %v1793 = vpack.c.b16 %v1401, %v1397
    %v1794 = vpack.c.b16 %v1402, %v1398
    %v1795 = vpack.c.b16 %v1403, %v1399
    %v1796 = vpack.c.b16 %v1404, %v1400
    %v1797 = vpack.c.b16 %v1409, %v1405
    %v1798 = vpack.c.b16 %v1410, %v1406
    %v1799 = vpack.c.b16 %v1411, %v1407
    %v1800 = vpack.c.b16 %v1412, %v1408
    %v1801 = vpack.c.b16 %v1417, %v1413
    %v1802 = vpack.c.b16 %v1418, %v1414
    %v1803 = vpack.c.b16 %v1419, %v1415
    %v1804 = vpack.c.b16 %v1420, %v1416
    %v1805 = vpack.c.b16 %v1425, %v1421
    %v1806 = vpack.c.b16 %v1426, %v1422
    %v1807 = vpack.c.b16 %v1427, %v1423
    %v1808 = vpack.c.b16 %v1428, %v1424
    %v1809 = vpack.c.b16 %v1433, %v1429
    %v1810 = vpack.c.b16 %v1434, %v1430
    %v1811 = vpack.c.b16 %v1435, %v1431
    %v1812 = vpack.c.b16 %v1436, %v1432
    %v1813 = vpack.c.b16 %v1441, %v1437
    %v1814 = vpack.c.b16 %v1442, %v1438
    %v1815 = vpack.c.b16 %v1443, %v1439
    %v1816 = vpack.c.b16 %v1444, %v1440
    %v1817 = vpack.c.b16 %v1449, %v1445
    %v1818 = vpack.c.b16 %v1450, %v1446
    %v1819 = vpack.c.b16 %v1451, %v1447
    %v1820 = vpack.c.b16 %v1452, %v1448
    %v1821 = vpack.c.b16 %v1457, %v1453
    %v1822 = vpack.c.b16 %v1458, %v1454
    %v1823 = vpack.c.b16 %v1459, %v1455
    %v1824 = vpack.c.b16 %v1460, %v1456
    %v1825 = vpack.c.b16 %v1465, %v1461
    %v1826 = vpack.c.b16 %v1466, %v1462
    %v1827 = vpack.c.b16 %v1467, %v1463
    %v1828 = vpack.c.b16 %v1468, %v1464
    %v1829 = vpack.c.b16 %v1473, %v1469
    %v1830 = vpack.c.b16 %v1474, %v1470
    %v1831 = vpack.c.b16 %v1475, %v1471
    %v1832 = vpack.c.b16 %v1476, %v1472
    %v1833 = vpack.c.b16 %v1481, %v1477
    %v1834 = vpack.c.b16 %v1482, %v1478
    %v1835 = vpack.c.b16 %v1483, %v1479
    %v1836 = vpack.c.b16 %v1484, %v1480
    %v1837 = vpack.c.b16 %v1489, %v1485
    %v1838 = vpack.c.b16 %v1490, %v1486
    %v1839 = vpack.c.b16 %v1491, %v1487
    %v1840 = vpack.c.b16 %v1492, %v1488
    %v1841 = vpack.c.b16 %v1497, %v1493
    %v1842 = vpack.c.b16 %v1498, %v1494
    %v1843 = vpack.c.b16 %v1499, %v1495
    %v1844 = vpack.c.b16 %v1500, %v1496
    %v1845 = vpack.c.b16 %v1505, %v1501
    %v1846 = vpack.c.b16 %v1506, %v1502
    %v1847 = vpack.c.b16 %v1507, %v1503
    %v1848 = vpack.c.b16 %v1508, %v1504
    %v1849 = vpack.c.b16 %v1513, %v1509
    %v1850 = vpack.c.b16 %v1514, %v1510
    %v1851 = vpack.c.b16 %v1515, %v1511
    %v1852 = vpack.c.b16 %v1516, %v1512
    %v1853 = vpack.c.b16 %v1521, %v1517
    %v1854 = vpack.c.b16 %v1522, %v1518
    %v1855 = vpack.c.b16 %v1523, %v1519
    %v1856 = vpack.c.b16 %v1524, %v1520
    %v1857 = vpack.c.b16 %v1529, %v1525
    %v1858 = vpack.c.b16 %v1530, %v1526
    %v1859 = vpack.c.b16 %v1531, %v1527
    %v1860 = vpack.c.b16 %v1532, %v1528
    %v1861 = vpack.c.b16 %v1537, %v1533
    %v1862 = vpack.c.b16 %v1538, %v1534
    %v1863 = vpack.c.b16 %v1539, %v1535
    %v1864 = vpack.c.b16 %v1540, %v1536
    %v1865 = vpack.c.b16 %v1545, %v1541
    %v1866 = vpack.c.b16 %v1546, %v1542
    %v1867 = vpack.c.b16 %v1547, %v1543
    %v1868 = vpack.c.b16 %v1548, %v1544
    %2189 = vmatprep.subr.bf16.mxu0 %v1578
    %2190 = vmatpush1.bf16.msra.mxu0 %v1577
    %2191 = vmatprep.subr.bf16.mxu0 %v1574
    %2192 = vmatpush1.bf16.msra.mxu0 %v1573
    %2193 = vmatprep.subr.bf16.mxu0 %v1570
    %2194 = vmatpush1.bf16.msra.mxu0 %v1569
    %2195 = vmatprep.subr.bf16.mxu0 %v1566
    %2196 = vmatpush1.bf16.msra.mxu0 %v1565
    %2197 = vmatprep.subr.bf16.mxu0 %v1562
    %2198 = vmatpush1.bf16.msra.mxu0 %v1561
    %2199 = vmatprep.subr.bf16.mxu0 %v1558
    %2200 = vmatpush1.bf16.msra.mxu0 %v1557
    %2201 = vmatprep.subr.bf16.mxu0 %v1554
    %2202 = vmatpush1.bf16.msra.mxu0 %v1553
    %2203 = vmatprep.subr.bf16.mxu0 %v1550
    %2204 = vmatpush1.bf16.msra.mxu0 %v1549
    %2205 = vmatprep.subr.bf16.mxu0 %v1610
    %2206 = vmatpush2.bf16.msra.mxu0 %v1609
    %2207 = vmatprep.subr.bf16.mxu0 %v1606
    %2208 = vmatpush2.bf16.msra.mxu0 %v1605
    %2209 = vmatprep.subr.bf16.mxu0 %v1602
    %2210 = vmatpush2.bf16.msra.mxu0 %v1601
    %2211 = vmatprep.subr.bf16.mxu0 %v1598
    %2212 = vmatpush2.bf16.msra.mxu0 %v1597
    %2213 = vmatprep.subr.bf16.mxu0 %v1594
    %2214 = vmatpush2.bf16.msra.mxu0 %v1593
    %2215 = vmatprep.subr.bf16.mxu0 %v1590
    %2216 = vmatpush2.bf16.msra.mxu0 %v1589
    %2217 = vmatprep.subr.bf16.mxu0 %v1586
    %2218 = vmatpush2.bf16.msra.mxu0 %v1585
    %2219 = vmatprep.subr.bf16.mxu0 %v1582
    %2220 = vmatpush2.bf16.msra.mxu0 %v1581
    %2221 = vmatprep.mubr.bf16.mxu0 %v570
    %2222 = vmatmul.mubr.bf16.gmra.mxu0 %v569
    %v2223 = vpop.f32.mrf.mxu0
    %v2224 = vadd.f32 %v491, %v2223
    %v2225 = vpop.f32.mrf.mxu0
    %v2226 = vadd.f32 %v495, %v2225
    %v2227 = vpop.f32.mrf.mxu0
    %v2228 = vpop.f32.mrf.mxu0
    %2229 = vdwg.mxu0
    %2230 = vmatprep.subr.bf16.mxu0 %v1642
    %2231 = vmatpush1.bf16.msra.mxu0 %v1641
    %2232 = vmatprep.subr.bf16.mxu0 %v1638
    %2233 = vmatpush1.bf16.msra.mxu0 %v1637
    %2234 = vmatprep.subr.bf16.mxu0 %v1634
    %2235 = vmatpush1.bf16.msra.mxu0 %v1633
    %2236 = vmatprep.subr.bf16.mxu0 %v1630
    %2237 = vmatpush1.bf16.msra.mxu0 %v1629
    %2238 = vmatprep.subr.bf16.mxu0 %v1626
    %2239 = vmatpush1.bf16.msra.mxu0 %v1625
    %2240 = vmatprep.subr.bf16.mxu0 %v1622
    %2241 = vmatpush1.bf16.msra.mxu0 %v1621
    %2242 = vmatprep.subr.bf16.mxu0 %v1618
    %2243 = vmatpush1.bf16.msra.mxu0 %v1617
    %2244 = vmatprep.subr.bf16.mxu0 %v1614
    %2245 = vmatpush1.bf16.msra.mxu0 %v1613
    %2246 = vmatprep.subr.bf16.mxu0 %v1674
    %2247 = vmatpush2.bf16.msra.mxu0 %v1673
    %2248 = vmatprep.subr.bf16.mxu0 %v1670
    %2249 = vmatpush2.bf16.msra.mxu0 %v1669
    %2250 = vmatprep.subr.bf16.mxu0 %v1666
    %2251 = vmatpush2.bf16.msra.mxu0 %v1665
    %2252 = vmatprep.subr.bf16.mxu0 %v1662
    %2253 = vmatpush2.bf16.msra.mxu0 %v1661
    %2254 = vmatprep.subr.bf16.mxu0 %v1658
    %2255 = vmatpush2.bf16.msra.mxu0 %v1657
    %2256 = vmatprep.subr.bf16.mxu0 %v1654
    %2257 = vmatpush2.bf16.msra.mxu0 %v1653
    %2258 = vmatprep.subr.bf16.mxu0 %v1650
    %2259 = vmatpush2.bf16.msra.mxu0 %v1649
    %2260 = vmatprep.subr.bf16.mxu0 %v1646
    %2261 = vmatpush2.bf16.msra.mxu0 %v1645
    %2262 = vmatprep.mubr.bf16.mxu0 %v572
    %2263 = vmatmul.mubr.bf16.gmra.mxu0 %v571
    %v2264 = vpop.f32.mrf.mxu0
    %v2265 = vadd.f32 %v2224, %v2264
    %v2266 = vpop.f32.mrf.mxu0
    %v2267 = vadd.f32 %v2226, %v2266
    %v2268 = vpop.f32.mrf.mxu0
    %v2269 = vpop.f32.mrf.mxu0
    %2270 = vdwg.mxu0
    %2271 = vmatprep.subr.bf16.mxu0 %v1706
    %2272 = vmatpush1.bf16.msra.mxu0 %v1705
    %2273 = vmatprep.subr.bf16.mxu0 %v1702
    %2274 = vmatpush1.bf16.msra.mxu0 %v1701
    %2275 = vmatprep.subr.bf16.mxu0 %v1698
    %2276 = vmatpush1.bf16.msra.mxu0 %v1697
    %2277 = vmatprep.subr.bf16.mxu0 %v1694
    %2278 = vmatpush1.bf16.msra.mxu0 %v1693
    %2279 = vmatprep.subr.bf16.mxu0 %v1690
    %2280 = vmatpush1.bf16.msra.mxu0 %v1689
    %2281 = vmatprep.subr.bf16.mxu0 %v1686
    %2282 = vmatpush1.bf16.msra.mxu0 %v1685
    %2283 = vmatprep.subr.bf16.mxu0 %v1682
    %2284 = vmatpush1.bf16.msra.mxu0 %v1681
    %2285 = vmatprep.subr.bf16.mxu0 %v1678
    %2286 = vmatpush1.bf16.msra.mxu0 %v1677
    %2287 = vmatprep.subr.bf16.mxu0 %v1738
    %2288 = vmatpush2.bf16.msra.mxu0 %v1737
    %2289 = vmatprep.subr.bf16.mxu0 %v1734
    %2290 = vmatpush2.bf16.msra.mxu0 %v1733
    %2291 = vmatprep.subr.bf16.mxu0 %v1730
    %2292 = vmatpush2.bf16.msra.mxu0 %v1729
    %2293 = vmatprep.subr.bf16.mxu0 %v1726
    %2294 = vmatpush2.bf16.msra.mxu0 %v1725
    %2295 = vmatprep.subr.bf16.mxu0 %v1722
    %2296 = vmatpush2.bf16.msra.mxu0 %v1721
    %2297 = vmatprep.subr.bf16.mxu0 %v1718
    %2298 = vmatpush2.bf16.msra.mxu0 %v1717
    %2299 = vmatprep.subr.bf16.mxu0 %v1714
    %2300 = vmatpush2.bf16.msra.mxu0 %v1713
    %2301 = vmatprep.subr.bf16.mxu0 %v1710
    %2302 = vmatpush2.bf16.msra.mxu0 %v1709
    %2303 = vmatprep.mubr.bf16.mxu0 %v574
    %2304 = vmatmul.mubr.bf16.gmra.mxu0 %v573
    %v2305 = vpop.f32.mrf.mxu0
    %v2306 = vadd.f32 %v2265, %v2305
    %v2307 = vpop.f32.mrf.mxu0
    %v2308 = vadd.f32 %v2267, %v2307
    %v2309 = vpop.f32.mrf.mxu0
    %v2310 = vpop.f32.mrf.mxu0
    %2311 = vdwg.mxu0
    %2312 = vmatprep.subr.bf16.mxu0 %v1770
    %2313 = vmatpush1.bf16.msra.mxu0 %v1769
    %2314 = vmatprep.subr.bf16.mxu0 %v1766
    %2315 = vmatpush1.bf16.msra.mxu0 %v1765
    %2316 = vmatprep.subr.bf16.mxu0 %v1762
    %2317 = vmatpush1.bf16.msra.mxu0 %v1761
    %2318 = vmatprep.subr.bf16.mxu0 %v1758
    %2319 = vmatpush1.bf16.msra.mxu0 %v1757
    %2320 = vmatprep.subr.bf16.mxu0 %v1754
    %2321 = vmatpush1.bf16.msra.mxu0 %v1753
    %2322 = vmatprep.subr.bf16.mxu0 %v1750
    %2323 = vmatpush1.bf16.msra.mxu0 %v1749
    %2324 = vmatprep.subr.bf16.mxu0 %v1746
    %2325 = vmatpush1.bf16.msra.mxu0 %v1745
    %2326 = vmatprep.subr.bf16.mxu0 %v1742
    %2327 = vmatpush1.bf16.msra.mxu0 %v1741
    %2328 = vmatprep.subr.bf16.mxu0 %v1802
    %2329 = vmatpush2.bf16.msra.mxu0 %v1801
    %2330 = vmatprep.subr.bf16.mxu0 %v1798
    %2331 = vmatpush2.bf16.msra.mxu0 %v1797
    %2332 = vmatprep.subr.bf16.mxu0 %v1794
    %2333 = vmatpush2.bf16.msra.mxu0 %v1793
    %2334 = vmatprep.subr.bf16.mxu0 %v1790
    %2335 = vmatpush2.bf16.msra.mxu0 %v1789
    %2336 = vmatprep.subr.bf16.mxu0 %v1786
    %2337 = vmatpush2.bf16.msra.mxu0 %v1785
    %2338 = vmatprep.subr.bf16.mxu0 %v1782
    %2339 = vmatpush2.bf16.msra.mxu0 %v1781
    %2340 = vmatprep.subr.bf16.mxu0 %v1778
    %2341 = vmatpush2.bf16.msra.mxu0 %v1777
    %2342 = vmatprep.subr.bf16.mxu0 %v1774
    %2343 = vmatpush2.bf16.msra.mxu0 %v1773
    %2344 = vmatprep.mubr.bf16.mxu0 %v576
    %2345 = vmatmul.mubr.bf16.gmra.mxu0 %v575
    %v2346 = vpop.f32.mrf.mxu0
    %v2347 = vadd.f32 %v2306, %v2346
    %v2348 = vpop.f32.mrf.mxu0
    %v2349 = vadd.f32 %v2308, %v2348
    %v2350 = vpop.f32.mrf.mxu0
    %v2351 = vpop.f32.mrf.mxu0
    %2352 = vdwg.mxu0
    %2353 = vmatprep.subr.bf16.mxu0 %v1834
    %2354 = vmatpush1.bf16.msra.mxu0 %v1833
    %2355 = vmatprep.subr.bf16.mxu0 %v1830
    %2356 = vmatpush1.bf16.msra.mxu0 %v1829
    %2357 = vmatprep.subr.bf16.mxu0 %v1826
    %2358 = vmatpush1.bf16.msra.mxu0 %v1825
    %2359 = vmatprep.subr.bf16.mxu0 %v1822
    %2360 = vmatpush1.bf16.msra.mxu0 %v1821
    %2361 = vmatprep.subr.bf16.mxu0 %v1818
    %2362 = vmatpush1.bf16.msra.mxu0 %v1817
    %2363 = vmatprep.subr.bf16.mxu0 %v1814
    %2364 = vmatpush1.bf16.msra.mxu0 %v1813
    %2365 = vmatprep.subr.bf16.mxu0 %v1810
    %2366 = vmatpush1.bf16.msra.mxu0 %v1809
    %2367 = vmatprep.subr.bf16.mxu0 %v1806
    %2368 = vmatpush1.bf16.msra.mxu0 %v1805
    %2369 = vmatprep.subr.bf16.mxu0 %v1866
    %2370 = vmatpush2.bf16.msra.mxu0 %v1865
    %2371 = vmatprep.subr.bf16.mxu0 %v1862
    %2372 = vmatpush2.bf16.msra.mxu0 %v1861
    %2373 = vmatprep.subr.bf16.mxu0 %v1858
    %2374 = vmatpush2.bf16.msra.mxu0 %v1857
    %2375 = vmatprep.subr.bf16.mxu0 %v1854
    %2376 = vmatpush2.bf16.msra.mxu0 %v1853
    %2377 = vmatprep.subr.bf16.mxu0 %v1850
    %2378 = vmatpush2.bf16.msra.mxu0 %v1849
    %2379 = vmatprep.subr.bf16.mxu0 %v1846
    %2380 = vmatpush2.bf16.msra.mxu0 %v1845
    %2381 = vmatprep.subr.bf16.mxu0 %v1842
    %2382 = vmatpush2.bf16.msra.mxu0 %v1841
    %2383 = vmatprep.subr.bf16.mxu0 %v1838
    %2384 = vmatpush2.bf16.msra.mxu0 %v1837
    %2385 = vmatprep.mubr.bf16.mxu0 %v578
    %2386 = vmatmul.mubr.bf16.gmra.mxu0 %v577
    %v2387 = vpop.f32.mrf.mxu0
    %v2388 = vadd.f32 %v2347, %v2387
    %v2389 = vpop.f32.mrf.mxu0
    %v2390 = vadd.f32 %v2349, %v2389
    %v2391 = vpop.f32.mrf.mxu0
    %v2392 = vpop.f32.mrf.mxu0
    %2393 = vdwg.mxu0
    %2394 = vmatprep.subr.bf16.mxu0 %v1580
    %2395 = vmatpush1.bf16.msra.mxu0 %v1579
    %2396 = vmatprep.subr.bf16.mxu0 %v1576
    %2397 = vmatpush1.bf16.msra.mxu0 %v1575
    %2398 = vmatprep.subr.bf16.mxu0 %v1572
    %2399 = vmatpush1.bf16.msra.mxu0 %v1571
    %2400 = vmatprep.subr.bf16.mxu0 %v1568
    %2401 = vmatpush1.bf16.msra.mxu0 %v1567
    %2402 = vmatprep.subr.bf16.mxu0 %v1564
    %2403 = vmatpush1.bf16.msra.mxu0 %v1563
    %2404 = vmatprep.subr.bf16.mxu0 %v1560
    %2405 = vmatpush1.bf16.msra.mxu0 %v1559
    %2406 = vmatprep.subr.bf16.mxu0 %v1556
    %2407 = vmatpush1.bf16.msra.mxu0 %v1555
    %2408 = vmatprep.subr.bf16.mxu0 %v1552
    %2409 = vmatpush1.bf16.msra.mxu0 %v1551
    %2410 = vmatprep.subr.bf16.mxu0 %v1612
    %2411 = vmatpush2.bf16.msra.mxu0 %v1611
    %2412 = vmatprep.subr.bf16.mxu0 %v1608
    %2413 = vmatpush2.bf16.msra.mxu0 %v1607
    %2414 = vmatprep.subr.bf16.mxu0 %v1604
    %2415 = vmatpush2.bf16.msra.mxu0 %v1603
    %2416 = vmatprep.subr.bf16.mxu0 %v1600
    %2417 = vmatpush2.bf16.msra.mxu0 %v1599
    %2418 = vmatprep.subr.bf16.mxu0 %v1596
    %2419 = vmatpush2.bf16.msra.mxu0 %v1595
    %2420 = vmatprep.subr.bf16.mxu0 %v1592
    %2421 = vmatpush2.bf16.msra.mxu0 %v1591
    %2422 = vmatprep.subr.bf16.mxu0 %v1588
    %2423 = vmatpush2.bf16.msra.mxu0 %v1587
    %2424 = vmatprep.subr.bf16.mxu0 %v1584
    %2425 = vmatpush2.bf16.msra.mxu0 %v1583
    %2426 = vmatprep.mubr.bf16.mxu0 %v570
    %2427 = vmatmul.mubr.bf16.gmra.mxu0 %v569
    %v2428 = vpop.f32.mrf.mxu0
    %v2429 = vadd.f32 %v499, %v2428
    %v2430 = vpop.f32.mrf.mxu0
    %v2431 = vadd.f32 %v503, %v2430
    %v2432 = vpop.f32.mrf.mxu0
    %v2433 = vpop.f32.mrf.mxu0
    %2434 = vdwg.mxu0
    %2435 = vmatprep.subr.bf16.mxu0 %v1644
    %2436 = vmatpush1.bf16.msra.mxu0 %v1643
    %2437 = vmatprep.subr.bf16.mxu0 %v1640
    %2438 = vmatpush1.bf16.msra.mxu0 %v1639
    %2439 = vmatprep.subr.bf16.mxu0 %v1636
    %2440 = vmatpush1.bf16.msra.mxu0 %v1635
    %2441 = vmatprep.subr.bf16.mxu0 %v1632
    %2442 = vmatpush1.bf16.msra.mxu0 %v1631
    %2443 = vmatprep.subr.bf16.mxu0 %v1628
    %2444 = vmatpush1.bf16.msra.mxu0 %v1627
    %2445 = vmatprep.subr.bf16.mxu0 %v1624
    %2446 = vmatpush1.bf16.msra.mxu0 %v1623
    %2447 = vmatprep.subr.bf16.mxu0 %v1620
    %2448 = vmatpush1.bf16.msra.mxu0 %v1619
    %2449 = vmatprep.subr.bf16.mxu0 %v1616
    %2450 = vmatpush1.bf16.msra.mxu0 %v1615
    %2451 = vmatprep.subr.bf16.mxu0 %v1676
    %2452 = vmatpush2.bf16.msra.mxu0 %v1675
    %2453 = vmatprep.subr.bf16.mxu0 %v1672
    %2454 = vmatpush2.bf16.msra.mxu0 %v1671
    %2455 = vmatprep.subr.bf16.mxu0 %v1668
    %2456 = vmatpush2.bf16.msra.mxu0 %v1667
    %2457 = vmatprep.subr.bf16.mxu0 %v1664
    %2458 = vmatpush2.bf16.msra.mxu0 %v1663
    %2459 = vmatprep.subr.bf16.mxu0 %v1660
    %2460 = vmatpush2.bf16.msra.mxu0 %v1659
    %2461 = vmatprep.subr.bf16.mxu0 %v1656
    %2462 = vmatpush2.bf16.msra.mxu0 %v1655
    %2463 = vmatprep.subr.bf16.mxu0 %v1652
    %2464 = vmatpush2.bf16.msra.mxu0 %v1651
    %2465 = vmatprep.subr.bf16.mxu0 %v1648
    %2466 = vmatpush2.bf16.msra.mxu0 %v1647
    %2467 = vmatprep.mubr.bf16.mxu0 %v572
    %2468 = vmatmul.mubr.bf16.gmra.mxu0 %v571
    %v2469 = vpop.f32.mrf.mxu0
    %v2470 = vadd.f32 %v2429, %v2469
    %v2471 = vpop.f32.mrf.mxu0
    %v2472 = vadd.f32 %v2431, %v2471
    %v2473 = vpop.f32.mrf.mxu0
    %v2474 = vpop.f32.mrf.mxu0
    %2475 = vdwg.mxu0
    %2476 = vmatprep.subr.bf16.mxu0 %v1708
    %2477 = vmatpush1.bf16.msra.mxu0 %v1707
    %2478 = vmatprep.subr.bf16.mxu0 %v1704
    %2479 = vmatpush1.bf16.msra.mxu0 %v1703
    %2480 = vmatprep.subr.bf16.mxu0 %v1700
    %2481 = vmatpush1.bf16.msra.mxu0 %v1699
    %2482 = vmatprep.subr.bf16.mxu0 %v1696
    %2483 = vmatpush1.bf16.msra.mxu0 %v1695
    %2484 = vmatprep.subr.bf16.mxu0 %v1692
    %2485 = vmatpush1.bf16.msra.mxu0 %v1691
    %2486 = vmatprep.subr.bf16.mxu0 %v1688
    %2487 = vmatpush1.bf16.msra.mxu0 %v1687
    %2488 = vmatprep.subr.bf16.mxu0 %v1684
    %2489 = vmatpush1.bf16.msra.mxu0 %v1683
    %2490 = vmatprep.subr.bf16.mxu0 %v1680
    %2491 = vmatpush1.bf16.msra.mxu0 %v1679
    %2492 = vmatprep.subr.bf16.mxu0 %v1740
    %2493 = vmatpush2.bf16.msra.mxu0 %v1739
    %2494 = vmatprep.subr.bf16.mxu0 %v1736
    %2495 = vmatpush2.bf16.msra.mxu0 %v1735
    %2496 = vmatprep.subr.bf16.mxu0 %v1732
    %2497 = vmatpush2.bf16.msra.mxu0 %v1731
    %2498 = vmatprep.subr.bf16.mxu0 %v1728
    %2499 = vmatpush2.bf16.msra.mxu0 %v1727
    %2500 = vmatprep.subr.bf16.mxu0 %v1724
    %2501 = vmatpush2.bf16.msra.mxu0 %v1723
    %2502 = vmatprep.subr.bf16.mxu0 %v1720
    %2503 = vmatpush2.bf16.msra.mxu0 %v1719
    %2504 = vmatprep.subr.bf16.mxu0 %v1716
    %2505 = vmatpush2.bf16.msra.mxu0 %v1715
    %2506 = vmatprep.subr.bf16.mxu0 %v1712
    %2507 = vmatpush2.bf16.msra.mxu0 %v1711
    %2508 = vmatprep.mubr.bf16.mxu0 %v574
    %2509 = vmatmul.mubr.bf16.gmra.mxu0 %v573
    %v2510 = vpop.f32.mrf.mxu0
    %v2511 = vadd.f32 %v2470, %v2510
    %v2512 = vpop.f32.mrf.mxu0
    %v2513 = vadd.f32 %v2472, %v2512
    %v2514 = vpop.f32.mrf.mxu0
    %v2515 = vpop.f32.mrf.mxu0
    %2516 = vdwg.mxu0
    %2517 = vmatprep.subr.bf16.mxu0 %v1772
    %2518 = vmatpush1.bf16.msra.mxu0 %v1771
    %2519 = vmatprep.subr.bf16.mxu0 %v1768
    %2520 = vmatpush1.bf16.msra.mxu0 %v1767
    %2521 = vmatprep.subr.bf16.mxu0 %v1764
    %2522 = vmatpush1.bf16.msra.mxu0 %v1763
    %2523 = vmatprep.subr.bf16.mxu0 %v1760
    %2524 = vmatpush1.bf16.msra.mxu0 %v1759
    %2525 = vmatprep.subr.bf16.mxu0 %v1756
    %2526 = vmatpush1.bf16.msra.mxu0 %v1755
    %2527 = vmatprep.subr.bf16.mxu0 %v1752
    %2528 = vmatpush1.bf16.msra.mxu0 %v1751
    %2529 = vmatprep.subr.bf16.mxu0 %v1748
    %2530 = vmatpush1.bf16.msra.mxu0 %v1747
    %2531 = vmatprep.subr.bf16.mxu0 %v1744
    %2532 = vmatpush1.bf16.msra.mxu0 %v1743
    %2533 = vmatprep.subr.bf16.mxu0 %v1804
    %2534 = vmatpush2.bf16.msra.mxu0 %v1803
    %2535 = vmatprep.subr.bf16.mxu0 %v1800
    %2536 = vmatpush2.bf16.msra.mxu0 %v1799
    %2537 = vmatprep.subr.bf16.mxu0 %v1796
    %2538 = vmatpush2.bf16.msra.mxu0 %v1795
    %2539 = vmatprep.subr.bf16.mxu0 %v1792
    %2540 = vmatpush2.bf16.msra.mxu0 %v1791
    %2541 = vmatprep.subr.bf16.mxu0 %v1788
    %2542 = vmatpush2.bf16.msra.mxu0 %v1787
    %2543 = vmatprep.subr.bf16.mxu0 %v1784
    %2544 = vmatpush2.bf16.msra.mxu0 %v1783
    %2545 = vmatprep.subr.bf16.mxu0 %v1780
    %2546 = vmatpush2.bf16.msra.mxu0 %v1779
    %2547 = vmatprep.subr.bf16.mxu0 %v1776
    %2548 = vmatpush2.bf16.msra.mxu0 %v1775
    %2549 = vmatprep.mubr.bf16.mxu0 %v576
    %2550 = vmatmul.mubr.bf16.gmra.mxu0 %v575
    %v2551 = vpop.f32.mrf.mxu0
    %v2552 = vadd.f32 %v2511, %v2551
    %v2553 = vpop.f32.mrf.mxu0
    %v2554 = vadd.f32 %v2513, %v2553
    %v2555 = vpop.f32.mrf.mxu0
    %v2556 = vpop.f32.mrf.mxu0
    %2557 = vdwg.mxu0
    %2558 = vmatprep.subr.bf16.mxu0 %v1836
    %2559 = vmatpush1.bf16.msra.mxu0 %v1835
    %2560 = vmatprep.subr.bf16.mxu0 %v1832
    %2561 = vmatpush1.bf16.msra.mxu0 %v1831
    %2562 = vmatprep.subr.bf16.mxu0 %v1828
    %2563 = vmatpush1.bf16.msra.mxu0 %v1827
    %2564 = vmatprep.subr.bf16.mxu0 %v1824
    %2565 = vmatpush1.bf16.msra.mxu0 %v1823
    %2566 = vmatprep.subr.bf16.mxu0 %v1820
    %2567 = vmatpush1.bf16.msra.mxu0 %v1819
    %2568 = vmatprep.subr.bf16.mxu0 %v1816
    %2569 = vmatpush1.bf16.msra.mxu0 %v1815
    %2570 = vmatprep.subr.bf16.mxu0 %v1812
    %2571 = vmatpush1.bf16.msra.mxu0 %v1811
    %2572 = vmatprep.subr.bf16.mxu0 %v1808
    %2573 = vmatpush1.bf16.msra.mxu0 %v1807
    %2574 = vmatprep.subr.bf16.mxu0 %v1868
    %2575 = vmatpush2.bf16.msra.mxu0 %v1867
    %2576 = vmatprep.subr.bf16.mxu0 %v1864
    %2577 = vmatpush2.bf16.msra.mxu0 %v1863
    %2578 = vmatprep.subr.bf16.mxu0 %v1860
    %2579 = vmatpush2.bf16.msra.mxu0 %v1859
    %2580 = vmatprep.subr.bf16.mxu0 %v1856
    %2581 = vmatpush2.bf16.msra.mxu0 %v1855
    %2582 = vmatprep.subr.bf16.mxu0 %v1852
    %2583 = vmatpush2.bf16.msra.mxu0 %v1851
    %2584 = vmatprep.subr.bf16.mxu0 %v1848
    %2585 = vmatpush2.bf16.msra.mxu0 %v1847
    %2586 = vmatprep.subr.bf16.mxu0 %v1844
    %2587 = vmatpush2.bf16.msra.mxu0 %v1843
    %2588 = vmatprep.subr.bf16.mxu0 %v1840
    %2589 = vmatpush2.bf16.msra.mxu0 %v1839
    %2590 = vmatprep.mubr.bf16.mxu0 %v578
    %2591 = vmatmul.mubr.bf16.gmra.mxu0 %v577
    %v2592 = vpop.f32.mrf.mxu0
    %v2593 = vadd.f32 %v2552, %v2592
    %v2594 = vpop.f32.mrf.mxu0
    %v2595 = vadd.f32 %v2554, %v2594
    %v2596 = vpop.f32.mrf.mxu0
    %v2597 = vpop.f32.mrf.mxu0
    %2598 = vdwg.mxu0
    %v2599 = vmax.f32 %v2388, 0.0
    %v2600 = vmax.f32 %v2390, 0.0
    %v2601 = vmax.f32 %v2593, 0.0
    %v2602 = vmax.f32 %v2595, 0.0
    %v2603 = vpack.c.bf16 %v2599, %v2599
    %v2604 = vpack.c.bf16 %v2600, %v2600
    %v2605 = vpack.c.bf16 %v2601, %v2601
    %v2606 = vpack.c.bf16 %v2602, %v2602
    %v2607 = vld [vmem:[%s3] sm:$0xf]
    %v2608 = vld [vmem:[%s3 + $0x4] sm:$0xf]
    %v2609 = vld [vmem:[%s3 + $0x8] sm:$0xf]
    %v2610 = vld [vmem:[%s3 + $0xc] sm:$0xf]
    %v2611 = vld [vmem:[%s3 + $0x10] sm:$0xf]
    %v2612 = vld [vmem:[%s3 + $0x14] sm:$0xf]
    %v2613 = vld [vmem:[%s3 + $0x18] sm:$0xf]
    %v2614 = vld [vmem:[%s3 + $0x1c] sm:$0xf]
    %v2615 = vld [vmem:[%s3 + $0x20] sm:$0xf]
    %v2616 = vld [vmem:[%s3 + $0x24] sm:$0xf]
    %v2617 = vld [vmem:[%s3 + $0x28] sm:$0xf]
    %v2618 = vld [vmem:[%s3 + $0x2c] sm:$0xf]
    %v2619 = vld [vmem:[%s3 + $0x30] sm:$0xf]
    %v2620 = vld [vmem:[%s3 + $0x34] sm:$0xf]
    %v2621 = vld [vmem:[%s3 + $0x38] sm:$0xf]
    %v2622 = vld [vmem:[%s3 + $0x3c] sm:$0xf]
    %v2623 = vld [vmem:[%s3 + $0x40] sm:$0xf]
    %v2624 = vld [vmem:[%s3 + $0x44] sm:$0xf]
    %v2625 = vld [vmem:[%s3 + $0x48] sm:$0xf]
    %v2626 = vld [vmem:[%s3 + $0x4c] sm:$0xf]
    %v2627 = vld [vmem:[%s3 + $0x50] sm:$0xf]
    %v2628 = vld [vmem:[%s3 + $0x54] sm:$0xf]
    %v2629 = vld [vmem:[%s3 + $0x58] sm:$0xf]
    %v2630 = vld [vmem:[%s3 + $0x5c] sm:$0xf]
    %v2631 = vld [vmem:[%s3 + $0x60] sm:$0xf]
    %v2632 = vld [vmem:[%s3 + $0x64] sm:$0xf]
    %v2633 = vld [vmem:[%s3 + $0x68] sm:$0xf]
    %v2634 = vld [vmem:[%s3 + $0x6c] sm:$0xf]
    %v2635 = vld [vmem:[%s3 + $0x70] sm:$0xf]
    %v2636 = vld [vmem:[%s3 + $0x74] sm:$0xf]
    %v2637 = vld [vmem:[%s3 + $0x78] sm:$0xf]
    %v2638 = vld [vmem:[%s3 + $0x7c] sm:$0xf]
    %v2639 = vld [vmem:[%s3 + $0x80] sm:$0xf]
    %v2640 = vld [vmem:[%s3 + $0x84] sm:$0xf]
    %v2641 = vld [vmem:[%s3 + $0x88] sm:$0xf]
    %v2642 = vld [vmem:[%s3 + $0x8c] sm:$0xf]
    %v2643 = vld [vmem:[%s3 + $0x90] sm:$0xf]
    %v2644 = vld [vmem:[%s3 + $0x94] sm:$0xf]
    %v2645 = vld [vmem:[%s3 + $0x98] sm:$0xf]
    %v2646 = vld [vmem:[%s3 + $0x9c] sm:$0xf]
    %v2647 = vld [vmem:[%s3 + $0xa0] sm:$0xf]
    %v2648 = vld [vmem:[%s3 + $0xa4] sm:$0xf]
    %v2649 = vld [vmem:[%s3 + $0xa8] sm:$0xf]
    %v2650 = vld [vmem:[%s3 + $0xac] sm:$0xf]
    %v2651 = vld [vmem:[%s3 + $0xb0] sm:$0xf]
    %v2652 = vld [vmem:[%s3 + $0xb4] sm:$0xf]
    %v2653 = vld [vmem:[%s3 + $0xb8] sm:$0xf]
    %v2654 = vld [vmem:[%s3 + $0xbc] sm:$0xf]
    %v2655 = vld [vmem:[%s3 + $0xc0] sm:$0xf]
    %v2656 = vld [vmem:[%s3 + $0xc4] sm:$0xf]
    %v2657 = vld [vmem:[%s3 + $0xc8] sm:$0xf]
    %v2658 = vld [vmem:[%s3 + $0xcc] sm:$0xf]
    %v2659 = vld [vmem:[%s3 + $0xd0] sm:$0xf]
    %v2660 = vld [vmem:[%s3 + $0xd4] sm:$0xf]
    %v2661 = vld [vmem:[%s3 + $0xd8] sm:$0xf]
    %v2662 = vld [vmem:[%s3 + $0xdc] sm:$0xf]
    %v2663 = vld [vmem:[%s3 + $0xe0] sm:$0xf]
    %v2664 = vld [vmem:[%s3 + $0xe4] sm:$0xf]
    %v2665 = vld [vmem:[%s3 + $0xe8] sm:$0xf]
    %v2666 = vld [vmem:[%s3 + $0xec] sm:$0xf]
    %v2667 = vld [vmem:[%s3 + $0xf0] sm:$0xf]
    %v2668 = vld [vmem:[%s3 + $0xf4] sm:$0xf]
    %v2669 = vld [vmem:[%s3 + $0xf8] sm:$0xf]
    %v2670 = vld [vmem:[%s3 + $0xfc] sm:$0xf]
    %v2671 = vld [vmem:[%s4] sm:$0x1]
    %v2673 = vlaneseq
    %v2674 = vshrl.u32 %v2673, 7
    %v2675 = vsub.s32 0, %v2674
    %v2676 = vrot.slane %v2671, %v2675
    %v2742 = vunpack.c.l.b16 %v2607
    %v2743 = vunpack.c.l.b16 %v2608
    %v2744 = vunpack.c.l.b16 %v2609
    %v2745 = vunpack.c.l.b16 %v2610
    %v2746 = vunpack.c.l.b16 %v2611
    %v2747 = vunpack.c.l.b16 %v2612
    %v2748 = vunpack.c.l.b16 %v2613
    %v2749 = vunpack.c.l.b16 %v2614
    %v2750 = vunpack.c.l.b16 %v2615
    %v2751 = vunpack.c.l.b16 %v2616
    %v2752 = vunpack.c.l.b16 %v2617
    %v2753 = vunpack.c.l.b16 %v2618
    %v2754 = vunpack.c.l.b16 %v2619
    %v2755 = vunpack.c.l.b16 %v2620
    %v2756 = vunpack.c.l.b16 %v2621
    %v2757 = vunpack.c.l.b16 %v2622
    %v2758 = vunpack.c.l.b16 %v2623
    %v2759 = vunpack.c.l.b16 %v2624
    %v2760 = vunpack.c.l.b16 %v2625
    %v2761 = vunpack.c.l.b16 %v2626
    %v2762 = vunpack.c.l.b16 %v2627
    %v2763 = vunpack.c.l.b16 %v2628
    %v2764 = vunpack.c.l.b16 %v2629
    %v2765 = vunpack.c.l.b16 %v2630
    %v2766 = vunpack.c.l.b16 %v2631
    %v2767 = vunpack.c.l.b16 %v2632
    %v2768 = vunpack.c.l.b16 %v2633
    %v2769 = vunpack.c.l.b16 %v2634
    %v2770 = vunpack.c.l.b16 %v2635
    %v2771 = vunpack.c.l.b16 %v2636
    %v2772 = vunpack.c.l.b16 %v2637
    %v2773 = vunpack.c.l.b16 %v2638
    %v2774 = vunpack.c.l.b16 %v2639
    %v2775 = vunpack.c.l.b16 %v2640
    %v2776 = vunpack.c.l.b16 %v2641
    %v2777 = vunpack.c.l.b16 %v2642
    %v2778 = vunpack.c.l.b16 %v2643
    %v2779 = vunpack.c.l.b16 %v2644
    %v2780 = vunpack.c.l.b16 %v2645
    %v2781 = vunpack.c.l.b16 %v2646
    %v2782 = vunpack.c.l.b16 %v2647
    %v2783 = vunpack.c.l.b16 %v2648
    %v2784 = vunpack.c.l.b16 %v2649
    %v2785 = vunpack.c.l.b16 %v2650
    %v2786 = vunpack.c.l.b16 %v2651
    %v2787 = vunpack.c.l.b16 %v2652
    %v2788 = vunpack.c.l.b16 %v2653
    %v2789 = vunpack.c.l.b16 %v2654
    %v2790 = vunpack.c.l.b16 %v2655
    %v2791 = vunpack.c.l.b16 %v2656
    %v2792 = vunpack.c.l.b16 %v2657
    %v2793 = vunpack.c.l.b16 %v2658
    %v2794 = vunpack.c.l.b16 %v2659
    %v2795 = vunpack.c.l.b16 %v2660
    %v2796 = vunpack.c.l.b16 %v2661
    %v2797 = vunpack.c.l.b16 %v2662
    %v2798 = vunpack.c.l.b16 %v2663
    %v2799 = vunpack.c.l.b16 %v2664
    %v2800 = vunpack.c.l.b16 %v2665
    %v2801 = vunpack.c.l.b16 %v2666
    %v2802 = vunpack.c.l.b16 %v2667
    %v2803 = vunpack.c.l.b16 %v2668
    %v2804 = vunpack.c.l.b16 %v2669
    %v2805 = vunpack.c.l.b16 %v2670
    %v2806 = vpack.c.b16 %v2743, %v2742
    %v2807 = vpack.c.b16 %v2745, %v2744
    %v2808 = vpack.c.b16 %v2747, %v2746
    %v2809 = vpack.c.b16 %v2749, %v2748
    %v2810 = vpack.c.b16 %v2751, %v2750
    %v2811 = vpack.c.b16 %v2753, %v2752
    %v2812 = vpack.c.b16 %v2755, %v2754
    %v2813 = vpack.c.b16 %v2757, %v2756
    %v2814 = vpack.c.b16 %v2759, %v2758
    %v2815 = vpack.c.b16 %v2761, %v2760
    %v2816 = vpack.c.b16 %v2763, %v2762
    %v2817 = vpack.c.b16 %v2765, %v2764
    %v2818 = vpack.c.b16 %v2767, %v2766
    %v2819 = vpack.c.b16 %v2769, %v2768
    %v2820 = vpack.c.b16 %v2771, %v2770
    %v2821 = vpack.c.b16 %v2773, %v2772
    %v2822 = vpack.c.b16 %v2775, %v2774
    %v2823 = vpack.c.b16 %v2777, %v2776
    %v2824 = vpack.c.b16 %v2779, %v2778
    %v2825 = vpack.c.b16 %v2781, %v2780
    %v2826 = vpack.c.b16 %v2783, %v2782
    %v2827 = vpack.c.b16 %v2785, %v2784
    %v2828 = vpack.c.b16 %v2787, %v2786
    %v2829 = vpack.c.b16 %v2789, %v2788
    %v2830 = vpack.c.b16 %v2791, %v2790
    %v2831 = vpack.c.b16 %v2793, %v2792
    %v2832 = vpack.c.b16 %v2795, %v2794
    %v2833 = vpack.c.b16 %v2797, %v2796
    %v2834 = vpack.c.b16 %v2799, %v2798
    %v2835 = vpack.c.b16 %v2801, %v2800
    %v2836 = vpack.c.b16 %v2803, %v2802
    %v2837 = vpack.c.b16 %v2805, %v2804
    %2870 = vmatprep.subr.bf16.mxu0 0
    %2871 = vmatpush1.bf16.msra.mxu0 %v2813
    %2872 = vmatprep.subr.bf16.mxu0 0
    %2873 = vmatpush1.bf16.msra.mxu0 %v2812
    %2874 = vmatprep.subr.bf16.mxu0 0
    %2875 = vmatpush1.bf16.msra.mxu0 %v2811
    %2876 = vmatprep.subr.bf16.mxu0 0
    %2877 = vmatpush1.bf16.msra.mxu0 %v2810
    %2878 = vmatprep.subr.bf16.mxu0 0
    %2879 = vmatpush1.bf16.msra.mxu0 %v2809
    %2880 = vmatprep.subr.bf16.mxu0 0
    %2881 = vmatpush1.bf16.msra.mxu0 %v2808
    %2882 = vmatprep.subr.bf16.mxu0 0
    %2883 = vmatpush1.bf16.msra.mxu0 %v2807
    %2884 = vmatprep.subr.bf16.mxu0 0
    %2885 = vmatpush1.bf16.msra.mxu0 %v2806
    %2886 = vmatprep.subr.bf16.mxu0 0
    %2887 = vmatpush2.bf16.msra.mxu0 %v2821
    %2888 = vmatprep.subr.bf16.mxu0 0
    %2889 = vmatpush2.bf16.msra.mxu0 %v2820
    %2890 = vmatprep.subr.bf16.mxu0 0
    %2891 = vmatpush2.bf16.msra.mxu0 %v2819
    %2892 = vmatprep.subr.bf16.mxu0 0
    %2893 = vmatpush2.bf16.msra.mxu0 %v2818
    %2894 = vmatprep.subr.bf16.mxu0 0
    %2895 = vmatpush2.bf16.msra.mxu0 %v2817
    %2896 = vmatprep.subr.bf16.mxu0 0
    %2897 = vmatpush2.bf16.msra.mxu0 %v2816
    %2898 = vmatprep.subr.bf16.mxu0 0
    %2899 = vmatpush2.bf16.msra.mxu0 %v2815
    %2900 = vmatprep.subr.bf16.mxu0 0
    %2901 = vmatpush2.bf16.msra.mxu0 %v2814
    %2902 = vmatprep.mubr.bf16.mxu0 %v2604
    %2903 = vmatmul.mubr.bf16.gmra.mxu0 %v2603
    %v2904 = vpop.f32.mrf.mxu0
    %v2905 = vadd.f32 %v2676, %v2904
    %v2906 = vpop.f32.mrf.mxu0
    %v2907 = vpop.f32.mrf.mxu0
    %v2908 = vpop.f32.mrf.mxu0
    %2909 = vdwg.mxu0
    %2910 = vmatprep.subr.bf16.mxu0 0
    %2911 = vmatpush1.bf16.msra.mxu0 %v2829
    %2912 = vmatprep.subr.bf16.mxu0 0
    %2913 = vmatpush1.bf16.msra.mxu0 %v2828
    %2914 = vmatprep.subr.bf16.mxu0 0
    %2915 = vmatpush1.bf16.msra.mxu0 %v2827
    %2916 = vmatprep.subr.bf16.mxu0 0
    %2917 = vmatpush1.bf16.msra.mxu0 %v2826
    %2918 = vmatprep.subr.bf16.mxu0 0
    %2919 = vmatpush1.bf16.msra.mxu0 %v2825
    %2920 = vmatprep.subr.bf16.mxu0 0
    %2921 = vmatpush1.bf16.msra.mxu0 %v2824
    %2922 = vmatprep.subr.bf16.mxu0 0
    %2923 = vmatpush1.bf16.msra.mxu0 %v2823
    %2924 = vmatprep.subr.bf16.mxu0 0
    %2925 = vmatpush1.bf16.msra.mxu0 %v2822
    %2926 = vmatprep.subr.bf16.mxu0 0
    %2927 = vmatpush2.bf16.msra.mxu0 %v2837
    %2928 = vmatprep.subr.bf16.mxu0 0
    %2929 = vmatpush2.bf16.msra.mxu0 %v2836
    %2930 = vmatprep.subr.bf16.mxu0 0
    %2931 = vmatpush2.bf16.msra.mxu0 %v2835
    %2932 = vmatprep.subr.bf16.mxu0 0
    %2933 = vmatpush2.bf16.msra.mxu0 %v2834
    %2934 = vmatprep.subr.bf16.mxu0 0
    %2935 = vmatpush2.bf16.msra.mxu0 %v2833
    %2936 = vmatprep.subr.bf16.mxu0 0
    %2937 = vmatpush2.bf16.msra.mxu0 %v2832
    %2938 = vmatprep.subr.bf16.mxu0 0
    %2939 = vmatpush2.bf16.msra.mxu0 %v2831
    %2940 = vmatprep.subr.bf16.mxu0 0
    %2941 = vmatpush2.bf16.msra.mxu0 %v2830
    %2942 = vmatprep.mubr.bf16.mxu0 %v2606
    %2943 = vmatmul.mubr.bf16.gmra.mxu0 %v2605
    %v2944 = vpop.f32.mrf.mxu0
    %v2945 = vadd.f32 %v2905, %v2944
    %v2946 = vpop.f32.mrf.mxu0
    %v2947 = vpop.f32.mrf.mxu0
    %v2948 = vpop.f32.mrf.mxu0
    %2949 = vdwg.mxu0
    %v2950 = vpack.c.bf16 %v2945, %v2945
    %v2951 = vld [vmem:[%s5] sm:$0xf]
    %v2952 = vld [vmem:[%s5 + $0x4] sm:$0xf]
    %v2953 = vld [vmem:[%s5 + $0x8] sm:$0xf]
    %v2954 = vld [vmem:[%s5 + $0xc] sm:$0xf]
    %v2955 = vld [vmem:[%s5 + $0x10] sm:$0xf]
    %v2956 = vld [vmem:[%s5 + $0x14] sm:$0xf]
    %v2957 = vld [vmem:[%s5 + $0x18] sm:$0xf]
    %v2958 = vld [vmem:[%s5 + $0x1c] sm:$0xf]
    %v2959 = vld [vmem:[%s5 + $0x20] sm:$0xf]
    %v2960 = vld [vmem:[%s5 + $0x24] sm:$0xf]
    %v2961 = vld [vmem:[%s5 + $0x28] sm:$0xf]
    %v2962 = vld [vmem:[%s5 + $0x2c] sm:$0xf]
    %v2963 = vld [vmem:[%s5 + $0x30] sm:$0xf]
    %v2964 = vld [vmem:[%s5 + $0x34] sm:$0xf]
    %v2965 = vld [vmem:[%s5 + $0x38] sm:$0xf]
    %v2966 = vld [vmem:[%s5 + $0x3c] sm:$0xf]
    %v2967 = vld [vmem:[%s6] sm:$0x1]
    %v2969 = vlaneseq
    %v2970 = vshrl.u32 %v2969, 7
    %v2971 = vsub.s32 0, %v2970
    %v2972 = vrot.slane %v2967, %v2971
    %v2990 = vunpack.c.l.b16 %v2951
    %v2991 = vunpack.c.l.b16 %v2952
    %v2992 = vunpack.c.l.b16 %v2953
    %v2993 = vunpack.c.l.b16 %v2954
    %v2994 = vunpack.c.l.b16 %v2955
    %v2995 = vunpack.c.l.b16 %v2956
    %v2996 = vunpack.c.l.b16 %v2957
    %v2997 = vunpack.c.l.b16 %v2958
    %v2998 = vunpack.c.l.b16 %v2959
    %v2999 = vunpack.c.l.b16 %v2960
    %v3000 = vunpack.c.l.b16 %v2961
    %v3001 = vunpack.c.l.b16 %v2962
    %v3002 = vunpack.c.l.b16 %v2963
    %v3003 = vunpack.c.l.b16 %v2964
    %v3004 = vunpack.c.l.b16 %v2965
    %v3005 = vunpack.c.l.b16 %v2966
    %v3006 = vpack.c.b16 %v2991, %v2990
    %v3007 = vpack.c.b16 %v2993, %v2992
    %v3008 = vpack.c.b16 %v2995, %v2994
    %v3009 = vpack.c.b16 %v2997, %v2996
    %v3010 = vpack.c.b16 %v2999, %v2998
    %v3011 = vpack.c.b16 %v3001, %v3000
    %v3012 = vpack.c.b16 %v3003, %v3002
    %v3013 = vpack.c.b16 %v3005, %v3004
    %3022 = vmatprep.subr.bf16.mxu0 0
    %3023 = vmatpush1.bf16.msra.mxu0 %v3013
    %3024 = vmatprep.subr.bf16.mxu0 0
    %3025 = vmatpush1.bf16.msra.mxu0 %v3012
    %3026 = vmatprep.subr.bf16.mxu0 0
    %3027 = vmatpush1.bf16.msra.mxu0 %v3011
    %3028 = vmatprep.subr.bf16.mxu0 0
    %3029 = vmatpush1.bf16.msra.mxu0 %v3010
    %3030 = vmatprep.subr.bf16.mxu0 0
    %3031 = vmatpush1.bf16.msra.mxu0 %v3009
    %3032 = vmatprep.subr.bf16.mxu0 0
    %3033 = vmatpush1.bf16.msra.mxu0 %v3008
    %3034 = vmatprep.subr.bf16.mxu0 0
    %3035 = vmatpush1.bf16.msra.mxu0 %v3007
    %3036 = vmatprep.subr.bf16.mxu0 0
    %3037 = vmatpush1.bf16.msra.mxu0 %v3006
    %3038 = vmatprep.subr.bf16.mxu0 0
    %3039 = vmatpush2.bf16.msra.mxu0 0
    %3040 = vmatprep.subr.bf16.mxu0 0
    %3041 = vmatpush2.bf16.msra.mxu0 0
    %3042 = vmatprep.subr.bf16.mxu0 0
    %3043 = vmatpush2.bf16.msra.mxu0 0
    %3044 = vmatprep.subr.bf16.mxu0 0
    %3045 = vmatpush2.bf16.msra.mxu0 0
    %3046 = vmatprep.subr.bf16.mxu0 0
    %3047 = vmatpush2.bf16.msra.mxu0 0
    %3048 = vmatprep.subr.bf16.mxu0 0
    %3049 = vmatpush2.bf16.msra.mxu0 0
    %3050 = vmatprep.subr.bf16.mxu0 0
    %3051 = vmatpush2.bf16.msra.mxu0 0
    %3052 = vmatprep.subr.bf16.mxu0 0
    %3053 = vmatpush2.bf16.msra.mxu0 0
    %3054 = vmatprep.mubr.bf16.mxu0 0
    %3055 = vmatmul.mubr.bf16.gmra.mxu0 %v2950
    %v3056 = vpop.f32.mrf.mxu0
    %v3057 = vadd.f32 %v2972, %v3056
    %v3058 = vpop.f32.mrf.mxu0
    %v3059 = vpop.f32.mrf.mxu0
    %v3060 = vpop.f32.mrf.mxu0
    %3061 = vdwg.mxu0
    %v3062 = vpack.c.bf16 %v3057, %v3057
    %v3063 = vld [vmem:[%s7] sm:$0xf]
    %v3064 = vld [vmem:[%s7 + $0x4] sm:$0xf]
    %v3065 = vld [vmem:[%s7 + $0x8] sm:$0xf]
    %v3066 = vld [vmem:[%s7 + $0xc] sm:$0xf]
    %v3067 = vld [vmem:[%s7 + $0x10] sm:$0xf]
    %v3068 = vld [vmem:[%s7 + $0x14] sm:$0xf]
    %v3069 = vld [vmem:[%s7 + $0x18] sm:$0xf]
    %v3070 = vld [vmem:[%s7 + $0x1c] sm:$0xf]
    %v3071 = vld [vmem:[%s8] sm:$0x1]
    %v3073 = vlaneseq
    %v3074 = vshrl.u32 %v3073, 7
    %v3075 = vsub.s32 0, %v3074
    %v3076 = vrot.slane %v3071, %v3075
    %v3086 = vunpack.c.l.b16 %v3063
    %v3087 = vunpack.c.l.b16 %v3064
    %v3088 = vunpack.c.l.b16 %v3065
    %v3089 = vunpack.c.l.b16 %v3066
    %v3090 = vunpack.c.l.b16 %v3067
    %v3091 = vunpack.c.l.b16 %v3068
    %v3092 = vunpack.c.l.b16 %v3069
    %v3093 = vunpack.c.l.b16 %v3070
    %v3094 = vpack.c.b16 %v3087, %v3086
    %v3095 = vpack.c.b16 %v3089, %v3088
    %v3096 = vpack.c.b16 %v3091, %v3090
    %v3097 = vpack.c.b16 %v3093, %v3092
    %vm3102 = vcmask 523264
    %v3104 = vsel %vm3102, %v3062, 0
    %3106 = vmatprep.subr.bf16.mxu0 0
    %3107 = vmatpush1.bf16.msra.mxu0 0
    %3108 = vmatprep.subr.bf16.mxu0 0
    %3109 = vmatpush1.bf16.msra.mxu0 0
    %3110 = vmatprep.subr.bf16.mxu0 0
    %3111 = vmatpush1.bf16.msra.mxu0 0
    %3112 = vmatprep.subr.bf16.mxu0 0
    %3113 = vmatpush1.bf16.msra.mxu0 0
    %3114 = vmatprep.subr.bf16.mxu0 0
    %3115 = vmatpush1.bf16.msra.mxu0 %v3097
    %3116 = vmatprep.subr.bf16.mxu0 0
    %3117 = vmatpush1.bf16.msra.mxu0 %v3096
    %3118 = vmatprep.subr.bf16.mxu0 0
    %3119 = vmatpush1.bf16.msra.mxu0 %v3095
    %3120 = vmatprep.subr.bf16.mxu0 0
    %3121 = vmatpush1.bf16.msra.mxu0 %v3094
    %3122 = vmatprep.subr.bf16.mxu0 0
    %3123 = vmatpush2.bf16.msra.mxu0 0
    %3124 = vmatprep.subr.bf16.mxu0 0
    %3125 = vmatpush2.bf16.msra.mxu0 0
    %3126 = vmatprep.subr.bf16.mxu0 0
    %3127 = vmatpush2.bf16.msra.mxu0 0
    %3128 = vmatprep.subr.bf16.mxu0 0
    %3129 = vmatpush2.bf16.msra.mxu0 0
    %3130 = vmatprep.subr.bf16.mxu0 0
    %3131 = vmatpush2.bf16.msra.mxu0 0
    %3132 = vmatprep.subr.bf16.mxu0 0
    %3133 = vmatpush2.bf16.msra.mxu0 0
    %3134 = vmatprep.subr.bf16.mxu0 0
    %3135 = vmatpush2.bf16.msra.mxu0 0
    %3136 = vmatprep.subr.bf16.mxu0 0
    %3137 = vmatpush2.bf16.msra.mxu0 0
    %3138 = vmatprep.mubr.bf16.mxu0 0
    %3139 = vmatmul.mubr.bf16.gmra.mxu0 %v3104
    %v3140 = vpop.f32.mrf.mxu0
    %v3141 = vadd.f32 %v3076, %v3140
    %v3142 = vpop.f32.mrf.mxu0
    %v3143 = vpop.f32.mrf.mxu0
    %v3144 = vpop.f32.mrf.mxu0
    %3145 = vdwg.mxu0
    %vm3146 = vcmask 25600
    %3147 = vst.msk [vmem:[#allocation2] sm:$0x3] %vm3146, %v3141
    // Predicated region
    $region38: #{mynet_forward.3} parent=1 // pred_check
      _
    $region39: #{mynet_forward.3} parent=1 // pred_check_branch
      %3149 = sbr.rel (0) target = $region41
    $region40: #{mynet_forward.3} parent=1 // pred_region
      %s3151 = ssub.s32 32, 32
      %3152 = vsyncadd [#allocation3], %s3151
      %s3154 = sshll.u32 [#allocation2], 4
      %s3155 = int_to_ptr.vmem [resolvable:$true] %s3154
      %3157 = dma.vmem_to_hbm [thread:$0]  %s3155, 32, %s9, [#allocation3]
    $region41: #{mynet_forward.3} parent=1 // pred_fallthru
      _
    // Predicated region
    $region42: #{mynet_forward.3} parent=1 // pred_check
      _
    $region43: #{mynet_forward.3} parent=1 // pred_check_branch
      %3159 = sbr.rel (0) target = $region45
    $region44: #{mynet_forward.3} parent=1 // pred_region
      %3160 = dma.done [#allocation3], 32
    $region45: #{mynet_forward.3} parent=1 // pred_fallthru
      _
    %3161 = vsyncpa [#allocation3], 1

</llo_original>
